<compile_context>
chip_gen: v6e
topology: v6e:2x2x1
jax: 0.10.0
libtpu: 0.0.40
codegen_flags: <defaults>
</compile_context>

<pallas_src>
import jax
import jax.numpy as jnp
from jax.experimental import pallas as pl
from jax.experimental.pallas import tpu as pltpu


def _decoder2vector_kernel(s2d_ref, w2_ref, bconv_ref, wfc_ref, bfc_ref, out_ref):
    b = pl.program_id(0)   # batch index
    pr = pl.program_id(1)  # pool-row index (0..3)

    # ---- stride-2 3x3 conv as 4 space-to-depth taps, + bias + SiLU, then sum the
    # ---- 16 conv rows belonging to pool row `pr`  ->  colsum: (112 conv cols, 8 ch)
    colsum = jnp.zeros((112, 8), jnp.float32)
    for rc in range(2):                                   # 2 chunks of 8 conv rows
        r0 = rc * 8
        acc = jnp.zeros((8 * 112, 8), jnp.float32)
        for dh in range(2):
            for dw in range(2):
                # (8, 112, 256) slab of the space-to-depth input for this tap
                patch = s2d_ref[0, r0 + dh:r0 + dh + 8, dw:dw + 112, :]
                acc = acc + jnp.dot(
                    patch.reshape(8 * 112, 256),
                    w2_ref[2 * dh + dw],
                    preferred_element_type=jnp.float32,
                )
        conv = acc + bconv_ref[...]                       # + conv bias (broadcast (1,8))
        act = conv * jax.lax.logistic(conv)               # SiLU
        colsum = colsum + jnp.sum(act.reshape(8, 112, 8), axis=0)

    # ---- AvgPool2d(16, stride 32) column windows fused with the fc matmul.
    # part16[r, o] accumulates sum_pc colsum[window_pc] @ Wfc[pr, pc]; reduce rows after.
    part16 = jnp.zeros((16, 128), jnp.float32)
    for pc in range(4):
        part16 = part16 + jnp.dot(
            colsum[32 * pc:32 * pc + 16, :],
            wfc_ref[0, pc],
            preferred_element_type=jnp.float32,
        )
    part = jnp.sum(part16, axis=0, keepdims=True) * (1.0 / 256.0)   # (1, 128)

    @pl.when(pr == 0)
    def _():
        out_ref[pl.ds(b, 1), :] = bfc_ref[...]            # init with fc bias

    out_ref[pl.ds(b, 1), :] = out_ref[pl.ds(b, 1), :] + part


def decoder2vector_forward(x, w_conv, b_conv, w_fc, b_fc):
    """Pallas TPU implementation of Decoder2Vector.forward.

    x: (B, 64, 224, 224) NCHW.  w_conv: (8, 64, 3, 3), b_conv: (8,),
    w_fc: (num_out, 128), b_fc: (num_out,).  Returns (B, num_out).
    """
    x = x.astype(jnp.float32)
    B, C, H, W = x.shape
    num_out = w_fc.shape[0]
    assert C == 64 and (H, W) == (224, 224) and w_fc.shape[1] == 128

    # Zero-pad (conv padding=1) and space-to-depth (2x2 -> channels), channels-last.
    xp = jnp.pad(x, ((0, 0), (0, 0), (1, 1), (1, 1)))                    # (B, 64, 226, 226)
    s2d = xp.reshape(B, C, 113, 2, 113, 2)
    s2d = s2d.transpose(0, 2, 4, 1, 3, 5).reshape(B, 113, 113, 4 * C)    # (B, 113, 113, 256)

    # Conv weight (8, 64, 3, 3) -> 4 taps of (256, 8); kernel padded to 4x4 with zeros.
    wp = jnp.pad(w_conv.astype(jnp.float32), ((0, 0), (0, 0), (0, 1), (0, 1)))   # (8,64,4,4)
    w2 = wp.reshape(8, C, 2, 2, 2, 2).transpose(2, 4, 1, 3, 5, 0).reshape(4, 4 * C, 8)

    bconv = b_conv.astype(jnp.float32).reshape(1, 8)

    # fc weight: feature order of x.view(B,-1) on (B, 8, 4, 4) is c*16 + pr*4 + pc.
    wfc = w_fc.astype(jnp.float32).reshape(num_out, 8, 4, 4).transpose(2, 3, 1, 0)  # (4,4,8,no)
    wfc = jnp.pad(wfc, ((0, 0), (0, 0), (0, 0), (0, 128 - num_out)))                # (4,4,8,128)
    bfc = jnp.pad(b_fc.astype(jnp.float32), (0, 128 - num_out)).reshape(1, 128)

    out = pl.pallas_call(
        _decoder2vector_kernel,
        out_shape=jax.ShapeDtypeStruct((B, 128), jnp.float32),
        grid_spec=pltpu.PrefetchScalarGridSpec(
            num_scalar_prefetch=0,
            grid=(B, 4),
            in_specs=[
                # 32 s2d rows cover the 17 rows needed by this pool row (offset 32*pr).
                pl.BlockSpec((1, 32, 113, 256), lambda b, pr: (b, pr, 0, 0)),
                pl.BlockSpec((4, 256, 8), lambda b, pr: (0, 0, 0)),
                pl.BlockSpec((1, 8), lambda b, pr: (0, 0)),
                pl.BlockSpec((1, 4, 8, 128), lambda b, pr: (pr, 0, 0, 0)),
                pl.BlockSpec((1, 128), lambda b, pr: (0, 0)),
            ],
            out_specs=pl.BlockSpec((B, 128), lambda b, pr: (0, 0)),
        ),
        compiler_params=pltpu.CompilerParams(
            dimension_semantics=("arbitrary", "arbitrary"),
            vmem_limit_bytes=32 * 1024 * 1024,
        ),
    )(s2d, w2, bconv, wfc, bfc)

    return out[:, :num_out]


def _reference(x, w_conv, b_conv, w_fc, b_fc):
    """Pure-JAX reference of Decoder2Vector.forward."""
    y = jax.lax.conv_general_dilated(
        x, w_conv, window_strides=(2, 2), padding=((1, 1), (1, 1)),
        dimension_numbers=("NCHW", "OIHW", "NCHW"))
    y = y + b_conv.reshape(1, -1, 1, 1)
    y = y * jax.lax.logistic(y)                                   # SiLU
    y = jax.lax.reduce_window(y, 0.0, jax.lax.add,
                              (1, 1, 16, 16), (1, 1, 32, 32), "VALID") / 256.0
    feats = y.reshape(x.shape[0], -1)                             # (B, 128), c*16+pr*4+pc order
    return feats @ w_fc.T + b_fc


if __name__ == "__main__":
    key = jax.random.PRNGKey(0)
    kx, kw, kb, kf, kfb = jax.random.split(key, 5)

    B, C, H, W = 2, 64, 224, 224     # spatial size implied by AvgPool2d(16,32) + Linear(128)
    num_out = 2
    x = jax.random.normal(kx, (B, C, H, W), dtype=jnp.float32)
    w_conv = 0.05 * jax.random.normal(kw, (8, C, 3, 3), dtype=jnp.float32)
    b_conv = 0.05 * jax.random.normal(kb, (8,), dtype=jnp.float32)
    w_fc = 0.05 * jax.random.normal(kf, (num_out, 128), dtype=jnp.float32)
    b_fc = 0.05 * jax.random.normal(kfb, (num_out,), dtype=jnp.float32)

    out = decoder2vector_forward(x, w_conv, b_conv, w_fc, b_fc)
    out = jax.block_until_ready(out)

    ref = _reference(x, w_conv, b_conv, w_fc, b_fc)
    assert out.shape == (B, num_out)
    assert jnp.allclose(out, ref, rtol=1e-2, atol=1e-2), (out, ref)

    print("KERNEL_OK")
</pallas_src>

<mosaic_0001>
module attributes {stable_mosaic.version = 11 : i64} {
  func.func @_decoder2vector_kernel(%arg0: i32, %arg1: i32, %arg2: memref<1x32x113x256xf32, #tpu.memory_space<vmem>>, %arg3: memref<4x256x8xf32, #tpu.memory_space<vmem>>, %arg4: memref<1x8xf32, #tpu.memory_space<vmem>>, %arg5: memref<1x4x8x128xf32, #tpu.memory_space<vmem>>, %arg6: memref<1x128xf32, #tpu.memory_space<vmem>>, %arg7: memref<2x128xf32, #tpu.memory_space<vmem>>) attributes {dimension_semantics = [#tpu.dimension_semantics<arbitrary>, #tpu.dimension_semantics<arbitrary>], iteration_bounds = array<i64: 2, 4>, scalar_prefetch = 0 : i64, scratch_operands = 0 : i64, tpu.core_type = #tpu.core_type<tc>, window_params = [{transform_indices = @transform_0, window_bounds = array<i64: 1, 32, 113, 256>}, {pipeline_mode = #tpu.pipeline_mode<synchronous>, transform_indices = @transform_1, window_bounds = array<i64: 4, 256, 8>}, {pipeline_mode = #tpu.pipeline_mode<synchronous>, transform_indices = @transform_2, window_bounds = array<i64: 1, 8>}, {transform_indices = @transform_3, window_bounds = array<i64: 1, 4, 8, 128>}, {pipeline_mode = #tpu.pipeline_mode<synchronous>, transform_indices = @transform_4, window_bounds = array<i64: 1, 128>}, {pipeline_mode = #tpu.pipeline_mode<synchronous>, transform_indices = @transform_5, window_bounds = array<i64: 2, 128>}]} {
    %cst = arith.constant 0.000000e+00 : f32
    %0 = vector.broadcast %cst : f32 to vector<112x8xf32>
    %cst_0 = arith.constant 0.000000e+00 : f32
    %1 = vector.broadcast %cst_0 : f32 to vector<896x8xf32>
    %c0 = arith.constant 0 : index
    %c0_1 = arith.constant 0 : index
    %c0_2 = arith.constant 0 : index
    %c0_3 = arith.constant 0 : index
    %2 = vector.load %arg2[%c0, %c0_1, %c0_2, %c0_3] : memref<1x32x113x256xf32, #tpu.memory_space<vmem>>, vector<1x8x112x256xf32>
    %3 = vector.shape_cast %2 : vector<1x8x112x256xf32> to vector<8x112x256xf32>
    %4 = vector.shape_cast %3 : vector<8x112x256xf32> to vector<896x256xf32>
    %c0_4 = arith.constant 0 : index
    %c0_5 = arith.constant 0 : index
    %c0_6 = arith.constant 0 : index
    %5 = vector.load %arg3[%c0_4, %c0_5, %c0_6] : memref<4x256x8xf32, #tpu.memory_space<vmem>>, vector<1x256x8xf32>
    %6 = vector.shape_cast %5 : vector<1x256x8xf32> to vector<256x8xf32>
    %cst_7 = arith.constant dense<0.000000e+00> : vector<896x8xf32>
    %7 = tpu.matmul %4, %6, %cst_7 {dimension_numbers = #tpu.dot_dimension_numbers<[1], [0], [0], [1], [0, 0, 1, 1], [], []>} : vector<896x256xf32>, vector<256x8xf32>, vector<896x8xf32> -> vector<896x8xf32>
    %8 = arith.addf %1, %7 : vector<896x8xf32>
    %c0_8 = arith.constant 0 : index
    %c0_9 = arith.constant 0 : index
    %c1 = arith.constant 1 : index
    %c0_10 = arith.constant 0 : index
    %9 = vector.load %arg2[%c0_8, %c0_9, %c1, %c0_10] : memref<1x32x113x256xf32, #tpu.memory_space<vmem>>, vector<1x8x112x256xf32>
    %10 = vector.shape_cast %9 : vector<1x8x112x256xf32> to vector<8x112x256xf32>
    %11 = vector.shape_cast %10 : vector<8x112x256xf32> to vector<896x256xf32>
    %c1_11 = arith.constant 1 : index
    %c0_12 = arith.constant 0 : index
    %c0_13 = arith.constant 0 : index
    %12 = vector.load %arg3[%c1_11, %c0_12, %c0_13] : memref<4x256x8xf32, #tpu.memory_space<vmem>>, vector<1x256x8xf32>
    %13 = vector.shape_cast %12 : vector<1x256x8xf32> to vector<256x8xf32>
    %cst_14 = arith.constant dense<0.000000e+00> : vector<896x8xf32>
    %14 = tpu.matmul %11, %13, %cst_14 {dimension_numbers = #tpu.dot_dimension_numbers<[1], [0], [0], [1], [0, 0, 1, 1], [], []>} : vector<896x256xf32>, vector<256x8xf32>, vector<896x8xf32> -> vector<896x8xf32>
    %15 = arith.addf %8, %14 : vector<896x8xf32>
    %c0_15 = arith.constant 0 : index
    %c1_16 = arith.constant 1 : index
    %c0_17 = arith.constant 0 : index
    %c0_18 = arith.constant 0 : index
    %16 = vector.load %arg2[%c0_15, %c1_16, %c0_17, %c0_18] : memref<1x32x113x256xf32, #tpu.memory_space<vmem>>, vector<1x8x112x256xf32>
    %17 = vector.shape_cast %16 : vector<1x8x112x256xf32> to vector<8x112x256xf32>
    %18 = vector.shape_cast %17 : vector<8x112x256xf32> to vector<896x256xf32>
    %c2 = arith.constant 2 : index
    %c0_19 = arith.constant 0 : index
    %c0_20 = arith.constant 0 : index
    %19 = vector.load %arg3[%c2, %c0_19, %c0_20] : memref<4x256x8xf32, #tpu.memory_space<vmem>>, vector<1x256x8xf32>
    %20 = vector.shape_cast %19 : vector<1x256x8xf32> to vector<256x8xf32>
    %cst_21 = arith.constant dense<0.000000e+00> : vector<896x8xf32>
    %21 = tpu.matmul %18, %20, %cst_21 {dimension_numbers = #tpu.dot_dimension_numbers<[1], [0], [0], [1], [0, 0, 1, 1], [], []>} : vector<896x256xf32>, vector<256x8xf32>, vector<896x8xf32> -> vector<896x8xf32>
    %22 = arith.addf %15, %21 : vector<896x8xf32>
    %c0_22 = arith.constant 0 : index
    %c1_23 = arith.constant 1 : index
    %c1_24 = arith.constant 1 : index
    %c0_25 = arith.constant 0 : index
    %23 = vector.load %arg2[%c0_22, %c1_23, %c1_24, %c0_25] : memref<1x32x113x256xf32, #tpu.memory_space<vmem>>, vector<1x8x112x256xf32>
    %24 = vector.shape_cast %23 : vector<1x8x112x256xf32> to vector<8x112x256xf32>
    %25 = vector.shape_cast %24 : vector<8x112x256xf32> to vector<896x256xf32>
    %c3 = arith.constant 3 : index
    %c0_26 = arith.constant 0 : index
    %c0_27 = arith.constant 0 : index
    %26 = vector.load %arg3[%c3, %c0_26, %c0_27] : memref<4x256x8xf32, #tpu.memory_space<vmem>>, vector<1x256x8xf32>
    %27 = vector.shape_cast %26 : vector<1x256x8xf32> to vector<256x8xf32>
    %cst_28 = arith.constant dense<0.000000e+00> : vector<896x8xf32>
    %28 = tpu.matmul %25, %27, %cst_28 {dimension_numbers = #tpu.dot_dimension_numbers<[1], [0], [0], [1], [0, 0, 1, 1], [], []>} : vector<896x256xf32>, vector<256x8xf32>, vector<896x8xf32> -> vector<896x8xf32>
    %29 = arith.addf %22, %28 : vector<896x8xf32>
    %c0_29 = arith.constant 0 : index
    %c0_30 = arith.constant 0 : index
    %30 = vector.load %arg4[%c0_29, %c0_30] : memref<1x8xf32, #tpu.memory_space<vmem>>, vector<1x8xf32>
    %31 = vector.broadcast %30 : vector<1x8xf32> to vector<896x8xf32>
    %32 = arith.addf %29, %31 : vector<896x8xf32>
    %33 = arith.negf %32 : vector<896x8xf32>
    %34 = math.exp %33 : vector<896x8xf32>
    %cst_31 = arith.constant 1.000000e+00 : f32
    %35 = vector.broadcast %cst_31 : f32 to vector<896x8xf32>
    %36 = arith.addf %35, %34 : vector<896x8xf32>
    %37 = arith.divf %35, %36 : vector<896x8xf32>
    %38 = arith.mulf %32, %37 : vector<896x8xf32>
    %39 = vector.shape_cast %38 : vector<896x8xf32> to vector<8x112x8xf32>
    %cst_32 = arith.constant dense<0.000000e+00> : vector<112x8xf32>
    %40 = vector.multi_reduction <add>, %39, %cst_32 [0] : vector<8x112x8xf32> to vector<112x8xf32>
    %41 = arith.addf %0, %40 : vector<112x8xf32>
    %cst_33 = arith.constant 0.000000e+00 : f32
    %42 = vector.broadcast %cst_33 : f32 to vector<896x8xf32>
    %c0_34 = arith.constant 0 : index
    %c8 = arith.constant 8 : index
    %c0_35 = arith.constant 0 : index
    %c0_36 = arith.constant 0 : index
    %43 = vector.load %arg2[%c0_34, %c8, %c0_35, %c0_36] : memref<1x32x113x256xf32, #tpu.memory_space<vmem>>, vector<1x8x112x256xf32>
    %44 = vector.shape_cast %43 : vector<1x8x112x256xf32> to vector<8x112x256xf32>
    %45 = vector.shape_cast %44 : vector<8x112x256xf32> to vector<896x256xf32>
    %c0_37 = arith.constant 0 : index
    %c0_38 = arith.constant 0 : index
    %c0_39 = arith.constant 0 : index
    %46 = vector.load %arg3[%c0_37, %c0_38, %c0_39] : memref<4x256x8xf32, #tpu.memory_space<vmem>>, vector<1x256x8xf32>
    %47 = vector.shape_cast %46 : vector<1x256x8xf32> to vector<256x8xf32>
    %cst_40 = arith.constant dense<0.000000e+00> : vector<896x8xf32>
    %48 = tpu.matmul %45, %47, %cst_40 {dimension_numbers = #tpu.dot_dimension_numbers<[1], [0], [0], [1], [0, 0, 1, 1], [], []>} : vector<896x256xf32>, vector<256x8xf32>, vector<896x8xf32> -> vector<896x8xf32>
    %49 = arith.addf %42, %48 : vector<896x8xf32>
    %c0_41 = arith.constant 0 : index
    %c8_42 = arith.constant 8 : index
    %c1_43 = arith.constant 1 : index
    %c0_44 = arith.constant 0 : index
    %50 = vector.load %arg2[%c0_41, %c8_42, %c1_43, %c0_44] : memref<1x32x113x256xf32, #tpu.memory_space<vmem>>, vector<1x8x112x256xf32>
    %51 = vector.shape_cast %50 : vector<1x8x112x256xf32> to vector<8x112x256xf32>
    %52 = vector.shape_cast %51 : vector<8x112x256xf32> to vector<896x256xf32>
    %c1_45 = arith.constant 1 : index
    %c0_46 = arith.constant 0 : index
    %c0_47 = arith.constant 0 : index
    %53 = vector.load %arg3[%c1_45, %c0_46, %c0_47] : memref<4x256x8xf32, #tpu.memory_space<vmem>>, vector<1x256x8xf32>
    %54 = vector.shape_cast %53 : vector<1x256x8xf32> to vector<256x8xf32>
    %cst_48 = arith.constant dense<0.000000e+00> : vector<896x8xf32>
    %55 = tpu.matmul %52, %54, %cst_48 {dimension_numbers = #tpu.dot_dimension_numbers<[1], [0], [0], [1], [0, 0, 1, 1], [], []>} : vector<896x256xf32>, vector<256x8xf32>, vector<896x8xf32> -> vector<896x8xf32>
    %56 = arith.addf %49, %55 : vector<896x8xf32>
    %c0_49 = arith.constant 0 : index
    %c9 = arith.constant 9 : index
    %c0_50 = arith.constant 0 : index
    %c0_51 = arith.constant 0 : index
    %57 = vector.load %arg2[%c0_49, %c9, %c0_50, %c0_51] : memref<1x32x113x256xf32, #tpu.memory_space<vmem>>, vector<1x8x112x256xf32>
    %58 = vector.shape_cast %57 : vector<1x8x112x256xf32> to vector<8x112x256xf32>
    %59 = vector.shape_cast %58 : vector<8x112x256xf32> to vector<896x256xf32>
    %c2_52 = arith.constant 2 : index
    %c0_53 = arith.constant 0 : index
    %c0_54 = arith.constant 0 : index
    %60 = vector.load %arg3[%c2_52, %c0_53, %c0_54] : memref<4x256x8xf32, #tpu.memory_space<vmem>>, vector<1x256x8xf32>
    %61 = vector.shape_cast %60 : vector<1x256x8xf32> to vector<256x8xf32>
    %cst_55 = arith.constant dense<0.000000e+00> : vector<896x8xf32>
    %62 = tpu.matmul %59, %61, %cst_55 {dimension_numbers = #tpu.dot_dimension_numbers<[1], [0], [0], [1], [0, 0, 1, 1], [], []>} : vector<896x256xf32>, vector<256x8xf32>, vector<896x8xf32> -> vector<896x8xf32>
    %63 = arith.addf %56, %62 : vector<896x8xf32>
    %c0_56 = arith.constant 0 : index
    %c9_57 = arith.constant 9 : index
    %c1_58 = arith.constant 1 : index
    %c0_59 = arith.constant 0 : index
    %64 = vector.load %arg2[%c0_56, %c9_57, %c1_58, %c0_59] : memref<1x32x113x256xf32, #tpu.memory_space<vmem>>, vector<1x8x112x256xf32>
    %65 = vector.shape_cast %64 : vector<1x8x112x256xf32> to vector<8x112x256xf32>
    %66 = vector.shape_cast %65 : vector<8x112x256xf32> to vector<896x256xf32>
    %c3_60 = arith.constant 3 : index
    %c0_61 = arith.constant 0 : index
    %c0_62 = arith.constant 0 : index
    %67 = vector.load %arg3[%c3_60, %c0_61, %c0_62] : memref<4x256x8xf32, #tpu.memory_space<vmem>>, vector<1x256x8xf32>
    %68 = vector.shape_cast %67 : vector<1x256x8xf32> to vector<256x8xf32>
    %cst_63 = arith.constant dense<0.000000e+00> : vector<896x8xf32>
    %69 = tpu.matmul %66, %68, %cst_63 {dimension_numbers = #tpu.dot_dimension_numbers<[1], [0], [0], [1], [0, 0, 1, 1], [], []>} : vector<896x256xf32>, vector<256x8xf32>, vector<896x8xf32> -> vector<896x8xf32>
    %70 = arith.addf %63, %69 : vector<896x8xf32>
    %c0_64 = arith.constant 0 : index
    %c0_65 = arith.constant 0 : index
    %71 = vector.load %arg4[%c0_64, %c0_65] : memref<1x8xf32, #tpu.memory_space<vmem>>, vector<1x8xf32>
    %72 = vector.broadcast %71 : vector<1x8xf32> to vector<896x8xf32>
    %73 = arith.addf %70, %72 : vector<896x8xf32>
    %74 = arith.negf %73 : vector<896x8xf32>
    %75 = math.exp %74 : vector<896x8xf32>
    %cst_66 = arith.constant 1.000000e+00 : f32
    %76 = vector.broadcast %cst_66 : f32 to vector<896x8xf32>
    %77 = arith.addf %76, %75 : vector<896x8xf32>
    %78 = arith.divf %76, %77 : vector<896x8xf32>
    %79 = arith.mulf %73, %78 : vector<896x8xf32>
    %80 = vector.shape_cast %79 : vector<896x8xf32> to vector<8x112x8xf32>
    %cst_67 = arith.constant dense<0.000000e+00> : vector<112x8xf32>
    %81 = vector.multi_reduction <add>, %80, %cst_67 [0] : vector<8x112x8xf32> to vector<112x8xf32>
    %82 = arith.addf %41, %81 : vector<112x8xf32>
    %cst_68 = arith.constant 0.000000e+00 : f32
    %83 = vector.broadcast %cst_68 : f32 to vector<16x128xf32>
    %84 = vector.extract_strided_slice %82 {offsets = [0, 0], sizes = [16, 8], strides = [1, 1]} : vector<112x8xf32> to vector<16x8xf32>
    %c0_69 = arith.constant 0 : index
    %c0_70 = arith.constant 0 : index
    %c0_71 = arith.constant 0 : index
    %c0_72 = arith.constant 0 : index
    %85 = vector.load %arg5[%c0_69, %c0_70, %c0_71, %c0_72] : memref<1x4x8x128xf32, #tpu.memory_space<vmem>>, vector<1x1x8x128xf32>
    %86 = vector.shape_cast %85 : vector<1x1x8x128xf32> to vector<8x128xf32>
    %cst_73 = arith.constant dense<0.000000e+00> : vector<16x128xf32>
    %87 = tpu.matmul %84, %86, %cst_73 {dimension_numbers = #tpu.dot_dimension_numbers<[1], [0], [0], [1], [0, 0, 1, 1], [], []>} : vector<16x8xf32>, vector<8x128xf32>, vector<16x128xf32> -> vector<16x128xf32>
    %88 = arith.addf %83, %87 : vector<16x128xf32>
    %89 = vector.extract_strided_slice %82 {offsets = [32, 0], sizes = [16, 8], strides = [1, 1]} : vector<112x8xf32> to vector<16x8xf32>
    %c0_74 = arith.constant 0 : index
    %c1_75 = arith.constant 1 : index
    %c0_76 = arith.constant 0 : index
    %c0_77 = arith.constant 0 : index
    %90 = vector.load %arg5[%c0_74, %c1_75, %c0_76, %c0_77] : memref<1x4x8x128xf32, #tpu.memory_space<vmem>>, vector<1x1x8x128xf32>
    %91 = vector.shape_cast %90 : vector<1x1x8x128xf32> to vector<8x128xf32>
    %cst_78 = arith.constant dense<0.000000e+00> : vector<16x128xf32>
    %92 = tpu.matmul %89, %91, %cst_78 {dimension_numbers = #tpu.dot_dimension_numbers<[1], [0], [0], [1], [0, 0, 1, 1], [], []>} : vector<16x8xf32>, vector<8x128xf32>, vector<16x128xf32> -> vector<16x128xf32>
    %93 = arith.addf %88, %92 : vector<16x128xf32>
    %94 = vector.extract_strided_slice %82 {offsets = [64, 0], sizes = [16, 8], strides = [1, 1]} : vector<112x8xf32> to vector<16x8xf32>
    %c0_79 = arith.constant 0 : index
    %c2_80 = arith.constant 2 : index
    %c0_81 = arith.constant 0 : index
    %c0_82 = arith.constant 0 : index
    %95 = vector.load %arg5[%c0_79, %c2_80, %c0_81, %c0_82] : memref<1x4x8x128xf32, #tpu.memory_space<vmem>>, vector<1x1x8x128xf32>
    %96 = vector.shape_cast %95 : vector<1x1x8x128xf32> to vector<8x128xf32>
    %cst_83 = arith.constant dense<0.000000e+00> : vector<16x128xf32>
    %97 = tpu.matmul %94, %96, %cst_83 {dimension_numbers = #tpu.dot_dimension_numbers<[1], [0], [0], [1], [0, 0, 1, 1], [], []>} : vector<16x8xf32>, vector<8x128xf32>, vector<16x128xf32> -> vector<16x128xf32>
    %98 = arith.addf %93, %97 : vector<16x128xf32>
    %99 = vector.extract_strided_slice %82 {offsets = [96, 0], sizes = [16, 8], strides = [1, 1]} : vector<112x8xf32> to vector<16x8xf32>
    %c0_84 = arith.constant 0 : index
    %c3_85 = arith.constant 3 : index
    %c0_86 = arith.constant 0 : index
    %c0_87 = arith.constant 0 : index
    %100 = vector.load %arg5[%c0_84, %c3_85, %c0_86, %c0_87] : memref<1x4x8x128xf32, #tpu.memory_space<vmem>>, vector<1x1x8x128xf32>
    %101 = vector.shape_cast %100 : vector<1x1x8x128xf32> to vector<8x128xf32>
    %cst_88 = arith.constant dense<0.000000e+00> : vector<16x128xf32>
    %102 = tpu.matmul %99, %101, %cst_88 {dimension_numbers = #tpu.dot_dimension_numbers<[1], [0], [0], [1], [0, 0, 1, 1], [], []>} : vector<16x8xf32>, vector<8x128xf32>, vector<16x128xf32> -> vector<16x128xf32>
    %103 = arith.addf %98, %102 : vector<16x128xf32>
    %cst_89 = arith.constant dense<0.000000e+00> : vector<128xf32>
    %104 = vector.multi_reduction <add>, %103, %cst_89 [0] : vector<16x128xf32> to vector<128xf32>
    %105 = vector.shape_cast %104 : vector<128xf32> to vector<1x128xf32>
    %cst_90 = arith.constant 3.906250e-03 : f32
    %106 = vector.broadcast %cst_90 : f32 to vector<1x128xf32>
    %107 = arith.mulf %105, %106 : vector<1x128xf32>
    %c0_i32 = arith.constant 0 : i32
    %108 = arith.cmpi eq, %arg1, %c0_i32 : i32
    %109 = arith.extui %108 : i1 to i32
    %c0_i32_91 = arith.constant 0 : i32
    %110 = arith.cmpi ne, %109, %c0_i32_91 : i32
    scf.if %110 {
      %c0_94 = arith.constant 0 : index
      %c0_95 = arith.constant 0 : index
      %116 = vector.load %arg6[%c0_94, %c0_95] : memref<1x128xf32, #tpu.memory_space<vmem>>, vector<1x128xf32>
      %117 = arith.index_cast %arg0 : i32 to index
      %c0_96 = arith.constant 0 : index
      %118 = vector.load %arg7[%117, %c0_96] : memref<2x128xf32, #tpu.memory_space<vmem>>, vector<1x128xf32>
      tpu.vector_store %arg7[%117, %c0_96], %116 {strides = array<i32>} : memref<2x128xf32, #tpu.memory_space<vmem>>, vector<1x128xf32>,
    } else {
    }
    %111 = arith.index_cast %arg0 : i32 to index
    %c0_92 = arith.constant 0 : index
    %112 = vector.load %arg7[%111, %c0_92] : memref<2x128xf32, #tpu.memory_space<vmem>>, vector<1x128xf32>
    %113 = arith.addf %112, %107 : vector<1x128xf32>
    %114 = arith.index_cast %arg0 : i32 to index
    %c0_93 = arith.constant 0 : index
    %115 = vector.load %arg7[%114, %c0_93] : memref<2x128xf32, #tpu.memory_space<vmem>>, vector<1x128xf32>
    tpu.vector_store %arg7[%114, %c0_93], %113 {strides = array<i32>} : memref<2x128xf32, #tpu.memory_space<vmem>>, vector<1x128xf32>,
    return
  }
  func.func @transform_0(%arg0: i32, %arg1: i32) -> (i32, i32, i32, i32) {
    %c0_i32 = arith.constant 0 : i32
    %c0_i32_0 = arith.constant 0 : i32
    %c0_i32_1 = arith.constant 0 : i32
    return %arg0, %arg1, %c0_i32, %c0_i32_0 : i32, i32, i32, i32
  }
  func.func @transform_1(%arg0: i32, %arg1: i32) -> (i32, i32, i32) {
    %c0_i32 = arith.constant 0 : i32
    %c0_i32_0 = arith.constant 0 : i32
    %c0_i32_1 = arith.constant 0 : i32
    %c0_i32_2 = arith.constant 0 : i32
    return %c0_i32, %c0_i32_0, %c0_i32_1 : i32, i32, i32
  }
  func.func @transform_2(%arg0: i32, %arg1: i32) -> (i32, i32) {
    %c0_i32 = arith.constant 0 : i32
    %c0_i32_0 = arith.constant 0 : i32
    %c0_i32_1 = arith.constant 0 : i32
    return %c0_i32, %c0_i32_0 : i32, i32
  }
  func.func @transform_3(%arg0: i32, %arg1: i32) -> (i32, i32, i32, i32) {
    %c0_i32 = arith.constant 0 : i32
    %c0_i32_0 = arith.constant 0 : i32
    %c0_i32_1 = arith.constant 0 : i32
    %c0_i32_2 = arith.constant 0 : i32
    return %arg1, %c0_i32, %c0_i32_0, %c0_i32_1 : i32, i32, i32, i32
  }
  func.func @transform_4(%arg0: i32, %arg1: i32) -> (i32, i32) {
    %c0_i32 = arith.constant 0 : i32
    %c0_i32_0 = arith.constant 0 : i32
    %c0_i32_1 = arith.constant 0 : i32
    return %c0_i32, %c0_i32_0 : i32, i32
  }
  func.func @transform_5(%arg0: i32, %arg1: i32) -> (i32, i32) {
    %c0_i32 = arith.constant 0 : i32
    %c0_i32_0 = arith.constant 0 : i32
    %c0_i32_1 = arith.constant 0 : i32
    return %c0_i32, %c0_i32_0 : i32, i32
  }
}

</mosaic_0001>

<llo_original>
// kernel: tpu_custom_call.1
$region0: #{tpu_custom_call.1}
  #allocation0 [shape = 'u32[]', space=smem, size = 0x4, offset = 0x4, fixed_abs, tag = 'smem constant byte address 0x4 - core index']
  #allocation1 [shape = 'u32[144,128]{1,0:T(1,128)}', space=vmem, size = 0x12000, scoped, tag = 'internal scratch']
  %s0 = inlined_call_operand.vmem [shape: f32[2,113,113,256], index: 0, kind: input, shape index: {}]
  %s1 = inlined_call_operand.vmem [shape: f32[4,256,8], index: 1, kind: input, shape index: {}]
  %s2 = inlined_call_operand.vmem [shape: f32[1,8], index: 2, kind: input, shape index: {}]
  %s3 = inlined_call_operand.vmem [shape: f32[4,4,8,128], index: 3, kind: input, shape index: {}]
  %s4 = inlined_call_operand.vmem [shape: f32[1,128], index: 4, kind: input, shape index: {}]
  %s5 = inlined_call_operand.hbm [shape: f32[2,128], index: 5, kind: output, shape index: {}]
  %s6 = sld [smem:[#allocation0]]
  $region57: #{tpu_custom_call.1} parent=0
    _
  %s8 = ssub.s32 1, %s6
  %s9 = scalar_select 0, %s8, %s6
  $region1: #{tpu_custom_call.1} parent=0
    #allocation2 [shape = 'u8[1024]{0}', space=vmem, size = 0x400, scoped, tag = 'output window, operand 0, single buffered']
    #allocation3 [shape = 's32[2]{0}', space=sflag, size = 0x8, scoped, tag = 'scoped memory for tpu_custom_call.1']
    %10 = vsyncpa [#allocation3], 0
    loop: start=0, step=1, limit=10
    $region2: #{tpu_custom_call.1} parent=1 // loop_pre_header
      _
    $region3: #{tpu_custom_call.1} parent=1 // loop_header
      %s12 = sphi 0, %s16
      %p13 = scmp.ge.s32.totalorder %s12, 10
      %s19 = sphi 0, %s31
      %s20 = sphi 0, %s27
      %s21 = sphi 0, %s19
      %s22 = sphi 0, %s20
      %s23 = sphi 0, %s21
      %s24 = sphi 0, %s22
      %s36 = sphi 0, %s38
      %s39 = sphi 0, %s36
      %s40 = sphi 0, %s39
      %s56 = sphi 0, %s40
      %s60 = sphi 0, %s60
      %s62 = sphi 0, %s60
      %s63 = sphi 0, %s62
      %s77 = sphi 0, %s63
      %s81 = sphi 0, %s81
      %s83 = sphi 0, %s81
      %s84 = sphi 0, %s83
      %s98 = sphi 0, %s84
      %s104 = sphi 0, %s106
      %s107 = sphi 0, %s104
      %s108 = sphi 0, %s107
      %s124 = sphi 0, %s108
      %s128 = sphi 0, %s128
      %s130 = sphi 0, %s128
      %s131 = sphi 0, %s130
      %s145 = sphi 0, %s131
      %s149 = sphi 0, %s149
      %s151 = sphi 0, %s149
      %s152 = sphi 0, %s151
      %s166 = sphi 0, %s152
    $region4: #{tpu_custom_call.1} parent=1 // loop_header_branch
      %15 = sbr.rel (%p13) target = $region8
    $region5: #{tpu_custom_call.1} parent=1 // loop_body
      %s17 = ssub.s32 %s12, 1
      %s18 = ssub.s32 %s12, 2
      %s25 = sadd.s32 1, %s20
      %p26 = scmp.ge.s32.totalorder %s25, 4
      %s27 = scalar_select %p26, 0, %s25
      %s28 = sadd.s32 1, %s19
      %s29 = scalar_select %p26, %s28, %s19
      %p30 = scmp.ge.s32.totalorder %s29, 2
      %s31 = scalar_select %p30, 0, %s29
      %s32 = ssub.s32 %s19, %s31
      %s33 = ssub.s32 %s20, %s27
      %s34 = sor.u32 %s32, %s33
      %p35 = scmp.eq.s32.totalorder %s34, 0
      %s37 = sadd.s32 %s36, 1
      %s38 = scalar_select %p35, %s36, %s37
      %p41 = pneg %p35
      %p42 = scmp.eq.s32.totalorder %s12, 7
      %p43 = por %p41, %p42
      %p44 = scmp.ne.s32.totalorder %s36, %s39
      %p45 = scmp.eq.s32.totalorder %s12, 0
      %p46 = por %p44, %p45
      %p47 = scmp.ne.s32.totalorder %s36, %s39
      %p48 = scmp.eq.s32.totalorder %s17, 7
      %p49 = por %p47, %p48
      %p50 = scmp.ne.s32.totalorder %s39, %s40
      %p51 = scmp.eq.s32.totalorder %s17, 0
      %p52 = por %p50, %p51
      %p53 = scmp.ne.s32.totalorder %s39, %s40
      %p54 = scmp.eq.s32.totalorder %s18, 7
      %p55 = por %p53, %p54
      %p57 = scmp.ne.s32.totalorder %s40, %s56
      %p58 = scmp.eq.s32.totalorder %s18, 0
      %p59 = por %p57, %p58
      %s61 = sadd.s32 %s60, 1
      %p64 = scmp.eq.s32.totalorder %s12, 7
      %p65 = scmp.ne.s32.totalorder %s60, %s62
      %p66 = scmp.eq.s32.totalorder %s12, 0
      %p67 = por %p65, %p66
      %p68 = scmp.ne.s32.totalorder %s60, %s62
      %p69 = scmp.eq.s32.totalorder %s17, 7
      %p70 = por %p68, %p69
      %p71 = scmp.ne.s32.totalorder %s62, %s63
      %p72 = scmp.eq.s32.totalorder %s17, 0
      %p73 = por %p71, %p72
      %p74 = scmp.ne.s32.totalorder %s62, %s63
      %p75 = scmp.eq.s32.totalorder %s18, 7
      %p76 = por %p74, %p75
      %p78 = scmp.ne.s32.totalorder %s63, %s77
      %p79 = scmp.eq.s32.totalorder %s18, 0
      %p80 = por %p78, %p79
      %s82 = sadd.s32 %s81, 1
      %p85 = scmp.eq.s32.totalorder %s12, 7
      %p86 = scmp.ne.s32.totalorder %s81, %s83
      %p87 = scmp.eq.s32.totalorder %s12, 0
      %p88 = por %p86, %p87
      %p89 = scmp.ne.s32.totalorder %s81, %s83
      %p90 = scmp.eq.s32.totalorder %s17, 7
      %p91 = por %p89, %p90
      %p92 = scmp.ne.s32.totalorder %s83, %s84
      %p93 = scmp.eq.s32.totalorder %s17, 0
      %p94 = por %p92, %p93
      %p95 = scmp.ne.s32.totalorder %s83, %s84
      %p96 = scmp.eq.s32.totalorder %s18, 7
      %p97 = por %p95, %p96
      %p99 = scmp.ne.s32.totalorder %s84, %s98
      %p100 = scmp.eq.s32.totalorder %s18, 0
      %p101 = por %p99, %p100
      %s102 = ssub.s32 %s20, %s27
      %p103 = scmp.eq.s32.totalorder %s102, 0
      %s105 = sadd.s32 %s104, 1
      %s106 = scalar_select %p103, %s104, %s105
      %p109 = pneg %p103
      %p110 = scmp.eq.s32.totalorder %s12, 7
      %p111 = por %p109, %p110
      %p112 = scmp.ne.s32.totalorder %s104, %s107
      %p113 = scmp.eq.s32.totalorder %s12, 0
      %p114 = por %p112, %p113
      %p115 = scmp.ne.s32.totalorder %s104, %s107
      %p116 = scmp.eq.s32.totalorder %s17, 7
      %p117 = por %p115, %p116
      %p118 = scmp.ne.s32.totalorder %s107, %s108
      %p119 = scmp.eq.s32.totalorder %s17, 0
      %p120 = por %p118, %p119
      %p121 = scmp.ne.s32.totalorder %s107, %s108
      %p122 = scmp.eq.s32.totalorder %s18, 7
      %p123 = por %p121, %p122
      %p125 = scmp.ne.s32.totalorder %s108, %s124
      %p126 = scmp.eq.s32.totalorder %s18, 0
      %p127 = por %p125, %p126
      %s129 = sadd.s32 %s128, 1
      %p132 = scmp.eq.s32.totalorder %s12, 7
      %p133 = scmp.ne.s32.totalorder %s128, %s130
      %p134 = scmp.eq.s32.totalorder %s12, 0
      %p135 = por %p133, %p134
      %p136 = scmp.ne.s32.totalorder %s128, %s130
      %p137 = scmp.eq.s32.totalorder %s17, 7
      %p138 = por %p136, %p137
      %p139 = scmp.ne.s32.totalorder %s130, %s131
      %p140 = scmp.eq.s32.totalorder %s17, 0
      %p141 = por %p139, %p140
      %p142 = scmp.ne.s32.totalorder %s130, %s131
      %p143 = scmp.eq.s32.totalorder %s18, 7
      %p144 = por %p142, %p143
      %p146 = scmp.ne.s32.totalorder %s131, %s145
      %p147 = scmp.eq.s32.totalorder %s18, 0
      %p148 = por %p146, %p147
      %s150 = sadd.s32 %s149, 1
      %p153 = scmp.eq.s32.totalorder %s12, 7
      %p154 = scmp.ne.s32.totalorder %s149, %s151
      %p155 = scmp.eq.s32.totalorder %s12, 0
      %p156 = por %p154, %p155
      %p157 = scmp.ne.s32.totalorder %s149, %s151
      %p158 = scmp.eq.s32.totalorder %s17, 7
      %p159 = por %p157, %p158
      %p160 = scmp.ne.s32.totalorder %s151, %s152
      %p161 = scmp.eq.s32.totalorder %s17, 0
      %p162 = por %p160, %p161
      %p163 = scmp.ne.s32.totalorder %s151, %s152
      %p164 = scmp.eq.s32.totalorder %s18, 7
      %p165 = por %p163, %p164
      %p167 = scmp.ne.s32.totalorder %s152, %s166
      %p168 = scmp.eq.s32.totalorder %s18, 0
      %p169 = por %p167, %p168
      %p170 = scmp.le.s32.totalorder 1, %s12
      %p171 = scmp.lt.s32.totalorder %s12, 9
      %p172 = pnand %p170, %p171
      %p173 = pneg %p172
      // Predicated region
      $region9: #{tpu_custom_call.1} parent=5 // pred_check
        _
      $region10: #{tpu_custom_call.1} parent=5 // pred_check_branch
        %175 = sbr.rel (%p172) target = $region12
      $region11: #{tpu_custom_call.1} parent=5 // pred_region
        %s176 = ssub.s32 %s12, 1
        // Predicated region
        $region13: #{tpu_custom_call.1} parent=11 // pred_check
          %p177 = pneg %p73
        $region14: #{tpu_custom_call.1} parent=11 // pred_check_branch
          %179 = sbr.rel (%p177) target = $region16
        $region15: #{tpu_custom_call.1} parent=11 // pred_region
          _
        $region16: #{tpu_custom_call.1} parent=11 // pred_fallthru
          _
        // Predicated region
        $region17: #{tpu_custom_call.1} parent=11 // pred_check
          %p180 = pneg %p94
        $region18: #{tpu_custom_call.1} parent=11 // pred_check_branch
          %182 = sbr.rel (%p180) target = $region20
        $region19: #{tpu_custom_call.1} parent=11 // pred_region
          _
        $region20: #{tpu_custom_call.1} parent=11 // pred_fallthru
          _
        // Predicated region
        $region21: #{tpu_custom_call.1} parent=11 // pred_check
          %p183 = pneg %p141
        $region22: #{tpu_custom_call.1} parent=11 // pred_check_branch
          %185 = sbr.rel (%p183) target = $region24
        $region23: #{tpu_custom_call.1} parent=11 // pred_region
          _
        $region24: #{tpu_custom_call.1} parent=11 // pred_fallthru
          _
      $region12: #{tpu_custom_call.1} parent=5 // pred_fallthru
        _
      %p186 = scmp.lt.s32.totalorder %s12, 8
      // Predicated region
      $region25: #{tpu_custom_call.1} parent=5 // pred_check
        %p187 = pneg %p186
      $region26: #{tpu_custom_call.1} parent=5 // pred_check_branch
        %189 = sbr.rel (%p187) target = $region28
      $region27: #{tpu_custom_call.1} parent=5 // pred_region
        // Predicated region
        $region29: #{tpu_custom_call.1} parent=27 // pred_check
          %p190 = pneg %p46
        $region30: #{tpu_custom_call.1} parent=27 // pred_check_branch
          %192 = sbr.rel (%p190) target = $region32
        $region31: #{tpu_custom_call.1} parent=27 // pred_region
          %s193 = smul.u32 32, %s20
          %s194 = ssub.s32 113, %s193
          %p195 = scmp.lt.s32.totalorder %s194, 32
          %s196 = scalar_select %p195, %s194, 32
          %s197 = smul.u32 128, %s196
          %s198 = smul.u32 %s197, 15
          %s199 = smul.u32 %s198, 2
          %p200 = scmp.lt.s32.totalorder %s19, 1
          %s201 = scalar_select %p200, %s19, 1
          %p202 = scmp.lt.s32.totalorder %s193, 112
          %s203 = scalar_select %p202, %s193, 112
          %s204 = smul.addr %s203, 30
          %s205 = smul.addr %s201, 3390
          %s206 = sadd.s32 %s204, %s205
          %s207 = smul.addr %s206, 8
          %s208 = scalar_lea.vmem %s0, %s207
          %s209 = smul.u32 32, %s20
          %s210 = ssub.s32 113, %s209
          %p211 = scmp.lt.s32.totalorder %s210, 32
          %s212 = scalar_select %p211, %s210, 32
          %s213 = smul.u32 128, %s212
          %s214 = smul.u32 %s213, 15
          %s215 = smul.u32 %s214, 2
        $region32: #{tpu_custom_call.1} parent=27 // pred_fallthru
          _
        // Predicated region
        $region33: #{tpu_custom_call.1} parent=27 // pred_check
          %p216 = pneg %p114
        $region34: #{tpu_custom_call.1} parent=27 // pred_check_branch
          %218 = sbr.rel (%p216) target = $region36
        $region35: #{tpu_custom_call.1} parent=27 // pred_region
          %p219 = scmp.lt.s32.totalorder %s20, 3
          %s220 = scalar_select %p219, %s20, 3
          %s221 = smul.addr %s220, 4
          %s222 = smul.addr %s221, 8
          %s223 = scalar_lea.vmem %s3, %s222
        $region36: #{tpu_custom_call.1} parent=27 // pred_fallthru
          _
      $region28: #{tpu_custom_call.1} parent=5 // pred_fallthru
        _
      %p224 = scmp.le.s32.totalorder 1, %s12
      %p225 = scmp.lt.s32.totalorder %s12, 9
      %p226 = pnand %p224, %p225
      %p227 = pneg %p226
      // Predicated region
      $region37: #{tpu_custom_call.1} parent=5 // pred_check
        _
      $region38: #{tpu_custom_call.1} parent=5 // pred_check_branch
        %229 = sbr.rel (%p226) target = $region40
      $region39: #{tpu_custom_call.1} parent=5 // pred_region
        %s230 = ssub.s32 %s12, 1
        %s231 = smul.u32 32, %s22
        %s232 = ssub.s32 113, %s231
        %p233 = scmp.lt.s32.totalorder %s232, 32
        %s234 = scalar_select %p233, %s232, 32
        %s235 = smul.u32 128, %s234
        %s236 = smul.u32 %s235, 15
        %s237 = smul.u32 %s236, 2
        %p238 = scmp.lt.s32.totalorder %s21, 1
        %s239 = scalar_select %p238, %s21, 1
        %p240 = scmp.lt.s32.totalorder %s231, 112
        %s241 = scalar_select %p240, %s231, 112
        %s242 = smul.addr %s241, 30
        %s243 = smul.addr %s239, 3390
        %s244 = sadd.s32 %s242, %s243
        %s245 = smul.addr %s244, 8
        %s246 = scalar_lea.vmem %s0, %s245
        %p247 = pneg %p52
        %p248 = pneg %p49
        %p249 = pneg %p73
        %p250 = pneg %p70
        %p251 = pneg %p94
        %p252 = pneg %p91
        %p253 = scmp.lt.s32.totalorder %s22, 3
        %s254 = scalar_select %p253, %s22, 3
        %s255 = smul.addr %s254, 4
        %s256 = smul.addr %s255, 8
        %s257 = scalar_lea.vmem %s3, %s256
        %p258 = pneg %p120
        %p259 = pneg %p117
        %p260 = pneg %p141
        %p261 = pneg %p138
        %p262 = pneg %p162
        %p263 = pneg %p159
        %s264 = smul.u32 32, %s22
        %s265 = ssub.s32 113, %s264
        %p266 = scmp.lt.s32.totalorder %s265, 32
        %s267 = scalar_select %p266, %s265, 32
        %s268 = smul.u32 128, %s267
        %s269 = smul.u32 %s268, 15
        %s270 = smul.u32 %s269, 2
        %p271 = scmp.lt.s32.totalorder %s21, 1
        %s272 = scalar_select %p271, %s21, 1
        %p273 = scmp.lt.s32.totalorder %s264, 112
        %s274 = scalar_select %p273, %s264, 112
        %s275 = smul.addr %s274, 30
        %s276 = smul.addr %s272, 3390
        %s277 = sadd.s32 %s275, %s276
        %s278 = smul.addr %s277, 8
        %s279 = scalar_lea.vmem %s0, %s278
        %s280 = smul.u32 32, %s22
        %s281 = ssub.s32 113, %s280
        %p282 = scmp.lt.s32.totalorder %s281, 32
        %s283 = scalar_select %p282, %s281, 32
        %s284 = smul.u32 128, %s283
        %s285 = smul.u32 %s284, 15
        %s286 = smul.u32 %s285, 2
        %p287 = scmp.lt.s32.totalorder %s22, 3
        %s288 = scalar_select %p287, %s22, 3
        %s289 = smul.addr %s288, 4
        %s290 = smul.addr %s289, 8
        %s291 = scalar_lea.vmem %s3, %s290
        %v292 = vld [vmem:[%s279] sm:$0xff]
        %v293 = vld [vmem:[%s279 + $0x8] sm:$0xff]
        %v294 = vld [vmem:[%s279 + $0x10] sm:$0xff]
        %v295 = vld [vmem:[%s279 + $0x18] sm:$0xff]
        %v296 = vld [vmem:[%s279 + $0x20] sm:$0xff]
        %v297 = vld [vmem:[%s279 + $0x28] sm:$0xff]
        %v298 = vld [vmem:[%s279 + $0x30] sm:$0xff]
        %v299 = vld [vmem:[%s279 + $0x38] sm:$0xff]
        %v300 = vld [vmem:[%s279 + $0x40] sm:$0xff]
        %v301 = vld [vmem:[%s279 + $0x48] sm:$0xff]
        %v302 = vld [vmem:[%s279 + $0x50] sm:$0xff]
        %v303 = vld [vmem:[%s279 + $0x58] sm:$0xff]
        %v304 = vld [vmem:[%s279 + $0x60] sm:$0xff]
        %v305 = vld [vmem:[%s279 + $0x68] sm:$0xff]
        %v306 = vld [vmem:[%s279 + $0x70] sm:$0xff]
        %v307 = vld [vmem:[%s279 + $0x78] sm:$0xff]
        %v308 = vld [vmem:[%s279 + $0x80] sm:$0xff]
        %v309 = vld [vmem:[%s279 + $0x88] sm:$0xff]
        %v310 = vld [vmem:[%s279 + $0x90] sm:$0xff]
        %v311 = vld [vmem:[%s279 + $0x98] sm:$0xff]
        %v312 = vld [vmem:[%s279 + $0xa0] sm:$0xff]
        %v313 = vld [vmem:[%s279 + $0xa8] sm:$0xff]
        %v314 = vld [vmem:[%s279 + $0xb0] sm:$0xff]
        %v315 = vld [vmem:[%s279 + $0xb8] sm:$0xff]
        %v316 = vld [vmem:[%s279 + $0xc0] sm:$0xff]
        %v317 = vld [vmem:[%s279 + $0xc8] sm:$0xff]
        %v318 = vld [vmem:[%s279 + $0xd0] sm:$0xff]
        %v319 = vld [vmem:[%s279 + $0xd8] sm:$0xff]
        %v320 = vld [vmem:[%s279 + $0xf0] sm:$0xff]
        %v321 = vld [vmem:[%s279 + $0xf8] sm:$0xff]
        %v322 = vld [vmem:[%s279 + $0x100] sm:$0xff]
        %v323 = vld [vmem:[%s279 + $0x108] sm:$0xff]
        %v324 = vld [vmem:[%s279 + $0x110] sm:$0xff]
        %v325 = vld [vmem:[%s279 + $0x118] sm:$0xff]
        %v326 = vld [vmem:[%s279 + $0x120] sm:$0xff]
        %v327 = vld [vmem:[%s279 + $0x128] sm:$0xff]
        %v328 = vld [vmem:[%s279 + $0x130] sm:$0xff]
        %v329 = vld [vmem:[%s279 + $0x138] sm:$0xff]
        %v330 = vld [vmem:[%s279 + $0x140] sm:$0xff]
        %v331 = vld [vmem:[%s279 + $0x148] sm:$0xff]
        %v332 = vld [vmem:[%s279 + $0x150] sm:$0xff]
        %v333 = vld [vmem:[%s279 + $0x158] sm:$0xff]
        %v334 = vld [vmem:[%s279 + $0x160] sm:$0xff]
        %v335 = vld [vmem:[%s279 + $0x168] sm:$0xff]
        %v336 = vld [vmem:[%s279 + $0x170] sm:$0xff]
        %v337 = vld [vmem:[%s279 + $0x178] sm:$0xff]
        %v338 = vld [vmem:[%s279 + $0x180] sm:$0xff]
        %v339 = vld [vmem:[%s279 + $0x188] sm:$0xff]
        %v340 = vld [vmem:[%s279 + $0x190] sm:$0xff]
        %v341 = vld [vmem:[%s279 + $0x198] sm:$0xff]
        %v342 = vld [vmem:[%s279 + $0x1a0] sm:$0xff]
        %v343 = vld [vmem:[%s279 + $0x1a8] sm:$0xff]
        %v344 = vld [vmem:[%s279 + $0x1b0] sm:$0xff]
        %v345 = vld [vmem:[%s279 + $0x1b8] sm:$0xff]
        %v346 = vld [vmem:[%s279 + $0x1c0] sm:$0xff]
        %v347 = vld [vmem:[%s279 + $0x1c8] sm:$0xff]
        %v348 = vld [vmem:[%s279 + $0x1e0] sm:$0xff]
        %v349 = vld [vmem:[%s279 + $0x1e8] sm:$0xff]
        %v350 = vld [vmem:[%s279 + $0x1f0] sm:$0xff]
        %v351 = vld [vmem:[%s279 + $0x1f8] sm:$0xff]
        %v352 = vld [vmem:[%s279 + $0x200] sm:$0xff]
        %v353 = vld [vmem:[%s279 + $0x208] sm:$0xff]
        %v354 = vld [vmem:[%s279 + $0x210] sm:$0xff]
        %v355 = vld [vmem:[%s279 + $0x218] sm:$0xff]
        %v356 = vld [vmem:[%s279 + $0x220] sm:$0xff]
        %v357 = vld [vmem:[%s279 + $0x228] sm:$0xff]
        %v358 = vld [vmem:[%s279 + $0x230] sm:$0xff]
        %v359 = vld [vmem:[%s279 + $0x238] sm:$0xff]
        %v360 = vld [vmem:[%s279 + $0x240] sm:$0xff]
        %v361 = vld [vmem:[%s279 + $0x248] sm:$0xff]
        %v362 = vld [vmem:[%s279 + $0x250] sm:$0xff]
        %v363 = vld [vmem:[%s279 + $0x258] sm:$0xff]
        %v364 = vld [vmem:[%s279 + $0x260] sm:$0xff]
        %v365 = vld [vmem:[%s279 + $0x268] sm:$0xff]
        %v366 = vld [vmem:[%s279 + $0x270] sm:$0xff]
        %v367 = vld [vmem:[%s279 + $0x278] sm:$0xff]
        %v368 = vld [vmem:[%s279 + $0x280] sm:$0xff]
        %v369 = vld [vmem:[%s279 + $0x288] sm:$0xff]
        %v370 = vld [vmem:[%s279 + $0x290] sm:$0xff]
        %v371 = vld [vmem:[%s279 + $0x298] sm:$0xff]
        %v372 = vld [vmem:[%s279 + $0x2a0] sm:$0xff]
        %v373 = vld [vmem:[%s279 + $0x2a8] sm:$0xff]
        %v374 = vld [vmem:[%s279 + $0x2b0] sm:$0xff]
        %v375 = vld [vmem:[%s279 + $0x2b8] sm:$0xff]
        %v376 = vld [vmem:[%s279 + $0x2d0] sm:$0xff]
        %v377 = vld [vmem:[%s279 + $0x2d8] sm:$0xff]
        %v378 = vld [vmem:[%s279 + $0x2e0] sm:$0xff]
        %v379 = vld [vmem:[%s279 + $0x2e8] sm:$0xff]
        %v380 = vld [vmem:[%s279 + $0x2f0] sm:$0xff]
        %v381 = vld [vmem:[%s279 + $0x2f8] sm:$0xff]
        %v382 = vld [vmem:[%s279 + $0x300] sm:$0xff]
        %v383 = vld [vmem:[%s279 + $0x308] sm:$0xff]
        %v384 = vld [vmem:[%s279 + $0x310] sm:$0xff]
        %v385 = vld [vmem:[%s279 + $0x318] sm:$0xff]
        %v386 = vld [vmem:[%s279 + $0x320] sm:$0xff]
        %v387 = vld [vmem:[%s279 + $0x328] sm:$0xff]
        %v388 = vld [vmem:[%s279 + $0x330] sm:$0xff]
        %v389 = vld [vmem:[%s279 + $0x338] sm:$0xff]
        %v390 = vld [vmem:[%s279 + $0x340] sm:$0xff]
        %v391 = vld [vmem:[%s279 + $0x348] sm:$0xff]
        %v392 = vld [vmem:[%s279 + $0x350] sm:$0xff]
        %v393 = vld [vmem:[%s279 + $0x358] sm:$0xff]
        %v394 = vld [vmem:[%s279 + $0x360] sm:$0xff]
        %v395 = vld [vmem:[%s279 + $0x368] sm:$0xff]
        %v396 = vld [vmem:[%s279 + $0x370] sm:$0xff]
        %v397 = vld [vmem:[%s279 + $0x378] sm:$0xff]
        %v398 = vld [vmem:[%s279 + $0x380] sm:$0xff]
        %v399 = vld [vmem:[%s279 + $0x388] sm:$0xff]
        %v400 = vld [vmem:[%s279 + $0x390] sm:$0xff]
        %v401 = vld [vmem:[%s279 + $0x398] sm:$0xff]
        %v402 = vld [vmem:[%s279 + $0x3a0] sm:$0xff]
        %v403 = vld [vmem:[%s279 + $0x3a8] sm:$0xff]
        %v404 = vld [vmem:[%s279 + $0x3c0] sm:$0xff]
        %v405 = vld [vmem:[%s279 + $0x3c8] sm:$0xff]
        %v406 = vld [vmem:[%s279 + $0x3d0] sm:$0xff]
        %v407 = vld [vmem:[%s279 + $0x3d8] sm:$0xff]
        %v408 = vld [vmem:[%s279 + $0x3e0] sm:$0xff]
        %v409 = vld [vmem:[%s279 + $0x3e8] sm:$0xff]
        %v410 = vld [vmem:[%s279 + $0x3f0] sm:$0xff]
        %v411 = vld [vmem:[%s279 + $0x3f8] sm:$0xff]
        %v412 = vld [vmem:[%s279 + $0x400] sm:$0xff]
        %v413 = vld [vmem:[%s279 + $0x408] sm:$0xff]
        %v414 = vld [vmem:[%s279 + $0x410] sm:$0xff]
        %v415 = vld [vmem:[%s279 + $0x418] sm:$0xff]
        %v416 = vld [vmem:[%s279 + $0x420] sm:$0xff]
        %v417 = vld [vmem:[%s279 + $0x428] sm:$0xff]
        %v418 = vld [vmem:[%s279 + $0x430] sm:$0xff]
        %v419 = vld [vmem:[%s279 + $0x438] sm:$0xff]
        %v420 = vld [vmem:[%s279 + $0x440] sm:$0xff]
        %v421 = vld [vmem:[%s279 + $0x448] sm:$0xff]
        %v422 = vld [vmem:[%s279 + $0x450] sm:$0xff]
        %v423 = vld [vmem:[%s279 + $0x458] sm:$0xff]
        %v424 = vld [vmem:[%s279 + $0x460] sm:$0xff]
        %v425 = vld [vmem:[%s279 + $0x468] sm:$0xff]
        %v426 = vld [vmem:[%s279 + $0x470] sm:$0xff]
        %v427 = vld [vmem:[%s279 + $0x478] sm:$0xff]
        %v428 = vld [vmem:[%s279 + $0x480] sm:$0xff]
        %v429 = vld [vmem:[%s279 + $0x488] sm:$0xff]
        %v430 = vld [vmem:[%s279 + $0x490] sm:$0xff]
        %v431 = vld [vmem:[%s279 + $0x498] sm:$0xff]
        %v432 = vld [vmem:[%s279 + $0x4b0] sm:$0xff]
        %v433 = vld [vmem:[%s279 + $0x4b8] sm:$0xff]
        %v434 = vld [vmem:[%s279 + $0x4c0] sm:$0xff]
        %v435 = vld [vmem:[%s279 + $0x4c8] sm:$0xff]
        %v436 = vld [vmem:[%s279 + $0x4d0] sm:$0xff]
        %v437 = vld [vmem:[%s279 + $0x4d8] sm:$0xff]
        %v438 = vld [vmem:[%s279 + $0x4e0] sm:$0xff]
        %v439 = vld [vmem:[%s279 + $0x4e8] sm:$0xff]
        %v440 = vld [vmem:[%s279 + $0x4f0] sm:$0xff]
        %v441 = vld [vmem:[%s279 + $0x4f8] sm:$0xff]
        %v442 = vld [vmem:[%s279 + $0x500] sm:$0xff]
        %v443 = vld [vmem:[%s279 + $0x508] sm:$0xff]
        %v444 = vld [vmem:[%s279 + $0x510] sm:$0xff]
        %v445 = vld [vmem:[%s279 + $0x518] sm:$0xff]
        %v446 = vld [vmem:[%s279 + $0x520] sm:$0xff]
        %v447 = vld [vmem:[%s279 + $0x528] sm:$0xff]
        %v448 = vld [vmem:[%s279 + $0x530] sm:$0xff]
        %v449 = vld [vmem:[%s279 + $0x538] sm:$0xff]
        %v450 = vld [vmem:[%s279 + $0x540] sm:$0xff]
        %v451 = vld [vmem:[%s279 + $0x548] sm:$0xff]
        %v452 = vld [vmem:[%s279 + $0x550] sm:$0xff]
        %v453 = vld [vmem:[%s279 + $0x558] sm:$0xff]
        %v454 = vld [vmem:[%s279 + $0x560] sm:$0xff]
        %v455 = vld [vmem:[%s279 + $0x568] sm:$0xff]
        %v456 = vld [vmem:[%s279 + $0x570] sm:$0xff]
        %v457 = vld [vmem:[%s279 + $0x578] sm:$0xff]
        %v458 = vld [vmem:[%s279 + $0x580] sm:$0xff]
        %v459 = vld [vmem:[%s279 + $0x588] sm:$0xff]
        %v460 = vld [vmem:[%s279 + $0x5a0] sm:$0xff]
        %v461 = vld [vmem:[%s279 + $0x5a8] sm:$0xff]
        %v462 = vld [vmem:[%s279 + $0x5b0] sm:$0xff]
        %v463 = vld [vmem:[%s279 + $0x5b8] sm:$0xff]
        %v464 = vld [vmem:[%s279 + $0x5c0] sm:$0xff]
        %v465 = vld [vmem:[%s279 + $0x5c8] sm:$0xff]
        %v466 = vld [vmem:[%s279 + $0x5d0] sm:$0xff]
        %v467 = vld [vmem:[%s279 + $0x5d8] sm:$0xff]
        %v468 = vld [vmem:[%s279 + $0x5e0] sm:$0xff]
        %v469 = vld [vmem:[%s279 + $0x5e8] sm:$0xff]
        %v470 = vld [vmem:[%s279 + $0x5f0] sm:$0xff]
        %v471 = vld [vmem:[%s279 + $0x5f8] sm:$0xff]
        %v472 = vld [vmem:[%s279 + $0x600] sm:$0xff]
        %v473 = vld [vmem:[%s279 + $0x608] sm:$0xff]
        %v474 = vld [vmem:[%s279 + $0x610] sm:$0xff]
        %v475 = vld [vmem:[%s279 + $0x618] sm:$0xff]
        %v476 = vld [vmem:[%s279 + $0x620] sm:$0xff]
        %v477 = vld [vmem:[%s279 + $0x628] sm:$0xff]
        %v478 = vld [vmem:[%s279 + $0x630] sm:$0xff]
        %v479 = vld [vmem:[%s279 + $0x638] sm:$0xff]
        %v480 = vld [vmem:[%s279 + $0x640] sm:$0xff]
        %v481 = vld [vmem:[%s279 + $0x648] sm:$0xff]
        %v482 = vld [vmem:[%s279 + $0x650] sm:$0xff]
        %v483 = vld [vmem:[%s279 + $0x658] sm:$0xff]
        %v484 = vld [vmem:[%s279 + $0x660] sm:$0xff]
        %v485 = vld [vmem:[%s279 + $0x668] sm:$0xff]
        %v486 = vld [vmem:[%s279 + $0x670] sm:$0xff]
        %v487 = vld [vmem:[%s279 + $0x678] sm:$0xff]
        %v488 = vld [vmem:[%s279 + $0x690] sm:$0xff]
        %v489 = vld [vmem:[%s279 + $0x698] sm:$0xff]
        %v490 = vld [vmem:[%s279 + $0x6a0] sm:$0xff]
        %v491 = vld [vmem:[%s279 + $0x6a8] sm:$0xff]
        %v492 = vld [vmem:[%s279 + $0x6b0] sm:$0xff]
        %v493 = vld [vmem:[%s279 + $0x6b8] sm:$0xff]
        %v494 = vld [vmem:[%s279 + $0x6c0] sm:$0xff]
        %v495 = vld [vmem:[%s279 + $0x6c8] sm:$0xff]
        %v496 = vld [vmem:[%s279 + $0x6d0] sm:$0xff]
        %v497 = vld [vmem:[%s279 + $0x6d8] sm:$0xff]
        %v498 = vld [vmem:[%s279 + $0x6e0] sm:$0xff]
        %v499 = vld [vmem:[%s279 + $0x6e8] sm:$0xff]
        %v500 = vld [vmem:[%s279 + $0x6f0] sm:$0xff]
        %v501 = vld [vmem:[%s279 + $0x6f8] sm:$0xff]
        %v502 = vld [vmem:[%s279 + $0x700] sm:$0xff]
        %v503 = vld [vmem:[%s279 + $0x708] sm:$0xff]
        %v504 = vld [vmem:[%s279 + $0x710] sm:$0xff]
        %v505 = vld [vmem:[%s279 + $0x718] sm:$0xff]
        %v506 = vld [vmem:[%s279 + $0x720] sm:$0xff]
        %v507 = vld [vmem:[%s279 + $0x728] sm:$0xff]
        %v508 = vld [vmem:[%s279 + $0x730] sm:$0xff]
        %v509 = vld [vmem:[%s279 + $0x738] sm:$0xff]
        %v510 = vld [vmem:[%s279 + $0x740] sm:$0xff]
        %v511 = vld [vmem:[%s279 + $0x748] sm:$0xff]
        %v512 = vld [vmem:[%s279 + $0x750] sm:$0xff]
        %v513 = vld [vmem:[%s279 + $0x758] sm:$0xff]
        %v514 = vld [vmem:[%s279 + $0x760] sm:$0xff]
        %v515 = vld [vmem:[%s279 + $0x768] sm:$0xff]
        %v516 = vld [vmem:[%s1] sm:$0xff]
        %v517 = vld [vmem:[%s1 + $0x8] sm:$0xff]
        %v518 = vld [vmem:[%s1 + $0x10] sm:$0xff]
        %v519 = vld [vmem:[%s1 + $0x18] sm:$0xff]
        %v520 = vld [vmem:[%s1 + $0x20] sm:$0xff]
        %v521 = vld [vmem:[%s1 + $0x28] sm:$0xff]
        %v522 = vld [vmem:[%s1 + $0x30] sm:$0xff]
        %v523 = vld [vmem:[%s1 + $0x38] sm:$0xff]
        %v524 = vld [vmem:[%s1 + $0x40] sm:$0xff]
        %v525 = vld [vmem:[%s1 + $0x48] sm:$0xff]
        %v526 = vld [vmem:[%s1 + $0x50] sm:$0xff]
        %v527 = vld [vmem:[%s1 + $0x58] sm:$0xff]
        %v528 = vld [vmem:[%s1 + $0x60] sm:$0xff]
        %v529 = vld [vmem:[%s1 + $0x68] sm:$0xff]
        %v530 = vld [vmem:[%s1 + $0x70] sm:$0xff]
        %v531 = vld [vmem:[%s1 + $0x78] sm:$0xff]
        %v532 = vld [vmem:[%s1 + $0x80] sm:$0xff]
        %v533 = vld [vmem:[%s1 + $0x88] sm:$0xff]
        %v534 = vld [vmem:[%s1 + $0x90] sm:$0xff]
        %v535 = vld [vmem:[%s1 + $0x98] sm:$0xff]
        %v536 = vld [vmem:[%s1 + $0xa0] sm:$0xff]
        %v537 = vld [vmem:[%s1 + $0xa8] sm:$0xff]
        %v538 = vld [vmem:[%s1 + $0xb0] sm:$0xff]
        %v539 = vld [vmem:[%s1 + $0xb8] sm:$0xff]
        %v540 = vld [vmem:[%s1 + $0xc0] sm:$0xff]
        %v541 = vld [vmem:[%s1 + $0xc8] sm:$0xff]
        %v542 = vld [vmem:[%s1 + $0xd0] sm:$0xff]
        %v543 = vld [vmem:[%s1 + $0xd8] sm:$0xff]
        %v544 = vld [vmem:[%s1 + $0xe0] sm:$0xff]
        %v545 = vld [vmem:[%s1 + $0xe8] sm:$0xff]
        %v546 = vld [vmem:[%s1 + $0xf0] sm:$0xff]
        %v547 = vld [vmem:[%s1 + $0xf8] sm:$0xff]
        %v548 = vld [vmem:[%s279] sm:$0xfe]
        %v549 = vld [vmem:[%s279 + $0x8] sm:$0xfe]
        %v550 = vld [vmem:[%s279 + $0xe0] sm:$0x1]
        %v551 = vld [vmem:[%s279 + $0xe8] sm:$0x1]
        %v552 = vld [vmem:[%s279 + $0xf0] sm:$0xfe]
        %v553 = vld [vmem:[%s279 + $0xf8] sm:$0xfe]
        %v554 = vld [vmem:[%s279 + $0x1d0] sm:$0x1]
        %v555 = vld [vmem:[%s279 + $0x1d8] sm:$0x1]
        %v556 = vld [vmem:[%s279 + $0x1e0] sm:$0xfe]
        %v557 = vld [vmem:[%s279 + $0x1e8] sm:$0xfe]
        %v558 = vld [vmem:[%s279 + $0x2c0] sm:$0x1]
        %v559 = vld [vmem:[%s279 + $0x2c8] sm:$0x1]
        %v560 = vld [vmem:[%s279 + $0x2d0] sm:$0xfe]
        %v561 = vld [vmem:[%s279 + $0x2d8] sm:$0xfe]
        %v562 = vld [vmem:[%s279 + $0x3b0] sm:$0x1]
        %v563 = vld [vmem:[%s279 + $0x3b8] sm:$0x1]
        %v564 = vld [vmem:[%s279 + $0x3c0] sm:$0xfe]
        %v565 = vld [vmem:[%s279 + $0x3c8] sm:$0xfe]
        %v566 = vld [vmem:[%s279 + $0x4a0] sm:$0x1]
        %v567 = vld [vmem:[%s279 + $0x4a8] sm:$0x1]
        %v568 = vld [vmem:[%s279 + $0x4b0] sm:$0xfe]
        %v569 = vld [vmem:[%s279 + $0x4b8] sm:$0xfe]
        %v570 = vld [vmem:[%s279 + $0x590] sm:$0x1]
        %v571 = vld [vmem:[%s279 + $0x598] sm:$0x1]
        %v572 = vld [vmem:[%s279 + $0x5a0] sm:$0xfe]
        %v573 = vld [vmem:[%s279 + $0x5a8] sm:$0xfe]
        %v574 = vld [vmem:[%s279 + $0x680] sm:$0x1]
        %v575 = vld [vmem:[%s279 + $0x688] sm:$0x1]
        %v576 = vld [vmem:[%s279 + $0x690] sm:$0xfe]
        %v577 = vld [vmem:[%s279 + $0x698] sm:$0xfe]
        %v578 = vld [vmem:[%s279 + $0x770] sm:$0x1]
        %v579 = vld [vmem:[%s279 + $0x778] sm:$0x1]
        %vm820 = vcmask 1046528
        %v821 = vrot.slane %v548, 1
        %v822 = vrot.slane %v294, 1
        %v823 = vsel %vm820, %v821, %v822
        %v824 = vrot.slane %v549, 1
        %v825 = vrot.slane %v295, 1
        %v826 = vsel %vm820, %v824, %v825
        %v827 = vrot.slane %v296, 1
        %v828 = vsel %vm820, %v822, %v827
        %v829 = vrot.slane %v297, 1
        %v830 = vsel %vm820, %v825, %v829
        %v831 = vrot.slane %v298, 1
        %v832 = vsel %vm820, %v827, %v831
        %v833 = vrot.slane %v299, 1
        %v834 = vsel %vm820, %v829, %v833
        %v835 = vrot.slane %v300, 1
        %v836 = vsel %vm820, %v831, %v835
        %v837 = vrot.slane %v301, 1
        %v838 = vsel %vm820, %v833, %v837
        %v839 = vrot.slane %v302, 1
        %v840 = vsel %vm820, %v835, %v839
        %v841 = vrot.slane %v303, 1
        %v842 = vsel %vm820, %v837, %v841
        %v843 = vrot.slane %v304, 1
        %v844 = vsel %vm820, %v839, %v843
        %v845 = vrot.slane %v305, 1
        %v846 = vsel %vm820, %v841, %v845
        %v847 = vrot.slane %v306, 1
        %v848 = vsel %vm820, %v843, %v847
        %v849 = vrot.slane %v307, 1
        %v850 = vsel %vm820, %v845, %v849
        %v851 = vrot.slane %v308, 1
        %v852 = vsel %vm820, %v847, %v851
        %v853 = vrot.slane %v309, 1
        %v854 = vsel %vm820, %v849, %v853
        %v855 = vrot.slane %v310, 1
        %v856 = vsel %vm820, %v851, %v855
        %v857 = vrot.slane %v311, 1
        %v858 = vsel %vm820, %v853, %v857
        %v859 = vrot.slane %v312, 1
        %v860 = vsel %vm820, %v855, %v859
        %v861 = vrot.slane %v313, 1
        %v862 = vsel %vm820, %v857, %v861
        %v863 = vrot.slane %v314, 1
        %v864 = vsel %vm820, %v859, %v863
        %v865 = vrot.slane %v315, 1
        %v866 = vsel %vm820, %v861, %v865
        %v867 = vrot.slane %v316, 1
        %v868 = vsel %vm820, %v863, %v867
        %v869 = vrot.slane %v317, 1
        %v870 = vsel %vm820, %v865, %v869
        %v871 = vrot.slane %v318, 1
        %v872 = vsel %vm820, %v867, %v871
        %v873 = vrot.slane %v319, 1
        %v874 = vsel %vm820, %v869, %v873
        %v875 = vrot.slane %v550, 1
        %v876 = vsel %vm820, %v871, %v875
        %v877 = vrot.slane %v551, 1
        %v878 = vsel %vm820, %v873, %v877
        %v879 = vrot.slane %v552, 1
        %v880 = vrot.slane %v322, 1
        %v881 = vsel %vm820, %v879, %v880
        %v882 = vrot.slane %v553, 1
        %v883 = vrot.slane %v323, 1
        %v884 = vsel %vm820, %v882, %v883
        %v885 = vrot.slane %v324, 1
        %v886 = vsel %vm820, %v880, %v885
        %v887 = vrot.slane %v325, 1
        %v888 = vsel %vm820, %v883, %v887
        %v889 = vrot.slane %v326, 1
        %v890 = vsel %vm820, %v885, %v889
        %v891 = vrot.slane %v327, 1
        %v892 = vsel %vm820, %v887, %v891
        %v893 = vrot.slane %v328, 1
        %v894 = vsel %vm820, %v889, %v893
        %v895 = vrot.slane %v329, 1
        %v896 = vsel %vm820, %v891, %v895
        %v897 = vrot.slane %v330, 1
        %v898 = vsel %vm820, %v893, %v897
        %v899 = vrot.slane %v331, 1
        %v900 = vsel %vm820, %v895, %v899
        %v901 = vrot.slane %v332, 1
        %v902 = vsel %vm820, %v897, %v901
        %v903 = vrot.slane %v333, 1
        %v904 = vsel %vm820, %v899, %v903
        %v905 = vrot.slane %v334, 1
        %v906 = vsel %vm820, %v901, %v905
        %v907 = vrot.slane %v335, 1
        %v908 = vsel %vm820, %v903, %v907
        %v909 = vrot.slane %v336, 1
        %v910 = vsel %vm820, %v905, %v909
        %v911 = vrot.slane %v337, 1
        %v912 = vsel %vm820, %v907, %v911
        %v913 = vrot.slane %v338, 1
        %v914 = vsel %vm820, %v909, %v913
        %v915 = vrot.slane %v339, 1
        %v916 = vsel %vm820, %v911, %v915
        %v917 = vrot.slane %v340, 1
        %v918 = vsel %vm820, %v913, %v917
        %v919 = vrot.slane %v341, 1
        %v920 = vsel %vm820, %v915, %v919
        %v921 = vrot.slane %v342, 1
        %v922 = vsel %vm820, %v917, %v921
        %v923 = vrot.slane %v343, 1
        %v924 = vsel %vm820, %v919, %v923
        %v925 = vrot.slane %v344, 1
        %v926 = vsel %vm820, %v921, %v925
        %v927 = vrot.slane %v345, 1
        %v928 = vsel %vm820, %v923, %v927
        %v929 = vrot.slane %v346, 1
        %v930 = vsel %vm820, %v925, %v929
        %v931 = vrot.slane %v347, 1
        %v932 = vsel %vm820, %v927, %v931
        %v933 = vrot.slane %v554, 1
        %v934 = vsel %vm820, %v929, %v933
        %v935 = vrot.slane %v555, 1
        %v936 = vsel %vm820, %v931, %v935
        %v937 = vrot.slane %v556, 1
        %v938 = vrot.slane %v350, 1
        %v939 = vsel %vm820, %v937, %v938
        %v940 = vrot.slane %v557, 1
        %v941 = vrot.slane %v351, 1
        %v942 = vsel %vm820, %v940, %v941
        %v943 = vrot.slane %v352, 1
        %v944 = vsel %vm820, %v938, %v943
        %v945 = vrot.slane %v353, 1
        %v946 = vsel %vm820, %v941, %v945
        %v947 = vrot.slane %v354, 1
        %v948 = vsel %vm820, %v943, %v947
        %v949 = vrot.slane %v355, 1
        %v950 = vsel %vm820, %v945, %v949
        %v951 = vrot.slane %v356, 1
        %v952 = vsel %vm820, %v947, %v951
        %v953 = vrot.slane %v357, 1
        %v954 = vsel %vm820, %v949, %v953
        %v955 = vrot.slane %v358, 1
        %v956 = vsel %vm820, %v951, %v955
        %v957 = vrot.slane %v359, 1
        %v958 = vsel %vm820, %v953, %v957
        %v959 = vrot.slane %v360, 1
        %v960 = vsel %vm820, %v955, %v959
        %v961 = vrot.slane %v361, 1
        %v962 = vsel %vm820, %v957, %v961
        %v963 = vrot.slane %v362, 1
        %v964 = vsel %vm820, %v959, %v963
        %v965 = vrot.slane %v363, 1
        %v966 = vsel %vm820, %v961, %v965
        %v967 = vrot.slane %v364, 1
        %v968 = vsel %vm820, %v963, %v967
        %v969 = vrot.slane %v365, 1
        %v970 = vsel %vm820, %v965, %v969
        %v971 = vrot.slane %v366, 1
        %v972 = vsel %vm820, %v967, %v971
        %v973 = vrot.slane %v367, 1
        %v974 = vsel %vm820, %v969, %v973
        %v975 = vrot.slane %v368, 1
        %v976 = vsel %vm820, %v971, %v975
        %v977 = vrot.slane %v369, 1
        %v978 = vsel %vm820, %v973, %v977
        %v979 = vrot.slane %v370, 1
        %v980 = vsel %vm820, %v975, %v979
        %v981 = vrot.slane %v371, 1
        %v982 = vsel %vm820, %v977, %v981
        %v983 = vrot.slane %v372, 1
        %v984 = vsel %vm820, %v979, %v983
        %v985 = vrot.slane %v373, 1
        %v986 = vsel %vm820, %v981, %v985
        %v987 = vrot.slane %v374, 1
        %v988 = vsel %vm820, %v983, %v987
        %v989 = vrot.slane %v375, 1
        %v990 = vsel %vm820, %v985, %v989
        %v991 = vrot.slane %v558, 1
        %v992 = vsel %vm820, %v987, %v991
        %v993 = vrot.slane %v559, 1
        %v994 = vsel %vm820, %v989, %v993
        %v995 = vrot.slane %v560, 1
        %v996 = vrot.slane %v378, 1
        %v997 = vsel %vm820, %v995, %v996
        %v998 = vrot.slane %v561, 1
        %v999 = vrot.slane %v379, 1
        %v1000 = vsel %vm820, %v998, %v999
        %v1001 = vrot.slane %v380, 1
        %v1002 = vsel %vm820, %v996, %v1001
        %v1003 = vrot.slane %v381, 1
        %v1004 = vsel %vm820, %v999, %v1003
        %v1005 = vrot.slane %v382, 1
        %v1006 = vsel %vm820, %v1001, %v1005
        %v1007 = vrot.slane %v383, 1
        %v1008 = vsel %vm820, %v1003, %v1007
        %v1009 = vrot.slane %v384, 1
        %v1010 = vsel %vm820, %v1005, %v1009
        %v1011 = vrot.slane %v385, 1
        %v1012 = vsel %vm820, %v1007, %v1011
        %v1013 = vrot.slane %v386, 1
        %v1014 = vsel %vm820, %v1009, %v1013
        %v1015 = vrot.slane %v387, 1
        %v1016 = vsel %vm820, %v1011, %v1015
        %v1017 = vrot.slane %v388, 1
        %v1018 = vsel %vm820, %v1013, %v1017
        %v1019 = vrot.slane %v389, 1
        %v1020 = vsel %vm820, %v1015, %v1019
        %v1021 = vrot.slane %v390, 1
        %v1022 = vsel %vm820, %v1017, %v1021
        %v1023 = vrot.slane %v391, 1
        %v1024 = vsel %vm820, %v1019, %v1023
        %v1025 = vrot.slane %v392, 1
        %v1026 = vsel %vm820, %v1021, %v1025
        %v1027 = vrot.slane %v393, 1
        %v1028 = vsel %vm820, %v1023, %v1027
        %v1029 = vrot.slane %v394, 1
        %v1030 = vsel %vm820, %v1025, %v1029
        %v1031 = vrot.slane %v395, 1
        %v1032 = vsel %vm820, %v1027, %v1031
        %v1033 = vrot.slane %v396, 1
        %v1034 = vsel %vm820, %v1029, %v1033
        %v1035 = vrot.slane %v397, 1
        %v1036 = vsel %vm820, %v1031, %v1035
        %v1037 = vrot.slane %v398, 1
        %v1038 = vsel %vm820, %v1033, %v1037
        %v1039 = vrot.slane %v399, 1
        %v1040 = vsel %vm820, %v1035, %v1039
        %v1041 = vrot.slane %v400, 1
        %v1042 = vsel %vm820, %v1037, %v1041
        %v1043 = vrot.slane %v401, 1
        %v1044 = vsel %vm820, %v1039, %v1043
        %v1045 = vrot.slane %v402, 1
        %v1046 = vsel %vm820, %v1041, %v1045
        %v1047 = vrot.slane %v403, 1
        %v1048 = vsel %vm820, %v1043, %v1047
        %v1049 = vrot.slane %v562, 1
        %v1050 = vsel %vm820, %v1045, %v1049
        %v1051 = vrot.slane %v563, 1
        %v1052 = vsel %vm820, %v1047, %v1051
        %v1053 = vrot.slane %v564, 1
        %v1054 = vrot.slane %v406, 1
        %v1055 = vsel %vm820, %v1053, %v1054
        %v1056 = vrot.slane %v565, 1
        %v1057 = vrot.slane %v407, 1
        %v1058 = vsel %vm820, %v1056, %v1057
        %v1059 = vrot.slane %v408, 1
        %v1060 = vsel %vm820, %v1054, %v1059
        %v1061 = vrot.slane %v409, 1
        %v1062 = vsel %vm820, %v1057, %v1061
        %v1063 = vrot.slane %v410, 1
        %v1064 = vsel %vm820, %v1059, %v1063
        %v1065 = vrot.slane %v411, 1
        %v1066 = vsel %vm820, %v1061, %v1065
        %v1067 = vrot.slane %v412, 1
        %v1068 = vsel %vm820, %v1063, %v1067
        %v1069 = vrot.slane %v413, 1
        %v1070 = vsel %vm820, %v1065, %v1069
        %v1071 = vrot.slane %v414, 1
        %v1072 = vsel %vm820, %v1067, %v1071
        %v1073 = vrot.slane %v415, 1
        %v1074 = vsel %vm820, %v1069, %v1073
        %v1075 = vrot.slane %v416, 1
        %v1076 = vsel %vm820, %v1071, %v1075
        %v1077 = vrot.slane %v417, 1
        %v1078 = vsel %vm820, %v1073, %v1077
        %v1079 = vrot.slane %v418, 1
        %v1080 = vsel %vm820, %v1075, %v1079
        %v1081 = vrot.slane %v419, 1
        %v1082 = vsel %vm820, %v1077, %v1081
        %v1083 = vrot.slane %v420, 1
        %v1084 = vsel %vm820, %v1079, %v1083
        %v1085 = vrot.slane %v421, 1
        %v1086 = vsel %vm820, %v1081, %v1085
        %v1087 = vrot.slane %v422, 1
        %v1088 = vsel %vm820, %v1083, %v1087
        %v1089 = vrot.slane %v423, 1
        %v1090 = vsel %vm820, %v1085, %v1089
        %v1091 = vrot.slane %v424, 1
        %v1092 = vsel %vm820, %v1087, %v1091
        %v1093 = vrot.slane %v425, 1
        %v1094 = vsel %vm820, %v1089, %v1093
        %v1095 = vrot.slane %v426, 1
        %v1096 = vsel %vm820, %v1091, %v1095
        %v1097 = vrot.slane %v427, 1
        %v1098 = vsel %vm820, %v1093, %v1097
        %v1099 = vrot.slane %v428, 1
        %v1100 = vsel %vm820, %v1095, %v1099
        %v1101 = vrot.slane %v429, 1
        %v1102 = vsel %vm820, %v1097, %v1101
        %v1103 = vrot.slane %v430, 1
        %v1104 = vsel %vm820, %v1099, %v1103
        %v1105 = vrot.slane %v431, 1
        %v1106 = vsel %vm820, %v1101, %v1105
        %v1107 = vrot.slane %v566, 1
        %v1108 = vsel %vm820, %v1103, %v1107
        %v1109 = vrot.slane %v567, 1
        %v1110 = vsel %vm820, %v1105, %v1109
        %v1111 = vrot.slane %v568, 1
        %v1112 = vrot.slane %v434, 1
        %v1113 = vsel %vm820, %v1111, %v1112
        %v1114 = vrot.slane %v569, 1
        %v1115 = vrot.slane %v435, 1
        %v1116 = vsel %vm820, %v1114, %v1115
        %v1117 = vrot.slane %v436, 1
        %v1118 = vsel %vm820, %v1112, %v1117
        %v1119 = vrot.slane %v437, 1
        %v1120 = vsel %vm820, %v1115, %v1119
        %v1121 = vrot.slane %v438, 1
        %v1122 = vsel %vm820, %v1117, %v1121
        %v1123 = vrot.slane %v439, 1
        %v1124 = vsel %vm820, %v1119, %v1123
        %v1125 = vrot.slane %v440, 1
        %v1126 = vsel %vm820, %v1121, %v1125
        %v1127 = vrot.slane %v441, 1
        %v1128 = vsel %vm820, %v1123, %v1127
        %v1129 = vrot.slane %v442, 1
        %v1130 = vsel %vm820, %v1125, %v1129
        %v1131 = vrot.slane %v443, 1
        %v1132 = vsel %vm820, %v1127, %v1131
        %v1133 = vrot.slane %v444, 1
        %v1134 = vsel %vm820, %v1129, %v1133
        %v1135 = vrot.slane %v445, 1
        %v1136 = vsel %vm820, %v1131, %v1135
        %v1137 = vrot.slane %v446, 1
        %v1138 = vsel %vm820, %v1133, %v1137
        %v1139 = vrot.slane %v447, 1
        %v1140 = vsel %vm820, %v1135, %v1139
        %v1141 = vrot.slane %v448, 1
        %v1142 = vsel %vm820, %v1137, %v1141
        %v1143 = vrot.slane %v449, 1
        %v1144 = vsel %vm820, %v1139, %v1143
        %v1145 = vrot.slane %v450, 1
        %v1146 = vsel %vm820, %v1141, %v1145
        %v1147 = vrot.slane %v451, 1
        %v1148 = vsel %vm820, %v1143, %v1147
        %v1149 = vrot.slane %v452, 1
        %v1150 = vsel %vm820, %v1145, %v1149
        %v1151 = vrot.slane %v453, 1
        %v1152 = vsel %vm820, %v1147, %v1151
        %v1153 = vrot.slane %v454, 1
        %v1154 = vsel %vm820, %v1149, %v1153
        %v1155 = vrot.slane %v455, 1
        %v1156 = vsel %vm820, %v1151, %v1155
        %v1157 = vrot.slane %v456, 1
        %v1158 = vsel %vm820, %v1153, %v1157
        %v1159 = vrot.slane %v457, 1
        %v1160 = vsel %vm820, %v1155, %v1159
        %v1161 = vrot.slane %v458, 1
        %v1162 = vsel %vm820, %v1157, %v1161
        %v1163 = vrot.slane %v459, 1
        %v1164 = vsel %vm820, %v1159, %v1163
        %v1165 = vrot.slane %v570, 1
        %v1166 = vsel %vm820, %v1161, %v1165
        %v1167 = vrot.slane %v571, 1
        %v1168 = vsel %vm820, %v1163, %v1167
        %v1169 = vrot.slane %v572, 1
        %v1170 = vrot.slane %v462, 1
        %v1171 = vsel %vm820, %v1169, %v1170
        %v1172 = vrot.slane %v573, 1
        %v1173 = vrot.slane %v463, 1
        %v1174 = vsel %vm820, %v1172, %v1173
        %v1175 = vrot.slane %v464, 1
        %v1176 = vsel %vm820, %v1170, %v1175
        %v1177 = vrot.slane %v465, 1
        %v1178 = vsel %vm820, %v1173, %v1177
        %v1179 = vrot.slane %v466, 1
        %v1180 = vsel %vm820, %v1175, %v1179
        %v1181 = vrot.slane %v467, 1
        %v1182 = vsel %vm820, %v1177, %v1181
        %v1183 = vrot.slane %v468, 1
        %v1184 = vsel %vm820, %v1179, %v1183
        %v1185 = vrot.slane %v469, 1
        %v1186 = vsel %vm820, %v1181, %v1185
        %v1187 = vrot.slane %v470, 1
        %v1188 = vsel %vm820, %v1183, %v1187
        %v1189 = vrot.slane %v471, 1
        %v1190 = vsel %vm820, %v1185, %v1189
        %v1191 = vrot.slane %v472, 1
        %v1192 = vsel %vm820, %v1187, %v1191
        %v1193 = vrot.slane %v473, 1
        %v1194 = vsel %vm820, %v1189, %v1193
        %v1195 = vrot.slane %v474, 1
        %v1196 = vsel %vm820, %v1191, %v1195
        %v1197 = vrot.slane %v475, 1
        %v1198 = vsel %vm820, %v1193, %v1197
        %v1199 = vrot.slane %v476, 1
        %v1200 = vsel %vm820, %v1195, %v1199
        %v1201 = vrot.slane %v477, 1
        %v1202 = vsel %vm820, %v1197, %v1201
        %v1203 = vrot.slane %v478, 1
        %v1204 = vsel %vm820, %v1199, %v1203
        %v1205 = vrot.slane %v479, 1
        %v1206 = vsel %vm820, %v1201, %v1205
        %v1207 = vrot.slane %v480, 1
        %v1208 = vsel %vm820, %v1203, %v1207
        %v1209 = vrot.slane %v481, 1
        %v1210 = vsel %vm820, %v1205, %v1209
        %v1211 = vrot.slane %v482, 1
        %v1212 = vsel %vm820, %v1207, %v1211
        %v1213 = vrot.slane %v483, 1
        %v1214 = vsel %vm820, %v1209, %v1213
        %v1215 = vrot.slane %v484, 1
        %v1216 = vsel %vm820, %v1211, %v1215
        %v1217 = vrot.slane %v485, 1
        %v1218 = vsel %vm820, %v1213, %v1217
        %v1219 = vrot.slane %v486, 1
        %v1220 = vsel %vm820, %v1215, %v1219
        %v1221 = vrot.slane %v487, 1
        %v1222 = vsel %vm820, %v1217, %v1221
        %v1223 = vrot.slane %v574, 1
        %v1224 = vsel %vm820, %v1219, %v1223
        %v1225 = vrot.slane %v575, 1
        %v1226 = vsel %vm820, %v1221, %v1225
        %v1227 = vrot.slane %v576, 1
        %v1228 = vrot.slane %v490, 1
        %v1229 = vsel %vm820, %v1227, %v1228
        %v1230 = vrot.slane %v577, 1
        %v1231 = vrot.slane %v491, 1
        %v1232 = vsel %vm820, %v1230, %v1231
        %v1233 = vrot.slane %v492, 1
        %v1234 = vsel %vm820, %v1228, %v1233
        %v1235 = vrot.slane %v493, 1
        %v1236 = vsel %vm820, %v1231, %v1235
        %v1237 = vrot.slane %v494, 1
        %v1238 = vsel %vm820, %v1233, %v1237
        %v1239 = vrot.slane %v495, 1
        %v1240 = vsel %vm820, %v1235, %v1239
        %v1241 = vrot.slane %v496, 1
        %v1242 = vsel %vm820, %v1237, %v1241
        %v1243 = vrot.slane %v497, 1
        %v1244 = vsel %vm820, %v1239, %v1243
        %v1245 = vrot.slane %v498, 1
        %v1246 = vsel %vm820, %v1241, %v1245
        %v1247 = vrot.slane %v499, 1
        %v1248 = vsel %vm820, %v1243, %v1247
        %v1249 = vrot.slane %v500, 1
        %v1250 = vsel %vm820, %v1245, %v1249
        %v1251 = vrot.slane %v501, 1
        %v1252 = vsel %vm820, %v1247, %v1251
        %v1253 = vrot.slane %v502, 1
        %v1254 = vsel %vm820, %v1249, %v1253
        %v1255 = vrot.slane %v503, 1
        %v1256 = vsel %vm820, %v1251, %v1255
        %v1257 = vrot.slane %v504, 1
        %v1258 = vsel %vm820, %v1253, %v1257
        %v1259 = vrot.slane %v505, 1
        %v1260 = vsel %vm820, %v1255, %v1259
        %v1261 = vrot.slane %v506, 1
        %v1262 = vsel %vm820, %v1257, %v1261
        %v1263 = vrot.slane %v507, 1
        %v1264 = vsel %vm820, %v1259, %v1263
        %v1265 = vrot.slane %v508, 1
        %v1266 = vsel %vm820, %v1261, %v1265
        %v1267 = vrot.slane %v509, 1
        %v1268 = vsel %vm820, %v1263, %v1267
        %v1269 = vrot.slane %v510, 1
        %v1270 = vsel %vm820, %v1265, %v1269
        %v1271 = vrot.slane %v511, 1
        %v1272 = vsel %vm820, %v1267, %v1271
        %v1273 = vrot.slane %v512, 1
        %v1274 = vsel %vm820, %v1269, %v1273
        %v1275 = vrot.slane %v513, 1
        %v1276 = vsel %vm820, %v1271, %v1275
        %v1277 = vrot.slane %v514, 1
        %v1278 = vsel %vm820, %v1273, %v1277
        %v1279 = vrot.slane %v515, 1
        %v1280 = vsel %vm820, %v1275, %v1279
        %v1281 = vrot.slane %v578, 1
        %v1282 = vsel %vm820, %v1277, %v1281
        %v1283 = vrot.slane %v579, 1
        %v1284 = vsel %vm820, %v1279, %v1283
        %s1509 = scalar_lea.vmem %s1, 256
        %v1510 = vld [vmem:[%s1509] sm:$0xff]
        %v1511 = vld [vmem:[%s1509 + $0x8] sm:$0xff]
        %v1512 = vld [vmem:[%s1509 + $0x10] sm:$0xff]
        %v1513 = vld [vmem:[%s1509 + $0x18] sm:$0xff]
        %v1514 = vld [vmem:[%s1509 + $0x20] sm:$0xff]
        %v1515 = vld [vmem:[%s1509 + $0x28] sm:$0xff]
        %v1516 = vld [vmem:[%s1509 + $0x30] sm:$0xff]
        %v1517 = vld [vmem:[%s1509 + $0x38] sm:$0xff]
        %v1518 = vld [vmem:[%s1509 + $0x40] sm:$0xff]
        %v1519 = vld [vmem:[%s1509 + $0x48] sm:$0xff]
        %v1520 = vld [vmem:[%s1509 + $0x50] sm:$0xff]
        %v1521 = vld [vmem:[%s1509 + $0x58] sm:$0xff]
        %v1522 = vld [vmem:[%s1509 + $0x60] sm:$0xff]
        %v1523 = vld [vmem:[%s1509 + $0x68] sm:$0xff]
        %v1524 = vld [vmem:[%s1509 + $0x70] sm:$0xff]
        %v1525 = vld [vmem:[%s1509 + $0x78] sm:$0xff]
        %v1526 = vld [vmem:[%s1509 + $0x80] sm:$0xff]
        %v1527 = vld [vmem:[%s1509 + $0x88] sm:$0xff]
        %v1528 = vld [vmem:[%s1509 + $0x90] sm:$0xff]
        %v1529 = vld [vmem:[%s1509 + $0x98] sm:$0xff]
        %v1530 = vld [vmem:[%s1509 + $0xa0] sm:$0xff]
        %v1531 = vld [vmem:[%s1509 + $0xa8] sm:$0xff]
        %v1532 = vld [vmem:[%s1509 + $0xb0] sm:$0xff]
        %v1533 = vld [vmem:[%s1509 + $0xb8] sm:$0xff]
        %v1534 = vld [vmem:[%s1509 + $0xc0] sm:$0xff]
        %v1535 = vld [vmem:[%s1509 + $0xc8] sm:$0xff]
        %v1536 = vld [vmem:[%s1509 + $0xd0] sm:$0xff]
        %v1537 = vld [vmem:[%s1509 + $0xd8] sm:$0xff]
        %v1538 = vld [vmem:[%s1509 + $0xe0] sm:$0xff]
        %v1539 = vld [vmem:[%s1509 + $0xe8] sm:$0xff]
        %v1540 = vld [vmem:[%s1509 + $0xf0] sm:$0xff]
        %v1541 = vld [vmem:[%s1509 + $0xf8] sm:$0xff]
        %1542 = vmatprep.subr.mxu0 0.0
        %1543 = vmatpush1.msra.mxu0 %v1525
        %1544 = vmatprep.subr.mxu0 0.0
        %1545 = vmatpush1.msra.mxu0 %v1524
        %1546 = vmatprep.subr.mxu0 0.0
        %1547 = vmatpush1.msra.mxu0 %v1523
        %1548 = vmatprep.subr.mxu0 0.0
        %1549 = vmatpush1.msra.mxu0 %v1522
        %1550 = vmatprep.subr.mxu0 0.0
        %1551 = vmatpush1.msra.mxu0 %v1521
        %1552 = vmatprep.subr.mxu0 0.0
        %1553 = vmatpush1.msra.mxu0 %v1520
        %1554 = vmatprep.subr.mxu0 0.0
        %1555 = vmatpush1.msra.mxu0 %v1519
        %1556 = vmatprep.subr.mxu0 0.0
        %1557 = vmatpush1.msra.mxu0 %v1518
        %1558 = vmatprep.subr.mxu0 0.0
        %1559 = vmatpush1.msra.mxu0 %v1517
        %1560 = vmatprep.subr.mxu0 0.0
        %1561 = vmatpush1.msra.mxu0 %v1516
        %1562 = vmatprep.subr.mxu0 0.0
        %1563 = vmatpush1.msra.mxu0 %v1515
        %1564 = vmatprep.subr.mxu0 0.0
        %1565 = vmatpush1.msra.mxu0 %v1514
        %1566 = vmatprep.subr.mxu0 0.0
        %1567 = vmatpush1.msra.mxu0 %v1513
        %1568 = vmatprep.subr.mxu0 0.0
        %1569 = vmatpush1.msra.mxu0 %v1512
        %1570 = vmatprep.subr.mxu0 0.0
        %1571 = vmatpush1.msra.mxu0 %v1511
        %1572 = vmatprep.subr.mxu0 0.0
        %1573 = vmatpush1.msra.mxu0 %v1510
        %1574 = vmatprep.subr.mxu0 0.0
        %1575 = vmatpush2.msra.mxu0 %v1541
        %1576 = vmatprep.subr.mxu0 0.0
        %1577 = vmatpush2.msra.mxu0 %v1540
        %1578 = vmatprep.subr.mxu0 0.0
        %1579 = vmatpush2.msra.mxu0 %v1539
        %1580 = vmatprep.subr.mxu0 0.0
        %1581 = vmatpush2.msra.mxu0 %v1538
        %1582 = vmatprep.subr.mxu0 0.0
        %1583 = vmatpush2.msra.mxu0 %v1537
        %1584 = vmatprep.subr.mxu0 0.0
        %1585 = vmatpush2.msra.mxu0 %v1536
        %1586 = vmatprep.subr.mxu0 0.0
        %1587 = vmatpush2.msra.mxu0 %v1535
        %1588 = vmatprep.subr.mxu0 0.0
        %1589 = vmatpush2.msra.mxu0 %v1534
        %1590 = vmatprep.subr.mxu0 0.0
        %1591 = vmatpush2.msra.mxu0 %v1533
        %1592 = vmatprep.subr.mxu0 0.0
        %1593 = vmatpush2.msra.mxu0 %v1532
        %1594 = vmatprep.subr.mxu0 0.0
        %1595 = vmatpush2.msra.mxu0 %v1531
        %1596 = vmatprep.subr.mxu0 0.0
        %1597 = vmatpush2.msra.mxu0 %v1530
        %1598 = vmatprep.subr.mxu0 0.0
        %1599 = vmatpush2.msra.mxu0 %v1529
        %1600 = vmatprep.subr.mxu0 0.0
        %1601 = vmatpush2.msra.mxu0 %v1528
        %1602 = vmatprep.subr.mxu0 0.0
        %1603 = vmatpush2.msra.mxu0 %v1527
        %1604 = vmatprep.subr.mxu0 0.0
        %1605 = vmatpush2.msra.mxu0 %v1526
        %1606 = vmatprep.mubr.f32.mxu0 %v826
        %1607 = vmatmul.mubr.f32.gmra.mxu0 %v823
        %v1608 = vpop.f32.mrf.mxu0
        %v1609 = vadd.f32 0.0, %v1608
        %v1610 = vpop.f32.mrf.mxu0
        %1611 = vmatprep.mubr.f32.mxu0 %v830
        %1612 = vmatmul.mubr.f32.gmra.mxu0 %v828
        %v1613 = vpop.f32.mrf.mxu0
        %v1614 = vadd.f32 0.0, %v1613
        %v1615 = vpop.f32.mrf.mxu0
        %1616 = vmatprep.mubr.f32.mxu0 %v834
        %1617 = vmatmul.mubr.f32.gmra.mxu0 %v832
        %v1618 = vpop.f32.mrf.mxu0
        %v1619 = vpop.f32.mrf.mxu0
        %1620 = vmatprep.mubr.f32.mxu0 %v838
        %1621 = vmatmul.mubr.f32.gmra.mxu0 %v836
        %v1622 = vpop.f32.mrf.mxu0
        %v1623 = vpop.f32.mrf.mxu0
        %1624 = vmatprep.mubr.f32.mxu0 %v842
        %1625 = vmatmul.mubr.f32.gmra.mxu0 %v840
        %v1626 = vpop.f32.mrf.mxu0
        %v1627 = vadd.f32 0.0, %v1626
        %v1628 = vpop.f32.mrf.mxu0
        %1629 = vmatprep.mubr.f32.mxu0 %v846
        %1630 = vmatmul.mubr.f32.gmra.mxu0 %v844
        %v1631 = vpop.f32.mrf.mxu0
        %v1632 = vadd.f32 0.0, %v1631
        %v1633 = vpop.f32.mrf.mxu0
        %1634 = vmatprep.mubr.f32.mxu0 %v850
        %1635 = vmatmul.mubr.f32.gmra.mxu0 %v848
        %v1636 = vpop.f32.mrf.mxu0
        %v1637 = vpop.f32.mrf.mxu0
        %1638 = vmatprep.mubr.f32.mxu0 %v854
        %1639 = vmatmul.mubr.f32.gmra.mxu0 %v852
        %v1640 = vpop.f32.mrf.mxu0
        %v1641 = vpop.f32.mrf.mxu0
        %1642 = vmatprep.mubr.f32.mxu0 %v858
        %1643 = vmatmul.mubr.f32.gmra.mxu0 %v856
        %v1644 = vpop.f32.mrf.mxu0
        %v1645 = vadd.f32 0.0, %v1644
        %v1646 = vpop.f32.mrf.mxu0
        %1647 = vmatprep.mubr.f32.mxu0 %v862
        %1648 = vmatmul.mubr.f32.gmra.mxu0 %v860
        %v1649 = vpop.f32.mrf.mxu0
        %v1650 = vadd.f32 0.0, %v1649
        %v1651 = vpop.f32.mrf.mxu0
        %1652 = vmatprep.mubr.f32.mxu0 %v866
        %1653 = vmatmul.mubr.f32.gmra.mxu0 %v864
        %v1654 = vpop.f32.mrf.mxu0
        %v1655 = vpop.f32.mrf.mxu0
        %1656 = vmatprep.mubr.f32.mxu0 %v870
        %1657 = vmatmul.mubr.f32.gmra.mxu0 %v868
        %v1658 = vpop.f32.mrf.mxu0
        %v1659 = vpop.f32.mrf.mxu0
        %1660 = vmatprep.mubr.f32.mxu0 %v874
        %1661 = vmatmul.mubr.f32.gmra.mxu0 %v872
        %v1662 = vpop.f32.mrf.mxu0
        %v1663 = vadd.f32 0.0, %v1662
        %v1664 = vpop.f32.mrf.mxu0
        %1665 = vmatprep.mubr.f32.mxu0 %v878
        %1666 = vmatmul.mubr.f32.gmra.mxu0 %v876
        %v1667 = vpop.f32.mrf.mxu0
        %v1668 = vadd.f32 0.0, %v1667
        %v1669 = vpop.f32.mrf.mxu0
        %1670 = vmatprep.mubr.f32.mxu0 %v884
        %1671 = vmatmul.mubr.f32.gmra.mxu0 %v881
        %v1672 = vpop.f32.mrf.mxu0
        %v1673 = vadd.f32 0.0, %v1672
        %v1674 = vpop.f32.mrf.mxu0
        %1675 = vmatprep.mubr.f32.mxu0 %v888
        %1676 = vmatmul.mubr.f32.gmra.mxu0 %v886
        %v1677 = vpop.f32.mrf.mxu0
        %v1678 = vadd.f32 0.0, %v1677
        %v1679 = vpop.f32.mrf.mxu0
        %1680 = vmatprep.mubr.f32.mxu0 %v892
        %1681 = vmatmul.mubr.f32.gmra.mxu0 %v890
        %v1682 = vpop.f32.mrf.mxu0
        %v1683 = vpop.f32.mrf.mxu0
        %1684 = vmatprep.mubr.f32.mxu0 %v896
        %1685 = vmatmul.mubr.f32.gmra.mxu0 %v894
        %v1686 = vpop.f32.mrf.mxu0
        %v1687 = vpop.f32.mrf.mxu0
        %1688 = vmatprep.mubr.f32.mxu0 %v900
        %1689 = vmatmul.mubr.f32.gmra.mxu0 %v898
        %v1690 = vpop.f32.mrf.mxu0
        %v1691 = vadd.f32 0.0, %v1690
        %v1692 = vpop.f32.mrf.mxu0
        %1693 = vmatprep.mubr.f32.mxu0 %v904
        %1694 = vmatmul.mubr.f32.gmra.mxu0 %v902
        %v1695 = vpop.f32.mrf.mxu0
        %v1696 = vadd.f32 0.0, %v1695
        %v1697 = vpop.f32.mrf.mxu0
        %1698 = vmatprep.mubr.f32.mxu0 %v908
        %1699 = vmatmul.mubr.f32.gmra.mxu0 %v906
        %v1700 = vpop.f32.mrf.mxu0
        %v1701 = vpop.f32.mrf.mxu0
        %1702 = vmatprep.mubr.f32.mxu0 %v912
        %1703 = vmatmul.mubr.f32.gmra.mxu0 %v910
        %v1704 = vpop.f32.mrf.mxu0
        %v1705 = vpop.f32.mrf.mxu0
        %1706 = vmatprep.mubr.f32.mxu0 %v916
        %1707 = vmatmul.mubr.f32.gmra.mxu0 %v914
        %v1708 = vpop.f32.mrf.mxu0
        %v1709 = vadd.f32 0.0, %v1708
        %v1710 = vpop.f32.mrf.mxu0
        %1711 = vmatprep.mubr.f32.mxu0 %v920
        %1712 = vmatmul.mubr.f32.gmra.mxu0 %v918
        %v1713 = vpop.f32.mrf.mxu0
        %v1714 = vadd.f32 0.0, %v1713
        %v1715 = vpop.f32.mrf.mxu0
        %1716 = vmatprep.mubr.f32.mxu0 %v924
        %1717 = vmatmul.mubr.f32.gmra.mxu0 %v922
        %v1718 = vpop.f32.mrf.mxu0
        %v1719 = vpop.f32.mrf.mxu0
        %1720 = vmatprep.mubr.f32.mxu0 %v928
        %1721 = vmatmul.mubr.f32.gmra.mxu0 %v926
        %v1722 = vpop.f32.mrf.mxu0
        %v1723 = vpop.f32.mrf.mxu0
        %1724 = vmatprep.mubr.f32.mxu0 %v932
        %1725 = vmatmul.mubr.f32.gmra.mxu0 %v930
        %v1726 = vpop.f32.mrf.mxu0
        %v1727 = vadd.f32 0.0, %v1726
        %v1728 = vpop.f32.mrf.mxu0
        %1729 = vmatprep.mubr.f32.mxu0 %v936
        %1730 = vmatmul.mubr.f32.gmra.mxu0 %v934
        %v1731 = vpop.f32.mrf.mxu0
        %v1732 = vadd.f32 0.0, %v1731
        %v1733 = vpop.f32.mrf.mxu0
        %1734 = vmatprep.mubr.f32.mxu0 %v942
        %1735 = vmatmul.mubr.f32.gmra.mxu0 %v939
        %v1736 = vpop.f32.mrf.mxu0
        %v1737 = vadd.f32 0.0, %v1736
        %v1738 = vpop.f32.mrf.mxu0
        %1739 = vmatprep.mubr.f32.mxu0 %v946
        %1740 = vmatmul.mubr.f32.gmra.mxu0 %v944
        %v1741 = vpop.f32.mrf.mxu0
        %v1742 = vadd.f32 0.0, %v1741
        %v1743 = vpop.f32.mrf.mxu0
        %1744 = vmatprep.mubr.f32.mxu0 %v950
        %1745 = vmatmul.mubr.f32.gmra.mxu0 %v948
        %v1746 = vpop.f32.mrf.mxu0
        %v1747 = vpop.f32.mrf.mxu0
        %1748 = vmatprep.mubr.f32.mxu0 %v954
        %1749 = vmatmul.mubr.f32.gmra.mxu0 %v952
        %v1750 = vpop.f32.mrf.mxu0
        %v1751 = vpop.f32.mrf.mxu0
        %1752 = vmatprep.mubr.f32.mxu0 %v958
        %1753 = vmatmul.mubr.f32.gmra.mxu0 %v956
        %v1754 = vpop.f32.mrf.mxu0
        %v1755 = vadd.f32 0.0, %v1754
        %v1756 = vpop.f32.mrf.mxu0
        %1757 = vmatprep.mubr.f32.mxu0 %v962
        %1758 = vmatmul.mubr.f32.gmra.mxu0 %v960
        %v1759 = vpop.f32.mrf.mxu0
        %v1760 = vadd.f32 0.0, %v1759
        %v1761 = vpop.f32.mrf.mxu0
        %1762 = vmatprep.mubr.f32.mxu0 %v966
        %1763 = vmatmul.mubr.f32.gmra.mxu0 %v964
        %v1764 = vpop.f32.mrf.mxu0
        %v1765 = vpop.f32.mrf.mxu0
        %1766 = vmatprep.mubr.f32.mxu0 %v970
        %1767 = vmatmul.mubr.f32.gmra.mxu0 %v968
        %v1768 = vpop.f32.mrf.mxu0
        %v1769 = vpop.f32.mrf.mxu0
        %1770 = vmatprep.mubr.f32.mxu0 %v974
        %1771 = vmatmul.mubr.f32.gmra.mxu0 %v972
        %v1772 = vpop.f32.mrf.mxu0
        %v1773 = vadd.f32 0.0, %v1772
        %v1774 = vpop.f32.mrf.mxu0
        %1775 = vmatprep.mubr.f32.mxu0 %v978
        %1776 = vmatmul.mubr.f32.gmra.mxu0 %v976
        %v1777 = vpop.f32.mrf.mxu0
        %v1778 = vadd.f32 0.0, %v1777
        %v1779 = vpop.f32.mrf.mxu0
        %1780 = vmatprep.mubr.f32.mxu0 %v982
        %1781 = vmatmul.mubr.f32.gmra.mxu0 %v980
        %v1782 = vpop.f32.mrf.mxu0
        %v1783 = vpop.f32.mrf.mxu0
        %1784 = vmatprep.mubr.f32.mxu0 %v986
        %1785 = vmatmul.mubr.f32.gmra.mxu0 %v984
        %v1786 = vpop.f32.mrf.mxu0
        %v1787 = vpop.f32.mrf.mxu0
        %1788 = vmatprep.mubr.f32.mxu0 %v990
        %1789 = vmatmul.mubr.f32.gmra.mxu0 %v988
        %v1790 = vpop.f32.mrf.mxu0
        %v1791 = vadd.f32 0.0, %v1790
        %v1792 = vpop.f32.mrf.mxu0
        %1793 = vmatprep.mubr.f32.mxu0 %v994
        %1794 = vmatmul.mubr.f32.gmra.mxu0 %v992
        %v1795 = vpop.f32.mrf.mxu0
        %v1796 = vadd.f32 0.0, %v1795
        %v1797 = vpop.f32.mrf.mxu0
        %1798 = vmatprep.mubr.f32.mxu0 %v1000
        %1799 = vmatmul.mubr.f32.gmra.mxu0 %v997
        %v1800 = vpop.f32.mrf.mxu0
        %v1801 = vadd.f32 0.0, %v1800
        %v1802 = vpop.f32.mrf.mxu0
        %1803 = vmatprep.mubr.f32.mxu0 %v1004
        %1804 = vmatmul.mubr.f32.gmra.mxu0 %v1002
        %v1805 = vpop.f32.mrf.mxu0
        %v1806 = vadd.f32 0.0, %v1805
        %v1807 = vpop.f32.mrf.mxu0
        %1808 = vmatprep.mubr.f32.mxu0 %v1008
        %1809 = vmatmul.mubr.f32.gmra.mxu0 %v1006
        %v1810 = vpop.f32.mrf.mxu0
        %v1811 = vpop.f32.mrf.mxu0
        %1812 = vmatprep.mubr.f32.mxu0 %v1012
        %1813 = vmatmul.mubr.f32.gmra.mxu0 %v1010
        %v1814 = vpop.f32.mrf.mxu0
        %v1815 = vpop.f32.mrf.mxu0
        %1816 = vmatprep.mubr.f32.mxu0 %v1016
        %1817 = vmatmul.mubr.f32.gmra.mxu0 %v1014
        %v1818 = vpop.f32.mrf.mxu0
        %v1819 = vadd.f32 0.0, %v1818
        %v1820 = vpop.f32.mrf.mxu0
        %1821 = vmatprep.mubr.f32.mxu0 %v1020
        %1822 = vmatmul.mubr.f32.gmra.mxu0 %v1018
        %v1823 = vpop.f32.mrf.mxu0
        %v1824 = vadd.f32 0.0, %v1823
        %v1825 = vpop.f32.mrf.mxu0
        %1826 = vmatprep.mubr.f32.mxu0 %v1024
        %1827 = vmatmul.mubr.f32.gmra.mxu0 %v1022
        %v1828 = vpop.f32.mrf.mxu0
        %v1829 = vpop.f32.mrf.mxu0
        %1830 = vmatprep.mubr.f32.mxu0 %v1028
        %1831 = vmatmul.mubr.f32.gmra.mxu0 %v1026
        %v1832 = vpop.f32.mrf.mxu0
        %v1833 = vpop.f32.mrf.mxu0
        %1834 = vmatprep.mubr.f32.mxu0 %v1032
        %1835 = vmatmul.mubr.f32.gmra.mxu0 %v1030
        %v1836 = vpop.f32.mrf.mxu0
        %v1837 = vadd.f32 0.0, %v1836
        %v1838 = vpop.f32.mrf.mxu0
        %1839 = vmatprep.mubr.f32.mxu0 %v1036
        %1840 = vmatmul.mubr.f32.gmra.mxu0 %v1034
        %v1841 = vpop.f32.mrf.mxu0
        %v1842 = vadd.f32 0.0, %v1841
        %v1843 = vpop.f32.mrf.mxu0
        %1844 = vmatprep.mubr.f32.mxu0 %v1040
        %1845 = vmatmul.mubr.f32.gmra.mxu0 %v1038
        %v1846 = vpop.f32.mrf.mxu0
        %v1847 = vpop.f32.mrf.mxu0
        %1848 = vmatprep.mubr.f32.mxu0 %v1044
        %1849 = vmatmul.mubr.f32.gmra.mxu0 %v1042
        %v1850 = vpop.f32.mrf.mxu0
        %v1851 = vpop.f32.mrf.mxu0
        %1852 = vmatprep.mubr.f32.mxu0 %v1048
        %1853 = vmatmul.mubr.f32.gmra.mxu0 %v1046
        %v1854 = vpop.f32.mrf.mxu0
        %v1855 = vadd.f32 0.0, %v1854
        %v1856 = vpop.f32.mrf.mxu0
        %1857 = vmatprep.mubr.f32.mxu0 %v1052
        %1858 = vmatmul.mubr.f32.gmra.mxu0 %v1050
        %v1859 = vpop.f32.mrf.mxu0
        %v1860 = vadd.f32 0.0, %v1859
        %v1861 = vpop.f32.mrf.mxu0
        %1862 = vmatprep.mubr.f32.mxu0 %v1058
        %1863 = vmatmul.mubr.f32.gmra.mxu0 %v1055
        %v1864 = vpop.f32.mrf.mxu0
        %v1865 = vadd.f32 0.0, %v1864
        %v1866 = vpop.f32.mrf.mxu0
        %1867 = vmatprep.mubr.f32.mxu0 %v1062
        %1868 = vmatmul.mubr.f32.gmra.mxu0 %v1060
        %v1869 = vpop.f32.mrf.mxu0
        %v1870 = vadd.f32 0.0, %v1869
        %v1871 = vpop.f32.mrf.mxu0
        %1872 = vmatprep.mubr.f32.mxu0 %v1066
        %1873 = vmatmul.mubr.f32.gmra.mxu0 %v1064
        %v1874 = vpop.f32.mrf.mxu0
        %v1875 = vpop.f32.mrf.mxu0
        %1876 = vmatprep.mubr.f32.mxu0 %v1070
        %1877 = vmatmul.mubr.f32.gmra.mxu0 %v1068
        %v1878 = vpop.f32.mrf.mxu0
        %v1879 = vpop.f32.mrf.mxu0
        %1880 = vmatprep.mubr.f32.mxu0 %v1074
        %1881 = vmatmul.mubr.f32.gmra.mxu0 %v1072
        %v1882 = vpop.f32.mrf.mxu0
        %v1883 = vadd.f32 0.0, %v1882
        %v1884 = vpop.f32.mrf.mxu0
        %1885 = vmatprep.mubr.f32.mxu0 %v1078
        %1886 = vmatmul.mubr.f32.gmra.mxu0 %v1076
        %v1887 = vpop.f32.mrf.mxu0
        %v1888 = vadd.f32 0.0, %v1887
        %v1889 = vpop.f32.mrf.mxu0
        %1890 = vmatprep.mubr.f32.mxu0 %v1082
        %1891 = vmatmul.mubr.f32.gmra.mxu0 %v1080
        %v1892 = vpop.f32.mrf.mxu0
        %v1893 = vpop.f32.mrf.mxu0
        %1894 = vmatprep.mubr.f32.mxu0 %v1086
        %1895 = vmatmul.mubr.f32.gmra.mxu0 %v1084
        %v1896 = vpop.f32.mrf.mxu0
        %v1897 = vpop.f32.mrf.mxu0
        %1898 = vmatprep.mubr.f32.mxu0 %v1090
        %1899 = vmatmul.mubr.f32.gmra.mxu0 %v1088
        %v1900 = vpop.f32.mrf.mxu0
        %v1901 = vadd.f32 0.0, %v1900
        %v1902 = vpop.f32.mrf.mxu0
        %1903 = vmatprep.mubr.f32.mxu0 %v1094
        %1904 = vmatmul.mubr.f32.gmra.mxu0 %v1092
        %v1905 = vpop.f32.mrf.mxu0
        %v1906 = vadd.f32 0.0, %v1905
        %v1907 = vpop.f32.mrf.mxu0
        %1908 = vmatprep.mubr.f32.mxu0 %v1098
        %1909 = vmatmul.mubr.f32.gmra.mxu0 %v1096
        %v1910 = vpop.f32.mrf.mxu0
        %v1911 = vpop.f32.mrf.mxu0
        %1912 = vmatprep.mubr.f32.mxu0 %v1102
        %1913 = vmatmul.mubr.f32.gmra.mxu0 %v1100
        %v1914 = vpop.f32.mrf.mxu0
        %v1915 = vpop.f32.mrf.mxu0
        %1916 = vmatprep.mubr.f32.mxu0 %v1106
        %1917 = vmatmul.mubr.f32.gmra.mxu0 %v1104
        %v1918 = vpop.f32.mrf.mxu0
        %v1919 = vadd.f32 0.0, %v1918
        %v1920 = vpop.f32.mrf.mxu0
        %1921 = vmatprep.mubr.f32.mxu0 %v1110
        %1922 = vmatmul.mubr.f32.gmra.mxu0 %v1108
        %v1923 = vpop.f32.mrf.mxu0
        %v1924 = vadd.f32 0.0, %v1923
        %v1925 = vpop.f32.mrf.mxu0
        %1926 = vmatprep.mubr.f32.mxu0 %v1116
        %1927 = vmatmul.mubr.f32.gmra.mxu0 %v1113
        %v1928 = vpop.f32.mrf.mxu0
        %v1929 = vadd.f32 0.0, %v1928
        %v1930 = vpop.f32.mrf.mxu0
        %1931 = vmatprep.mubr.f32.mxu0 %v1120
        %1932 = vmatmul.mubr.f32.gmra.mxu0 %v1118
        %v1933 = vpop.f32.mrf.mxu0
        %v1934 = vadd.f32 0.0, %v1933
        %v1935 = vpop.f32.mrf.mxu0
        %1936 = vmatprep.mubr.f32.mxu0 %v1124
        %1937 = vmatmul.mubr.f32.gmra.mxu0 %v1122
        %v1938 = vpop.f32.mrf.mxu0
        %v1939 = vpop.f32.mrf.mxu0
        %1940 = vmatprep.mubr.f32.mxu0 %v1128
        %1941 = vmatmul.mubr.f32.gmra.mxu0 %v1126
        %v1942 = vpop.f32.mrf.mxu0
        %v1943 = vpop.f32.mrf.mxu0
        %1944 = vmatprep.mubr.f32.mxu0 %v1132
        %1945 = vmatmul.mubr.f32.gmra.mxu0 %v1130
        %v1946 = vpop.f32.mrf.mxu0
        %v1947 = vadd.f32 0.0, %v1946
        %v1948 = vpop.f32.mrf.mxu0
        %1949 = vmatprep.mubr.f32.mxu0 %v1136
        %1950 = vmatmul.mubr.f32.gmra.mxu0 %v1134
        %v1951 = vpop.f32.mrf.mxu0
        %v1952 = vadd.f32 0.0, %v1951
        %v1953 = vpop.f32.mrf.mxu0
        %1954 = vmatprep.mubr.f32.mxu0 %v1140
        %1955 = vmatmul.mubr.f32.gmra.mxu0 %v1138
        %v1956 = vpop.f32.mrf.mxu0
        %v1957 = vpop.f32.mrf.mxu0
        %1958 = vmatprep.mubr.f32.mxu0 %v1144
        %1959 = vmatmul.mubr.f32.gmra.mxu0 %v1142
        %v1960 = vpop.f32.mrf.mxu0
        %v1961 = vpop.f32.mrf.mxu0
        %1962 = vmatprep.mubr.f32.mxu0 %v1148
        %1963 = vmatmul.mubr.f32.gmra.mxu0 %v1146
        %v1964 = vpop.f32.mrf.mxu0
        %v1965 = vadd.f32 0.0, %v1964
        %v1966 = vpop.f32.mrf.mxu0
        %1967 = vmatprep.mubr.f32.mxu0 %v1152
        %1968 = vmatmul.mubr.f32.gmra.mxu0 %v1150
        %v1969 = vpop.f32.mrf.mxu0
        %v1970 = vadd.f32 0.0, %v1969
        %v1971 = vpop.f32.mrf.mxu0
        %1972 = vmatprep.mubr.f32.mxu0 %v1156
        %1973 = vmatmul.mubr.f32.gmra.mxu0 %v1154
        %v1974 = vpop.f32.mrf.mxu0
        %v1975 = vpop.f32.mrf.mxu0
        %1976 = vmatprep.mubr.f32.mxu0 %v1160
        %1977 = vmatmul.mubr.f32.gmra.mxu0 %v1158
        %v1978 = vpop.f32.mrf.mxu0
        %v1979 = vpop.f32.mrf.mxu0
        %1980 = vmatprep.mubr.f32.mxu0 %v1164
        %1981 = vmatmul.mubr.f32.gmra.mxu0 %v1162
        %v1982 = vpop.f32.mrf.mxu0
        %v1983 = vadd.f32 0.0, %v1982
        %v1984 = vpop.f32.mrf.mxu0
        %1985 = vmatprep.mubr.f32.mxu0 %v1168
        %1986 = vmatmul.mubr.f32.gmra.mxu0 %v1166
        %v1987 = vpop.f32.mrf.mxu0
        %v1988 = vadd.f32 0.0, %v1987
        %v1989 = vpop.f32.mrf.mxu0
        %1990 = vmatprep.mubr.f32.mxu0 %v1174
        %1991 = vmatmul.mubr.f32.gmra.mxu0 %v1171
        %v1992 = vpop.f32.mrf.mxu0
        %v1993 = vadd.f32 0.0, %v1992
        %v1994 = vpop.f32.mrf.mxu0
        %1995 = vmatprep.mubr.f32.mxu0 %v1178
        %1996 = vmatmul.mubr.f32.gmra.mxu0 %v1176
        %v1997 = vpop.f32.mrf.mxu0
        %v1998 = vadd.f32 0.0, %v1997
        %v1999 = vpop.f32.mrf.mxu0
        %2000 = vmatprep.mubr.f32.mxu0 %v1182
        %2001 = vmatmul.mubr.f32.gmra.mxu0 %v1180
        %v2002 = vpop.f32.mrf.mxu0
        %v2003 = vpop.f32.mrf.mxu0
        %2004 = vmatprep.mubr.f32.mxu0 %v1186
        %2005 = vmatmul.mubr.f32.gmra.mxu0 %v1184
        %v2006 = vpop.f32.mrf.mxu0
        %v2007 = vpop.f32.mrf.mxu0
        %2008 = vmatprep.mubr.f32.mxu0 %v1190
        %2009 = vmatmul.mubr.f32.gmra.mxu0 %v1188
        %v2010 = vpop.f32.mrf.mxu0
        %v2011 = vadd.f32 0.0, %v2010
        %v2012 = vpop.f32.mrf.mxu0
        %2013 = vmatprep.mubr.f32.mxu0 %v1194
        %2014 = vmatmul.mubr.f32.gmra.mxu0 %v1192
        %v2015 = vpop.f32.mrf.mxu0
        %v2016 = vadd.f32 0.0, %v2015
        %v2017 = vpop.f32.mrf.mxu0
        %2018 = vmatprep.mubr.f32.mxu0 %v1198
        %2019 = vmatmul.mubr.f32.gmra.mxu0 %v1196
        %v2020 = vpop.f32.mrf.mxu0
        %v2021 = vpop.f32.mrf.mxu0
        %2022 = vmatprep.mubr.f32.mxu0 %v1202
        %2023 = vmatmul.mubr.f32.gmra.mxu0 %v1200
        %v2024 = vpop.f32.mrf.mxu0
        %v2025 = vpop.f32.mrf.mxu0
        %2026 = vmatprep.mubr.f32.mxu0 %v1206
        %2027 = vmatmul.mubr.f32.gmra.mxu0 %v1204
        %v2028 = vpop.f32.mrf.mxu0
        %v2029 = vadd.f32 0.0, %v2028
        %v2030 = vpop.f32.mrf.mxu0
        %2031 = vmatprep.mubr.f32.mxu0 %v1210
        %2032 = vmatmul.mubr.f32.gmra.mxu0 %v1208
        %v2033 = vpop.f32.mrf.mxu0
        %v2034 = vadd.f32 0.0, %v2033
        %v2035 = vpop.f32.mrf.mxu0
        %2036 = vmatprep.mubr.f32.mxu0 %v1214
        %2037 = vmatmul.mubr.f32.gmra.mxu0 %v1212
        %v2038 = vpop.f32.mrf.mxu0
        %v2039 = vpop.f32.mrf.mxu0
        %2040 = vmatprep.mubr.f32.mxu0 %v1218
        %2041 = vmatmul.mubr.f32.gmra.mxu0 %v1216
        %v2042 = vpop.f32.mrf.mxu0
        %v2043 = vpop.f32.mrf.mxu0
        %2044 = vmatprep.mubr.f32.mxu0 %v1222
        %2045 = vmatmul.mubr.f32.gmra.mxu0 %v1220
        %v2046 = vpop.f32.mrf.mxu0
        %v2047 = vadd.f32 0.0, %v2046
        %v2048 = vpop.f32.mrf.mxu0
        %2049 = vmatprep.mubr.f32.mxu0 %v1226
        %2050 = vmatmul.mubr.f32.gmra.mxu0 %v1224
        %v2051 = vpop.f32.mrf.mxu0
        %v2052 = vadd.f32 0.0, %v2051
        %v2053 = vpop.f32.mrf.mxu0
        %2054 = vmatprep.mubr.f32.mxu0 %v1232
        %2055 = vmatmul.mubr.f32.gmra.mxu0 %v1229
        %v2056 = vpop.f32.mrf.mxu0
        %v2057 = vadd.f32 0.0, %v2056
        %v2058 = vpop.f32.mrf.mxu0
        %2059 = vmatprep.mubr.f32.mxu0 %v1236
        %2060 = vmatmul.mubr.f32.gmra.mxu0 %v1234
        %v2061 = vpop.f32.mrf.mxu0
        %v2062 = vadd.f32 0.0, %v2061
        %v2063 = vpop.f32.mrf.mxu0
        %2064 = vmatprep.mubr.f32.mxu0 %v1240
        %2065 = vmatmul.mubr.f32.gmra.mxu0 %v1238
        %v2066 = vpop.f32.mrf.mxu0
        %v2067 = vpop.f32.mrf.mxu0
        %2068 = vmatprep.mubr.f32.mxu0 %v1244
        %2069 = vmatmul.mubr.f32.gmra.mxu0 %v1242
        %v2070 = vpop.f32.mrf.mxu0
        %v2071 = vpop.f32.mrf.mxu0
        %2072 = vmatprep.mubr.f32.mxu0 %v1248
        %2073 = vmatmul.mubr.f32.gmra.mxu0 %v1246
        %v2074 = vpop.f32.mrf.mxu0
        %v2075 = vadd.f32 0.0, %v2074
        %v2076 = vpop.f32.mrf.mxu0
        %2077 = vmatprep.mubr.f32.mxu0 %v1252
        %2078 = vmatmul.mubr.f32.gmra.mxu0 %v1250
        %v2079 = vpop.f32.mrf.mxu0
        %v2080 = vadd.f32 0.0, %v2079
        %v2081 = vpop.f32.mrf.mxu0
        %2082 = vmatprep.mubr.f32.mxu0 %v1256
        %2083 = vmatmul.mubr.f32.gmra.mxu0 %v1254
        %v2084 = vpop.f32.mrf.mxu0
        %v2085 = vpop.f32.mrf.mxu0
        %2086 = vmatprep.mubr.f32.mxu0 %v1260
        %2087 = vmatmul.mubr.f32.gmra.mxu0 %v1258
        %v2088 = vpop.f32.mrf.mxu0
        %v2089 = vpop.f32.mrf.mxu0
        %2090 = vmatprep.mubr.f32.mxu0 %v1264
        %2091 = vmatmul.mubr.f32.gmra.mxu0 %v1262
        %v2092 = vpop.f32.mrf.mxu0
        %v2093 = vadd.f32 0.0, %v2092
        %v2094 = vpop.f32.mrf.mxu0
        %2095 = vmatprep.mubr.f32.mxu0 %v1268
        %2096 = vmatmul.mubr.f32.gmra.mxu0 %v1266
        %v2097 = vpop.f32.mrf.mxu0
        %v2098 = vadd.f32 0.0, %v2097
        %v2099 = vpop.f32.mrf.mxu0
        %2100 = vmatprep.mubr.f32.mxu0 %v1272
        %2101 = vmatmul.mubr.f32.gmra.mxu0 %v1270
        %v2102 = vpop.f32.mrf.mxu0
        %v2103 = vpop.f32.mrf.mxu0
        %2104 = vmatprep.mubr.f32.mxu0 %v1276
        %2105 = vmatmul.mubr.f32.gmra.mxu0 %v1274
        %v2106 = vpop.f32.mrf.mxu0
        %v2107 = vpop.f32.mrf.mxu0
        %2108 = vmatprep.mubr.f32.mxu0 %v1280
        %2109 = vmatmul.mubr.f32.gmra.mxu0 %v1278
        %v2110 = vpop.f32.mrf.mxu0
        %v2111 = vadd.f32 0.0, %v2110
        %v2112 = vpop.f32.mrf.mxu0
        %2113 = vmatprep.mubr.f32.mxu0 %v1284
        %2114 = vmatmul.mubr.f32.gmra.mxu0 %v1282
        %v2115 = vpop.f32.mrf.mxu0
        %v2116 = vadd.f32 0.0, %v2115
        %v2117 = vpop.f32.mrf.mxu0
        %2118 = vdwg.mxu0
        %2119 = vmatprep.subr.mxu0 0.0
        %2120 = vmatpush1.msra.mxu0 %v531
        %2121 = vmatprep.subr.mxu0 0.0
        %2122 = vmatpush1.msra.mxu0 %v530
        %2123 = vmatprep.subr.mxu0 0.0
        %2124 = vmatpush1.msra.mxu0 %v529
        %2125 = vmatprep.subr.mxu0 0.0
        %2126 = vmatpush1.msra.mxu0 %v528
        %2127 = vmatprep.subr.mxu0 0.0
        %2128 = vmatpush1.msra.mxu0 %v527
        %2129 = vmatprep.subr.mxu0 0.0
        %2130 = vmatpush1.msra.mxu0 %v526
        %2131 = vmatprep.subr.mxu0 0.0
        %2132 = vmatpush1.msra.mxu0 %v525
        %2133 = vmatprep.subr.mxu0 0.0
        %2134 = vmatpush1.msra.mxu0 %v524
        %2135 = vmatprep.subr.mxu0 0.0
        %2136 = vmatpush1.msra.mxu0 %v523
        %2137 = vmatprep.subr.mxu0 0.0
        %2138 = vmatpush1.msra.mxu0 %v522
        %2139 = vmatprep.subr.mxu0 0.0
        %2140 = vmatpush1.msra.mxu0 %v521
        %2141 = vmatprep.subr.mxu0 0.0
        %2142 = vmatpush1.msra.mxu0 %v520
        %2143 = vmatprep.subr.mxu0 0.0
        %2144 = vmatpush1.msra.mxu0 %v519
        %2145 = vmatprep.subr.mxu0 0.0
        %2146 = vmatpush1.msra.mxu0 %v518
        %2147 = vmatprep.subr.mxu0 0.0
        %2148 = vmatpush1.msra.mxu0 %v517
        %2149 = vmatprep.subr.mxu0 0.0
        %2150 = vmatpush1.msra.mxu0 %v516
        %2151 = vmatprep.subr.mxu0 0.0
        %2152 = vmatpush2.msra.mxu0 %v547
        %2153 = vmatprep.subr.mxu0 0.0
        %2154 = vmatpush2.msra.mxu0 %v546
        %2155 = vmatprep.subr.mxu0 0.0
        %2156 = vmatpush2.msra.mxu0 %v545
        %2157 = vmatprep.subr.mxu0 0.0
        %2158 = vmatpush2.msra.mxu0 %v544
        %2159 = vmatprep.subr.mxu0 0.0
        %2160 = vmatpush2.msra.mxu0 %v543
        %2161 = vmatprep.subr.mxu0 0.0
        %2162 = vmatpush2.msra.mxu0 %v542
        %2163 = vmatprep.subr.mxu0 0.0
        %2164 = vmatpush2.msra.mxu0 %v541
        %2165 = vmatprep.subr.mxu0 0.0
        %2166 = vmatpush2.msra.mxu0 %v540
        %2167 = vmatprep.subr.mxu0 0.0
        %2168 = vmatpush2.msra.mxu0 %v539
        %2169 = vmatprep.subr.mxu0 0.0
        %2170 = vmatpush2.msra.mxu0 %v538
        %2171 = vmatprep.subr.mxu0 0.0
        %2172 = vmatpush2.msra.mxu0 %v537
        %2173 = vmatprep.subr.mxu0 0.0
        %2174 = vmatpush2.msra.mxu0 %v536
        %2175 = vmatprep.subr.mxu0 0.0
        %2176 = vmatpush2.msra.mxu0 %v535
        %2177 = vmatprep.subr.mxu0 0.0
        %2178 = vmatpush2.msra.mxu0 %v534
        %2179 = vmatprep.subr.mxu0 0.0
        %2180 = vmatpush2.msra.mxu0 %v533
        %2181 = vmatprep.subr.mxu0 0.0
        %2182 = vmatpush2.msra.mxu0 %v532
        %2183 = vmatprep.mubr.f32.mxu0 %v293
        %2184 = vmatmul.mubr.f32.gmra.mxu0 %v292
        %v2185 = vpop.f32.mrf.mxu0
        %v2186 = vadd.f32 %v1609, %v2185
        %v2187 = vpop.f32.mrf.mxu0
        %2188 = vmatprep.mubr.f32.mxu0 %v295
        %2189 = vmatmul.mubr.f32.gmra.mxu0 %v294
        %v2190 = vpop.f32.mrf.mxu0
        %v2191 = vadd.f32 %v1614, %v2190
        %v2192 = vpop.f32.mrf.mxu0
        %2193 = vmatprep.mubr.f32.mxu0 %v297
        %2194 = vmatmul.mubr.f32.gmra.mxu0 %v296
        %v2195 = vpop.f32.mrf.mxu0
        %v2196 = vpop.f32.mrf.mxu0
        %2197 = vmatprep.mubr.f32.mxu0 %v299
        %2198 = vmatmul.mubr.f32.gmra.mxu0 %v298
        %v2199 = vpop.f32.mrf.mxu0
        %v2200 = vpop.f32.mrf.mxu0
        %2201 = vmatprep.mubr.f32.mxu0 %v301
        %2202 = vmatmul.mubr.f32.gmra.mxu0 %v300
        %v2203 = vpop.f32.mrf.mxu0
        %v2204 = vadd.f32 %v1627, %v2203
        %v2205 = vpop.f32.mrf.mxu0
        %2206 = vmatprep.mubr.f32.mxu0 %v303
        %2207 = vmatmul.mubr.f32.gmra.mxu0 %v302
        %v2208 = vpop.f32.mrf.mxu0
        %v2209 = vadd.f32 %v1632, %v2208
        %v2210 = vpop.f32.mrf.mxu0
        %2211 = vmatprep.mubr.f32.mxu0 %v305
        %2212 = vmatmul.mubr.f32.gmra.mxu0 %v304
        %v2213 = vpop.f32.mrf.mxu0
        %v2214 = vpop.f32.mrf.mxu0
        %2215 = vmatprep.mubr.f32.mxu0 %v307
        %2216 = vmatmul.mubr.f32.gmra.mxu0 %v306
        %v2217 = vpop.f32.mrf.mxu0
        %v2218 = vpop.f32.mrf.mxu0
        %2219 = vmatprep.mubr.f32.mxu0 %v309
        %2220 = vmatmul.mubr.f32.gmra.mxu0 %v308
        %v2221 = vpop.f32.mrf.mxu0
        %v2222 = vadd.f32 %v1645, %v2221
        %v2223 = vpop.f32.mrf.mxu0
        %2224 = vmatprep.mubr.f32.mxu0 %v311
        %2225 = vmatmul.mubr.f32.gmra.mxu0 %v310
        %v2226 = vpop.f32.mrf.mxu0
        %v2227 = vadd.f32 %v1650, %v2226
        %v2228 = vpop.f32.mrf.mxu0
        %2229 = vmatprep.mubr.f32.mxu0 %v313
        %2230 = vmatmul.mubr.f32.gmra.mxu0 %v312
        %v2231 = vpop.f32.mrf.mxu0
        %v2232 = vpop.f32.mrf.mxu0
        %2233 = vmatprep.mubr.f32.mxu0 %v315
        %2234 = vmatmul.mubr.f32.gmra.mxu0 %v314
        %v2235 = vpop.f32.mrf.mxu0
        %v2236 = vpop.f32.mrf.mxu0
        %2237 = vmatprep.mubr.f32.mxu0 %v317
        %2238 = vmatmul.mubr.f32.gmra.mxu0 %v316
        %v2239 = vpop.f32.mrf.mxu0
        %v2240 = vadd.f32 %v1663, %v2239
        %v2241 = vpop.f32.mrf.mxu0
        %2242 = vmatprep.mubr.f32.mxu0 %v319
        %2243 = vmatmul.mubr.f32.gmra.mxu0 %v318
        %v2244 = vpop.f32.mrf.mxu0
        %v2245 = vadd.f32 %v1668, %v2244
        %v2246 = vpop.f32.mrf.mxu0
        %2247 = vmatprep.mubr.f32.mxu0 %v321
        %2248 = vmatmul.mubr.f32.gmra.mxu0 %v320
        %v2249 = vpop.f32.mrf.mxu0
        %v2250 = vadd.f32 %v1673, %v2249
        %v2251 = vpop.f32.mrf.mxu0
        %2252 = vmatprep.mubr.f32.mxu0 %v323
        %2253 = vmatmul.mubr.f32.gmra.mxu0 %v322
        %v2254 = vpop.f32.mrf.mxu0
        %v2255 = vadd.f32 %v1678, %v2254
        %v2256 = vpop.f32.mrf.mxu0
        %2257 = vmatprep.mubr.f32.mxu0 %v325
        %2258 = vmatmul.mubr.f32.gmra.mxu0 %v324
        %v2259 = vpop.f32.mrf.mxu0
        %v2260 = vpop.f32.mrf.mxu0
        %2261 = vmatprep.mubr.f32.mxu0 %v327
        %2262 = vmatmul.mubr.f32.gmra.mxu0 %v326
        %v2263 = vpop.f32.mrf.mxu0
        %v2264 = vpop.f32.mrf.mxu0
        %2265 = vmatprep.mubr.f32.mxu0 %v329
        %2266 = vmatmul.mubr.f32.gmra.mxu0 %v328
        %v2267 = vpop.f32.mrf.mxu0
        %v2268 = vadd.f32 %v1691, %v2267
        %v2269 = vpop.f32.mrf.mxu0
        %2270 = vmatprep.mubr.f32.mxu0 %v331
        %2271 = vmatmul.mubr.f32.gmra.mxu0 %v330
        %v2272 = vpop.f32.mrf.mxu0
        %v2273 = vadd.f32 %v1696, %v2272
        %v2274 = vpop.f32.mrf.mxu0
        %2275 = vmatprep.mubr.f32.mxu0 %v333
        %2276 = vmatmul.mubr.f32.gmra.mxu0 %v332
        %v2277 = vpop.f32.mrf.mxu0
        %v2278 = vpop.f32.mrf.mxu0
        %2279 = vmatprep.mubr.f32.mxu0 %v335
        %2280 = vmatmul.mubr.f32.gmra.mxu0 %v334
        %v2281 = vpop.f32.mrf.mxu0
        %v2282 = vpop.f32.mrf.mxu0
        %2283 = vmatprep.mubr.f32.mxu0 %v337
        %2284 = vmatmul.mubr.f32.gmra.mxu0 %v336
        %v2285 = vpop.f32.mrf.mxu0
        %v2286 = vadd.f32 %v1709, %v2285
        %v2287 = vpop.f32.mrf.mxu0
        %2288 = vmatprep.mubr.f32.mxu0 %v339
        %2289 = vmatmul.mubr.f32.gmra.mxu0 %v338
        %v2290 = vpop.f32.mrf.mxu0
        %v2291 = vadd.f32 %v1714, %v2290
        %v2292 = vpop.f32.mrf.mxu0
        %2293 = vmatprep.mubr.f32.mxu0 %v341
        %2294 = vmatmul.mubr.f32.gmra.mxu0 %v340
        %v2295 = vpop.f32.mrf.mxu0
        %v2296 = vpop.f32.mrf.mxu0
        %2297 = vmatprep.mubr.f32.mxu0 %v343
        %2298 = vmatmul.mubr.f32.gmra.mxu0 %v342
        %v2299 = vpop.f32.mrf.mxu0
        %v2300 = vpop.f32.mrf.mxu0
        %2301 = vmatprep.mubr.f32.mxu0 %v345
        %2302 = vmatmul.mubr.f32.gmra.mxu0 %v344
        %v2303 = vpop.f32.mrf.mxu0
        %v2304 = vadd.f32 %v1727, %v2303
        %v2305 = vpop.f32.mrf.mxu0
        %2306 = vmatprep.mubr.f32.mxu0 %v347
        %2307 = vmatmul.mubr.f32.gmra.mxu0 %v346
        %v2308 = vpop.f32.mrf.mxu0
        %v2309 = vadd.f32 %v1732, %v2308
        %v2310 = vpop.f32.mrf.mxu0
        %2311 = vmatprep.mubr.f32.mxu0 %v349
        %2312 = vmatmul.mubr.f32.gmra.mxu0 %v348
        %v2313 = vpop.f32.mrf.mxu0
        %v2314 = vadd.f32 %v1737, %v2313
        %v2315 = vpop.f32.mrf.mxu0
        %2316 = vmatprep.mubr.f32.mxu0 %v351
        %2317 = vmatmul.mubr.f32.gmra.mxu0 %v350
        %v2318 = vpop.f32.mrf.mxu0
        %v2319 = vadd.f32 %v1742, %v2318
        %v2320 = vpop.f32.mrf.mxu0
        %2321 = vmatprep.mubr.f32.mxu0 %v353
        %2322 = vmatmul.mubr.f32.gmra.mxu0 %v352
        %v2323 = vpop.f32.mrf.mxu0
        %v2324 = vpop.f32.mrf.mxu0
        %2325 = vmatprep.mubr.f32.mxu0 %v355
        %2326 = vmatmul.mubr.f32.gmra.mxu0 %v354
        %v2327 = vpop.f32.mrf.mxu0
        %v2328 = vpop.f32.mrf.mxu0
        %2329 = vmatprep.mubr.f32.mxu0 %v357
        %2330 = vmatmul.mubr.f32.gmra.mxu0 %v356
        %v2331 = vpop.f32.mrf.mxu0
        %v2332 = vadd.f32 %v1755, %v2331
        %v2333 = vpop.f32.mrf.mxu0
        %2334 = vmatprep.mubr.f32.mxu0 %v359
        %2335 = vmatmul.mubr.f32.gmra.mxu0 %v358
        %v2336 = vpop.f32.mrf.mxu0
        %v2337 = vadd.f32 %v1760, %v2336
        %v2338 = vpop.f32.mrf.mxu0
        %2339 = vmatprep.mubr.f32.mxu0 %v361
        %2340 = vmatmul.mubr.f32.gmra.mxu0 %v360
        %v2341 = vpop.f32.mrf.mxu0
        %v2342 = vpop.f32.mrf.mxu0
        %2343 = vmatprep.mubr.f32.mxu0 %v363
        %2344 = vmatmul.mubr.f32.gmra.mxu0 %v362
        %v2345 = vpop.f32.mrf.mxu0
        %v2346 = vpop.f32.mrf.mxu0
        %2347 = vmatprep.mubr.f32.mxu0 %v365
        %2348 = vmatmul.mubr.f32.gmra.mxu0 %v364
        %v2349 = vpop.f32.mrf.mxu0
        %v2350 = vadd.f32 %v1773, %v2349
        %v2351 = vpop.f32.mrf.mxu0
        %2352 = vmatprep.mubr.f32.mxu0 %v367
        %2353 = vmatmul.mubr.f32.gmra.mxu0 %v366
        %v2354 = vpop.f32.mrf.mxu0
        %v2355 = vadd.f32 %v1778, %v2354
        %v2356 = vpop.f32.mrf.mxu0
        %2357 = vmatprep.mubr.f32.mxu0 %v369
        %2358 = vmatmul.mubr.f32.gmra.mxu0 %v368
        %v2359 = vpop.f32.mrf.mxu0
        %v2360 = vpop.f32.mrf.mxu0
        %2361 = vmatprep.mubr.f32.mxu0 %v371
        %2362 = vmatmul.mubr.f32.gmra.mxu0 %v370
        %v2363 = vpop.f32.mrf.mxu0
        %v2364 = vpop.f32.mrf.mxu0
        %2365 = vmatprep.mubr.f32.mxu0 %v373
        %2366 = vmatmul.mubr.f32.gmra.mxu0 %v372
        %v2367 = vpop.f32.mrf.mxu0
        %v2368 = vadd.f32 %v1791, %v2367
        %v2369 = vpop.f32.mrf.mxu0
        %2370 = vmatprep.mubr.f32.mxu0 %v375
        %2371 = vmatmul.mubr.f32.gmra.mxu0 %v374
        %v2372 = vpop.f32.mrf.mxu0
        %v2373 = vadd.f32 %v1796, %v2372
        %v2374 = vpop.f32.mrf.mxu0
        %2375 = vmatprep.mubr.f32.mxu0 %v377
        %2376 = vmatmul.mubr.f32.gmra.mxu0 %v376
        %v2377 = vpop.f32.mrf.mxu0
        %v2378 = vadd.f32 %v1801, %v2377
        %v2379 = vpop.f32.mrf.mxu0
        %2380 = vmatprep.mubr.f32.mxu0 %v379
        %2381 = vmatmul.mubr.f32.gmra.mxu0 %v378
        %v2382 = vpop.f32.mrf.mxu0
        %v2383 = vadd.f32 %v1806, %v2382
        %v2384 = vpop.f32.mrf.mxu0
        %2385 = vmatprep.mubr.f32.mxu0 %v381
        %2386 = vmatmul.mubr.f32.gmra.mxu0 %v380
        %v2387 = vpop.f32.mrf.mxu0
        %v2388 = vpop.f32.mrf.mxu0
        %2389 = vmatprep.mubr.f32.mxu0 %v383
        %2390 = vmatmul.mubr.f32.gmra.mxu0 %v382
        %v2391 = vpop.f32.mrf.mxu0
        %v2392 = vpop.f32.mrf.mxu0
        %2393 = vmatprep.mubr.f32.mxu0 %v385
        %2394 = vmatmul.mubr.f32.gmra.mxu0 %v384
        %v2395 = vpop.f32.mrf.mxu0
        %v2396 = vadd.f32 %v1819, %v2395
        %v2397 = vpop.f32.mrf.mxu0
        %2398 = vmatprep.mubr.f32.mxu0 %v387
        %2399 = vmatmul.mubr.f32.gmra.mxu0 %v386
        %v2400 = vpop.f32.mrf.mxu0
        %v2401 = vadd.f32 %v1824, %v2400
        %v2402 = vpop.f32.mrf.mxu0
        %2403 = vmatprep.mubr.f32.mxu0 %v389
        %2404 = vmatmul.mubr.f32.gmra.mxu0 %v388
        %v2405 = vpop.f32.mrf.mxu0
        %v2406 = vpop.f32.mrf.mxu0
        %2407 = vmatprep.mubr.f32.mxu0 %v391
        %2408 = vmatmul.mubr.f32.gmra.mxu0 %v390
        %v2409 = vpop.f32.mrf.mxu0
        %v2410 = vpop.f32.mrf.mxu0
        %2411 = vmatprep.mubr.f32.mxu0 %v393
        %2412 = vmatmul.mubr.f32.gmra.mxu0 %v392
        %v2413 = vpop.f32.mrf.mxu0
        %v2414 = vadd.f32 %v1837, %v2413
        %v2415 = vpop.f32.mrf.mxu0
        %2416 = vmatprep.mubr.f32.mxu0 %v395
        %2417 = vmatmul.mubr.f32.gmra.mxu0 %v394
        %v2418 = vpop.f32.mrf.mxu0
        %v2419 = vadd.f32 %v1842, %v2418
        %v2420 = vpop.f32.mrf.mxu0
        %2421 = vmatprep.mubr.f32.mxu0 %v397
        %2422 = vmatmul.mubr.f32.gmra.mxu0 %v396
        %v2423 = vpop.f32.mrf.mxu0
        %v2424 = vpop.f32.mrf.mxu0
        %2425 = vmatprep.mubr.f32.mxu0 %v399
        %2426 = vmatmul.mubr.f32.gmra.mxu0 %v398
        %v2427 = vpop.f32.mrf.mxu0
        %v2428 = vpop.f32.mrf.mxu0
        %2429 = vmatprep.mubr.f32.mxu0 %v401
        %2430 = vmatmul.mubr.f32.gmra.mxu0 %v400
        %v2431 = vpop.f32.mrf.mxu0
        %v2432 = vadd.f32 %v1855, %v2431
        %v2433 = vpop.f32.mrf.mxu0
        %2434 = vmatprep.mubr.f32.mxu0 %v403
        %2435 = vmatmul.mubr.f32.gmra.mxu0 %v402
        %v2436 = vpop.f32.mrf.mxu0
        %v2437 = vadd.f32 %v1860, %v2436
        %v2438 = vpop.f32.mrf.mxu0
        %2439 = vmatprep.mubr.f32.mxu0 %v405
        %2440 = vmatmul.mubr.f32.gmra.mxu0 %v404
        %v2441 = vpop.f32.mrf.mxu0
        %v2442 = vadd.f32 %v1865, %v2441
        %v2443 = vpop.f32.mrf.mxu0
        %2444 = vmatprep.mubr.f32.mxu0 %v407
        %2445 = vmatmul.mubr.f32.gmra.mxu0 %v406
        %v2446 = vpop.f32.mrf.mxu0
        %v2447 = vadd.f32 %v1870, %v2446
        %v2448 = vpop.f32.mrf.mxu0
        %2449 = vmatprep.mubr.f32.mxu0 %v409
        %2450 = vmatmul.mubr.f32.gmra.mxu0 %v408
        %v2451 = vpop.f32.mrf.mxu0
        %v2452 = vpop.f32.mrf.mxu0
        %2453 = vmatprep.mubr.f32.mxu0 %v411
        %2454 = vmatmul.mubr.f32.gmra.mxu0 %v410
        %v2455 = vpop.f32.mrf.mxu0
        %v2456 = vpop.f32.mrf.mxu0
        %2457 = vmatprep.mubr.f32.mxu0 %v413
        %2458 = vmatmul.mubr.f32.gmra.mxu0 %v412
        %v2459 = vpop.f32.mrf.mxu0
        %v2460 = vadd.f32 %v1883, %v2459
        %v2461 = vpop.f32.mrf.mxu0
        %2462 = vmatprep.mubr.f32.mxu0 %v415
        %2463 = vmatmul.mubr.f32.gmra.mxu0 %v414
        %v2464 = vpop.f32.mrf.mxu0
        %v2465 = vadd.f32 %v1888, %v2464
        %v2466 = vpop.f32.mrf.mxu0
        %2467 = vmatprep.mubr.f32.mxu0 %v417
        %2468 = vmatmul.mubr.f32.gmra.mxu0 %v416
        %v2469 = vpop.f32.mrf.mxu0
        %v2470 = vpop.f32.mrf.mxu0
        %2471 = vmatprep.mubr.f32.mxu0 %v419
        %2472 = vmatmul.mubr.f32.gmra.mxu0 %v418
        %v2473 = vpop.f32.mrf.mxu0
        %v2474 = vpop.f32.mrf.mxu0
        %2475 = vmatprep.mubr.f32.mxu0 %v421
        %2476 = vmatmul.mubr.f32.gmra.mxu0 %v420
        %v2477 = vpop.f32.mrf.mxu0
        %v2478 = vadd.f32 %v1901, %v2477
        %v2479 = vpop.f32.mrf.mxu0
        %2480 = vmatprep.mubr.f32.mxu0 %v423
        %2481 = vmatmul.mubr.f32.gmra.mxu0 %v422
        %v2482 = vpop.f32.mrf.mxu0
        %v2483 = vadd.f32 %v1906, %v2482
        %v2484 = vpop.f32.mrf.mxu0
        %2485 = vmatprep.mubr.f32.mxu0 %v425
        %2486 = vmatmul.mubr.f32.gmra.mxu0 %v424
        %v2487 = vpop.f32.mrf.mxu0
        %v2488 = vpop.f32.mrf.mxu0
        %2489 = vmatprep.mubr.f32.mxu0 %v427
        %2490 = vmatmul.mubr.f32.gmra.mxu0 %v426
        %v2491 = vpop.f32.mrf.mxu0
        %v2492 = vpop.f32.mrf.mxu0
        %2493 = vmatprep.mubr.f32.mxu0 %v429
        %2494 = vmatmul.mubr.f32.gmra.mxu0 %v428
        %v2495 = vpop.f32.mrf.mxu0
        %v2496 = vadd.f32 %v1919, %v2495
        %v2497 = vpop.f32.mrf.mxu0
        %2498 = vmatprep.mubr.f32.mxu0 %v431
        %2499 = vmatmul.mubr.f32.gmra.mxu0 %v430
        %v2500 = vpop.f32.mrf.mxu0
        %v2501 = vadd.f32 %v1924, %v2500
        %v2502 = vpop.f32.mrf.mxu0
        %2503 = vmatprep.mubr.f32.mxu0 %v433
        %2504 = vmatmul.mubr.f32.gmra.mxu0 %v432
        %v2505 = vpop.f32.mrf.mxu0
        %v2506 = vadd.f32 %v1929, %v2505
        %v2507 = vpop.f32.mrf.mxu0
        %2508 = vmatprep.mubr.f32.mxu0 %v435
        %2509 = vmatmul.mubr.f32.gmra.mxu0 %v434
        %v2510 = vpop.f32.mrf.mxu0
        %v2511 = vadd.f32 %v1934, %v2510
        %v2512 = vpop.f32.mrf.mxu0
        %2513 = vmatprep.mubr.f32.mxu0 %v437
        %2514 = vmatmul.mubr.f32.gmra.mxu0 %v436
        %v2515 = vpop.f32.mrf.mxu0
        %v2516 = vpop.f32.mrf.mxu0
        %2517 = vmatprep.mubr.f32.mxu0 %v439
        %2518 = vmatmul.mubr.f32.gmra.mxu0 %v438
        %v2519 = vpop.f32.mrf.mxu0
        %v2520 = vpop.f32.mrf.mxu0
        %2521 = vmatprep.mubr.f32.mxu0 %v441
        %2522 = vmatmul.mubr.f32.gmra.mxu0 %v440
        %v2523 = vpop.f32.mrf.mxu0
        %v2524 = vadd.f32 %v1947, %v2523
        %v2525 = vpop.f32.mrf.mxu0
        %2526 = vmatprep.mubr.f32.mxu0 %v443
        %2527 = vmatmul.mubr.f32.gmra.mxu0 %v442
        %v2528 = vpop.f32.mrf.mxu0
        %v2529 = vadd.f32 %v1952, %v2528
        %v2530 = vpop.f32.mrf.mxu0
        %2531 = vmatprep.mubr.f32.mxu0 %v445
        %2532 = vmatmul.mubr.f32.gmra.mxu0 %v444
        %v2533 = vpop.f32.mrf.mxu0
        %v2534 = vpop.f32.mrf.mxu0
        %2535 = vmatprep.mubr.f32.mxu0 %v447
        %2536 = vmatmul.mubr.f32.gmra.mxu0 %v446
        %v2537 = vpop.f32.mrf.mxu0
        %v2538 = vpop.f32.mrf.mxu0
        %2539 = vmatprep.mubr.f32.mxu0 %v449
        %2540 = vmatmul.mubr.f32.gmra.mxu0 %v448
        %v2541 = vpop.f32.mrf.mxu0
        %v2542 = vadd.f32 %v1965, %v2541
        %v2543 = vpop.f32.mrf.mxu0
        %2544 = vmatprep.mubr.f32.mxu0 %v451
        %2545 = vmatmul.mubr.f32.gmra.mxu0 %v450
        %v2546 = vpop.f32.mrf.mxu0
        %v2547 = vadd.f32 %v1970, %v2546
        %v2548 = vpop.f32.mrf.mxu0
        %2549 = vmatprep.mubr.f32.mxu0 %v453
        %2550 = vmatmul.mubr.f32.gmra.mxu0 %v452
        %v2551 = vpop.f32.mrf.mxu0
        %v2552 = vpop.f32.mrf.mxu0
        %2553 = vmatprep.mubr.f32.mxu0 %v455
        %2554 = vmatmul.mubr.f32.gmra.mxu0 %v454
        %v2555 = vpop.f32.mrf.mxu0
        %v2556 = vpop.f32.mrf.mxu0
        %2557 = vmatprep.mubr.f32.mxu0 %v457
        %2558 = vmatmul.mubr.f32.gmra.mxu0 %v456
        %v2559 = vpop.f32.mrf.mxu0
        %v2560 = vadd.f32 %v1983, %v2559
        %v2561 = vpop.f32.mrf.mxu0
        %2562 = vmatprep.mubr.f32.mxu0 %v459
        %2563 = vmatmul.mubr.f32.gmra.mxu0 %v458
        %v2564 = vpop.f32.mrf.mxu0
        %v2565 = vadd.f32 %v1988, %v2564
        %v2566 = vpop.f32.mrf.mxu0
        %2567 = vmatprep.mubr.f32.mxu0 %v461
        %2568 = vmatmul.mubr.f32.gmra.mxu0 %v460
        %v2569 = vpop.f32.mrf.mxu0
        %v2570 = vadd.f32 %v1993, %v2569
        %v2571 = vpop.f32.mrf.mxu0
        %2572 = vmatprep.mubr.f32.mxu0 %v463
        %2573 = vmatmul.mubr.f32.gmra.mxu0 %v462
        %v2574 = vpop.f32.mrf.mxu0
        %v2575 = vadd.f32 %v1998, %v2574
        %v2576 = vpop.f32.mrf.mxu0
        %2577 = vmatprep.mubr.f32.mxu0 %v465
        %2578 = vmatmul.mubr.f32.gmra.mxu0 %v464
        %v2579 = vpop.f32.mrf.mxu0
        %v2580 = vpop.f32.mrf.mxu0
        %2581 = vmatprep.mubr.f32.mxu0 %v467
        %2582 = vmatmul.mubr.f32.gmra.mxu0 %v466
        %v2583 = vpop.f32.mrf.mxu0
        %v2584 = vpop.f32.mrf.mxu0
        %2585 = vmatprep.mubr.f32.mxu0 %v469
        %2586 = vmatmul.mubr.f32.gmra.mxu0 %v468
        %v2587 = vpop.f32.mrf.mxu0
        %v2588 = vadd.f32 %v2011, %v2587
        %v2589 = vpop.f32.mrf.mxu0
        %2590 = vmatprep.mubr.f32.mxu0 %v471
        %2591 = vmatmul.mubr.f32.gmra.mxu0 %v470
        %v2592 = vpop.f32.mrf.mxu0
        %v2593 = vadd.f32 %v2016, %v2592
        %v2594 = vpop.f32.mrf.mxu0
        %2595 = vmatprep.mubr.f32.mxu0 %v473
        %2596 = vmatmul.mubr.f32.gmra.mxu0 %v472
        %v2597 = vpop.f32.mrf.mxu0
        %v2598 = vpop.f32.mrf.mxu0
        %2599 = vmatprep.mubr.f32.mxu0 %v475
        %2600 = vmatmul.mubr.f32.gmra.mxu0 %v474
        %v2601 = vpop.f32.mrf.mxu0
        %v2602 = vpop.f32.mrf.mxu0
        %2603 = vmatprep.mubr.f32.mxu0 %v477
        %2604 = vmatmul.mubr.f32.gmra.mxu0 %v476
        %v2605 = vpop.f32.mrf.mxu0
        %v2606 = vadd.f32 %v2029, %v2605
        %v2607 = vpop.f32.mrf.mxu0
        %2608 = vmatprep.mubr.f32.mxu0 %v479
        %2609 = vmatmul.mubr.f32.gmra.mxu0 %v478
        %v2610 = vpop.f32.mrf.mxu0
        %v2611 = vadd.f32 %v2034, %v2610
        %v2612 = vpop.f32.mrf.mxu0
        %2613 = vmatprep.mubr.f32.mxu0 %v481
        %2614 = vmatmul.mubr.f32.gmra.mxu0 %v480
        %v2615 = vpop.f32.mrf.mxu0
        %v2616 = vpop.f32.mrf.mxu0
        %2617 = vmatprep.mubr.f32.mxu0 %v483
        %2618 = vmatmul.mubr.f32.gmra.mxu0 %v482
        %v2619 = vpop.f32.mrf.mxu0
        %v2620 = vpop.f32.mrf.mxu0
        %2621 = vmatprep.mubr.f32.mxu0 %v485
        %2622 = vmatmul.mubr.f32.gmra.mxu0 %v484
        %v2623 = vpop.f32.mrf.mxu0
        %v2624 = vadd.f32 %v2047, %v2623
        %v2625 = vpop.f32.mrf.mxu0
        %2626 = vmatprep.mubr.f32.mxu0 %v487
        %2627 = vmatmul.mubr.f32.gmra.mxu0 %v486
        %v2628 = vpop.f32.mrf.mxu0
        %v2629 = vadd.f32 %v2052, %v2628
        %v2630 = vpop.f32.mrf.mxu0
        %2631 = vmatprep.mubr.f32.mxu0 %v489
        %2632 = vmatmul.mubr.f32.gmra.mxu0 %v488
        %v2633 = vpop.f32.mrf.mxu0
        %v2634 = vadd.f32 %v2057, %v2633
        %v2635 = vpop.f32.mrf.mxu0
        %2636 = vmatprep.mubr.f32.mxu0 %v491
        %2637 = vmatmul.mubr.f32.gmra.mxu0 %v490
        %v2638 = vpop.f32.mrf.mxu0
        %v2639 = vadd.f32 %v2062, %v2638
        %v2640 = vpop.f32.mrf.mxu0
        %2641 = vmatprep.mubr.f32.mxu0 %v493
        %2642 = vmatmul.mubr.f32.gmra.mxu0 %v492
        %v2643 = vpop.f32.mrf.mxu0
        %v2644 = vpop.f32.mrf.mxu0
        %2645 = vmatprep.mubr.f32.mxu0 %v495
        %2646 = vmatmul.mubr.f32.gmra.mxu0 %v494
        %v2647 = vpop.f32.mrf.mxu0
        %v2648 = vpop.f32.mrf.mxu0
        %2649 = vmatprep.mubr.f32.mxu0 %v497
        %2650 = vmatmul.mubr.f32.gmra.mxu0 %v496
        %v2651 = vpop.f32.mrf.mxu0
        %v2652 = vadd.f32 %v2075, %v2651
        %v2653 = vpop.f32.mrf.mxu0
        %2654 = vmatprep.mubr.f32.mxu0 %v499
        %2655 = vmatmul.mubr.f32.gmra.mxu0 %v498
        %v2656 = vpop.f32.mrf.mxu0
        %v2657 = vadd.f32 %v2080, %v2656
        %v2658 = vpop.f32.mrf.mxu0
        %2659 = vmatprep.mubr.f32.mxu0 %v501
        %2660 = vmatmul.mubr.f32.gmra.mxu0 %v500
        %v2661 = vpop.f32.mrf.mxu0
        %v2662 = vpop.f32.mrf.mxu0
        %2663 = vmatprep.mubr.f32.mxu0 %v503
        %2664 = vmatmul.mubr.f32.gmra.mxu0 %v502
        %v2665 = vpop.f32.mrf.mxu0
        %v2666 = vpop.f32.mrf.mxu0
        %2667 = vmatprep.mubr.f32.mxu0 %v505
        %2668 = vmatmul.mubr.f32.gmra.mxu0 %v504
        %v2669 = vpop.f32.mrf.mxu0
        %v2670 = vadd.f32 %v2093, %v2669
        %v2671 = vpop.f32.mrf.mxu0
        %2672 = vmatprep.mubr.f32.mxu0 %v507
        %2673 = vmatmul.mubr.f32.gmra.mxu0 %v506
        %v2674 = vpop.f32.mrf.mxu0
        %v2675 = vadd.f32 %v2098, %v2674
        %v2676 = vpop.f32.mrf.mxu0
        %2677 = vmatprep.mubr.f32.mxu0 %v509
        %2678 = vmatmul.mubr.f32.gmra.mxu0 %v508
        %v2679 = vpop.f32.mrf.mxu0
        %v2680 = vpop.f32.mrf.mxu0
        %2681 = vmatprep.mubr.f32.mxu0 %v511
        %2682 = vmatmul.mubr.f32.gmra.mxu0 %v510
        %v2683 = vpop.f32.mrf.mxu0
        %v2684 = vpop.f32.mrf.mxu0
        %2685 = vmatprep.mubr.f32.mxu0 %v513
        %2686 = vmatmul.mubr.f32.gmra.mxu0 %v512
        %v2687 = vpop.f32.mrf.mxu0
        %v2688 = vadd.f32 %v2111, %v2687
        %v2689 = vpop.f32.mrf.mxu0
        %2690 = vmatprep.mubr.f32.mxu0 %v515
        %2691 = vmatmul.mubr.f32.gmra.mxu0 %v514
        %v2692 = vpop.f32.mrf.mxu0
        %v2693 = vadd.f32 %v2116, %v2692
        %v2694 = vpop.f32.mrf.mxu0
        %2695 = vdwg.mxu0
        %s2696 = scalar_lea.vmem %s279, 240
        %v2697 = vld [vmem:[%s2696] sm:$0xff]
        %v2698 = vld [vmem:[%s2696 + $0x8] sm:$0xff]
        %v2699 = vld [vmem:[%s2696 + $0x10] sm:$0xff]
        %v2700 = vld [vmem:[%s2696 + $0x18] sm:$0xff]
        %v2701 = vld [vmem:[%s2696 + $0x20] sm:$0xff]
        %v2702 = vld [vmem:[%s2696 + $0x28] sm:$0xff]
        %v2703 = vld [vmem:[%s2696 + $0x30] sm:$0xff]
        %v2704 = vld [vmem:[%s2696 + $0x38] sm:$0xff]
        %v2705 = vld [vmem:[%s2696 + $0x40] sm:$0xff]
        %v2706 = vld [vmem:[%s2696 + $0x48] sm:$0xff]
        %v2707 = vld [vmem:[%s2696 + $0x50] sm:$0xff]
        %v2708 = vld [vmem:[%s2696 + $0x58] sm:$0xff]
        %v2709 = vld [vmem:[%s2696 + $0x60] sm:$0xff]
        %v2710 = vld [vmem:[%s2696 + $0x68] sm:$0xff]
        %v2711 = vld [vmem:[%s2696 + $0x70] sm:$0xff]
        %v2712 = vld [vmem:[%s2696 + $0x78] sm:$0xff]
        %v2713 = vld [vmem:[%s2696 + $0x80] sm:$0xff]
        %v2714 = vld [vmem:[%s2696 + $0x88] sm:$0xff]
        %v2715 = vld [vmem:[%s2696 + $0x90] sm:$0xff]
        %v2716 = vld [vmem:[%s2696 + $0x98] sm:$0xff]
        %v2717 = vld [vmem:[%s2696 + $0xa0] sm:$0xff]
        %v2718 = vld [vmem:[%s2696 + $0xa8] sm:$0xff]
        %v2719 = vld [vmem:[%s2696 + $0xb0] sm:$0xff]
        %v2720 = vld [vmem:[%s2696 + $0xb8] sm:$0xff]
        %v2721 = vld [vmem:[%s2696 + $0xc0] sm:$0xff]
        %v2722 = vld [vmem:[%s2696 + $0xc8] sm:$0xff]
        %v2723 = vld [vmem:[%s2696 + $0xd0] sm:$0xff]
        %v2724 = vld [vmem:[%s2696 + $0xd8] sm:$0xff]
        %v2725 = vld [vmem:[%s2696 + $0xf0] sm:$0xff]
        %v2726 = vld [vmem:[%s2696 + $0xf8] sm:$0xff]
        %v2727 = vld [vmem:[%s2696 + $0x100] sm:$0xff]
        %v2728 = vld [vmem:[%s2696 + $0x108] sm:$0xff]
        %v2729 = vld [vmem:[%s2696 + $0x110] sm:$0xff]
        %v2730 = vld [vmem:[%s2696 + $0x118] sm:$0xff]
        %v2731 = vld [vmem:[%s2696 + $0x120] sm:$0xff]
        %v2732 = vld [vmem:[%s2696 + $0x128] sm:$0xff]
        %v2733 = vld [vmem:[%s2696 + $0x130] sm:$0xff]
        %v2734 = vld [vmem:[%s2696 + $0x138] sm:$0xff]
        %v2735 = vld [vmem:[%s2696 + $0x140] sm:$0xff]
        %v2736 = vld [vmem:[%s2696 + $0x148] sm:$0xff]
        %v2737 = vld [vmem:[%s2696 + $0x150] sm:$0xff]
        %v2738 = vld [vmem:[%s2696 + $0x158] sm:$0xff]
        %v2739 = vld [vmem:[%s2696 + $0x160] sm:$0xff]
        %v2740 = vld [vmem:[%s2696 + $0x168] sm:$0xff]
        %v2741 = vld [vmem:[%s2696 + $0x170] sm:$0xff]
        %v2742 = vld [vmem:[%s2696 + $0x178] sm:$0xff]
        %v2743 = vld [vmem:[%s2696 + $0x180] sm:$0xff]
        %v2744 = vld [vmem:[%s2696 + $0x188] sm:$0xff]
        %v2745 = vld [vmem:[%s2696 + $0x190] sm:$0xff]
        %v2746 = vld [vmem:[%s2696 + $0x198] sm:$0xff]
        %v2747 = vld [vmem:[%s2696 + $0x1a0] sm:$0xff]
        %v2748 = vld [vmem:[%s2696 + $0x1a8] sm:$0xff]
        %v2749 = vld [vmem:[%s2696 + $0x1b0] sm:$0xff]
        %v2750 = vld [vmem:[%s2696 + $0x1b8] sm:$0xff]
        %v2751 = vld [vmem:[%s2696 + $0x1c0] sm:$0xff]
        %v2752 = vld [vmem:[%s2696 + $0x1c8] sm:$0xff]
        %v2753 = vld [vmem:[%s2696 + $0x1e0] sm:$0xff]
        %v2754 = vld [vmem:[%s2696 + $0x1e8] sm:$0xff]
        %v2755 = vld [vmem:[%s2696 + $0x1f0] sm:$0xff]
        %v2756 = vld [vmem:[%s2696 + $0x1f8] sm:$0xff]
        %v2757 = vld [vmem:[%s2696 + $0x200] sm:$0xff]
        %v2758 = vld [vmem:[%s2696 + $0x208] sm:$0xff]
        %v2759 = vld [vmem:[%s2696 + $0x210] sm:$0xff]
        %v2760 = vld [vmem:[%s2696 + $0x218] sm:$0xff]
        %v2761 = vld [vmem:[%s2696 + $0x220] sm:$0xff]
        %v2762 = vld [vmem:[%s2696 + $0x228] sm:$0xff]
        %v2763 = vld [vmem:[%s2696 + $0x230] sm:$0xff]
        %v2764 = vld [vmem:[%s2696 + $0x238] sm:$0xff]
        %v2765 = vld [vmem:[%s2696 + $0x240] sm:$0xff]
        %v2766 = vld [vmem:[%s2696 + $0x248] sm:$0xff]
        %v2767 = vld [vmem:[%s2696 + $0x250] sm:$0xff]
        %v2768 = vld [vmem:[%s2696 + $0x258] sm:$0xff]
        %v2769 = vld [vmem:[%s2696 + $0x260] sm:$0xff]
        %v2770 = vld [vmem:[%s2696 + $0x268] sm:$0xff]
        %v2771 = vld [vmem:[%s2696 + $0x270] sm:$0xff]
        %v2772 = vld [vmem:[%s2696 + $0x278] sm:$0xff]
        %v2773 = vld [vmem:[%s2696 + $0x280] sm:$0xff]
        %v2774 = vld [vmem:[%s2696 + $0x288] sm:$0xff]
        %v2775 = vld [vmem:[%s2696 + $0x290] sm:$0xff]
        %v2776 = vld [vmem:[%s2696 + $0x298] sm:$0xff]
        %v2777 = vld [vmem:[%s2696 + $0x2a0] sm:$0xff]
        %v2778 = vld [vmem:[%s2696 + $0x2a8] sm:$0xff]
        %v2779 = vld [vmem:[%s2696 + $0x2b0] sm:$0xff]
        %v2780 = vld [vmem:[%s2696 + $0x2b8] sm:$0xff]
        %v2781 = vld [vmem:[%s2696 + $0x2d0] sm:$0xff]
        %v2782 = vld [vmem:[%s2696 + $0x2d8] sm:$0xff]
        %v2783 = vld [vmem:[%s2696 + $0x2e0] sm:$0xff]
        %v2784 = vld [vmem:[%s2696 + $0x2e8] sm:$0xff]
        %v2785 = vld [vmem:[%s2696 + $0x2f0] sm:$0xff]
        %v2786 = vld [vmem:[%s2696 + $0x2f8] sm:$0xff]
        %v2787 = vld [vmem:[%s2696 + $0x300] sm:$0xff]
        %v2788 = vld [vmem:[%s2696 + $0x308] sm:$0xff]
        %v2789 = vld [vmem:[%s2696 + $0x310] sm:$0xff]
        %v2790 = vld [vmem:[%s2696 + $0x318] sm:$0xff]
        %v2791 = vld [vmem:[%s2696 + $0x320] sm:$0xff]
        %v2792 = vld [vmem:[%s2696 + $0x328] sm:$0xff]
        %v2793 = vld [vmem:[%s2696 + $0x330] sm:$0xff]
        %v2794 = vld [vmem:[%s2696 + $0x338] sm:$0xff]
        %v2795 = vld [vmem:[%s2696 + $0x340] sm:$0xff]
        %v2796 = vld [vmem:[%s2696 + $0x348] sm:$0xff]
        %v2797 = vld [vmem:[%s2696 + $0x350] sm:$0xff]
        %v2798 = vld [vmem:[%s2696 + $0x358] sm:$0xff]
        %v2799 = vld [vmem:[%s2696 + $0x360] sm:$0xff]
        %v2800 = vld [vmem:[%s2696 + $0x368] sm:$0xff]
        %v2801 = vld [vmem:[%s2696 + $0x370] sm:$0xff]
        %v2802 = vld [vmem:[%s2696 + $0x378] sm:$0xff]
        %v2803 = vld [vmem:[%s2696 + $0x380] sm:$0xff]
        %v2804 = vld [vmem:[%s2696 + $0x388] sm:$0xff]
        %v2805 = vld [vmem:[%s2696 + $0x390] sm:$0xff]
        %v2806 = vld [vmem:[%s2696 + $0x398] sm:$0xff]
        %v2807 = vld [vmem:[%s2696 + $0x3a0] sm:$0xff]
        %v2808 = vld [vmem:[%s2696 + $0x3a8] sm:$0xff]
        %v2809 = vld [vmem:[%s2696 + $0x3c0] sm:$0xff]
        %v2810 = vld [vmem:[%s2696 + $0x3c8] sm:$0xff]
        %v2811 = vld [vmem:[%s2696 + $0x3d0] sm:$0xff]
        %v2812 = vld [vmem:[%s2696 + $0x3d8] sm:$0xff]
        %v2813 = vld [vmem:[%s2696 + $0x3e0] sm:$0xff]
        %v2814 = vld [vmem:[%s2696 + $0x3e8] sm:$0xff]
        %v2815 = vld [vmem:[%s2696 + $0x3f0] sm:$0xff]
        %v2816 = vld [vmem:[%s2696 + $0x3f8] sm:$0xff]
        %v2817 = vld [vmem:[%s2696 + $0x400] sm:$0xff]
        %v2818 = vld [vmem:[%s2696 + $0x408] sm:$0xff]
        %v2819 = vld [vmem:[%s2696 + $0x410] sm:$0xff]
        %v2820 = vld [vmem:[%s2696 + $0x418] sm:$0xff]
        %v2821 = vld [vmem:[%s2696 + $0x420] sm:$0xff]
        %v2822 = vld [vmem:[%s2696 + $0x428] sm:$0xff]
        %v2823 = vld [vmem:[%s2696 + $0x430] sm:$0xff]
        %v2824 = vld [vmem:[%s2696 + $0x438] sm:$0xff]
        %v2825 = vld [vmem:[%s2696 + $0x440] sm:$0xff]
        %v2826 = vld [vmem:[%s2696 + $0x448] sm:$0xff]
        %v2827 = vld [vmem:[%s2696 + $0x450] sm:$0xff]
        %v2828 = vld [vmem:[%s2696 + $0x458] sm:$0xff]
        %v2829 = vld [vmem:[%s2696 + $0x460] sm:$0xff]
        %v2830 = vld [vmem:[%s2696 + $0x468] sm:$0xff]
        %v2831 = vld [vmem:[%s2696 + $0x470] sm:$0xff]
        %v2832 = vld [vmem:[%s2696 + $0x478] sm:$0xff]
        %v2833 = vld [vmem:[%s2696 + $0x480] sm:$0xff]
        %v2834 = vld [vmem:[%s2696 + $0x488] sm:$0xff]
        %v2835 = vld [vmem:[%s2696 + $0x490] sm:$0xff]
        %v2836 = vld [vmem:[%s2696 + $0x498] sm:$0xff]
        %v2837 = vld [vmem:[%s2696 + $0x4b0] sm:$0xff]
        %v2838 = vld [vmem:[%s2696 + $0x4b8] sm:$0xff]
        %v2839 = vld [vmem:[%s2696 + $0x4c0] sm:$0xff]
        %v2840 = vld [vmem:[%s2696 + $0x4c8] sm:$0xff]
        %v2841 = vld [vmem:[%s2696 + $0x4d0] sm:$0xff]
        %v2842 = vld [vmem:[%s2696 + $0x4d8] sm:$0xff]
        %v2843 = vld [vmem:[%s2696 + $0x4e0] sm:$0xff]
        %v2844 = vld [vmem:[%s2696 + $0x4e8] sm:$0xff]
        %v2845 = vld [vmem:[%s2696 + $0x4f0] sm:$0xff]
        %v2846 = vld [vmem:[%s2696 + $0x4f8] sm:$0xff]
        %v2847 = vld [vmem:[%s2696 + $0x500] sm:$0xff]
        %v2848 = vld [vmem:[%s2696 + $0x508] sm:$0xff]
        %v2849 = vld [vmem:[%s2696 + $0x510] sm:$0xff]
        %v2850 = vld [vmem:[%s2696 + $0x518] sm:$0xff]
        %v2851 = vld [vmem:[%s2696 + $0x520] sm:$0xff]
        %v2852 = vld [vmem:[%s2696 + $0x528] sm:$0xff]
        %v2853 = vld [vmem:[%s2696 + $0x530] sm:$0xff]
        %v2854 = vld [vmem:[%s2696 + $0x538] sm:$0xff]
        %v2855 = vld [vmem:[%s2696 + $0x540] sm:$0xff]
        %v2856 = vld [vmem:[%s2696 + $0x548] sm:$0xff]
        %v2857 = vld [vmem:[%s2696 + $0x550] sm:$0xff]
        %v2858 = vld [vmem:[%s2696 + $0x558] sm:$0xff]
        %v2859 = vld [vmem:[%s2696 + $0x560] sm:$0xff]
        %v2860 = vld [vmem:[%s2696 + $0x568] sm:$0xff]
        %v2861 = vld [vmem:[%s2696 + $0x570] sm:$0xff]
        %v2862 = vld [vmem:[%s2696 + $0x578] sm:$0xff]
        %v2863 = vld [vmem:[%s2696 + $0x580] sm:$0xff]
        %v2864 = vld [vmem:[%s2696 + $0x588] sm:$0xff]
        %v2865 = vld [vmem:[%s2696 + $0x5a0] sm:$0xff]
        %v2866 = vld [vmem:[%s2696 + $0x5a8] sm:$0xff]
        %v2867 = vld [vmem:[%s2696 + $0x5b0] sm:$0xff]
        %v2868 = vld [vmem:[%s2696 + $0x5b8] sm:$0xff]
        %v2869 = vld [vmem:[%s2696 + $0x5c0] sm:$0xff]
        %v2870 = vld [vmem:[%s2696 + $0x5c8] sm:$0xff]
        %v2871 = vld [vmem:[%s2696 + $0x5d0] sm:$0xff]
        %v2872 = vld [vmem:[%s2696 + $0x5d8] sm:$0xff]
        %v2873 = vld [vmem:[%s2696 + $0x5e0] sm:$0xff]
        %v2874 = vld [vmem:[%s2696 + $0x5e8] sm:$0xff]
        %v2875 = vld [vmem:[%s2696 + $0x5f0] sm:$0xff]
        %v2876 = vld [vmem:[%s2696 + $0x5f8] sm:$0xff]
        %v2877 = vld [vmem:[%s2696 + $0x600] sm:$0xff]
        %v2878 = vld [vmem:[%s2696 + $0x608] sm:$0xff]
        %v2879 = vld [vmem:[%s2696 + $0x610] sm:$0xff]
        %v2880 = vld [vmem:[%s2696 + $0x618] sm:$0xff]
        %v2881 = vld [vmem:[%s2696 + $0x620] sm:$0xff]
        %v2882 = vld [vmem:[%s2696 + $0x628] sm:$0xff]
        %v2883 = vld [vmem:[%s2696 + $0x630] sm:$0xff]
        %v2884 = vld [vmem:[%s2696 + $0x638] sm:$0xff]
        %v2885 = vld [vmem:[%s2696 + $0x640] sm:$0xff]
        %v2886 = vld [vmem:[%s2696 + $0x648] sm:$0xff]
        %v2887 = vld [vmem:[%s2696 + $0x650] sm:$0xff]
        %v2888 = vld [vmem:[%s2696 + $0x658] sm:$0xff]
        %v2889 = vld [vmem:[%s2696 + $0x660] sm:$0xff]
        %v2890 = vld [vmem:[%s2696 + $0x668] sm:$0xff]
        %v2891 = vld [vmem:[%s2696 + $0x670] sm:$0xff]
        %v2892 = vld [vmem:[%s2696 + $0x678] sm:$0xff]
        %v2893 = vld [vmem:[%s2696 + $0x690] sm:$0xff]
        %v2894 = vld [vmem:[%s2696 + $0x698] sm:$0xff]
        %v2895 = vld [vmem:[%s2696 + $0x6a0] sm:$0xff]
        %v2896 = vld [vmem:[%s2696 + $0x6a8] sm:$0xff]
        %v2897 = vld [vmem:[%s2696 + $0x6b0] sm:$0xff]
        %v2898 = vld [vmem:[%s2696 + $0x6b8] sm:$0xff]
        %v2899 = vld [vmem:[%s2696 + $0x6c0] sm:$0xff]
        %v2900 = vld [vmem:[%s2696 + $0x6c8] sm:$0xff]
        %v2901 = vld [vmem:[%s2696 + $0x6d0] sm:$0xff]
        %v2902 = vld [vmem:[%s2696 + $0x6d8] sm:$0xff]
        %v2903 = vld [vmem:[%s2696 + $0x6e0] sm:$0xff]
        %v2904 = vld [vmem:[%s2696 + $0x6e8] sm:$0xff]
        %v2905 = vld [vmem:[%s2696 + $0x6f0] sm:$0xff]
        %v2906 = vld [vmem:[%s2696 + $0x6f8] sm:$0xff]
        %v2907 = vld [vmem:[%s2696 + $0x700] sm:$0xff]
        %v2908 = vld [vmem:[%s2696 + $0x708] sm:$0xff]
        %v2909 = vld [vmem:[%s2696 + $0x710] sm:$0xff]
        %v2910 = vld [vmem:[%s2696 + $0x718] sm:$0xff]
        %v2911 = vld [vmem:[%s2696 + $0x720] sm:$0xff]
        %v2912 = vld [vmem:[%s2696 + $0x728] sm:$0xff]
        %v2913 = vld [vmem:[%s2696 + $0x730] sm:$0xff]
        %v2914 = vld [vmem:[%s2696 + $0x738] sm:$0xff]
        %v2915 = vld [vmem:[%s2696 + $0x740] sm:$0xff]
        %v2916 = vld [vmem:[%s2696 + $0x748] sm:$0xff]
        %v2917 = vld [vmem:[%s2696 + $0x750] sm:$0xff]
        %v2918 = vld [vmem:[%s2696 + $0x758] sm:$0xff]
        %v2919 = vld [vmem:[%s2696 + $0x760] sm:$0xff]
        %v2920 = vld [vmem:[%s2696 + $0x768] sm:$0xff]
        %s2921 = scalar_lea.vmem %s1, 512
        %v2922 = vld [vmem:[%s2921] sm:$0xff]
        %v2923 = vld [vmem:[%s2921 + $0x8] sm:$0xff]
        %v2924 = vld [vmem:[%s2921 + $0x10] sm:$0xff]
        %v2925 = vld [vmem:[%s2921 + $0x18] sm:$0xff]
        %v2926 = vld [vmem:[%s2921 + $0x20] sm:$0xff]
        %v2927 = vld [vmem:[%s2921 + $0x28] sm:$0xff]
        %v2928 = vld [vmem:[%s2921 + $0x30] sm:$0xff]
        %v2929 = vld [vmem:[%s2921 + $0x38] sm:$0xff]
        %v2930 = vld [vmem:[%s2921 + $0x40] sm:$0xff]
        %v2931 = vld [vmem:[%s2921 + $0x48] sm:$0xff]
        %v2932 = vld [vmem:[%s2921 + $0x50] sm:$0xff]
        %v2933 = vld [vmem:[%s2921 + $0x58] sm:$0xff]
        %v2934 = vld [vmem:[%s2921 + $0x60] sm:$0xff]
        %v2935 = vld [vmem:[%s2921 + $0x68] sm:$0xff]
        %v2936 = vld [vmem:[%s2921 + $0x70] sm:$0xff]
        %v2937 = vld [vmem:[%s2921 + $0x78] sm:$0xff]
        %v2938 = vld [vmem:[%s2921 + $0x80] sm:$0xff]
        %v2939 = vld [vmem:[%s2921 + $0x88] sm:$0xff]
        %v2940 = vld [vmem:[%s2921 + $0x90] sm:$0xff]
        %v2941 = vld [vmem:[%s2921 + $0x98] sm:$0xff]
        %v2942 = vld [vmem:[%s2921 + $0xa0] sm:$0xff]
        %v2943 = vld [vmem:[%s2921 + $0xa8] sm:$0xff]
        %v2944 = vld [vmem:[%s2921 + $0xb0] sm:$0xff]
        %v2945 = vld [vmem:[%s2921 + $0xb8] sm:$0xff]
        %v2946 = vld [vmem:[%s2921 + $0xc0] sm:$0xff]
        %v2947 = vld [vmem:[%s2921 + $0xc8] sm:$0xff]
        %v2948 = vld [vmem:[%s2921 + $0xd0] sm:$0xff]
        %v2949 = vld [vmem:[%s2921 + $0xd8] sm:$0xff]
        %v2950 = vld [vmem:[%s2921 + $0xe0] sm:$0xff]
        %v2951 = vld [vmem:[%s2921 + $0xe8] sm:$0xff]
        %v2952 = vld [vmem:[%s2921 + $0xf0] sm:$0xff]
        %v2953 = vld [vmem:[%s2921 + $0xf8] sm:$0xff]
        %2954 = vmatprep.subr.mxu0 0.0
        %2955 = vmatpush1.msra.mxu0 %v2937
        %2956 = vmatprep.subr.mxu0 0.0
        %2957 = vmatpush1.msra.mxu0 %v2936
        %2958 = vmatprep.subr.mxu0 0.0
        %2959 = vmatpush1.msra.mxu0 %v2935
        %2960 = vmatprep.subr.mxu0 0.0
        %2961 = vmatpush1.msra.mxu0 %v2934
        %2962 = vmatprep.subr.mxu0 0.0
        %2963 = vmatpush1.msra.mxu0 %v2933
        %2964 = vmatprep.subr.mxu0 0.0
        %2965 = vmatpush1.msra.mxu0 %v2932
        %2966 = vmatprep.subr.mxu0 0.0
        %2967 = vmatpush1.msra.mxu0 %v2931
        %2968 = vmatprep.subr.mxu0 0.0
        %2969 = vmatpush1.msra.mxu0 %v2930
        %2970 = vmatprep.subr.mxu0 0.0
        %2971 = vmatpush1.msra.mxu0 %v2929
        %2972 = vmatprep.subr.mxu0 0.0
        %2973 = vmatpush1.msra.mxu0 %v2928
        %2974 = vmatprep.subr.mxu0 0.0
        %2975 = vmatpush1.msra.mxu0 %v2927
        %2976 = vmatprep.subr.mxu0 0.0
        %2977 = vmatpush1.msra.mxu0 %v2926
        %2978 = vmatprep.subr.mxu0 0.0
        %2979 = vmatpush1.msra.mxu0 %v2925
        %2980 = vmatprep.subr.mxu0 0.0
        %2981 = vmatpush1.msra.mxu0 %v2924
        %2982 = vmatprep.subr.mxu0 0.0
        %2983 = vmatpush1.msra.mxu0 %v2923
        %2984 = vmatprep.subr.mxu0 0.0
        %2985 = vmatpush1.msra.mxu0 %v2922
        %2986 = vmatprep.subr.mxu0 0.0
        %2987 = vmatpush2.msra.mxu0 %v2953
        %2988 = vmatprep.subr.mxu0 0.0
        %2989 = vmatpush2.msra.mxu0 %v2952
        %2990 = vmatprep.subr.mxu0 0.0
        %2991 = vmatpush2.msra.mxu0 %v2951
        %2992 = vmatprep.subr.mxu0 0.0
        %2993 = vmatpush2.msra.mxu0 %v2950
        %2994 = vmatprep.subr.mxu0 0.0
        %2995 = vmatpush2.msra.mxu0 %v2949
        %2996 = vmatprep.subr.mxu0 0.0
        %2997 = vmatpush2.msra.mxu0 %v2948
        %2998 = vmatprep.subr.mxu0 0.0
        %2999 = vmatpush2.msra.mxu0 %v2947
        %3000 = vmatprep.subr.mxu0 0.0
        %3001 = vmatpush2.msra.mxu0 %v2946
        %3002 = vmatprep.subr.mxu0 0.0
        %3003 = vmatpush2.msra.mxu0 %v2945
        %3004 = vmatprep.subr.mxu0 0.0
        %3005 = vmatpush2.msra.mxu0 %v2944
        %3006 = vmatprep.subr.mxu0 0.0
        %3007 = vmatpush2.msra.mxu0 %v2943
        %3008 = vmatprep.subr.mxu0 0.0
        %3009 = vmatpush2.msra.mxu0 %v2942
        %3010 = vmatprep.subr.mxu0 0.0
        %3011 = vmatpush2.msra.mxu0 %v2941
        %3012 = vmatprep.subr.mxu0 0.0
        %3013 = vmatpush2.msra.mxu0 %v2940
        %3014 = vmatprep.subr.mxu0 0.0
        %3015 = vmatpush2.msra.mxu0 %v2939
        %3016 = vmatprep.subr.mxu0 0.0
        %3017 = vmatpush2.msra.mxu0 %v2938
        %3018 = vmatprep.mubr.f32.mxu0 %v2698
        %3019 = vmatmul.mubr.f32.gmra.mxu0 %v2697
        %v3020 = vpop.f32.mrf.mxu0
        %v3021 = vadd.f32 0.0, %v3020
        %v3022 = vpop.f32.mrf.mxu0
        %3023 = vmatprep.mubr.f32.mxu0 %v2700
        %3024 = vmatmul.mubr.f32.gmra.mxu0 %v2699
        %v3025 = vpop.f32.mrf.mxu0
        %v3026 = vadd.f32 0.0, %v3025
        %v3027 = vpop.f32.mrf.mxu0
        %3028 = vmatprep.mubr.f32.mxu0 %v2702
        %3029 = vmatmul.mubr.f32.gmra.mxu0 %v2701
        %v3030 = vpop.f32.mrf.mxu0
        %v3031 = vpop.f32.mrf.mxu0
        %3032 = vmatprep.mubr.f32.mxu0 %v2704
        %3033 = vmatmul.mubr.f32.gmra.mxu0 %v2703
        %v3034 = vpop.f32.mrf.mxu0
        %v3035 = vpop.f32.mrf.mxu0
        %3036 = vmatprep.mubr.f32.mxu0 %v2706
        %3037 = vmatmul.mubr.f32.gmra.mxu0 %v2705
        %v3038 = vpop.f32.mrf.mxu0
        %v3039 = vadd.f32 0.0, %v3038
        %v3040 = vpop.f32.mrf.mxu0
        %3041 = vmatprep.mubr.f32.mxu0 %v2708
        %3042 = vmatmul.mubr.f32.gmra.mxu0 %v2707
        %v3043 = vpop.f32.mrf.mxu0
        %v3044 = vadd.f32 0.0, %v3043
        %v3045 = vpop.f32.mrf.mxu0
        %3046 = vmatprep.mubr.f32.mxu0 %v2710
        %3047 = vmatmul.mubr.f32.gmra.mxu0 %v2709
        %v3048 = vpop.f32.mrf.mxu0
        %v3049 = vpop.f32.mrf.mxu0
        %3050 = vmatprep.mubr.f32.mxu0 %v2712
        %3051 = vmatmul.mubr.f32.gmra.mxu0 %v2711
        %v3052 = vpop.f32.mrf.mxu0
        %v3053 = vpop.f32.mrf.mxu0
        %3054 = vmatprep.mubr.f32.mxu0 %v2714
        %3055 = vmatmul.mubr.f32.gmra.mxu0 %v2713
        %v3056 = vpop.f32.mrf.mxu0
        %v3057 = vadd.f32 0.0, %v3056
        %v3058 = vpop.f32.mrf.mxu0
        %3059 = vmatprep.mubr.f32.mxu0 %v2716
        %3060 = vmatmul.mubr.f32.gmra.mxu0 %v2715
        %v3061 = vpop.f32.mrf.mxu0
        %v3062 = vadd.f32 0.0, %v3061
        %v3063 = vpop.f32.mrf.mxu0
        %3064 = vmatprep.mubr.f32.mxu0 %v2718
        %3065 = vmatmul.mubr.f32.gmra.mxu0 %v2717
        %v3066 = vpop.f32.mrf.mxu0
        %v3067 = vpop.f32.mrf.mxu0
        %3068 = vmatprep.mubr.f32.mxu0 %v2720
        %3069 = vmatmul.mubr.f32.gmra.mxu0 %v2719
        %v3070 = vpop.f32.mrf.mxu0
        %v3071 = vpop.f32.mrf.mxu0
        %3072 = vmatprep.mubr.f32.mxu0 %v2722
        %3073 = vmatmul.mubr.f32.gmra.mxu0 %v2721
        %v3074 = vpop.f32.mrf.mxu0
        %v3075 = vadd.f32 0.0, %v3074
        %v3076 = vpop.f32.mrf.mxu0
        %3077 = vmatprep.mubr.f32.mxu0 %v2724
        %3078 = vmatmul.mubr.f32.gmra.mxu0 %v2723
        %v3079 = vpop.f32.mrf.mxu0
        %v3080 = vadd.f32 0.0, %v3079
        %v3081 = vpop.f32.mrf.mxu0
        %3082 = vmatprep.mubr.f32.mxu0 %v2726
        %3083 = vmatmul.mubr.f32.gmra.mxu0 %v2725
        %v3084 = vpop.f32.mrf.mxu0
        %v3085 = vadd.f32 0.0, %v3084
        %v3086 = vpop.f32.mrf.mxu0
        %3087 = vmatprep.mubr.f32.mxu0 %v2728
        %3088 = vmatmul.mubr.f32.gmra.mxu0 %v2727
        %v3089 = vpop.f32.mrf.mxu0
        %v3090 = vadd.f32 0.0, %v3089
        %v3091 = vpop.f32.mrf.mxu0
        %3092 = vmatprep.mubr.f32.mxu0 %v2730
        %3093 = vmatmul.mubr.f32.gmra.mxu0 %v2729
        %v3094 = vpop.f32.mrf.mxu0
        %v3095 = vpop.f32.mrf.mxu0
        %3096 = vmatprep.mubr.f32.mxu0 %v2732
        %3097 = vmatmul.mubr.f32.gmra.mxu0 %v2731
        %v3098 = vpop.f32.mrf.mxu0
        %v3099 = vpop.f32.mrf.mxu0
        %3100 = vmatprep.mubr.f32.mxu0 %v2734
        %3101 = vmatmul.mubr.f32.gmra.mxu0 %v2733
        %v3102 = vpop.f32.mrf.mxu0
        %v3103 = vadd.f32 0.0, %v3102
        %v3104 = vpop.f32.mrf.mxu0
        %3105 = vmatprep.mubr.f32.mxu0 %v2736
        %3106 = vmatmul.mubr.f32.gmra.mxu0 %v2735
        %v3107 = vpop.f32.mrf.mxu0
        %v3108 = vadd.f32 0.0, %v3107
        %v3109 = vpop.f32.mrf.mxu0
        %3110 = vmatprep.mubr.f32.mxu0 %v2738
        %3111 = vmatmul.mubr.f32.gmra.mxu0 %v2737
        %v3112 = vpop.f32.mrf.mxu0
        %v3113 = vpop.f32.mrf.mxu0
        %3114 = vmatprep.mubr.f32.mxu0 %v2740
        %3115 = vmatmul.mubr.f32.gmra.mxu0 %v2739
        %v3116 = vpop.f32.mrf.mxu0
        %v3117 = vpop.f32.mrf.mxu0
        %3118 = vmatprep.mubr.f32.mxu0 %v2742
        %3119 = vmatmul.mubr.f32.gmra.mxu0 %v2741
        %v3120 = vpop.f32.mrf.mxu0
        %v3121 = vadd.f32 0.0, %v3120
        %v3122 = vpop.f32.mrf.mxu0
        %3123 = vmatprep.mubr.f32.mxu0 %v2744
        %3124 = vmatmul.mubr.f32.gmra.mxu0 %v2743
        %v3125 = vpop.f32.mrf.mxu0
        %v3126 = vadd.f32 0.0, %v3125
        %v3127 = vpop.f32.mrf.mxu0
        %3128 = vmatprep.mubr.f32.mxu0 %v2746
        %3129 = vmatmul.mubr.f32.gmra.mxu0 %v2745
        %v3130 = vpop.f32.mrf.mxu0
        %v3131 = vpop.f32.mrf.mxu0
        %3132 = vmatprep.mubr.f32.mxu0 %v2748
        %3133 = vmatmul.mubr.f32.gmra.mxu0 %v2747
        %v3134 = vpop.f32.mrf.mxu0
        %v3135 = vpop.f32.mrf.mxu0
        %3136 = vmatprep.mubr.f32.mxu0 %v2750
        %3137 = vmatmul.mubr.f32.gmra.mxu0 %v2749
        %v3138 = vpop.f32.mrf.mxu0
        %v3139 = vadd.f32 0.0, %v3138
        %v3140 = vpop.f32.mrf.mxu0
        %3141 = vmatprep.mubr.f32.mxu0 %v2752
        %3142 = vmatmul.mubr.f32.gmra.mxu0 %v2751
        %v3143 = vpop.f32.mrf.mxu0
        %v3144 = vadd.f32 0.0, %v3143
        %v3145 = vpop.f32.mrf.mxu0
        %3146 = vmatprep.mubr.f32.mxu0 %v2754
        %3147 = vmatmul.mubr.f32.gmra.mxu0 %v2753
        %v3148 = vpop.f32.mrf.mxu0
        %v3149 = vadd.f32 0.0, %v3148
        %v3150 = vpop.f32.mrf.mxu0
        %3151 = vmatprep.mubr.f32.mxu0 %v2756
        %3152 = vmatmul.mubr.f32.gmra.mxu0 %v2755
        %v3153 = vpop.f32.mrf.mxu0
        %v3154 = vadd.f32 0.0, %v3153
        %v3155 = vpop.f32.mrf.mxu0
        %3156 = vmatprep.mubr.f32.mxu0 %v2758
        %3157 = vmatmul.mubr.f32.gmra.mxu0 %v2757
        %v3158 = vpop.f32.mrf.mxu0
        %v3159 = vpop.f32.mrf.mxu0
        %3160 = vmatprep.mubr.f32.mxu0 %v2760
        %3161 = vmatmul.mubr.f32.gmra.mxu0 %v2759
        %v3162 = vpop.f32.mrf.mxu0
        %v3163 = vpop.f32.mrf.mxu0
        %3164 = vmatprep.mubr.f32.mxu0 %v2762
        %3165 = vmatmul.mubr.f32.gmra.mxu0 %v2761
        %v3166 = vpop.f32.mrf.mxu0
        %v3167 = vadd.f32 0.0, %v3166
        %v3168 = vpop.f32.mrf.mxu0
        %3169 = vmatprep.mubr.f32.mxu0 %v2764
        %3170 = vmatmul.mubr.f32.gmra.mxu0 %v2763
        %v3171 = vpop.f32.mrf.mxu0
        %v3172 = vadd.f32 0.0, %v3171
        %v3173 = vpop.f32.mrf.mxu0
        %3174 = vmatprep.mubr.f32.mxu0 %v2766
        %3175 = vmatmul.mubr.f32.gmra.mxu0 %v2765
        %v3176 = vpop.f32.mrf.mxu0
        %v3177 = vpop.f32.mrf.mxu0
        %3178 = vmatprep.mubr.f32.mxu0 %v2768
        %3179 = vmatmul.mubr.f32.gmra.mxu0 %v2767
        %v3180 = vpop.f32.mrf.mxu0
        %v3181 = vpop.f32.mrf.mxu0
        %3182 = vmatprep.mubr.f32.mxu0 %v2770
        %3183 = vmatmul.mubr.f32.gmra.mxu0 %v2769
        %v3184 = vpop.f32.mrf.mxu0
        %v3185 = vadd.f32 0.0, %v3184
        %v3186 = vpop.f32.mrf.mxu0
        %3187 = vmatprep.mubr.f32.mxu0 %v2772
        %3188 = vmatmul.mubr.f32.gmra.mxu0 %v2771
        %v3189 = vpop.f32.mrf.mxu0
        %v3190 = vadd.f32 0.0, %v3189
        %v3191 = vpop.f32.mrf.mxu0
        %3192 = vmatprep.mubr.f32.mxu0 %v2774
        %3193 = vmatmul.mubr.f32.gmra.mxu0 %v2773
        %v3194 = vpop.f32.mrf.mxu0
        %v3195 = vpop.f32.mrf.mxu0
        %3196 = vmatprep.mubr.f32.mxu0 %v2776
        %3197 = vmatmul.mubr.f32.gmra.mxu0 %v2775
        %v3198 = vpop.f32.mrf.mxu0
        %v3199 = vpop.f32.mrf.mxu0
        %3200 = vmatprep.mubr.f32.mxu0 %v2778
        %3201 = vmatmul.mubr.f32.gmra.mxu0 %v2777
        %v3202 = vpop.f32.mrf.mxu0
        %v3203 = vadd.f32 0.0, %v3202
        %v3204 = vpop.f32.mrf.mxu0
        %3205 = vmatprep.mubr.f32.mxu0 %v2780
        %3206 = vmatmul.mubr.f32.gmra.mxu0 %v2779
        %v3207 = vpop.f32.mrf.mxu0
        %v3208 = vadd.f32 0.0, %v3207
        %v3209 = vpop.f32.mrf.mxu0
        %3210 = vmatprep.mubr.f32.mxu0 %v2782
        %3211 = vmatmul.mubr.f32.gmra.mxu0 %v2781
        %v3212 = vpop.f32.mrf.mxu0
        %v3213 = vadd.f32 0.0, %v3212
        %v3214 = vpop.f32.mrf.mxu0
        %3215 = vmatprep.mubr.f32.mxu0 %v2784
        %3216 = vmatmul.mubr.f32.gmra.mxu0 %v2783
        %v3217 = vpop.f32.mrf.mxu0
        %v3218 = vadd.f32 0.0, %v3217
        %v3219 = vpop.f32.mrf.mxu0
        %3220 = vmatprep.mubr.f32.mxu0 %v2786
        %3221 = vmatmul.mubr.f32.gmra.mxu0 %v2785
        %v3222 = vpop.f32.mrf.mxu0
        %v3223 = vpop.f32.mrf.mxu0
        %3224 = vmatprep.mubr.f32.mxu0 %v2788
        %3225 = vmatmul.mubr.f32.gmra.mxu0 %v2787
        %v3226 = vpop.f32.mrf.mxu0
        %v3227 = vpop.f32.mrf.mxu0
        %3228 = vmatprep.mubr.f32.mxu0 %v2790
        %3229 = vmatmul.mubr.f32.gmra.mxu0 %v2789
        %v3230 = vpop.f32.mrf.mxu0
        %v3231 = vadd.f32 0.0, %v3230
        %v3232 = vpop.f32.mrf.mxu0
        %3233 = vmatprep.mubr.f32.mxu0 %v2792
        %3234 = vmatmul.mubr.f32.gmra.mxu0 %v2791
        %v3235 = vpop.f32.mrf.mxu0
        %v3236 = vadd.f32 0.0, %v3235
        %v3237 = vpop.f32.mrf.mxu0
        %3238 = vmatprep.mubr.f32.mxu0 %v2794
        %3239 = vmatmul.mubr.f32.gmra.mxu0 %v2793
        %v3240 = vpop.f32.mrf.mxu0
        %v3241 = vpop.f32.mrf.mxu0
        %3242 = vmatprep.mubr.f32.mxu0 %v2796
        %3243 = vmatmul.mubr.f32.gmra.mxu0 %v2795
        %v3244 = vpop.f32.mrf.mxu0
        %v3245 = vpop.f32.mrf.mxu0
        %3246 = vmatprep.mubr.f32.mxu0 %v2798
        %3247 = vmatmul.mubr.f32.gmra.mxu0 %v2797
        %v3248 = vpop.f32.mrf.mxu0
        %v3249 = vadd.f32 0.0, %v3248
        %v3250 = vpop.f32.mrf.mxu0
        %3251 = vmatprep.mubr.f32.mxu0 %v2800
        %3252 = vmatmul.mubr.f32.gmra.mxu0 %v2799
        %v3253 = vpop.f32.mrf.mxu0
        %v3254 = vadd.f32 0.0, %v3253
        %v3255 = vpop.f32.mrf.mxu0
        %3256 = vmatprep.mubr.f32.mxu0 %v2802
        %3257 = vmatmul.mubr.f32.gmra.mxu0 %v2801
        %v3258 = vpop.f32.mrf.mxu0
        %v3259 = vpop.f32.mrf.mxu0
        %3260 = vmatprep.mubr.f32.mxu0 %v2804
        %3261 = vmatmul.mubr.f32.gmra.mxu0 %v2803
        %v3262 = vpop.f32.mrf.mxu0
        %v3263 = vpop.f32.mrf.mxu0
        %3264 = vmatprep.mubr.f32.mxu0 %v2806
        %3265 = vmatmul.mubr.f32.gmra.mxu0 %v2805
        %v3266 = vpop.f32.mrf.mxu0
        %v3267 = vadd.f32 0.0, %v3266
        %v3268 = vpop.f32.mrf.mxu0
        %3269 = vmatprep.mubr.f32.mxu0 %v2808
        %3270 = vmatmul.mubr.f32.gmra.mxu0 %v2807
        %v3271 = vpop.f32.mrf.mxu0
        %v3272 = vadd.f32 0.0, %v3271
        %v3273 = vpop.f32.mrf.mxu0
        %3274 = vmatprep.mubr.f32.mxu0 %v2810
        %3275 = vmatmul.mubr.f32.gmra.mxu0 %v2809
        %v3276 = vpop.f32.mrf.mxu0
        %v3277 = vadd.f32 0.0, %v3276
        %v3278 = vpop.f32.mrf.mxu0
        %3279 = vmatprep.mubr.f32.mxu0 %v2812
        %3280 = vmatmul.mubr.f32.gmra.mxu0 %v2811
        %v3281 = vpop.f32.mrf.mxu0
        %v3282 = vadd.f32 0.0, %v3281
        %v3283 = vpop.f32.mrf.mxu0
        %3284 = vmatprep.mubr.f32.mxu0 %v2814
        %3285 = vmatmul.mubr.f32.gmra.mxu0 %v2813
        %v3286 = vpop.f32.mrf.mxu0
        %v3287 = vpop.f32.mrf.mxu0
        %3288 = vmatprep.mubr.f32.mxu0 %v2816
        %3289 = vmatmul.mubr.f32.gmra.mxu0 %v2815
        %v3290 = vpop.f32.mrf.mxu0
        %v3291 = vpop.f32.mrf.mxu0
        %3292 = vmatprep.mubr.f32.mxu0 %v2818
        %3293 = vmatmul.mubr.f32.gmra.mxu0 %v2817
        %v3294 = vpop.f32.mrf.mxu0
        %v3295 = vadd.f32 0.0, %v3294
        %v3296 = vpop.f32.mrf.mxu0
        %3297 = vmatprep.mubr.f32.mxu0 %v2820
        %3298 = vmatmul.mubr.f32.gmra.mxu0 %v2819
        %v3299 = vpop.f32.mrf.mxu0
        %v3300 = vadd.f32 0.0, %v3299
        %v3301 = vpop.f32.mrf.mxu0
        %3302 = vmatprep.mubr.f32.mxu0 %v2822
        %3303 = vmatmul.mubr.f32.gmra.mxu0 %v2821
        %v3304 = vpop.f32.mrf.mxu0
        %v3305 = vpop.f32.mrf.mxu0
        %3306 = vmatprep.mubr.f32.mxu0 %v2824
        %3307 = vmatmul.mubr.f32.gmra.mxu0 %v2823
        %v3308 = vpop.f32.mrf.mxu0
        %v3309 = vpop.f32.mrf.mxu0
        %3310 = vmatprep.mubr.f32.mxu0 %v2826
        %3311 = vmatmul.mubr.f32.gmra.mxu0 %v2825
        %v3312 = vpop.f32.mrf.mxu0
        %v3313 = vadd.f32 0.0, %v3312
        %v3314 = vpop.f32.mrf.mxu0
        %3315 = vmatprep.mubr.f32.mxu0 %v2828
        %3316 = vmatmul.mubr.f32.gmra.mxu0 %v2827
        %v3317 = vpop.f32.mrf.mxu0
        %v3318 = vadd.f32 0.0, %v3317
        %v3319 = vpop.f32.mrf.mxu0
        %3320 = vmatprep.mubr.f32.mxu0 %v2830
        %3321 = vmatmul.mubr.f32.gmra.mxu0 %v2829
        %v3322 = vpop.f32.mrf.mxu0
        %v3323 = vpop.f32.mrf.mxu0
        %3324 = vmatprep.mubr.f32.mxu0 %v2832
        %3325 = vmatmul.mubr.f32.gmra.mxu0 %v2831
        %v3326 = vpop.f32.mrf.mxu0
        %v3327 = vpop.f32.mrf.mxu0
        %3328 = vmatprep.mubr.f32.mxu0 %v2834
        %3329 = vmatmul.mubr.f32.gmra.mxu0 %v2833
        %v3330 = vpop.f32.mrf.mxu0
        %v3331 = vadd.f32 0.0, %v3330
        %v3332 = vpop.f32.mrf.mxu0
        %3333 = vmatprep.mubr.f32.mxu0 %v2836
        %3334 = vmatmul.mubr.f32.gmra.mxu0 %v2835
        %v3335 = vpop.f32.mrf.mxu0
        %v3336 = vadd.f32 0.0, %v3335
        %v3337 = vpop.f32.mrf.mxu0
        %3338 = vmatprep.mubr.f32.mxu0 %v2838
        %3339 = vmatmul.mubr.f32.gmra.mxu0 %v2837
        %v3340 = vpop.f32.mrf.mxu0
        %v3341 = vadd.f32 0.0, %v3340
        %v3342 = vpop.f32.mrf.mxu0
        %3343 = vmatprep.mubr.f32.mxu0 %v2840
        %3344 = vmatmul.mubr.f32.gmra.mxu0 %v2839
        %v3345 = vpop.f32.mrf.mxu0
        %v3346 = vadd.f32 0.0, %v3345
        %v3347 = vpop.f32.mrf.mxu0
        %3348 = vmatprep.mubr.f32.mxu0 %v2842
        %3349 = vmatmul.mubr.f32.gmra.mxu0 %v2841
        %v3350 = vpop.f32.mrf.mxu0
        %v3351 = vpop.f32.mrf.mxu0
        %3352 = vmatprep.mubr.f32.mxu0 %v2844
        %3353 = vmatmul.mubr.f32.gmra.mxu0 %v2843
        %v3354 = vpop.f32.mrf.mxu0
        %v3355 = vpop.f32.mrf.mxu0
        %3356 = vmatprep.mubr.f32.mxu0 %v2846
        %3357 = vmatmul.mubr.f32.gmra.mxu0 %v2845
        %v3358 = vpop.f32.mrf.mxu0
        %v3359 = vadd.f32 0.0, %v3358
        %v3360 = vpop.f32.mrf.mxu0
        %3361 = vmatprep.mubr.f32.mxu0 %v2848
        %3362 = vmatmul.mubr.f32.gmra.mxu0 %v2847
        %v3363 = vpop.f32.mrf.mxu0
        %v3364 = vadd.f32 0.0, %v3363
        %v3365 = vpop.f32.mrf.mxu0
        %3366 = vmatprep.mubr.f32.mxu0 %v2850
        %3367 = vmatmul.mubr.f32.gmra.mxu0 %v2849
        %v3368 = vpop.f32.mrf.mxu0
        %v3369 = vpop.f32.mrf.mxu0
        %3370 = vmatprep.mubr.f32.mxu0 %v2852
        %3371 = vmatmul.mubr.f32.gmra.mxu0 %v2851
        %v3372 = vpop.f32.mrf.mxu0
        %v3373 = vpop.f32.mrf.mxu0
        %3374 = vmatprep.mubr.f32.mxu0 %v2854
        %3375 = vmatmul.mubr.f32.gmra.mxu0 %v2853
        %v3376 = vpop.f32.mrf.mxu0
        %v3377 = vadd.f32 0.0, %v3376
        %v3378 = vpop.f32.mrf.mxu0
        %3379 = vmatprep.mubr.f32.mxu0 %v2856
        %3380 = vmatmul.mubr.f32.gmra.mxu0 %v2855
        %v3381 = vpop.f32.mrf.mxu0
        %v3382 = vadd.f32 0.0, %v3381
        %v3383 = vpop.f32.mrf.mxu0
        %3384 = vmatprep.mubr.f32.mxu0 %v2858
        %3385 = vmatmul.mubr.f32.gmra.mxu0 %v2857
        %v3386 = vpop.f32.mrf.mxu0
        %v3387 = vpop.f32.mrf.mxu0
        %3388 = vmatprep.mubr.f32.mxu0 %v2860
        %3389 = vmatmul.mubr.f32.gmra.mxu0 %v2859
        %v3390 = vpop.f32.mrf.mxu0
        %v3391 = vpop.f32.mrf.mxu0
        %3392 = vmatprep.mubr.f32.mxu0 %v2862
        %3393 = vmatmul.mubr.f32.gmra.mxu0 %v2861
        %v3394 = vpop.f32.mrf.mxu0
        %v3395 = vadd.f32 0.0, %v3394
        %v3396 = vpop.f32.mrf.mxu0
        %3397 = vmatprep.mubr.f32.mxu0 %v2864
        %3398 = vmatmul.mubr.f32.gmra.mxu0 %v2863
        %v3399 = vpop.f32.mrf.mxu0
        %v3400 = vadd.f32 0.0, %v3399
        %v3401 = vpop.f32.mrf.mxu0
        %3402 = vmatprep.mubr.f32.mxu0 %v2866
        %3403 = vmatmul.mubr.f32.gmra.mxu0 %v2865
        %v3404 = vpop.f32.mrf.mxu0
        %v3405 = vadd.f32 0.0, %v3404
        %v3406 = vpop.f32.mrf.mxu0
        %3407 = vmatprep.mubr.f32.mxu0 %v2868
        %3408 = vmatmul.mubr.f32.gmra.mxu0 %v2867
        %v3409 = vpop.f32.mrf.mxu0
        %v3410 = vadd.f32 0.0, %v3409
        %v3411 = vpop.f32.mrf.mxu0
        %3412 = vmatprep.mubr.f32.mxu0 %v2870
        %3413 = vmatmul.mubr.f32.gmra.mxu0 %v2869
        %v3414 = vpop.f32.mrf.mxu0
        %v3415 = vpop.f32.mrf.mxu0
        %3416 = vmatprep.mubr.f32.mxu0 %v2872
        %3417 = vmatmul.mubr.f32.gmra.mxu0 %v2871
        %v3418 = vpop.f32.mrf.mxu0
        %v3419 = vpop.f32.mrf.mxu0
        %3420 = vmatprep.mubr.f32.mxu0 %v2874
        %3421 = vmatmul.mubr.f32.gmra.mxu0 %v2873
        %v3422 = vpop.f32.mrf.mxu0
        %v3423 = vadd.f32 0.0, %v3422
        %v3424 = vpop.f32.mrf.mxu0
        %3425 = vmatprep.mubr.f32.mxu0 %v2876
        %3426 = vmatmul.mubr.f32.gmra.mxu0 %v2875
        %v3427 = vpop.f32.mrf.mxu0
        %v3428 = vadd.f32 0.0, %v3427
        %v3429 = vpop.f32.mrf.mxu0
        %3430 = vmatprep.mubr.f32.mxu0 %v2878
        %3431 = vmatmul.mubr.f32.gmra.mxu0 %v2877
        %v3432 = vpop.f32.mrf.mxu0
        %v3433 = vpop.f32.mrf.mxu0
        %3434 = vmatprep.mubr.f32.mxu0 %v2880
        %3435 = vmatmul.mubr.f32.gmra.mxu0 %v2879
        %v3436 = vpop.f32.mrf.mxu0
        %v3437 = vpop.f32.mrf.mxu0
        %3438 = vmatprep.mubr.f32.mxu0 %v2882
        %3439 = vmatmul.mubr.f32.gmra.mxu0 %v2881
        %v3440 = vpop.f32.mrf.mxu0
        %v3441 = vadd.f32 0.0, %v3440
        %v3442 = vpop.f32.mrf.mxu0
        %3443 = vmatprep.mubr.f32.mxu0 %v2884
        %3444 = vmatmul.mubr.f32.gmra.mxu0 %v2883
        %v3445 = vpop.f32.mrf.mxu0
        %v3446 = vadd.f32 0.0, %v3445
        %v3447 = vpop.f32.mrf.mxu0
        %3448 = vmatprep.mubr.f32.mxu0 %v2886
        %3449 = vmatmul.mubr.f32.gmra.mxu0 %v2885
        %v3450 = vpop.f32.mrf.mxu0
        %v3451 = vpop.f32.mrf.mxu0
        %3452 = vmatprep.mubr.f32.mxu0 %v2888
        %3453 = vmatmul.mubr.f32.gmra.mxu0 %v2887
        %v3454 = vpop.f32.mrf.mxu0
        %v3455 = vpop.f32.mrf.mxu0
        %3456 = vmatprep.mubr.f32.mxu0 %v2890
        %3457 = vmatmul.mubr.f32.gmra.mxu0 %v2889
        %v3458 = vpop.f32.mrf.mxu0
        %v3459 = vadd.f32 0.0, %v3458
        %v3460 = vpop.f32.mrf.mxu0
        %3461 = vmatprep.mubr.f32.mxu0 %v2892
        %3462 = vmatmul.mubr.f32.gmra.mxu0 %v2891
        %v3463 = vpop.f32.mrf.mxu0
        %v3464 = vadd.f32 0.0, %v3463
        %v3465 = vpop.f32.mrf.mxu0
        %3466 = vmatprep.mubr.f32.mxu0 %v2894
        %3467 = vmatmul.mubr.f32.gmra.mxu0 %v2893
        %v3468 = vpop.f32.mrf.mxu0
        %v3469 = vadd.f32 0.0, %v3468
        %v3470 = vpop.f32.mrf.mxu0
        %3471 = vmatprep.mubr.f32.mxu0 %v2896
        %3472 = vmatmul.mubr.f32.gmra.mxu0 %v2895
        %v3473 = vpop.f32.mrf.mxu0
        %v3474 = vadd.f32 0.0, %v3473
        %v3475 = vpop.f32.mrf.mxu0
        %3476 = vmatprep.mubr.f32.mxu0 %v2898
        %3477 = vmatmul.mubr.f32.gmra.mxu0 %v2897
        %v3478 = vpop.f32.mrf.mxu0
        %v3479 = vpop.f32.mrf.mxu0
        %3480 = vmatprep.mubr.f32.mxu0 %v2900
        %3481 = vmatmul.mubr.f32.gmra.mxu0 %v2899
        %v3482 = vpop.f32.mrf.mxu0
        %v3483 = vpop.f32.mrf.mxu0
        %3484 = vmatprep.mubr.f32.mxu0 %v2902
        %3485 = vmatmul.mubr.f32.gmra.mxu0 %v2901
        %v3486 = vpop.f32.mrf.mxu0
        %v3487 = vadd.f32 0.0, %v3486
        %v3488 = vpop.f32.mrf.mxu0
        %3489 = vmatprep.mubr.f32.mxu0 %v2904
        %3490 = vmatmul.mubr.f32.gmra.mxu0 %v2903
        %v3491 = vpop.f32.mrf.mxu0
        %v3492 = vadd.f32 0.0, %v3491
        %v3493 = vpop.f32.mrf.mxu0
        %3494 = vmatprep.mubr.f32.mxu0 %v2906
        %3495 = vmatmul.mubr.f32.gmra.mxu0 %v2905
        %v3496 = vpop.f32.mrf.mxu0
        %v3497 = vpop.f32.mrf.mxu0
        %3498 = vmatprep.mubr.f32.mxu0 %v2908
        %3499 = vmatmul.mubr.f32.gmra.mxu0 %v2907
        %v3500 = vpop.f32.mrf.mxu0
        %v3501 = vpop.f32.mrf.mxu0
        %3502 = vmatprep.mubr.f32.mxu0 %v2910
        %3503 = vmatmul.mubr.f32.gmra.mxu0 %v2909
        %v3504 = vpop.f32.mrf.mxu0
        %v3505 = vadd.f32 0.0, %v3504
        %v3506 = vpop.f32.mrf.mxu0
        %3507 = vmatprep.mubr.f32.mxu0 %v2912
        %3508 = vmatmul.mubr.f32.gmra.mxu0 %v2911
        %v3509 = vpop.f32.mrf.mxu0
        %v3510 = vadd.f32 0.0, %v3509
        %v3511 = vpop.f32.mrf.mxu0
        %3512 = vmatprep.mubr.f32.mxu0 %v2914
        %3513 = vmatmul.mubr.f32.gmra.mxu0 %v2913
        %v3514 = vpop.f32.mrf.mxu0
        %v3515 = vpop.f32.mrf.mxu0
        %3516 = vmatprep.mubr.f32.mxu0 %v2916
        %3517 = vmatmul.mubr.f32.gmra.mxu0 %v2915
        %v3518 = vpop.f32.mrf.mxu0
        %v3519 = vpop.f32.mrf.mxu0
        %3520 = vmatprep.mubr.f32.mxu0 %v2918
        %3521 = vmatmul.mubr.f32.gmra.mxu0 %v2917
        %v3522 = vpop.f32.mrf.mxu0
        %v3523 = vadd.f32 0.0, %v3522
        %v3524 = vpop.f32.mrf.mxu0
        %3525 = vmatprep.mubr.f32.mxu0 %v2920
        %3526 = vmatmul.mubr.f32.gmra.mxu0 %v2919
        %v3527 = vpop.f32.mrf.mxu0
        %v3528 = vadd.f32 0.0, %v3527
        %v3529 = vpop.f32.mrf.mxu0
        %3530 = vdwg.mxu0
        %v3531 = vadd.f32 %v2186, %v3021
        %v3532 = vadd.f32 %v2191, %v3026
        %v3533 = vadd.f32 %v2204, %v3039
        %v3534 = vadd.f32 %v2209, %v3044
        %v3535 = vadd.f32 %v2222, %v3057
        %v3536 = vadd.f32 %v2227, %v3062
        %v3537 = vadd.f32 %v2240, %v3075
        %v3538 = vadd.f32 %v2245, %v3080
        %v3539 = vadd.f32 %v2250, %v3085
        %v3540 = vadd.f32 %v2255, %v3090
        %v3541 = vadd.f32 %v2268, %v3103
        %v3542 = vadd.f32 %v2273, %v3108
        %v3543 = vadd.f32 %v2286, %v3121
        %v3544 = vadd.f32 %v2291, %v3126
        %v3545 = vadd.f32 %v2304, %v3139
        %v3546 = vadd.f32 %v2309, %v3144
        %v3547 = vadd.f32 %v2314, %v3149
        %v3548 = vadd.f32 %v2319, %v3154
        %v3549 = vadd.f32 %v2332, %v3167
        %v3550 = vadd.f32 %v2337, %v3172
        %v3551 = vadd.f32 %v2350, %v3185
        %v3552 = vadd.f32 %v2355, %v3190
        %v3553 = vadd.f32 %v2368, %v3203
        %v3554 = vadd.f32 %v2373, %v3208
        %v3555 = vadd.f32 %v2378, %v3213
        %v3556 = vadd.f32 %v2383, %v3218
        %v3557 = vadd.f32 %v2396, %v3231
        %v3558 = vadd.f32 %v2401, %v3236
        %v3559 = vadd.f32 %v2414, %v3249
        %v3560 = vadd.f32 %v2419, %v3254
        %v3561 = vadd.f32 %v2432, %v3267
        %v3562 = vadd.f32 %v2437, %v3272
        %v3563 = vadd.f32 %v2442, %v3277
        %v3564 = vadd.f32 %v2447, %v3282
        %v3565 = vadd.f32 %v2460, %v3295
        %v3566 = vadd.f32 %v2465, %v3300
        %v3567 = vadd.f32 %v2478, %v3313
        %v3568 = vadd.f32 %v2483, %v3318
        %v3569 = vadd.f32 %v2496, %v3331
        %v3570 = vadd.f32 %v2501, %v3336
        %v3571 = vadd.f32 %v2506, %v3341
        %v3572 = vadd.f32 %v2511, %v3346
        %v3573 = vadd.f32 %v2524, %v3359
        %v3574 = vadd.f32 %v2529, %v3364
        %v3575 = vadd.f32 %v2542, %v3377
        %v3576 = vadd.f32 %v2547, %v3382
        %v3577 = vadd.f32 %v2560, %v3395
        %v3578 = vadd.f32 %v2565, %v3400
        %v3579 = vadd.f32 %v2570, %v3405
        %v3580 = vadd.f32 %v2575, %v3410
        %v3581 = vadd.f32 %v2588, %v3423
        %v3582 = vadd.f32 %v2593, %v3428
        %v3583 = vadd.f32 %v2606, %v3441
        %v3584 = vadd.f32 %v2611, %v3446
        %v3585 = vadd.f32 %v2624, %v3459
        %v3586 = vadd.f32 %v2629, %v3464
        %v3587 = vadd.f32 %v2634, %v3469
        %v3588 = vadd.f32 %v2639, %v3474
        %v3589 = vadd.f32 %v2652, %v3487
        %v3590 = vadd.f32 %v2657, %v3492
        %v3591 = vadd.f32 %v2670, %v3505
        %v3592 = vadd.f32 %v2675, %v3510
        %v3593 = vadd.f32 %v2688, %v3523
        %v3594 = vadd.f32 %v2693, %v3528
        %v3595 = vld [vmem:[%s2696] sm:$0xfe]
        %v3596 = vld [vmem:[%s2696 + $0x8] sm:$0xfe]
        %v3597 = vld [vmem:[%s2696 + $0x10] sm:$0xff]
        %v3598 = vld [vmem:[%s2696 + $0x18] sm:$0xff]
        %v3599 = vld [vmem:[%s2696 + $0x20] sm:$0xff]
        %v3600 = vld [vmem:[%s2696 + $0x28] sm:$0xff]
        %v3601 = vld [vmem:[%s2696 + $0x30] sm:$0xff]
        %v3602 = vld [vmem:[%s2696 + $0x38] sm:$0xff]
        %v3603 = vld [vmem:[%s2696 + $0x40] sm:$0xff]
        %v3604 = vld [vmem:[%s2696 + $0x48] sm:$0xff]
        %v3605 = vld [vmem:[%s2696 + $0x50] sm:$0xff]
        %v3606 = vld [vmem:[%s2696 + $0x58] sm:$0xff]
        %v3607 = vld [vmem:[%s2696 + $0x60] sm:$0xff]
        %v3608 = vld [vmem:[%s2696 + $0x68] sm:$0xff]
        %v3609 = vld [vmem:[%s2696 + $0x70] sm:$0xff]
        %v3610 = vld [vmem:[%s2696 + $0x78] sm:$0xff]
        %v3611 = vld [vmem:[%s2696 + $0x80] sm:$0xff]
        %v3612 = vld [vmem:[%s2696 + $0x88] sm:$0xff]
        %v3613 = vld [vmem:[%s2696 + $0x90] sm:$0xff]
        %v3614 = vld [vmem:[%s2696 + $0x98] sm:$0xff]
        %v3615 = vld [vmem:[%s2696 + $0xa0] sm:$0xff]
        %v3616 = vld [vmem:[%s2696 + $0xa8] sm:$0xff]
        %v3617 = vld [vmem:[%s2696 + $0xb0] sm:$0xff]
        %v3618 = vld [vmem:[%s2696 + $0xb8] sm:$0xff]
        %v3619 = vld [vmem:[%s2696 + $0xc0] sm:$0xff]
        %v3620 = vld [vmem:[%s2696 + $0xc8] sm:$0xff]
        %v3621 = vld [vmem:[%s2696 + $0xd0] sm:$0xff]
        %v3622 = vld [vmem:[%s2696 + $0xd8] sm:$0xff]
        %v3623 = vld [vmem:[%s2696 + $0xe0] sm:$0x1]
        %v3624 = vld [vmem:[%s2696 + $0xe8] sm:$0x1]
        %v3625 = vld [vmem:[%s2696 + $0xf0] sm:$0xfe]
        %v3626 = vld [vmem:[%s2696 + $0xf8] sm:$0xfe]
        %v3627 = vld [vmem:[%s2696 + $0x100] sm:$0xff]
        %v3628 = vld [vmem:[%s2696 + $0x108] sm:$0xff]
        %v3629 = vld [vmem:[%s2696 + $0x110] sm:$0xff]
        %v3630 = vld [vmem:[%s2696 + $0x118] sm:$0xff]
        %v3631 = vld [vmem:[%s2696 + $0x120] sm:$0xff]
        %v3632 = vld [vmem:[%s2696 + $0x128] sm:$0xff]
        %v3633 = vld [vmem:[%s2696 + $0x130] sm:$0xff]
        %v3634 = vld [vmem:[%s2696 + $0x138] sm:$0xff]
        %v3635 = vld [vmem:[%s2696 + $0x140] sm:$0xff]
        %v3636 = vld [vmem:[%s2696 + $0x148] sm:$0xff]
        %v3637 = vld [vmem:[%s2696 + $0x150] sm:$0xff]
        %v3638 = vld [vmem:[%s2696 + $0x158] sm:$0xff]
        %v3639 = vld [vmem:[%s2696 + $0x160] sm:$0xff]
        %v3640 = vld [vmem:[%s2696 + $0x168] sm:$0xff]
        %v3641 = vld [vmem:[%s2696 + $0x170] sm:$0xff]
        %v3642 = vld [vmem:[%s2696 + $0x178] sm:$0xff]
        %v3643 = vld [vmem:[%s2696 + $0x180] sm:$0xff]
        %v3644 = vld [vmem:[%s2696 + $0x188] sm:$0xff]
        %v3645 = vld [vmem:[%s2696 + $0x190] sm:$0xff]
        %v3646 = vld [vmem:[%s2696 + $0x198] sm:$0xff]
        %v3647 = vld [vmem:[%s2696 + $0x1a0] sm:$0xff]
        %v3648 = vld [vmem:[%s2696 + $0x1a8] sm:$0xff]
        %v3649 = vld [vmem:[%s2696 + $0x1b0] sm:$0xff]
        %v3650 = vld [vmem:[%s2696 + $0x1b8] sm:$0xff]
        %v3651 = vld [vmem:[%s2696 + $0x1c0] sm:$0xff]
        %v3652 = vld [vmem:[%s2696 + $0x1c8] sm:$0xff]
        %v3653 = vld [vmem:[%s2696 + $0x1d0] sm:$0x1]
        %v3654 = vld [vmem:[%s2696 + $0x1d8] sm:$0x1]
        %v3655 = vld [vmem:[%s2696 + $0x1e0] sm:$0xfe]
        %v3656 = vld [vmem:[%s2696 + $0x1e8] sm:$0xfe]
        %v3657 = vld [vmem:[%s2696 + $0x1f0] sm:$0xff]
        %v3658 = vld [vmem:[%s2696 + $0x1f8] sm:$0xff]
        %v3659 = vld [vmem:[%s2696 + $0x200] sm:$0xff]
        %v3660 = vld [vmem:[%s2696 + $0x208] sm:$0xff]
        %v3661 = vld [vmem:[%s2696 + $0x210] sm:$0xff]
        %v3662 = vld [vmem:[%s2696 + $0x218] sm:$0xff]
        %v3663 = vld [vmem:[%s2696 + $0x220] sm:$0xff]
        %v3664 = vld [vmem:[%s2696 + $0x228] sm:$0xff]
        %v3665 = vld [vmem:[%s2696 + $0x230] sm:$0xff]
        %v3666 = vld [vmem:[%s2696 + $0x238] sm:$0xff]
        %v3667 = vld [vmem:[%s2696 + $0x240] sm:$0xff]
        %v3668 = vld [vmem:[%s2696 + $0x248] sm:$0xff]
        %v3669 = vld [vmem:[%s2696 + $0x250] sm:$0xff]
        %v3670 = vld [vmem:[%s2696 + $0x258] sm:$0xff]
        %v3671 = vld [vmem:[%s2696 + $0x260] sm:$0xff]
        %v3672 = vld [vmem:[%s2696 + $0x268] sm:$0xff]
        %v3673 = vld [vmem:[%s2696 + $0x270] sm:$0xff]
        %v3674 = vld [vmem:[%s2696 + $0x278] sm:$0xff]
        %v3675 = vld [vmem:[%s2696 + $0x280] sm:$0xff]
        %v3676 = vld [vmem:[%s2696 + $0x288] sm:$0xff]
        %v3677 = vld [vmem:[%s2696 + $0x290] sm:$0xff]
        %v3678 = vld [vmem:[%s2696 + $0x298] sm:$0xff]
        %v3679 = vld [vmem:[%s2696 + $0x2a0] sm:$0xff]
        %v3680 = vld [vmem:[%s2696 + $0x2a8] sm:$0xff]
        %v3681 = vld [vmem:[%s2696 + $0x2b0] sm:$0xff]
        %v3682 = vld [vmem:[%s2696 + $0x2b8] sm:$0xff]
        %v3683 = vld [vmem:[%s2696 + $0x2c0] sm:$0x1]
        %v3684 = vld [vmem:[%s2696 + $0x2c8] sm:$0x1]
        %v3685 = vld [vmem:[%s2696 + $0x2d0] sm:$0xfe]
        %v3686 = vld [vmem:[%s2696 + $0x2d8] sm:$0xfe]
        %v3687 = vld [vmem:[%s2696 + $0x2e0] sm:$0xff]
        %v3688 = vld [vmem:[%s2696 + $0x2e8] sm:$0xff]
        %v3689 = vld [vmem:[%s2696 + $0x2f0] sm:$0xff]
        %v3690 = vld [vmem:[%s2696 + $0x2f8] sm:$0xff]
        %v3691 = vld [vmem:[%s2696 + $0x300] sm:$0xff]
        %v3692 = vld [vmem:[%s2696 + $0x308] sm:$0xff]
        %v3693 = vld [vmem:[%s2696 + $0x310] sm:$0xff]
        %v3694 = vld [vmem:[%s2696 + $0x318] sm:$0xff]
        %v3695 = vld [vmem:[%s2696 + $0x320] sm:$0xff]
        %v3696 = vld [vmem:[%s2696 + $0x328] sm:$0xff]
        %v3697 = vld [vmem:[%s2696 + $0x330] sm:$0xff]
        %v3698 = vld [vmem:[%s2696 + $0x338] sm:$0xff]
        %v3699 = vld [vmem:[%s2696 + $0x340] sm:$0xff]
        %v3700 = vld [vmem:[%s2696 + $0x348] sm:$0xff]
        %v3701 = vld [vmem:[%s2696 + $0x350] sm:$0xff]
        %v3702 = vld [vmem:[%s2696 + $0x358] sm:$0xff]
        %v3703 = vld [vmem:[%s2696 + $0x360] sm:$0xff]
        %v3704 = vld [vmem:[%s2696 + $0x368] sm:$0xff]
        %v3705 = vld [vmem:[%s2696 + $0x370] sm:$0xff]
        %v3706 = vld [vmem:[%s2696 + $0x378] sm:$0xff]
        %v3707 = vld [vmem:[%s2696 + $0x380] sm:$0xff]
        %v3708 = vld [vmem:[%s2696 + $0x388] sm:$0xff]
        %v3709 = vld [vmem:[%s2696 + $0x390] sm:$0xff]
        %v3710 = vld [vmem:[%s2696 + $0x398] sm:$0xff]
        %v3711 = vld [vmem:[%s2696 + $0x3a0] sm:$0xff]
        %v3712 = vld [vmem:[%s2696 + $0x3a8] sm:$0xff]
        %v3713 = vld [vmem:[%s2696 + $0x3b0] sm:$0x1]
        %v3714 = vld [vmem:[%s2696 + $0x3b8] sm:$0x1]
        %v3715 = vld [vmem:[%s2696 + $0x3c0] sm:$0xfe]
        %v3716 = vld [vmem:[%s2696 + $0x3c8] sm:$0xfe]
        %v3717 = vld [vmem:[%s2696 + $0x3d0] sm:$0xff]
        %v3718 = vld [vmem:[%s2696 + $0x3d8] sm:$0xff]
        %v3719 = vld [vmem:[%s2696 + $0x3e0] sm:$0xff]
        %v3720 = vld [vmem:[%s2696 + $0x3e8] sm:$0xff]
        %v3721 = vld [vmem:[%s2696 + $0x3f0] sm:$0xff]
        %v3722 = vld [vmem:[%s2696 + $0x3f8] sm:$0xff]
        %v3723 = vld [vmem:[%s2696 + $0x400] sm:$0xff]
        %v3724 = vld [vmem:[%s2696 + $0x408] sm:$0xff]
        %v3725 = vld [vmem:[%s2696 + $0x410] sm:$0xff]
        %v3726 = vld [vmem:[%s2696 + $0x418] sm:$0xff]
        %v3727 = vld [vmem:[%s2696 + $0x420] sm:$0xff]
        %v3728 = vld [vmem:[%s2696 + $0x428] sm:$0xff]
        %v3729 = vld [vmem:[%s2696 + $0x430] sm:$0xff]
        %v3730 = vld [vmem:[%s2696 + $0x438] sm:$0xff]
        %v3731 = vld [vmem:[%s2696 + $0x440] sm:$0xff]
        %v3732 = vld [vmem:[%s2696 + $0x448] sm:$0xff]
        %v3733 = vld [vmem:[%s2696 + $0x450] sm:$0xff]
        %v3734 = vld [vmem:[%s2696 + $0x458] sm:$0xff]
        %v3735 = vld [vmem:[%s2696 + $0x460] sm:$0xff]
        %v3736 = vld [vmem:[%s2696 + $0x468] sm:$0xff]
        %v3737 = vld [vmem:[%s2696 + $0x470] sm:$0xff]
        %v3738 = vld [vmem:[%s2696 + $0x478] sm:$0xff]
        %v3739 = vld [vmem:[%s2696 + $0x480] sm:$0xff]
        %v3740 = vld [vmem:[%s2696 + $0x488] sm:$0xff]
        %v3741 = vld [vmem:[%s2696 + $0x490] sm:$0xff]
        %v3742 = vld [vmem:[%s2696 + $0x498] sm:$0xff]
        %v3743 = vld [vmem:[%s2696 + $0x4a0] sm:$0x1]
        %v3744 = vld [vmem:[%s2696 + $0x4a8] sm:$0x1]
        %v3745 = vld [vmem:[%s2696 + $0x4b0] sm:$0xfe]
        %v3746 = vld [vmem:[%s2696 + $0x4b8] sm:$0xfe]
        %v3747 = vld [vmem:[%s2696 + $0x4c0] sm:$0xff]
        %v3748 = vld [vmem:[%s2696 + $0x4c8] sm:$0xff]
        %v3749 = vld [vmem:[%s2696 + $0x4d0] sm:$0xff]
        %v3750 = vld [vmem:[%s2696 + $0x4d8] sm:$0xff]
        %v3751 = vld [vmem:[%s2696 + $0x4e0] sm:$0xff]
        %v3752 = vld [vmem:[%s2696 + $0x4e8] sm:$0xff]
        %v3753 = vld [vmem:[%s2696 + $0x4f0] sm:$0xff]
        %v3754 = vld [vmem:[%s2696 + $0x4f8] sm:$0xff]
        %v3755 = vld [vmem:[%s2696 + $0x500] sm:$0xff]
        %v3756 = vld [vmem:[%s2696 + $0x508] sm:$0xff]
        %v3757 = vld [vmem:[%s2696 + $0x510] sm:$0xff]
        %v3758 = vld [vmem:[%s2696 + $0x518] sm:$0xff]
        %v3759 = vld [vmem:[%s2696 + $0x520] sm:$0xff]
        %v3760 = vld [vmem:[%s2696 + $0x528] sm:$0xff]
        %v3761 = vld [vmem:[%s2696 + $0x530] sm:$0xff]
        %v3762 = vld [vmem:[%s2696 + $0x538] sm:$0xff]
        %v3763 = vld [vmem:[%s2696 + $0x540] sm:$0xff]
        %v3764 = vld [vmem:[%s2696 + $0x548] sm:$0xff]
        %v3765 = vld [vmem:[%s2696 + $0x550] sm:$0xff]
        %v3766 = vld [vmem:[%s2696 + $0x558] sm:$0xff]
        %v3767 = vld [vmem:[%s2696 + $0x560] sm:$0xff]
        %v3768 = vld [vmem:[%s2696 + $0x568] sm:$0xff]
        %v3769 = vld [vmem:[%s2696 + $0x570] sm:$0xff]
        %v3770 = vld [vmem:[%s2696 + $0x578] sm:$0xff]
        %v3771 = vld [vmem:[%s2696 + $0x580] sm:$0xff]
        %v3772 = vld [vmem:[%s2696 + $0x588] sm:$0xff]
        %v3773 = vld [vmem:[%s2696 + $0x590] sm:$0x1]
        %v3774 = vld [vmem:[%s2696 + $0x598] sm:$0x1]
        %v3775 = vld [vmem:[%s2696 + $0x5a0] sm:$0xfe]
        %v3776 = vld [vmem:[%s2696 + $0x5a8] sm:$0xfe]
        %v3777 = vld [vmem:[%s2696 + $0x5b0] sm:$0xff]
        %v3778 = vld [vmem:[%s2696 + $0x5b8] sm:$0xff]
        %v3779 = vld [vmem:[%s2696 + $0x5c0] sm:$0xff]
        %v3780 = vld [vmem:[%s2696 + $0x5c8] sm:$0xff]
        %v3781 = vld [vmem:[%s2696 + $0x5d0] sm:$0xff]
        %v3782 = vld [vmem:[%s2696 + $0x5d8] sm:$0xff]
        %v3783 = vld [vmem:[%s2696 + $0x5e0] sm:$0xff]
        %v3784 = vld [vmem:[%s2696 + $0x5e8] sm:$0xff]
        %v3785 = vld [vmem:[%s2696 + $0x5f0] sm:$0xff]
        %v3786 = vld [vmem:[%s2696 + $0x5f8] sm:$0xff]
        %v3787 = vld [vmem:[%s2696 + $0x600] sm:$0xff]
        %v3788 = vld [vmem:[%s2696 + $0x608] sm:$0xff]
        %v3789 = vld [vmem:[%s2696 + $0x610] sm:$0xff]
        %v3790 = vld [vmem:[%s2696 + $0x618] sm:$0xff]
        %v3791 = vld [vmem:[%s2696 + $0x620] sm:$0xff]
        %v3792 = vld [vmem:[%s2696 + $0x628] sm:$0xff]
        %v3793 = vld [vmem:[%s2696 + $0x630] sm:$0xff]
        %v3794 = vld [vmem:[%s2696 + $0x638] sm:$0xff]
        %v3795 = vld [vmem:[%s2696 + $0x640] sm:$0xff]
        %v3796 = vld [vmem:[%s2696 + $0x648] sm:$0xff]
        %v3797 = vld [vmem:[%s2696 + $0x650] sm:$0xff]
        %v3798 = vld [vmem:[%s2696 + $0x658] sm:$0xff]
        %v3799 = vld [vmem:[%s2696 + $0x660] sm:$0xff]
        %v3800 = vld [vmem:[%s2696 + $0x668] sm:$0xff]
        %v3801 = vld [vmem:[%s2696 + $0x670] sm:$0xff]
        %v3802 = vld [vmem:[%s2696 + $0x678] sm:$0xff]
        %v3803 = vld [vmem:[%s2696 + $0x680] sm:$0x1]
        %v3804 = vld [vmem:[%s2696 + $0x688] sm:$0x1]
        %v3805 = vld [vmem:[%s2696 + $0x690] sm:$0xfe]
        %v3806 = vld [vmem:[%s2696 + $0x698] sm:$0xfe]
        %v3807 = vld [vmem:[%s2696 + $0x6a0] sm:$0xff]
        %v3808 = vld [vmem:[%s2696 + $0x6a8] sm:$0xff]
        %v3809 = vld [vmem:[%s2696 + $0x6b0] sm:$0xff]
        %v3810 = vld [vmem:[%s2696 + $0x6b8] sm:$0xff]
        %v3811 = vld [vmem:[%s2696 + $0x6c0] sm:$0xff]
        %v3812 = vld [vmem:[%s2696 + $0x6c8] sm:$0xff]
        %v3813 = vld [vmem:[%s2696 + $0x6d0] sm:$0xff]
        %v3814 = vld [vmem:[%s2696 + $0x6d8] sm:$0xff]
        %v3815 = vld [vmem:[%s2696 + $0x6e0] sm:$0xff]
        %v3816 = vld [vmem:[%s2696 + $0x6e8] sm:$0xff]
        %v3817 = vld [vmem:[%s2696 + $0x6f0] sm:$0xff]
        %v3818 = vld [vmem:[%s2696 + $0x6f8] sm:$0xff]
        %v3819 = vld [vmem:[%s2696 + $0x700] sm:$0xff]
        %v3820 = vld [vmem:[%s2696 + $0x708] sm:$0xff]
        %v3821 = vld [vmem:[%s2696 + $0x710] sm:$0xff]
        %v3822 = vld [vmem:[%s2696 + $0x718] sm:$0xff]
        %v3823 = vld [vmem:[%s2696 + $0x720] sm:$0xff]
        %v3824 = vld [vmem:[%s2696 + $0x728] sm:$0xff]
        %v3825 = vld [vmem:[%s2696 + $0x730] sm:$0xff]
        %v3826 = vld [vmem:[%s2696 + $0x738] sm:$0xff]
        %v3827 = vld [vmem:[%s2696 + $0x740] sm:$0xff]
        %v3828 = vld [vmem:[%s2696 + $0x748] sm:$0xff]
        %v3829 = vld [vmem:[%s2696 + $0x750] sm:$0xff]
        %v3830 = vld [vmem:[%s2696 + $0x758] sm:$0xff]
        %v3831 = vld [vmem:[%s2696 + $0x760] sm:$0xff]
        %v3832 = vld [vmem:[%s2696 + $0x768] sm:$0xff]
        %v3833 = vld [vmem:[%s2696 + $0x770] sm:$0x1]
        %v3834 = vld [vmem:[%s2696 + $0x778] sm:$0x1]
        %v4075 = vrot.slane %v3595, 1
        %v4076 = vrot.slane %v3597, 1
        %v4077 = vsel %vm820, %v4075, %v4076
        %v4078 = vrot.slane %v3596, 1
        %v4079 = vrot.slane %v3598, 1
        %v4080 = vsel %vm820, %v4078, %v4079
        %v4081 = vrot.slane %v3599, 1
        %v4082 = vsel %vm820, %v4076, %v4081
        %v4083 = vrot.slane %v3600, 1
        %v4084 = vsel %vm820, %v4079, %v4083
        %v4085 = vrot.slane %v3601, 1
        %v4086 = vsel %vm820, %v4081, %v4085
        %v4087 = vrot.slane %v3602, 1
        %v4088 = vsel %vm820, %v4083, %v4087
        %v4089 = vrot.slane %v3603, 1
        %v4090 = vsel %vm820, %v4085, %v4089
        %v4091 = vrot.slane %v3604, 1
        %v4092 = vsel %vm820, %v4087, %v4091
        %v4093 = vrot.slane %v3605, 1
        %v4094 = vsel %vm820, %v4089, %v4093
        %v4095 = vrot.slane %v3606, 1
        %v4096 = vsel %vm820, %v4091, %v4095
        %v4097 = vrot.slane %v3607, 1
        %v4098 = vsel %vm820, %v4093, %v4097
        %v4099 = vrot.slane %v3608, 1
        %v4100 = vsel %vm820, %v4095, %v4099
        %v4101 = vrot.slane %v3609, 1
        %v4102 = vsel %vm820, %v4097, %v4101
        %v4103 = vrot.slane %v3610, 1
        %v4104 = vsel %vm820, %v4099, %v4103
        %v4105 = vrot.slane %v3611, 1
        %v4106 = vsel %vm820, %v4101, %v4105
        %v4107 = vrot.slane %v3612, 1
        %v4108 = vsel %vm820, %v4103, %v4107
        %v4109 = vrot.slane %v3613, 1
        %v4110 = vsel %vm820, %v4105, %v4109
        %v4111 = vrot.slane %v3614, 1
        %v4112 = vsel %vm820, %v4107, %v4111
        %v4113 = vrot.slane %v3615, 1
        %v4114 = vsel %vm820, %v4109, %v4113
        %v4115 = vrot.slane %v3616, 1
        %v4116 = vsel %vm820, %v4111, %v4115
        %v4117 = vrot.slane %v3617, 1
        %v4118 = vsel %vm820, %v4113, %v4117
        %v4119 = vrot.slane %v3618, 1
        %v4120 = vsel %vm820, %v4115, %v4119
        %v4121 = vrot.slane %v3619, 1
        %v4122 = vsel %vm820, %v4117, %v4121
        %v4123 = vrot.slane %v3620, 1
        %v4124 = vsel %vm820, %v4119, %v4123
        %v4125 = vrot.slane %v3621, 1
        %v4126 = vsel %vm820, %v4121, %v4125
        %v4127 = vrot.slane %v3622, 1
        %v4128 = vsel %vm820, %v4123, %v4127
        %v4129 = vrot.slane %v3623, 1
        %v4130 = vsel %vm820, %v4125, %v4129
        %v4131 = vrot.slane %v3624, 1
        %v4132 = vsel %vm820, %v4127, %v4131
        %v4133 = vrot.slane %v3625, 1
        %v4134 = vrot.slane %v3627, 1
        %v4135 = vsel %vm820, %v4133, %v4134
        %v4136 = vrot.slane %v3626, 1
        %v4137 = vrot.slane %v3628, 1
        %v4138 = vsel %vm820, %v4136, %v4137
        %v4139 = vrot.slane %v3629, 1
        %v4140 = vsel %vm820, %v4134, %v4139
        %v4141 = vrot.slane %v3630, 1
        %v4142 = vsel %vm820, %v4137, %v4141
        %v4143 = vrot.slane %v3631, 1
        %v4144 = vsel %vm820, %v4139, %v4143
        %v4145 = vrot.slane %v3632, 1
        %v4146 = vsel %vm820, %v4141, %v4145
        %v4147 = vrot.slane %v3633, 1
        %v4148 = vsel %vm820, %v4143, %v4147
        %v4149 = vrot.slane %v3634, 1
        %v4150 = vsel %vm820, %v4145, %v4149
        %v4151 = vrot.slane %v3635, 1
        %v4152 = vsel %vm820, %v4147, %v4151
        %v4153 = vrot.slane %v3636, 1
        %v4154 = vsel %vm820, %v4149, %v4153
        %v4155 = vrot.slane %v3637, 1
        %v4156 = vsel %vm820, %v4151, %v4155
        %v4157 = vrot.slane %v3638, 1
        %v4158 = vsel %vm820, %v4153, %v4157
        %v4159 = vrot.slane %v3639, 1
        %v4160 = vsel %vm820, %v4155, %v4159
        %v4161 = vrot.slane %v3640, 1
        %v4162 = vsel %vm820, %v4157, %v4161
        %v4163 = vrot.slane %v3641, 1
        %v4164 = vsel %vm820, %v4159, %v4163
        %v4165 = vrot.slane %v3642, 1
        %v4166 = vsel %vm820, %v4161, %v4165
        %v4167 = vrot.slane %v3643, 1
        %v4168 = vsel %vm820, %v4163, %v4167
        %v4169 = vrot.slane %v3644, 1
        %v4170 = vsel %vm820, %v4165, %v4169
        %v4171 = vrot.slane %v3645, 1
        %v4172 = vsel %vm820, %v4167, %v4171
        %v4173 = vrot.slane %v3646, 1
        %v4174 = vsel %vm820, %v4169, %v4173
        %v4175 = vrot.slane %v3647, 1
        %v4176 = vsel %vm820, %v4171, %v4175
        %v4177 = vrot.slane %v3648, 1
        %v4178 = vsel %vm820, %v4173, %v4177
        %v4179 = vrot.slane %v3649, 1
        %v4180 = vsel %vm820, %v4175, %v4179
        %v4181 = vrot.slane %v3650, 1
        %v4182 = vsel %vm820, %v4177, %v4181
        %v4183 = vrot.slane %v3651, 1
        %v4184 = vsel %vm820, %v4179, %v4183
        %v4185 = vrot.slane %v3652, 1
        %v4186 = vsel %vm820, %v4181, %v4185
        %v4187 = vrot.slane %v3653, 1
        %v4188 = vsel %vm820, %v4183, %v4187
        %v4189 = vrot.slane %v3654, 1
        %v4190 = vsel %vm820, %v4185, %v4189
        %v4191 = vrot.slane %v3655, 1
        %v4192 = vrot.slane %v3657, 1
        %v4193 = vsel %vm820, %v4191, %v4192
        %v4194 = vrot.slane %v3656, 1
        %v4195 = vrot.slane %v3658, 1
        %v4196 = vsel %vm820, %v4194, %v4195
        %v4197 = vrot.slane %v3659, 1
        %v4198 = vsel %vm820, %v4192, %v4197
        %v4199 = vrot.slane %v3660, 1
        %v4200 = vsel %vm820, %v4195, %v4199
        %v4201 = vrot.slane %v3661, 1
        %v4202 = vsel %vm820, %v4197, %v4201
        %v4203 = vrot.slane %v3662, 1
        %v4204 = vsel %vm820, %v4199, %v4203
        %v4205 = vrot.slane %v3663, 1
        %v4206 = vsel %vm820, %v4201, %v4205
        %v4207 = vrot.slane %v3664, 1
        %v4208 = vsel %vm820, %v4203, %v4207
        %v4209 = vrot.slane %v3665, 1
        %v4210 = vsel %vm820, %v4205, %v4209
        %v4211 = vrot.slane %v3666, 1
        %v4212 = vsel %vm820, %v4207, %v4211
        %v4213 = vrot.slane %v3667, 1
        %v4214 = vsel %vm820, %v4209, %v4213
        %v4215 = vrot.slane %v3668, 1
        %v4216 = vsel %vm820, %v4211, %v4215
        %v4217 = vrot.slane %v3669, 1
        %v4218 = vsel %vm820, %v4213, %v4217
        %v4219 = vrot.slane %v3670, 1
        %v4220 = vsel %vm820, %v4215, %v4219
        %v4221 = vrot.slane %v3671, 1
        %v4222 = vsel %vm820, %v4217, %v4221
        %v4223 = vrot.slane %v3672, 1
        %v4224 = vsel %vm820, %v4219, %v4223
        %v4225 = vrot.slane %v3673, 1
        %v4226 = vsel %vm820, %v4221, %v4225
        %v4227 = vrot.slane %v3674, 1
        %v4228 = vsel %vm820, %v4223, %v4227
        %v4229 = vrot.slane %v3675, 1
        %v4230 = vsel %vm820, %v4225, %v4229
        %v4231 = vrot.slane %v3676, 1
        %v4232 = vsel %vm820, %v4227, %v4231
        %v4233 = vrot.slane %v3677, 1
        %v4234 = vsel %vm820, %v4229, %v4233
        %v4235 = vrot.slane %v3678, 1
        %v4236 = vsel %vm820, %v4231, %v4235
        %v4237 = vrot.slane %v3679, 1
        %v4238 = vsel %vm820, %v4233, %v4237
        %v4239 = vrot.slane %v3680, 1
        %v4240 = vsel %vm820, %v4235, %v4239
        %v4241 = vrot.slane %v3681, 1
        %v4242 = vsel %vm820, %v4237, %v4241
        %v4243 = vrot.slane %v3682, 1
        %v4244 = vsel %vm820, %v4239, %v4243
        %v4245 = vrot.slane %v3683, 1
        %v4246 = vsel %vm820, %v4241, %v4245
        %v4247 = vrot.slane %v3684, 1
        %v4248 = vsel %vm820, %v4243, %v4247
        %v4249 = vrot.slane %v3685, 1
        %v4250 = vrot.slane %v3687, 1
        %v4251 = vsel %vm820, %v4249, %v4250
        %v4252 = vrot.slane %v3686, 1
        %v4253 = vrot.slane %v3688, 1
        %v4254 = vsel %vm820, %v4252, %v4253
        %v4255 = vrot.slane %v3689, 1
        %v4256 = vsel %vm820, %v4250, %v4255
        %v4257 = vrot.slane %v3690, 1
        %v4258 = vsel %vm820, %v4253, %v4257
        %v4259 = vrot.slane %v3691, 1
        %v4260 = vsel %vm820, %v4255, %v4259
        %v4261 = vrot.slane %v3692, 1
        %v4262 = vsel %vm820, %v4257, %v4261
        %v4263 = vrot.slane %v3693, 1
        %v4264 = vsel %vm820, %v4259, %v4263
        %v4265 = vrot.slane %v3694, 1
        %v4266 = vsel %vm820, %v4261, %v4265
        %v4267 = vrot.slane %v3695, 1
        %v4268 = vsel %vm820, %v4263, %v4267
        %v4269 = vrot.slane %v3696, 1
        %v4270 = vsel %vm820, %v4265, %v4269
        %v4271 = vrot.slane %v3697, 1
        %v4272 = vsel %vm820, %v4267, %v4271
        %v4273 = vrot.slane %v3698, 1
        %v4274 = vsel %vm820, %v4269, %v4273
        %v4275 = vrot.slane %v3699, 1
        %v4276 = vsel %vm820, %v4271, %v4275
        %v4277 = vrot.slane %v3700, 1
        %v4278 = vsel %vm820, %v4273, %v4277
        %v4279 = vrot.slane %v3701, 1
        %v4280 = vsel %vm820, %v4275, %v4279
        %v4281 = vrot.slane %v3702, 1
        %v4282 = vsel %vm820, %v4277, %v4281
        %v4283 = vrot.slane %v3703, 1
        %v4284 = vsel %vm820, %v4279, %v4283
        %v4285 = vrot.slane %v3704, 1
        %v4286 = vsel %vm820, %v4281, %v4285
        %v4287 = vrot.slane %v3705, 1
        %v4288 = vsel %vm820, %v4283, %v4287
        %v4289 = vrot.slane %v3706, 1
        %v4290 = vsel %vm820, %v4285, %v4289
        %v4291 = vrot.slane %v3707, 1
        %v4292 = vsel %vm820, %v4287, %v4291
        %v4293 = vrot.slane %v3708, 1
        %v4294 = vsel %vm820, %v4289, %v4293
        %v4295 = vrot.slane %v3709, 1
        %v4296 = vsel %vm820, %v4291, %v4295
        %v4297 = vrot.slane %v3710, 1
        %v4298 = vsel %vm820, %v4293, %v4297
        %v4299 = vrot.slane %v3711, 1
        %v4300 = vsel %vm820, %v4295, %v4299
        %v4301 = vrot.slane %v3712, 1
        %v4302 = vsel %vm820, %v4297, %v4301
        %v4303 = vrot.slane %v3713, 1
        %v4304 = vsel %vm820, %v4299, %v4303
        %v4305 = vrot.slane %v3714, 1
        %v4306 = vsel %vm820, %v4301, %v4305
        %v4307 = vrot.slane %v3715, 1
        %v4308 = vrot.slane %v3717, 1
        %v4309 = vsel %vm820, %v4307, %v4308
        %v4310 = vrot.slane %v3716, 1
        %v4311 = vrot.slane %v3718, 1
        %v4312 = vsel %vm820, %v4310, %v4311
        %v4313 = vrot.slane %v3719, 1
        %v4314 = vsel %vm820, %v4308, %v4313
        %v4315 = vrot.slane %v3720, 1
        %v4316 = vsel %vm820, %v4311, %v4315
        %v4317 = vrot.slane %v3721, 1
        %v4318 = vsel %vm820, %v4313, %v4317
        %v4319 = vrot.slane %v3722, 1
        %v4320 = vsel %vm820, %v4315, %v4319
        %v4321 = vrot.slane %v3723, 1
        %v4322 = vsel %vm820, %v4317, %v4321
        %v4323 = vrot.slane %v3724, 1
        %v4324 = vsel %vm820, %v4319, %v4323
        %v4325 = vrot.slane %v3725, 1
        %v4326 = vsel %vm820, %v4321, %v4325
        %v4327 = vrot.slane %v3726, 1
        %v4328 = vsel %vm820, %v4323, %v4327
        %v4329 = vrot.slane %v3727, 1
        %v4330 = vsel %vm820, %v4325, %v4329
        %v4331 = vrot.slane %v3728, 1
        %v4332 = vsel %vm820, %v4327, %v4331
        %v4333 = vrot.slane %v3729, 1
        %v4334 = vsel %vm820, %v4329, %v4333
        %v4335 = vrot.slane %v3730, 1
        %v4336 = vsel %vm820, %v4331, %v4335
        %v4337 = vrot.slane %v3731, 1
        %v4338 = vsel %vm820, %v4333, %v4337
        %v4339 = vrot.slane %v3732, 1
        %v4340 = vsel %vm820, %v4335, %v4339
        %v4341 = vrot.slane %v3733, 1
        %v4342 = vsel %vm820, %v4337, %v4341
        %v4343 = vrot.slane %v3734, 1
        %v4344 = vsel %vm820, %v4339, %v4343
        %v4345 = vrot.slane %v3735, 1
        %v4346 = vsel %vm820, %v4341, %v4345
        %v4347 = vrot.slane %v3736, 1
        %v4348 = vsel %vm820, %v4343, %v4347
        %v4349 = vrot.slane %v3737, 1
        %v4350 = vsel %vm820, %v4345, %v4349
        %v4351 = vrot.slane %v3738, 1
        %v4352 = vsel %vm820, %v4347, %v4351
        %v4353 = vrot.slane %v3739, 1
        %v4354 = vsel %vm820, %v4349, %v4353
        %v4355 = vrot.slane %v3740, 1
        %v4356 = vsel %vm820, %v4351, %v4355
        %v4357 = vrot.slane %v3741, 1
        %v4358 = vsel %vm820, %v4353, %v4357
        %v4359 = vrot.slane %v3742, 1
        %v4360 = vsel %vm820, %v4355, %v4359
        %v4361 = vrot.slane %v3743, 1
        %v4362 = vsel %vm820, %v4357, %v4361
        %v4363 = vrot.slane %v3744, 1
        %v4364 = vsel %vm820, %v4359, %v4363
        %v4365 = vrot.slane %v3745, 1
        %v4366 = vrot.slane %v3747, 1
        %v4367 = vsel %vm820, %v4365, %v4366
        %v4368 = vrot.slane %v3746, 1
        %v4369 = vrot.slane %v3748, 1
        %v4370 = vsel %vm820, %v4368, %v4369
        %v4371 = vrot.slane %v3749, 1
        %v4372 = vsel %vm820, %v4366, %v4371
        %v4373 = vrot.slane %v3750, 1
        %v4374 = vsel %vm820, %v4369, %v4373
        %v4375 = vrot.slane %v3751, 1
        %v4376 = vsel %vm820, %v4371, %v4375
        %v4377 = vrot.slane %v3752, 1
        %v4378 = vsel %vm820, %v4373, %v4377
        %v4379 = vrot.slane %v3753, 1
        %v4380 = vsel %vm820, %v4375, %v4379
        %v4381 = vrot.slane %v3754, 1
        %v4382 = vsel %vm820, %v4377, %v4381
        %v4383 = vrot.slane %v3755, 1
        %v4384 = vsel %vm820, %v4379, %v4383
        %v4385 = vrot.slane %v3756, 1
        %v4386 = vsel %vm820, %v4381, %v4385
        %v4387 = vrot.slane %v3757, 1
        %v4388 = vsel %vm820, %v4383, %v4387
        %v4389 = vrot.slane %v3758, 1
        %v4390 = vsel %vm820, %v4385, %v4389
        %v4391 = vrot.slane %v3759, 1
        %v4392 = vsel %vm820, %v4387, %v4391
        %v4393 = vrot.slane %v3760, 1
        %v4394 = vsel %vm820, %v4389, %v4393
        %v4395 = vrot.slane %v3761, 1
        %v4396 = vsel %vm820, %v4391, %v4395
        %v4397 = vrot.slane %v3762, 1
        %v4398 = vsel %vm820, %v4393, %v4397
        %v4399 = vrot.slane %v3763, 1
        %v4400 = vsel %vm820, %v4395, %v4399
        %v4401 = vrot.slane %v3764, 1
        %v4402 = vsel %vm820, %v4397, %v4401
        %v4403 = vrot.slane %v3765, 1
        %v4404 = vsel %vm820, %v4399, %v4403
        %v4405 = vrot.slane %v3766, 1
        %v4406 = vsel %vm820, %v4401, %v4405
        %v4407 = vrot.slane %v3767, 1
        %v4408 = vsel %vm820, %v4403, %v4407
        %v4409 = vrot.slane %v3768, 1
        %v4410 = vsel %vm820, %v4405, %v4409
        %v4411 = vrot.slane %v3769, 1
        %v4412 = vsel %vm820, %v4407, %v4411
        %v4413 = vrot.slane %v3770, 1
        %v4414 = vsel %vm820, %v4409, %v4413
        %v4415 = vrot.slane %v3771, 1
        %v4416 = vsel %vm820, %v4411, %v4415
        %v4417 = vrot.slane %v3772, 1
        %v4418 = vsel %vm820, %v4413, %v4417
        %v4419 = vrot.slane %v3773, 1
        %v4420 = vsel %vm820, %v4415, %v4419
        %v4421 = vrot.slane %v3774, 1
        %v4422 = vsel %vm820, %v4417, %v4421
        %v4423 = vrot.slane %v3775, 1
        %v4424 = vrot.slane %v3777, 1
        %v4425 = vsel %vm820, %v4423, %v4424
        %v4426 = vrot.slane %v3776, 1
        %v4427 = vrot.slane %v3778, 1
        %v4428 = vsel %vm820, %v4426, %v4427
        %v4429 = vrot.slane %v3779, 1
        %v4430 = vsel %vm820, %v4424, %v4429
        %v4431 = vrot.slane %v3780, 1
        %v4432 = vsel %vm820, %v4427, %v4431
        %v4433 = vrot.slane %v3781, 1
        %v4434 = vsel %vm820, %v4429, %v4433
        %v4435 = vrot.slane %v3782, 1
        %v4436 = vsel %vm820, %v4431, %v4435
        %v4437 = vrot.slane %v3783, 1
        %v4438 = vsel %vm820, %v4433, %v4437
        %v4439 = vrot.slane %v3784, 1
        %v4440 = vsel %vm820, %v4435, %v4439
        %v4441 = vrot.slane %v3785, 1
        %v4442 = vsel %vm820, %v4437, %v4441
        %v4443 = vrot.slane %v3786, 1
        %v4444 = vsel %vm820, %v4439, %v4443
        %v4445 = vrot.slane %v3787, 1
        %v4446 = vsel %vm820, %v4441, %v4445
        %v4447 = vrot.slane %v3788, 1
        %v4448 = vsel %vm820, %v4443, %v4447
        %v4449 = vrot.slane %v3789, 1
        %v4450 = vsel %vm820, %v4445, %v4449
        %v4451 = vrot.slane %v3790, 1
        %v4452 = vsel %vm820, %v4447, %v4451
        %v4453 = vrot.slane %v3791, 1
        %v4454 = vsel %vm820, %v4449, %v4453
        %v4455 = vrot.slane %v3792, 1
        %v4456 = vsel %vm820, %v4451, %v4455
        %v4457 = vrot.slane %v3793, 1
        %v4458 = vsel %vm820, %v4453, %v4457
        %v4459 = vrot.slane %v3794, 1
        %v4460 = vsel %vm820, %v4455, %v4459
        %v4461 = vrot.slane %v3795, 1
        %v4462 = vsel %vm820, %v4457, %v4461
        %v4463 = vrot.slane %v3796, 1
        %v4464 = vsel %vm820, %v4459, %v4463
        %v4465 = vrot.slane %v3797, 1
        %v4466 = vsel %vm820, %v4461, %v4465
        %v4467 = vrot.slane %v3798, 1
        %v4468 = vsel %vm820, %v4463, %v4467
        %v4469 = vrot.slane %v3799, 1
        %v4470 = vsel %vm820, %v4465, %v4469
        %v4471 = vrot.slane %v3800, 1
        %v4472 = vsel %vm820, %v4467, %v4471
        %v4473 = vrot.slane %v3801, 1
        %v4474 = vsel %vm820, %v4469, %v4473
        %v4475 = vrot.slane %v3802, 1
        %v4476 = vsel %vm820, %v4471, %v4475
        %v4477 = vrot.slane %v3803, 1
        %v4478 = vsel %vm820, %v4473, %v4477
        %v4479 = vrot.slane %v3804, 1
        %v4480 = vsel %vm820, %v4475, %v4479
        %v4481 = vrot.slane %v3805, 1
        %v4482 = vrot.slane %v3807, 1
        %v4483 = vsel %vm820, %v4481, %v4482
        %v4484 = vrot.slane %v3806, 1
        %v4485 = vrot.slane %v3808, 1
        %v4486 = vsel %vm820, %v4484, %v4485
        %v4487 = vrot.slane %v3809, 1
        %v4488 = vsel %vm820, %v4482, %v4487
        %v4489 = vrot.slane %v3810, 1
        %v4490 = vsel %vm820, %v4485, %v4489
        %v4491 = vrot.slane %v3811, 1
        %v4492 = vsel %vm820, %v4487, %v4491
        %v4493 = vrot.slane %v3812, 1
        %v4494 = vsel %vm820, %v4489, %v4493
        %v4495 = vrot.slane %v3813, 1
        %v4496 = vsel %vm820, %v4491, %v4495
        %v4497 = vrot.slane %v3814, 1
        %v4498 = vsel %vm820, %v4493, %v4497
        %v4499 = vrot.slane %v3815, 1
        %v4500 = vsel %vm820, %v4495, %v4499
        %v4501 = vrot.slane %v3816, 1
        %v4502 = vsel %vm820, %v4497, %v4501
        %v4503 = vrot.slane %v3817, 1
        %v4504 = vsel %vm820, %v4499, %v4503
        %v4505 = vrot.slane %v3818, 1
        %v4506 = vsel %vm820, %v4501, %v4505
        %v4507 = vrot.slane %v3819, 1
        %v4508 = vsel %vm820, %v4503, %v4507
        %v4509 = vrot.slane %v3820, 1
        %v4510 = vsel %vm820, %v4505, %v4509
        %v4511 = vrot.slane %v3821, 1
        %v4512 = vsel %vm820, %v4507, %v4511
        %v4513 = vrot.slane %v3822, 1
        %v4514 = vsel %vm820, %v4509, %v4513
        %v4515 = vrot.slane %v3823, 1
        %v4516 = vsel %vm820, %v4511, %v4515
        %v4517 = vrot.slane %v3824, 1
        %v4518 = vsel %vm820, %v4513, %v4517
        %v4519 = vrot.slane %v3825, 1
        %v4520 = vsel %vm820, %v4515, %v4519
        %v4521 = vrot.slane %v3826, 1
        %v4522 = vsel %vm820, %v4517, %v4521
        %v4523 = vrot.slane %v3827, 1
        %v4524 = vsel %vm820, %v4519, %v4523
        %v4525 = vrot.slane %v3828, 1
        %v4526 = vsel %vm820, %v4521, %v4525
        %v4527 = vrot.slane %v3829, 1
        %v4528 = vsel %vm820, %v4523, %v4527
        %v4529 = vrot.slane %v3830, 1
        %v4530 = vsel %vm820, %v4525, %v4529
        %v4531 = vrot.slane %v3831, 1
        %v4532 = vsel %vm820, %v4527, %v4531
        %v4533 = vrot.slane %v3832, 1
        %v4534 = vsel %vm820, %v4529, %v4533
        %v4535 = vrot.slane %v3833, 1
        %v4536 = vsel %vm820, %v4531, %v4535
        %v4537 = vrot.slane %v3834, 1
        %v4538 = vsel %vm820, %v4533, %v4537
        %s4763 = scalar_lea.vmem %s1, 768
        %v4764 = vld [vmem:[%s4763] sm:$0xff]
        %v4765 = vld [vmem:[%s4763 + $0x8] sm:$0xff]
        %v4766 = vld [vmem:[%s4763 + $0x10] sm:$0xff]
        %v4767 = vld [vmem:[%s4763 + $0x18] sm:$0xff]
        %v4768 = vld [vmem:[%s4763 + $0x20] sm:$0xff]
        %v4769 = vld [vmem:[%s4763 + $0x28] sm:$0xff]
        %v4770 = vld [vmem:[%s4763 + $0x30] sm:$0xff]
        %v4771 = vld [vmem:[%s4763 + $0x38] sm:$0xff]
        %v4772 = vld [vmem:[%s4763 + $0x40] sm:$0xff]
        %v4773 = vld [vmem:[%s4763 + $0x48] sm:$0xff]
        %v4774 = vld [vmem:[%s4763 + $0x50] sm:$0xff]
        %v4775 = vld [vmem:[%s4763 + $0x58] sm:$0xff]
        %v4776 = vld [vmem:[%s4763 + $0x60] sm:$0xff]
        %v4777 = vld [vmem:[%s4763 + $0x68] sm:$0xff]
        %v4778 = vld [vmem:[%s4763 + $0x70] sm:$0xff]
        %v4779 = vld [vmem:[%s4763 + $0x78] sm:$0xff]
        %v4780 = vld [vmem:[%s4763 + $0x80] sm:$0xff]
        %v4781 = vld [vmem:[%s4763 + $0x88] sm:$0xff]
        %v4782 = vld [vmem:[%s4763 + $0x90] sm:$0xff]
        %v4783 = vld [vmem:[%s4763 + $0x98] sm:$0xff]
        %v4784 = vld [vmem:[%s4763 + $0xa0] sm:$0xff]
        %v4785 = vld [vmem:[%s4763 + $0xa8] sm:$0xff]
        %v4786 = vld [vmem:[%s4763 + $0xb0] sm:$0xff]
        %v4787 = vld [vmem:[%s4763 + $0xb8] sm:$0xff]
        %v4788 = vld [vmem:[%s4763 + $0xc0] sm:$0xff]
        %v4789 = vld [vmem:[%s4763 + $0xc8] sm:$0xff]
        %v4790 = vld [vmem:[%s4763 + $0xd0] sm:$0xff]
        %v4791 = vld [vmem:[%s4763 + $0xd8] sm:$0xff]
        %v4792 = vld [vmem:[%s4763 + $0xe0] sm:$0xff]
        %v4793 = vld [vmem:[%s4763 + $0xe8] sm:$0xff]
        %v4794 = vld [vmem:[%s4763 + $0xf0] sm:$0xff]
        %v4795 = vld [vmem:[%s4763 + $0xf8] sm:$0xff]
        %4796 = vmatprep.subr.mxu0 0.0
        %4797 = vmatpush1.msra.mxu0 %v4779
        %4798 = vmatprep.subr.mxu0 0.0
        %4799 = vmatpush1.msra.mxu0 %v4778
        %4800 = vmatprep.subr.mxu0 0.0
        %4801 = vmatpush1.msra.mxu0 %v4777
        %4802 = vmatprep.subr.mxu0 0.0
        %4803 = vmatpush1.msra.mxu0 %v4776
        %4804 = vmatprep.subr.mxu0 0.0
        %4805 = vmatpush1.msra.mxu0 %v4775
        %4806 = vmatprep.subr.mxu0 0.0
        %4807 = vmatpush1.msra.mxu0 %v4774
        %4808 = vmatprep.subr.mxu0 0.0
        %4809 = vmatpush1.msra.mxu0 %v4773
        %4810 = vmatprep.subr.mxu0 0.0
        %4811 = vmatpush1.msra.mxu0 %v4772
        %4812 = vmatprep.subr.mxu0 0.0
        %4813 = vmatpush1.msra.mxu0 %v4771
        %4814 = vmatprep.subr.mxu0 0.0
        %4815 = vmatpush1.msra.mxu0 %v4770
        %4816 = vmatprep.subr.mxu0 0.0
        %4817 = vmatpush1.msra.mxu0 %v4769
        %4818 = vmatprep.subr.mxu0 0.0
        %4819 = vmatpush1.msra.mxu0 %v4768
        %4820 = vmatprep.subr.mxu0 0.0
        %4821 = vmatpush1.msra.mxu0 %v4767
        %4822 = vmatprep.subr.mxu0 0.0
        %4823 = vmatpush1.msra.mxu0 %v4766
        %4824 = vmatprep.subr.mxu0 0.0
        %4825 = vmatpush1.msra.mxu0 %v4765
        %4826 = vmatprep.subr.mxu0 0.0
        %4827 = vmatpush1.msra.mxu0 %v4764
        %4828 = vmatprep.subr.mxu0 0.0
        %4829 = vmatpush2.msra.mxu0 %v4795
        %4830 = vmatprep.subr.mxu0 0.0
        %4831 = vmatpush2.msra.mxu0 %v4794
        %4832 = vmatprep.subr.mxu0 0.0
        %4833 = vmatpush2.msra.mxu0 %v4793
        %4834 = vmatprep.subr.mxu0 0.0
        %4835 = vmatpush2.msra.mxu0 %v4792
        %4836 = vmatprep.subr.mxu0 0.0
        %4837 = vmatpush2.msra.mxu0 %v4791
        %4838 = vmatprep.subr.mxu0 0.0
        %4839 = vmatpush2.msra.mxu0 %v4790
        %4840 = vmatprep.subr.mxu0 0.0
        %4841 = vmatpush2.msra.mxu0 %v4789
        %4842 = vmatprep.subr.mxu0 0.0
        %4843 = vmatpush2.msra.mxu0 %v4788
        %4844 = vmatprep.subr.mxu0 0.0
        %4845 = vmatpush2.msra.mxu0 %v4787
        %4846 = vmatprep.subr.mxu0 0.0
        %4847 = vmatpush2.msra.mxu0 %v4786
        %4848 = vmatprep.subr.mxu0 0.0
        %4849 = vmatpush2.msra.mxu0 %v4785
        %4850 = vmatprep.subr.mxu0 0.0
        %4851 = vmatpush2.msra.mxu0 %v4784
        %4852 = vmatprep.subr.mxu0 0.0
        %4853 = vmatpush2.msra.mxu0 %v4783
        %4854 = vmatprep.subr.mxu0 0.0
        %4855 = vmatpush2.msra.mxu0 %v4782
        %4856 = vmatprep.subr.mxu0 0.0
        %4857 = vmatpush2.msra.mxu0 %v4781
        %4858 = vmatprep.subr.mxu0 0.0
        %4859 = vmatpush2.msra.mxu0 %v4780
        %4860 = vmatprep.mubr.f32.mxu0 %v4080
        %4861 = vmatmul.mubr.f32.gmra.mxu0 %v4077
        %v4862 = vpop.f32.mrf.mxu0
        %v4863 = vadd.f32 0.0, %v4862
        %v4864 = vpop.f32.mrf.mxu0
        %4865 = vmatprep.mubr.f32.mxu0 %v4084
        %4866 = vmatmul.mubr.f32.gmra.mxu0 %v4082
        %v4867 = vpop.f32.mrf.mxu0
        %v4868 = vadd.f32 0.0, %v4867
        %v4869 = vpop.f32.mrf.mxu0
        %4870 = vmatprep.mubr.f32.mxu0 %v4088
        %4871 = vmatmul.mubr.f32.gmra.mxu0 %v4086
        %v4872 = vpop.f32.mrf.mxu0
        %v4873 = vpop.f32.mrf.mxu0
        %4874 = vmatprep.mubr.f32.mxu0 %v4092
        %4875 = vmatmul.mubr.f32.gmra.mxu0 %v4090
        %v4876 = vpop.f32.mrf.mxu0
        %v4877 = vpop.f32.mrf.mxu0
        %4878 = vmatprep.mubr.f32.mxu0 %v4096
        %4879 = vmatmul.mubr.f32.gmra.mxu0 %v4094
        %v4880 = vpop.f32.mrf.mxu0
        %v4881 = vadd.f32 0.0, %v4880
        %v4882 = vpop.f32.mrf.mxu0
        %4883 = vmatprep.mubr.f32.mxu0 %v4100
        %4884 = vmatmul.mubr.f32.gmra.mxu0 %v4098
        %v4885 = vpop.f32.mrf.mxu0
        %v4886 = vadd.f32 0.0, %v4885
        %v4887 = vpop.f32.mrf.mxu0
        %4888 = vmatprep.mubr.f32.mxu0 %v4104
        %4889 = vmatmul.mubr.f32.gmra.mxu0 %v4102
        %v4890 = vpop.f32.mrf.mxu0
        %v4891 = vpop.f32.mrf.mxu0
        %4892 = vmatprep.mubr.f32.mxu0 %v4108
        %4893 = vmatmul.mubr.f32.gmra.mxu0 %v4106
        %v4894 = vpop.f32.mrf.mxu0
        %v4895 = vpop.f32.mrf.mxu0
        %4896 = vmatprep.mubr.f32.mxu0 %v4112
        %4897 = vmatmul.mubr.f32.gmra.mxu0 %v4110
        %v4898 = vpop.f32.mrf.mxu0
        %v4899 = vadd.f32 0.0, %v4898
        %v4900 = vpop.f32.mrf.mxu0
        %4901 = vmatprep.mubr.f32.mxu0 %v4116
        %4902 = vmatmul.mubr.f32.gmra.mxu0 %v4114
        %v4903 = vpop.f32.mrf.mxu0
        %v4904 = vadd.f32 0.0, %v4903
        %v4905 = vpop.f32.mrf.mxu0
        %4906 = vmatprep.mubr.f32.mxu0 %v4120
        %4907 = vmatmul.mubr.f32.gmra.mxu0 %v4118
        %v4908 = vpop.f32.mrf.mxu0
        %v4909 = vpop.f32.mrf.mxu0
        %4910 = vmatprep.mubr.f32.mxu0 %v4124
        %4911 = vmatmul.mubr.f32.gmra.mxu0 %v4122
        %v4912 = vpop.f32.mrf.mxu0
        %v4913 = vpop.f32.mrf.mxu0
        %4914 = vmatprep.mubr.f32.mxu0 %v4128
        %4915 = vmatmul.mubr.f32.gmra.mxu0 %v4126
        %v4916 = vpop.f32.mrf.mxu0
        %v4917 = vadd.f32 0.0, %v4916
        %v4918 = vpop.f32.mrf.mxu0
        %4919 = vmatprep.mubr.f32.mxu0 %v4132
        %4920 = vmatmul.mubr.f32.gmra.mxu0 %v4130
        %v4921 = vpop.f32.mrf.mxu0
        %v4922 = vadd.f32 0.0, %v4921
        %v4923 = vpop.f32.mrf.mxu0
        %4924 = vmatprep.mubr.f32.mxu0 %v4138
        %4925 = vmatmul.mubr.f32.gmra.mxu0 %v4135
        %v4926 = vpop.f32.mrf.mxu0
        %v4927 = vadd.f32 0.0, %v4926
        %v4928 = vpop.f32.mrf.mxu0
        %4929 = vmatprep.mubr.f32.mxu0 %v4142
        %4930 = vmatmul.mubr.f32.gmra.mxu0 %v4140
        %v4931 = vpop.f32.mrf.mxu0
        %v4932 = vadd.f32 0.0, %v4931
        %v4933 = vpop.f32.mrf.mxu0
        %4934 = vmatprep.mubr.f32.mxu0 %v4146
        %4935 = vmatmul.mubr.f32.gmra.mxu0 %v4144
        %v4936 = vpop.f32.mrf.mxu0
        %v4937 = vpop.f32.mrf.mxu0
        %4938 = vmatprep.mubr.f32.mxu0 %v4150
        %4939 = vmatmul.mubr.f32.gmra.mxu0 %v4148
        %v4940 = vpop.f32.mrf.mxu0
        %v4941 = vpop.f32.mrf.mxu0
        %4942 = vmatprep.mubr.f32.mxu0 %v4154
        %4943 = vmatmul.mubr.f32.gmra.mxu0 %v4152
        %v4944 = vpop.f32.mrf.mxu0
        %v4945 = vadd.f32 0.0, %v4944
        %v4946 = vpop.f32.mrf.mxu0
        %4947 = vmatprep.mubr.f32.mxu0 %v4158
        %4948 = vmatmul.mubr.f32.gmra.mxu0 %v4156
        %v4949 = vpop.f32.mrf.mxu0
        %v4950 = vadd.f32 0.0, %v4949
        %v4951 = vpop.f32.mrf.mxu0
        %4952 = vmatprep.mubr.f32.mxu0 %v4162
        %4953 = vmatmul.mubr.f32.gmra.mxu0 %v4160
        %v4954 = vpop.f32.mrf.mxu0
        %v4955 = vpop.f32.mrf.mxu0
        %4956 = vmatprep.mubr.f32.mxu0 %v4166
        %4957 = vmatmul.mubr.f32.gmra.mxu0 %v4164
        %v4958 = vpop.f32.mrf.mxu0
        %v4959 = vpop.f32.mrf.mxu0
        %4960 = vmatprep.mubr.f32.mxu0 %v4170
        %4961 = vmatmul.mubr.f32.gmra.mxu0 %v4168
        %v4962 = vpop.f32.mrf.mxu0
        %v4963 = vadd.f32 0.0, %v4962
        %v4964 = vpop.f32.mrf.mxu0
        %4965 = vmatprep.mubr.f32.mxu0 %v4174
        %4966 = vmatmul.mubr.f32.gmra.mxu0 %v4172
        %v4967 = vpop.f32.mrf.mxu0
        %v4968 = vadd.f32 0.0, %v4967
        %v4969 = vpop.f32.mrf.mxu0
        %4970 = vmatprep.mubr.f32.mxu0 %v4178
        %4971 = vmatmul.mubr.f32.gmra.mxu0 %v4176
        %v4972 = vpop.f32.mrf.mxu0
        %v4973 = vpop.f32.mrf.mxu0
        %4974 = vmatprep.mubr.f32.mxu0 %v4182
        %4975 = vmatmul.mubr.f32.gmra.mxu0 %v4180
        %v4976 = vpop.f32.mrf.mxu0
        %v4977 = vpop.f32.mrf.mxu0
        %4978 = vmatprep.mubr.f32.mxu0 %v4186
        %4979 = vmatmul.mubr.f32.gmra.mxu0 %v4184
        %v4980 = vpop.f32.mrf.mxu0
        %v4981 = vadd.f32 0.0, %v4980
        %v4982 = vpop.f32.mrf.mxu0
        %4983 = vmatprep.mubr.f32.mxu0 %v4190
        %4984 = vmatmul.mubr.f32.gmra.mxu0 %v4188
        %v4985 = vpop.f32.mrf.mxu0
        %v4986 = vadd.f32 0.0, %v4985
        %v4987 = vpop.f32.mrf.mxu0
        %4988 = vmatprep.mubr.f32.mxu0 %v4196
        %4989 = vmatmul.mubr.f32.gmra.mxu0 %v4193
        %v4990 = vpop.f32.mrf.mxu0
        %v4991 = vadd.f32 0.0, %v4990
        %v4992 = vpop.f32.mrf.mxu0
        %4993 = vmatprep.mubr.f32.mxu0 %v4200
        %4994 = vmatmul.mubr.f32.gmra.mxu0 %v4198
        %v4995 = vpop.f32.mrf.mxu0
        %v4996 = vadd.f32 0.0, %v4995
        %v4997 = vpop.f32.mrf.mxu0
        %4998 = vmatprep.mubr.f32.mxu0 %v4204
        %4999 = vmatmul.mubr.f32.gmra.mxu0 %v4202
        %v5000 = vpop.f32.mrf.mxu0
        %v5001 = vpop.f32.mrf.mxu0
        %5002 = vmatprep.mubr.f32.mxu0 %v4208
        %5003 = vmatmul.mubr.f32.gmra.mxu0 %v4206
        %v5004 = vpop.f32.mrf.mxu0
        %v5005 = vpop.f32.mrf.mxu0
        %5006 = vmatprep.mubr.f32.mxu0 %v4212
        %5007 = vmatmul.mubr.f32.gmra.mxu0 %v4210
        %v5008 = vpop.f32.mrf.mxu0
        %v5009 = vadd.f32 0.0, %v5008
        %v5010 = vpop.f32.mrf.mxu0
        %5011 = vmatprep.mubr.f32.mxu0 %v4216
        %5012 = vmatmul.mubr.f32.gmra.mxu0 %v4214
        %v5013 = vpop.f32.mrf.mxu0
        %v5014 = vadd.f32 0.0, %v5013
        %v5015 = vpop.f32.mrf.mxu0
        %5016 = vmatprep.mubr.f32.mxu0 %v4220
        %5017 = vmatmul.mubr.f32.gmra.mxu0 %v4218
        %v5018 = vpop.f32.mrf.mxu0
        %v5019 = vpop.f32.mrf.mxu0
        %5020 = vmatprep.mubr.f32.mxu0 %v4224
        %5021 = vmatmul.mubr.f32.gmra.mxu0 %v4222
        %v5022 = vpop.f32.mrf.mxu0
        %v5023 = vpop.f32.mrf.mxu0
        %5024 = vmatprep.mubr.f32.mxu0 %v4228
        %5025 = vmatmul.mubr.f32.gmra.mxu0 %v4226
        %v5026 = vpop.f32.mrf.mxu0
        %v5027 = vadd.f32 0.0, %v5026
        %v5028 = vpop.f32.mrf.mxu0
        %5029 = vmatprep.mubr.f32.mxu0 %v4232
        %5030 = vmatmul.mubr.f32.gmra.mxu0 %v4230
        %v5031 = vpop.f32.mrf.mxu0
        %v5032 = vadd.f32 0.0, %v5031
        %v5033 = vpop.f32.mrf.mxu0
        %5034 = vmatprep.mubr.f32.mxu0 %v4236
        %5035 = vmatmul.mubr.f32.gmra.mxu0 %v4234
        %v5036 = vpop.f32.mrf.mxu0
        %v5037 = vpop.f32.mrf.mxu0
        %5038 = vmatprep.mubr.f32.mxu0 %v4240
        %5039 = vmatmul.mubr.f32.gmra.mxu0 %v4238
        %v5040 = vpop.f32.mrf.mxu0
        %v5041 = vpop.f32.mrf.mxu0
        %5042 = vmatprep.mubr.f32.mxu0 %v4244
        %5043 = vmatmul.mubr.f32.gmra.mxu0 %v4242
        %v5044 = vpop.f32.mrf.mxu0
        %v5045 = vadd.f32 0.0, %v5044
        %v5046 = vpop.f32.mrf.mxu0
        %5047 = vmatprep.mubr.f32.mxu0 %v4248
        %5048 = vmatmul.mubr.f32.gmra.mxu0 %v4246
        %v5049 = vpop.f32.mrf.mxu0
        %v5050 = vadd.f32 0.0, %v5049
        %v5051 = vpop.f32.mrf.mxu0
        %5052 = vmatprep.mubr.f32.mxu0 %v4254
        %5053 = vmatmul.mubr.f32.gmra.mxu0 %v4251
        %v5054 = vpop.f32.mrf.mxu0
        %v5055 = vadd.f32 0.0, %v5054
        %v5056 = vpop.f32.mrf.mxu0
        %5057 = vmatprep.mubr.f32.mxu0 %v4258
        %5058 = vmatmul.mubr.f32.gmra.mxu0 %v4256
        %v5059 = vpop.f32.mrf.mxu0
        %v5060 = vadd.f32 0.0, %v5059
        %v5061 = vpop.f32.mrf.mxu0
        %5062 = vmatprep.mubr.f32.mxu0 %v4262
        %5063 = vmatmul.mubr.f32.gmra.mxu0 %v4260
        %v5064 = vpop.f32.mrf.mxu0
        %v5065 = vpop.f32.mrf.mxu0
        %5066 = vmatprep.mubr.f32.mxu0 %v4266
        %5067 = vmatmul.mubr.f32.gmra.mxu0 %v4264
        %v5068 = vpop.f32.mrf.mxu0
        %v5069 = vpop.f32.mrf.mxu0
        %5070 = vmatprep.mubr.f32.mxu0 %v4270
        %5071 = vmatmul.mubr.f32.gmra.mxu0 %v4268
        %v5072 = vpop.f32.mrf.mxu0
        %v5073 = vadd.f32 0.0, %v5072
        %v5074 = vpop.f32.mrf.mxu0
        %5075 = vmatprep.mubr.f32.mxu0 %v4274
        %5076 = vmatmul.mubr.f32.gmra.mxu0 %v4272
        %v5077 = vpop.f32.mrf.mxu0
        %v5078 = vadd.f32 0.0, %v5077
        %v5079 = vpop.f32.mrf.mxu0
        %5080 = vmatprep.mubr.f32.mxu0 %v4278
        %5081 = vmatmul.mubr.f32.gmra.mxu0 %v4276
        %v5082 = vpop.f32.mrf.mxu0
        %v5083 = vpop.f32.mrf.mxu0
        %5084 = vmatprep.mubr.f32.mxu0 %v4282
        %5085 = vmatmul.mubr.f32.gmra.mxu0 %v4280
        %v5086 = vpop.f32.mrf.mxu0
        %v5087 = vpop.f32.mrf.mxu0
        %5088 = vmatprep.mubr.f32.mxu0 %v4286
        %5089 = vmatmul.mubr.f32.gmra.mxu0 %v4284
        %v5090 = vpop.f32.mrf.mxu0
        %v5091 = vadd.f32 0.0, %v5090
        %v5092 = vpop.f32.mrf.mxu0
        %5093 = vmatprep.mubr.f32.mxu0 %v4290
        %5094 = vmatmul.mubr.f32.gmra.mxu0 %v4288
        %v5095 = vpop.f32.mrf.mxu0
        %v5096 = vadd.f32 0.0, %v5095
        %v5097 = vpop.f32.mrf.mxu0
        %5098 = vmatprep.mubr.f32.mxu0 %v4294
        %5099 = vmatmul.mubr.f32.gmra.mxu0 %v4292
        %v5100 = vpop.f32.mrf.mxu0
        %v5101 = vpop.f32.mrf.mxu0
        %5102 = vmatprep.mubr.f32.mxu0 %v4298
        %5103 = vmatmul.mubr.f32.gmra.mxu0 %v4296
        %v5104 = vpop.f32.mrf.mxu0
        %v5105 = vpop.f32.mrf.mxu0
        %5106 = vmatprep.mubr.f32.mxu0 %v4302
        %5107 = vmatmul.mubr.f32.gmra.mxu0 %v4300
        %v5108 = vpop.f32.mrf.mxu0
        %v5109 = vadd.f32 0.0, %v5108
        %v5110 = vpop.f32.mrf.mxu0
        %5111 = vmatprep.mubr.f32.mxu0 %v4306
        %5112 = vmatmul.mubr.f32.gmra.mxu0 %v4304
        %v5113 = vpop.f32.mrf.mxu0
        %v5114 = vadd.f32 0.0, %v5113
        %v5115 = vpop.f32.mrf.mxu0
        %5116 = vmatprep.mubr.f32.mxu0 %v4312
        %5117 = vmatmul.mubr.f32.gmra.mxu0 %v4309
        %v5118 = vpop.f32.mrf.mxu0
        %v5119 = vadd.f32 0.0, %v5118
        %v5120 = vpop.f32.mrf.mxu0
        %5121 = vmatprep.mubr.f32.mxu0 %v4316
        %5122 = vmatmul.mubr.f32.gmra.mxu0 %v4314
        %v5123 = vpop.f32.mrf.mxu0
        %v5124 = vadd.f32 0.0, %v5123
        %v5125 = vpop.f32.mrf.mxu0
        %5126 = vmatprep.mubr.f32.mxu0 %v4320
        %5127 = vmatmul.mubr.f32.gmra.mxu0 %v4318
        %v5128 = vpop.f32.mrf.mxu0
        %v5129 = vpop.f32.mrf.mxu0
        %5130 = vmatprep.mubr.f32.mxu0 %v4324
        %5131 = vmatmul.mubr.f32.gmra.mxu0 %v4322
        %v5132 = vpop.f32.mrf.mxu0
        %v5133 = vpop.f32.mrf.mxu0
        %5134 = vmatprep.mubr.f32.mxu0 %v4328
        %5135 = vmatmul.mubr.f32.gmra.mxu0 %v4326
        %v5136 = vpop.f32.mrf.mxu0
        %v5137 = vadd.f32 0.0, %v5136
        %v5138 = vpop.f32.mrf.mxu0
        %5139 = vmatprep.mubr.f32.mxu0 %v4332
        %5140 = vmatmul.mubr.f32.gmra.mxu0 %v4330
        %v5141 = vpop.f32.mrf.mxu0
        %v5142 = vadd.f32 0.0, %v5141
        %v5143 = vpop.f32.mrf.mxu0
        %5144 = vmatprep.mubr.f32.mxu0 %v4336
        %5145 = vmatmul.mubr.f32.gmra.mxu0 %v4334
        %v5146 = vpop.f32.mrf.mxu0
        %v5147 = vpop.f32.mrf.mxu0
        %5148 = vmatprep.mubr.f32.mxu0 %v4340
        %5149 = vmatmul.mubr.f32.gmra.mxu0 %v4338
        %v5150 = vpop.f32.mrf.mxu0
        %v5151 = vpop.f32.mrf.mxu0
        %5152 = vmatprep.mubr.f32.mxu0 %v4344
        %5153 = vmatmul.mubr.f32.gmra.mxu0 %v4342
        %v5154 = vpop.f32.mrf.mxu0
        %v5155 = vadd.f32 0.0, %v5154
        %v5156 = vpop.f32.mrf.mxu0
        %5157 = vmatprep.mubr.f32.mxu0 %v4348
        %5158 = vmatmul.mubr.f32.gmra.mxu0 %v4346
        %v5159 = vpop.f32.mrf.mxu0
        %v5160 = vadd.f32 0.0, %v5159
        %v5161 = vpop.f32.mrf.mxu0
        %5162 = vmatprep.mubr.f32.mxu0 %v4352
        %5163 = vmatmul.mubr.f32.gmra.mxu0 %v4350
        %v5164 = vpop.f32.mrf.mxu0
        %v5165 = vpop.f32.mrf.mxu0
        %5166 = vmatprep.mubr.f32.mxu0 %v4356
        %5167 = vmatmul.mubr.f32.gmra.mxu0 %v4354
        %v5168 = vpop.f32.mrf.mxu0
        %v5169 = vpop.f32.mrf.mxu0
        %5170 = vmatprep.mubr.f32.mxu0 %v4360
        %5171 = vmatmul.mubr.f32.gmra.mxu0 %v4358
        %v5172 = vpop.f32.mrf.mxu0
        %v5173 = vadd.f32 0.0, %v5172
        %v5174 = vpop.f32.mrf.mxu0
        %5175 = vmatprep.mubr.f32.mxu0 %v4364
        %5176 = vmatmul.mubr.f32.gmra.mxu0 %v4362
        %v5177 = vpop.f32.mrf.mxu0
        %v5178 = vadd.f32 0.0, %v5177
        %v5179 = vpop.f32.mrf.mxu0
        %5180 = vmatprep.mubr.f32.mxu0 %v4370
        %5181 = vmatmul.mubr.f32.gmra.mxu0 %v4367
        %v5182 = vpop.f32.mrf.mxu0
        %v5183 = vadd.f32 0.0, %v5182
        %v5184 = vpop.f32.mrf.mxu0
        %5185 = vmatprep.mubr.f32.mxu0 %v4374
        %5186 = vmatmul.mubr.f32.gmra.mxu0 %v4372
        %v5187 = vpop.f32.mrf.mxu0
        %v5188 = vadd.f32 0.0, %v5187
        %v5189 = vpop.f32.mrf.mxu0
        %5190 = vmatprep.mubr.f32.mxu0 %v4378
        %5191 = vmatmul.mubr.f32.gmra.mxu0 %v4376
        %v5192 = vpop.f32.mrf.mxu0
        %v5193 = vpop.f32.mrf.mxu0
        %5194 = vmatprep.mubr.f32.mxu0 %v4382
        %5195 = vmatmul.mubr.f32.gmra.mxu0 %v4380
        %v5196 = vpop.f32.mrf.mxu0
        %v5197 = vpop.f32.mrf.mxu0
        %5198 = vmatprep.mubr.f32.mxu0 %v4386
        %5199 = vmatmul.mubr.f32.gmra.mxu0 %v4384
        %v5200 = vpop.f32.mrf.mxu0
        %v5201 = vadd.f32 0.0, %v5200
        %v5202 = vpop.f32.mrf.mxu0
        %5203 = vmatprep.mubr.f32.mxu0 %v4390
        %5204 = vmatmul.mubr.f32.gmra.mxu0 %v4388
        %v5205 = vpop.f32.mrf.mxu0
        %v5206 = vadd.f32 0.0, %v5205
        %v5207 = vpop.f32.mrf.mxu0
        %5208 = vmatprep.mubr.f32.mxu0 %v4394
        %5209 = vmatmul.mubr.f32.gmra.mxu0 %v4392
        %v5210 = vpop.f32.mrf.mxu0
        %v5211 = vpop.f32.mrf.mxu0
        %5212 = vmatprep.mubr.f32.mxu0 %v4398
        %5213 = vmatmul.mubr.f32.gmra.mxu0 %v4396
        %v5214 = vpop.f32.mrf.mxu0
        %v5215 = vpop.f32.mrf.mxu0
        %5216 = vmatprep.mubr.f32.mxu0 %v4402
        %5217 = vmatmul.mubr.f32.gmra.mxu0 %v4400
        %v5218 = vpop.f32.mrf.mxu0
        %v5219 = vadd.f32 0.0, %v5218
        %v5220 = vpop.f32.mrf.mxu0
        %5221 = vmatprep.mubr.f32.mxu0 %v4406
        %5222 = vmatmul.mubr.f32.gmra.mxu0 %v4404
        %v5223 = vpop.f32.mrf.mxu0
        %v5224 = vadd.f32 0.0, %v5223
        %v5225 = vpop.f32.mrf.mxu0
        %5226 = vmatprep.mubr.f32.mxu0 %v4410
        %5227 = vmatmul.mubr.f32.gmra.mxu0 %v4408
        %v5228 = vpop.f32.mrf.mxu0
        %v5229 = vpop.f32.mrf.mxu0
        %5230 = vmatprep.mubr.f32.mxu0 %v4414
        %5231 = vmatmul.mubr.f32.gmra.mxu0 %v4412
        %v5232 = vpop.f32.mrf.mxu0
        %v5233 = vpop.f32.mrf.mxu0
        %5234 = vmatprep.mubr.f32.mxu0 %v4418
        %5235 = vmatmul.mubr.f32.gmra.mxu0 %v4416
        %v5236 = vpop.f32.mrf.mxu0
        %v5237 = vadd.f32 0.0, %v5236
        %v5238 = vpop.f32.mrf.mxu0
        %5239 = vmatprep.mubr.f32.mxu0 %v4422
        %5240 = vmatmul.mubr.f32.gmra.mxu0 %v4420
        %v5241 = vpop.f32.mrf.mxu0
        %v5242 = vadd.f32 0.0, %v5241
        %v5243 = vpop.f32.mrf.mxu0
        %5244 = vmatprep.mubr.f32.mxu0 %v4428
        %5245 = vmatmul.mubr.f32.gmra.mxu0 %v4425
        %v5246 = vpop.f32.mrf.mxu0
        %v5247 = vadd.f32 0.0, %v5246
        %v5248 = vpop.f32.mrf.mxu0
        %5249 = vmatprep.mubr.f32.mxu0 %v4432
        %5250 = vmatmul.mubr.f32.gmra.mxu0 %v4430
        %v5251 = vpop.f32.mrf.mxu0
        %v5252 = vadd.f32 0.0, %v5251
        %v5253 = vpop.f32.mrf.mxu0
        %5254 = vmatprep.mubr.f32.mxu0 %v4436
        %5255 = vmatmul.mubr.f32.gmra.mxu0 %v4434
        %v5256 = vpop.f32.mrf.mxu0
        %v5257 = vpop.f32.mrf.mxu0
        %5258 = vmatprep.mubr.f32.mxu0 %v4440
        %5259 = vmatmul.mubr.f32.gmra.mxu0 %v4438
        %v5260 = vpop.f32.mrf.mxu0
        %v5261 = vpop.f32.mrf.mxu0
        %5262 = vmatprep.mubr.f32.mxu0 %v4444
        %5263 = vmatmul.mubr.f32.gmra.mxu0 %v4442
        %v5264 = vpop.f32.mrf.mxu0
        %v5265 = vadd.f32 0.0, %v5264
        %v5266 = vpop.f32.mrf.mxu0
        %5267 = vmatprep.mubr.f32.mxu0 %v4448
        %5268 = vmatmul.mubr.f32.gmra.mxu0 %v4446
        %v5269 = vpop.f32.mrf.mxu0
        %v5270 = vadd.f32 0.0, %v5269
        %v5271 = vpop.f32.mrf.mxu0
        %5272 = vmatprep.mubr.f32.mxu0 %v4452
        %5273 = vmatmul.mubr.f32.gmra.mxu0 %v4450
        %v5274 = vpop.f32.mrf.mxu0
        %v5275 = vpop.f32.mrf.mxu0
        %5276 = vmatprep.mubr.f32.mxu0 %v4456
        %5277 = vmatmul.mubr.f32.gmra.mxu0 %v4454
        %v5278 = vpop.f32.mrf.mxu0
        %v5279 = vpop.f32.mrf.mxu0
        %5280 = vmatprep.mubr.f32.mxu0 %v4460
        %5281 = vmatmul.mubr.f32.gmra.mxu0 %v4458
        %v5282 = vpop.f32.mrf.mxu0
        %v5283 = vadd.f32 0.0, %v5282
        %v5284 = vpop.f32.mrf.mxu0
        %5285 = vmatprep.mubr.f32.mxu0 %v4464
        %5286 = vmatmul.mubr.f32.gmra.mxu0 %v4462
        %v5287 = vpop.f32.mrf.mxu0
        %v5288 = vadd.f32 0.0, %v5287
        %v5289 = vpop.f32.mrf.mxu0
        %5290 = vmatprep.mubr.f32.mxu0 %v4468
        %5291 = vmatmul.mubr.f32.gmra.mxu0 %v4466
        %v5292 = vpop.f32.mrf.mxu0
        %v5293 = vpop.f32.mrf.mxu0
        %5294 = vmatprep.mubr.f32.mxu0 %v4472
        %5295 = vmatmul.mubr.f32.gmra.mxu0 %v4470
        %v5296 = vpop.f32.mrf.mxu0
        %v5297 = vpop.f32.mrf.mxu0
        %5298 = vmatprep.mubr.f32.mxu0 %v4476
        %5299 = vmatmul.mubr.f32.gmra.mxu0 %v4474
        %v5300 = vpop.f32.mrf.mxu0
        %v5301 = vadd.f32 0.0, %v5300
        %v5302 = vpop.f32.mrf.mxu0
        %5303 = vmatprep.mubr.f32.mxu0 %v4480
        %5304 = vmatmul.mubr.f32.gmra.mxu0 %v4478
        %v5305 = vpop.f32.mrf.mxu0
        %v5306 = vadd.f32 0.0, %v5305
        %v5307 = vpop.f32.mrf.mxu0
        %5308 = vmatprep.mubr.f32.mxu0 %v4486
        %5309 = vmatmul.mubr.f32.gmra.mxu0 %v4483
        %v5310 = vpop.f32.mrf.mxu0
        %v5311 = vadd.f32 0.0, %v5310
        %v5312 = vpop.f32.mrf.mxu0
        %5313 = vmatprep.mubr.f32.mxu0 %v4490
        %5314 = vmatmul.mubr.f32.gmra.mxu0 %v4488
        %v5315 = vpop.f32.mrf.mxu0
        %v5316 = vadd.f32 0.0, %v5315
        %v5317 = vpop.f32.mrf.mxu0
        %5318 = vmatprep.mubr.f32.mxu0 %v4494
        %5319 = vmatmul.mubr.f32.gmra.mxu0 %v4492
        %v5320 = vpop.f32.mrf.mxu0
        %v5321 = vpop.f32.mrf.mxu0
        %5322 = vmatprep.mubr.f32.mxu0 %v4498
        %5323 = vmatmul.mubr.f32.gmra.mxu0 %v4496
        %v5324 = vpop.f32.mrf.mxu0
        %v5325 = vpop.f32.mrf.mxu0
        %5326 = vmatprep.mubr.f32.mxu0 %v4502
        %5327 = vmatmul.mubr.f32.gmra.mxu0 %v4500
        %v5328 = vpop.f32.mrf.mxu0
        %v5329 = vadd.f32 0.0, %v5328
        %v5330 = vpop.f32.mrf.mxu0
        %5331 = vmatprep.mubr.f32.mxu0 %v4506
        %5332 = vmatmul.mubr.f32.gmra.mxu0 %v4504
        %v5333 = vpop.f32.mrf.mxu0
        %v5334 = vadd.f32 0.0, %v5333
        %v5335 = vpop.f32.mrf.mxu0
        %5336 = vmatprep.mubr.f32.mxu0 %v4510
        %5337 = vmatmul.mubr.f32.gmra.mxu0 %v4508
        %v5338 = vpop.f32.mrf.mxu0
        %v5339 = vpop.f32.mrf.mxu0
        %5340 = vmatprep.mubr.f32.mxu0 %v4514
        %5341 = vmatmul.mubr.f32.gmra.mxu0 %v4512
        %v5342 = vpop.f32.mrf.mxu0
        %v5343 = vpop.f32.mrf.mxu0
        %5344 = vmatprep.mubr.f32.mxu0 %v4518
        %5345 = vmatmul.mubr.f32.gmra.mxu0 %v4516
        %v5346 = vpop.f32.mrf.mxu0
        %v5347 = vadd.f32 0.0, %v5346
        %v5348 = vpop.f32.mrf.mxu0
        %5349 = vmatprep.mubr.f32.mxu0 %v4522
        %5350 = vmatmul.mubr.f32.gmra.mxu0 %v4520
        %v5351 = vpop.f32.mrf.mxu0
        %v5352 = vadd.f32 0.0, %v5351
        %v5353 = vpop.f32.mrf.mxu0
        %5354 = vmatprep.mubr.f32.mxu0 %v4526
        %5355 = vmatmul.mubr.f32.gmra.mxu0 %v4524
        %v5356 = vpop.f32.mrf.mxu0
        %v5357 = vpop.f32.mrf.mxu0
        %5358 = vmatprep.mubr.f32.mxu0 %v4530
        %5359 = vmatmul.mubr.f32.gmra.mxu0 %v4528
        %v5360 = vpop.f32.mrf.mxu0
        %v5361 = vpop.f32.mrf.mxu0
        %5362 = vmatprep.mubr.f32.mxu0 %v4534
        %5363 = vmatmul.mubr.f32.gmra.mxu0 %v4532
        %v5364 = vpop.f32.mrf.mxu0
        %v5365 = vadd.f32 0.0, %v5364
        %v5366 = vpop.f32.mrf.mxu0
        %5367 = vmatprep.mubr.f32.mxu0 %v4538
        %5368 = vmatmul.mubr.f32.gmra.mxu0 %v4536
        %v5369 = vpop.f32.mrf.mxu0
        %v5370 = vadd.f32 0.0, %v5369
        %v5371 = vpop.f32.mrf.mxu0
        %5372 = vdwg.mxu0
        %v5373 = vadd.f32 %v3531, %v4863
        %v5374 = vadd.f32 %v3532, %v4868
        %v5375 = vadd.f32 %v3533, %v4881
        %v5376 = vadd.f32 %v3534, %v4886
        %v5377 = vadd.f32 %v3535, %v4899
        %v5378 = vadd.f32 %v3536, %v4904
        %v5379 = vadd.f32 %v3537, %v4917
        %v5380 = vadd.f32 %v3538, %v4922
        %v5381 = vadd.f32 %v3539, %v4927
        %v5382 = vadd.f32 %v3540, %v4932
        %v5383 = vadd.f32 %v3541, %v4945
        %v5384 = vadd.f32 %v3542, %v4950
        %v5385 = vadd.f32 %v3543, %v4963
        %v5386 = vadd.f32 %v3544, %v4968
        %v5387 = vadd.f32 %v3545, %v4981
        %v5388 = vadd.f32 %v3546, %v4986
        %v5389 = vadd.f32 %v3547, %v4991
        %v5390 = vadd.f32 %v3548, %v4996
        %v5391 = vadd.f32 %v3549, %v5009
        %v5392 = vadd.f32 %v3550, %v5014
        %v5393 = vadd.f32 %v3551, %v5027
        %v5394 = vadd.f32 %v3552, %v5032
        %v5395 = vadd.f32 %v3553, %v5045
        %v5396 = vadd.f32 %v3554, %v5050
        %v5397 = vadd.f32 %v3555, %v5055
        %v5398 = vadd.f32 %v3556, %v5060
        %v5399 = vadd.f32 %v3557, %v5073
        %v5400 = vadd.f32 %v3558, %v5078
        %v5401 = vadd.f32 %v3559, %v5091
        %v5402 = vadd.f32 %v3560, %v5096
        %v5403 = vadd.f32 %v3561, %v5109
        %v5404 = vadd.f32 %v3562, %v5114
        %v5405 = vadd.f32 %v3563, %v5119
        %v5406 = vadd.f32 %v3564, %v5124
        %v5407 = vadd.f32 %v3565, %v5137
        %v5408 = vadd.f32 %v3566, %v5142
        %v5409 = vadd.f32 %v3567, %v5155
        %v5410 = vadd.f32 %v3568, %v5160
        %v5411 = vadd.f32 %v3569, %v5173
        %v5412 = vadd.f32 %v3570, %v5178
        %v5413 = vadd.f32 %v3571, %v5183
        %v5414 = vadd.f32 %v3572, %v5188
        %v5415 = vadd.f32 %v3573, %v5201
        %v5416 = vadd.f32 %v3574, %v5206
        %v5417 = vadd.f32 %v3575, %v5219
        %v5418 = vadd.f32 %v3576, %v5224
        %v5419 = vadd.f32 %v3577, %v5237
        %v5420 = vadd.f32 %v3578, %v5242
        %v5421 = vadd.f32 %v3579, %v5247
        %v5422 = vadd.f32 %v3580, %v5252
        %v5423 = vadd.f32 %v3581, %v5265
        %v5424 = vadd.f32 %v3582, %v5270
        %v5425 = vadd.f32 %v3583, %v5283
        %v5426 = vadd.f32 %v3584, %v5288
        %v5427 = vadd.f32 %v3585, %v5301
        %v5428 = vadd.f32 %v3586, %v5306
        %v5429 = vadd.f32 %v3587, %v5311
        %v5430 = vadd.f32 %v3588, %v5316
        %v5431 = vadd.f32 %v3589, %v5329
        %v5432 = vadd.f32 %v3590, %v5334
        %v5433 = vadd.f32 %v3591, %v5347
        %v5434 = vadd.f32 %v3592, %v5352
        %v5435 = vadd.f32 %v3593, %v5365
        %v5436 = vadd.f32 %v3594, %v5370
        %v5437 = vld [vmem:[%s2] sm:$0x1]
        %v5439 = vlaneseq
        %v5440 = vshrl.u32 %v5439, 7
        %v5441 = vsub.s32 0, %v5440
        %v5442 = vrot.slane %v5437, %v5441
        %v5444 = vadd.f32 %v5373, %v5442
        %v5445 = vadd.f32 %v5374, %v5442
        %v5446 = vadd.f32 %v5375, %v5442
        %v5447 = vadd.f32 %v5376, %v5442
        %v5448 = vadd.f32 %v5377, %v5442
        %v5449 = vadd.f32 %v5378, %v5442
        %v5450 = vadd.f32 %v5379, %v5442
        %v5451 = vadd.f32 %v5380, %v5442
        %v5452 = vadd.f32 %v5381, %v5442
        %v5453 = vadd.f32 %v5382, %v5442
        %v5454 = vadd.f32 %v5383, %v5442
        %v5455 = vadd.f32 %v5384, %v5442
        %v5456 = vadd.f32 %v5385, %v5442
        %v5457 = vadd.f32 %v5386, %v5442
        %v5458 = vadd.f32 %v5387, %v5442
        %v5459 = vadd.f32 %v5388, %v5442
        %v5460 = vadd.f32 %v5389, %v5442
        %v5461 = vadd.f32 %v5390, %v5442
        %v5462 = vadd.f32 %v5391, %v5442
        %v5463 = vadd.f32 %v5392, %v5442
        %v5464 = vadd.f32 %v5393, %v5442
        %v5465 = vadd.f32 %v5394, %v5442
        %v5466 = vadd.f32 %v5395, %v5442
        %v5467 = vadd.f32 %v5396, %v5442
        %v5468 = vadd.f32 %v5397, %v5442
        %v5469 = vadd.f32 %v5398, %v5442
        %v5470 = vadd.f32 %v5399, %v5442
        %v5471 = vadd.f32 %v5400, %v5442
        %v5472 = vadd.f32 %v5401, %v5442
        %v5473 = vadd.f32 %v5402, %v5442
        %v5474 = vadd.f32 %v5403, %v5442
        %v5475 = vadd.f32 %v5404, %v5442
        %v5476 = vadd.f32 %v5405, %v5442
        %v5477 = vadd.f32 %v5406, %v5442
        %v5478 = vadd.f32 %v5407, %v5442
        %v5479 = vadd.f32 %v5408, %v5442
        %v5480 = vadd.f32 %v5409, %v5442
        %v5481 = vadd.f32 %v5410, %v5442
        %v5482 = vadd.f32 %v5411, %v5442
        %v5483 = vadd.f32 %v5412, %v5442
        %v5484 = vadd.f32 %v5413, %v5442
        %v5485 = vadd.f32 %v5414, %v5442
        %v5486 = vadd.f32 %v5415, %v5442
        %v5487 = vadd.f32 %v5416, %v5442
        %v5488 = vadd.f32 %v5417, %v5442
        %v5489 = vadd.f32 %v5418, %v5442
        %v5490 = vadd.f32 %v5419, %v5442
        %v5491 = vadd.f32 %v5420, %v5442
        %v5492 = vadd.f32 %v5421, %v5442
        %v5493 = vadd.f32 %v5422, %v5442
        %v5494 = vadd.f32 %v5423, %v5442
        %v5495 = vadd.f32 %v5424, %v5442
        %v5496 = vadd.f32 %v5425, %v5442
        %v5497 = vadd.f32 %v5426, %v5442
        %v5498 = vadd.f32 %v5427, %v5442
        %v5499 = vadd.f32 %v5428, %v5442
        %v5500 = vadd.f32 %v5429, %v5442
        %v5501 = vadd.f32 %v5430, %v5442
        %v5502 = vadd.f32 %v5431, %v5442
        %v5503 = vadd.f32 %v5432, %v5442
        %v5504 = vadd.f32 %v5433, %v5442
        %v5505 = vadd.f32 %v5434, %v5442
        %v5506 = vadd.f32 %v5435, %v5442
        %v5507 = vadd.f32 %v5436, %v5442
        %v5508 = vxor.u32 %v5444, 2147483648
        %v5509 = vxor.u32 %v5445, 2147483648
        %v5510 = vxor.u32 %v5446, 2147483648
        %v5511 = vxor.u32 %v5447, 2147483648
        %v5512 = vxor.u32 %v5448, 2147483648
        %v5513 = vxor.u32 %v5449, 2147483648
        %v5514 = vxor.u32 %v5450, 2147483648
        %v5515 = vxor.u32 %v5451, 2147483648
        %v5516 = vxor.u32 %v5452, 2147483648
        %v5517 = vxor.u32 %v5453, 2147483648
        %v5518 = vxor.u32 %v5454, 2147483648
        %v5519 = vxor.u32 %v5455, 2147483648
        %v5520 = vxor.u32 %v5456, 2147483648
        %v5521 = vxor.u32 %v5457, 2147483648
        %v5522 = vxor.u32 %v5458, 2147483648
        %v5523 = vxor.u32 %v5459, 2147483648
        %v5524 = vxor.u32 %v5460, 2147483648
        %v5525 = vxor.u32 %v5461, 2147483648
        %v5526 = vxor.u32 %v5462, 2147483648
        %v5527 = vxor.u32 %v5463, 2147483648
        %v5528 = vxor.u32 %v5464, 2147483648
        %v5529 = vxor.u32 %v5465, 2147483648
        %v5530 = vxor.u32 %v5466, 2147483648
        %v5531 = vxor.u32 %v5467, 2147483648
        %v5532 = vxor.u32 %v5468, 2147483648
        %v5533 = vxor.u32 %v5469, 2147483648
        %v5534 = vxor.u32 %v5470, 2147483648
        %v5535 = vxor.u32 %v5471, 2147483648
        %v5536 = vxor.u32 %v5472, 2147483648
        %v5537 = vxor.u32 %v5473, 2147483648
        %v5538 = vxor.u32 %v5474, 2147483648
        %v5539 = vxor.u32 %v5475, 2147483648
        %v5540 = vxor.u32 %v5476, 2147483648
        %v5541 = vxor.u32 %v5477, 2147483648
        %v5542 = vxor.u32 %v5478, 2147483648
        %v5543 = vxor.u32 %v5479, 2147483648
        %v5544 = vxor.u32 %v5480, 2147483648
        %v5545 = vxor.u32 %v5481, 2147483648
        %v5546 = vxor.u32 %v5482, 2147483648
        %v5547 = vxor.u32 %v5483, 2147483648
        %v5548 = vxor.u32 %v5484, 2147483648
        %v5549 = vxor.u32 %v5485, 2147483648
        %v5550 = vxor.u32 %v5486, 2147483648
        %v5551 = vxor.u32 %v5487, 2147483648
        %v5552 = vxor.u32 %v5488, 2147483648
        %v5553 = vxor.u32 %v5489, 2147483648
        %v5554 = vxor.u32 %v5490, 2147483648
        %v5555 = vxor.u32 %v5491, 2147483648
        %v5556 = vxor.u32 %v5492, 2147483648
        %v5557 = vxor.u32 %v5493, 2147483648
        %v5558 = vxor.u32 %v5494, 2147483648
        %v5559 = vxor.u32 %v5495, 2147483648
        %v5560 = vxor.u32 %v5496, 2147483648
        %v5561 = vxor.u32 %v5497, 2147483648
        %v5562 = vxor.u32 %v5498, 2147483648
        %v5563 = vxor.u32 %v5499, 2147483648
        %v5564 = vxor.u32 %v5500, 2147483648
        %v5565 = vxor.u32 %v5501, 2147483648
        %v5566 = vxor.u32 %v5502, 2147483648
        %v5567 = vxor.u32 %v5503, 2147483648
        %v5568 = vxor.u32 %v5504, 2147483648
        %v5569 = vxor.u32 %v5505, 2147483648
        %v5570 = vxor.u32 %v5506, 2147483648
        %v5571 = vxor.u32 %v5507, 2147483648
        %v5572 = vmul.f32 %v5508, 1.442695
        %v5573 = vpow.pop %v5572
        %v5574 = vmul.f32 %v5509, 1.442695
        %v5575 = vpow.pop %v5574
        %v5576 = vmul.f32 %v5510, 1.442695
        %v5577 = vpow.pop %v5576
        %v5578 = vmul.f32 %v5511, 1.442695
        %v5579 = vpow.pop %v5578
        %v5580 = vmul.f32 %v5512, 1.442695
        %v5581 = vpow.pop %v5580
        %v5582 = vmul.f32 %v5513, 1.442695
        %v5583 = vpow.pop %v5582
        %v5584 = vmul.f32 %v5514, 1.442695
        %v5585 = vpow.pop %v5584
        %v5586 = vmul.f32 %v5515, 1.442695
        %v5587 = vpow.pop %v5586
        %v5588 = vmul.f32 %v5516, 1.442695
        %v5589 = vpow.pop %v5588
        %v5590 = vmul.f32 %v5517, 1.442695
        %v5591 = vpow.pop %v5590
        %v5592 = vmul.f32 %v5518, 1.442695
        %v5593 = vpow.pop %v5592
        %v5594 = vmul.f32 %v5519, 1.442695
        %v5595 = vpow.pop %v5594
        %v5596 = vmul.f32 %v5520, 1.442695
        %v5597 = vpow.pop %v5596
        %v5598 = vmul.f32 %v5521, 1.442695
        %v5599 = vpow.pop %v5598
        %v5600 = vmul.f32 %v5522, 1.442695
        %v5601 = vpow.pop %v5600
        %v5602 = vmul.f32 %v5523, 1.442695
        %v5603 = vpow.pop %v5602
        %v5604 = vmul.f32 %v5524, 1.442695
        %v5605 = vpow.pop %v5604
        %v5606 = vmul.f32 %v5525, 1.442695
        %v5607 = vpow.pop %v5606
        %v5608 = vmul.f32 %v5526, 1.442695
        %v5609 = vpow.pop %v5608
        %v5610 = vmul.f32 %v5527, 1.442695
        %v5611 = vpow.pop %v5610
        %v5612 = vmul.f32 %v5528, 1.442695
        %v5613 = vpow.pop %v5612
        %v5614 = vmul.f32 %v5529, 1.442695
        %v5615 = vpow.pop %v5614
        %v5616 = vmul.f32 %v5530, 1.442695
        %v5617 = vpow.pop %v5616
        %v5618 = vmul.f32 %v5531, 1.442695
        %v5619 = vpow.pop %v5618
        %v5620 = vmul.f32 %v5532, 1.442695
        %v5621 = vpow.pop %v5620
        %v5622 = vmul.f32 %v5533, 1.442695
        %v5623 = vpow.pop %v5622
        %v5624 = vmul.f32 %v5534, 1.442695
        %v5625 = vpow.pop %v5624
        %v5626 = vmul.f32 %v5535, 1.442695
        %v5627 = vpow.pop %v5626
        %v5628 = vmul.f32 %v5536, 1.442695
        %v5629 = vpow.pop %v5628
        %v5630 = vmul.f32 %v5537, 1.442695
        %v5631 = vpow.pop %v5630
        %v5632 = vmul.f32 %v5538, 1.442695
        %v5633 = vpow.pop %v5632
        %v5634 = vmul.f32 %v5539, 1.442695
        %v5635 = vpow.pop %v5634
        %v5636 = vmul.f32 %v5540, 1.442695
        %v5637 = vpow.pop %v5636
        %v5638 = vmul.f32 %v5541, 1.442695
        %v5639 = vpow.pop %v5638
        %v5640 = vmul.f32 %v5542, 1.442695
        %v5641 = vpow.pop %v5640
        %v5642 = vmul.f32 %v5543, 1.442695
        %v5643 = vpow.pop %v5642
        %v5644 = vmul.f32 %v5544, 1.442695
        %v5645 = vpow.pop %v5644
        %v5646 = vmul.f32 %v5545, 1.442695
        %v5647 = vpow.pop %v5646
        %v5648 = vmul.f32 %v5546, 1.442695
        %v5649 = vpow.pop %v5648
        %v5650 = vmul.f32 %v5547, 1.442695
        %v5651 = vpow.pop %v5650
        %v5652 = vmul.f32 %v5548, 1.442695
        %v5653 = vpow.pop %v5652
        %v5654 = vmul.f32 %v5549, 1.442695
        %v5655 = vpow.pop %v5654
        %v5656 = vmul.f32 %v5550, 1.442695
        %v5657 = vpow.pop %v5656
        %v5658 = vmul.f32 %v5551, 1.442695
        %v5659 = vpow.pop %v5658
        %v5660 = vmul.f32 %v5552, 1.442695
        %v5661 = vpow.pop %v5660
        %v5662 = vmul.f32 %v5553, 1.442695
        %v5663 = vpow.pop %v5662
        %v5664 = vmul.f32 %v5554, 1.442695
        %v5665 = vpow.pop %v5664
        %v5666 = vmul.f32 %v5555, 1.442695
        %v5667 = vpow.pop %v5666
        %v5668 = vmul.f32 %v5556, 1.442695
        %v5669 = vpow.pop %v5668
        %v5670 = vmul.f32 %v5557, 1.442695
        %v5671 = vpow.pop %v5670
        %v5672 = vmul.f32 %v5558, 1.442695
        %v5673 = vpow.pop %v5672
        %v5674 = vmul.f32 %v5559, 1.442695
        %v5675 = vpow.pop %v5674
        %v5676 = vmul.f32 %v5560, 1.442695
        %v5677 = vpow.pop %v5676
        %v5678 = vmul.f32 %v5561, 1.442695
        %v5679 = vpow.pop %v5678
        %v5680 = vmul.f32 %v5562, 1.442695
        %v5681 = vpow.pop %v5680
        %v5682 = vmul.f32 %v5563, 1.442695
        %v5683 = vpow.pop %v5682
        %v5684 = vmul.f32 %v5564, 1.442695
        %v5685 = vpow.pop %v5684
        %v5686 = vmul.f32 %v5565, 1.442695
        %v5687 = vpow.pop %v5686
        %v5688 = vmul.f32 %v5566, 1.442695
        %v5689 = vpow.pop %v5688
        %v5690 = vmul.f32 %v5567, 1.442695
        %v5691 = vpow.pop %v5690
        %v5692 = vmul.f32 %v5568, 1.442695
        %v5693 = vpow.pop %v5692
        %v5694 = vmul.f32 %v5569, 1.442695
        %v5695 = vpow.pop %v5694
        %v5696 = vmul.f32 %v5570, 1.442695
        %v5697 = vpow.pop %v5696
        %v5698 = vmul.f32 %v5571, 1.442695
        %v5699 = vpow.pop %v5698
        %v5700 = vadd.f32 %v5573, 1.0
        %v5701 = vadd.f32 %v5575, 1.0
        %v5702 = vadd.f32 %v5577, 1.0
        %v5703 = vadd.f32 %v5579, 1.0
        %v5704 = vadd.f32 %v5581, 1.0
        %v5705 = vadd.f32 %v5583, 1.0
        %v5706 = vadd.f32 %v5585, 1.0
        %v5707 = vadd.f32 %v5587, 1.0
        %v5708 = vadd.f32 %v5589, 1.0
        %v5709 = vadd.f32 %v5591, 1.0
        %v5710 = vadd.f32 %v5593, 1.0
        %v5711 = vadd.f32 %v5595, 1.0
        %v5712 = vadd.f32 %v5597, 1.0
        %v5713 = vadd.f32 %v5599, 1.0
        %v5714 = vadd.f32 %v5601, 1.0
        %v5715 = vadd.f32 %v5603, 1.0
        %v5716 = vadd.f32 %v5605, 1.0
        %v5717 = vadd.f32 %v5607, 1.0
        %v5718 = vadd.f32 %v5609, 1.0
        %v5719 = vadd.f32 %v5611, 1.0
        %v5720 = vadd.f32 %v5613, 1.0
        %v5721 = vadd.f32 %v5615, 1.0
        %v5722 = vadd.f32 %v5617, 1.0
        %v5723 = vadd.f32 %v5619, 1.0
        %v5724 = vadd.f32 %v5621, 1.0
        %v5725 = vadd.f32 %v5623, 1.0
        %v5726 = vadd.f32 %v5625, 1.0
        %v5727 = vadd.f32 %v5627, 1.0
        %v5728 = vadd.f32 %v5629, 1.0
        %v5729 = vadd.f32 %v5631, 1.0
        %v5730 = vadd.f32 %v5633, 1.0
        %v5731 = vadd.f32 %v5635, 1.0
        %v5732 = vadd.f32 %v5637, 1.0
        %v5733 = vadd.f32 %v5639, 1.0
        %v5734 = vadd.f32 %v5641, 1.0
        %v5735 = vadd.f32 %v5643, 1.0
        %v5736 = vadd.f32 %v5645, 1.0
        %v5737 = vadd.f32 %v5647, 1.0
        %v5738 = vadd.f32 %v5649, 1.0
        %v5739 = vadd.f32 %v5651, 1.0
        %v5740 = vadd.f32 %v5653, 1.0
        %v5741 = vadd.f32 %v5655, 1.0
        %v5742 = vadd.f32 %v5657, 1.0
        %v5743 = vadd.f32 %v5659, 1.0
        %v5744 = vadd.f32 %v5661, 1.0
        %v5745 = vadd.f32 %v5663, 1.0
        %v5746 = vadd.f32 %v5665, 1.0
        %v5747 = vadd.f32 %v5667, 1.0
        %v5748 = vadd.f32 %v5669, 1.0
        %v5749 = vadd.f32 %v5671, 1.0
        %v5750 = vadd.f32 %v5673, 1.0
        %v5751 = vadd.f32 %v5675, 1.0
        %v5752 = vadd.f32 %v5677, 1.0
        %v5753 = vadd.f32 %v5679, 1.0
        %v5754 = vadd.f32 %v5681, 1.0
        %v5755 = vadd.f32 %v5683, 1.0
        %v5756 = vadd.f32 %v5685, 1.0
        %v5757 = vadd.f32 %v5687, 1.0
        %v5758 = vadd.f32 %v5689, 1.0
        %v5759 = vadd.f32 %v5691, 1.0
        %v5760 = vadd.f32 %v5693, 1.0
        %v5761 = vadd.f32 %v5695, 1.0
        %v5762 = vadd.f32 %v5697, 1.0
        %v5763 = vadd.f32 %v5699, 1.0
        %v5764 = vrcp.pop %v5700
        %v5765 = vmul.f32 1.0, %v5764
        %v5766 = vrcp.pop %v5701
        %v5767 = vmul.f32 1.0, %v5766
        %v5768 = vrcp.pop %v5702
        %v5769 = vmul.f32 1.0, %v5768
        %v5770 = vrcp.pop %v5703
        %v5771 = vmul.f32 1.0, %v5770
        %v5772 = vrcp.pop %v5704
        %v5773 = vmul.f32 1.0, %v5772
        %v5774 = vrcp.pop %v5705
        %v5775 = vmul.f32 1.0, %v5774
        %v5776 = vrcp.pop %v5706
        %v5777 = vmul.f32 1.0, %v5776
        %v5778 = vrcp.pop %v5707
        %v5779 = vmul.f32 1.0, %v5778
        %v5780 = vrcp.pop %v5708
        %v5781 = vmul.f32 1.0, %v5780
        %v5782 = vrcp.pop %v5709
        %v5783 = vmul.f32 1.0, %v5782
        %v5784 = vrcp.pop %v5710
        %v5785 = vmul.f32 1.0, %v5784
        %v5786 = vrcp.pop %v5711
        %v5787 = vmul.f32 1.0, %v5786
        %v5788 = vrcp.pop %v5712
        %v5789 = vmul.f32 1.0, %v5788
        %v5790 = vrcp.pop %v5713
        %v5791 = vmul.f32 1.0, %v5790
        %v5792 = vrcp.pop %v5714
        %v5793 = vmul.f32 1.0, %v5792
        %v5794 = vrcp.pop %v5715
        %v5795 = vmul.f32 1.0, %v5794
        %v5796 = vrcp.pop %v5716
        %v5797 = vmul.f32 1.0, %v5796
        %v5798 = vrcp.pop %v5717
        %v5799 = vmul.f32 1.0, %v5798
        %v5800 = vrcp.pop %v5718
        %v5801 = vmul.f32 1.0, %v5800
        %v5802 = vrcp.pop %v5719
        %v5803 = vmul.f32 1.0, %v5802
        %v5804 = vrcp.pop %v5720
        %v5805 = vmul.f32 1.0, %v5804
        %v5806 = vrcp.pop %v5721
        %v5807 = vmul.f32 1.0, %v5806
        %v5808 = vrcp.pop %v5722
        %v5809 = vmul.f32 1.0, %v5808
        %v5810 = vrcp.pop %v5723
        %v5811 = vmul.f32 1.0, %v5810
        %v5812 = vrcp.pop %v5724
        %v5813 = vmul.f32 1.0, %v5812
        %v5814 = vrcp.pop %v5725
        %v5815 = vmul.f32 1.0, %v5814
        %v5816 = vrcp.pop %v5726
        %v5817 = vmul.f32 1.0, %v5816
        %v5818 = vrcp.pop %v5727
        %v5819 = vmul.f32 1.0, %v5818
        %v5820 = vrcp.pop %v5728
        %v5821 = vmul.f32 1.0, %v5820
        %v5822 = vrcp.pop %v5729
        %v5823 = vmul.f32 1.0, %v5822
        %v5824 = vrcp.pop %v5730
        %v5825 = vmul.f32 1.0, %v5824
        %v5826 = vrcp.pop %v5731
        %v5827 = vmul.f32 1.0, %v5826
        %v5828 = vrcp.pop %v5732
        %v5829 = vmul.f32 1.0, %v5828
        %v5830 = vrcp.pop %v5733
        %v5831 = vmul.f32 1.0, %v5830
        %v5832 = vrcp.pop %v5734
        %v5833 = vmul.f32 1.0, %v5832
        %v5834 = vrcp.pop %v5735
        %v5835 = vmul.f32 1.0, %v5834
        %v5836 = vrcp.pop %v5736
        %v5837 = vmul.f32 1.0, %v5836
        %v5838 = vrcp.pop %v5737
        %v5839 = vmul.f32 1.0, %v5838
        %v5840 = vrcp.pop %v5738
        %v5841 = vmul.f32 1.0, %v5840
        %v5842 = vrcp.pop %v5739
        %v5843 = vmul.f32 1.0, %v5842
        %v5844 = vrcp.pop %v5740
        %v5845 = vmul.f32 1.0, %v5844
        %v5846 = vrcp.pop %v5741
        %v5847 = vmul.f32 1.0, %v5846
        %v5848 = vrcp.pop %v5742
        %v5849 = vmul.f32 1.0, %v5848
        %v5850 = vrcp.pop %v5743
        %v5851 = vmul.f32 1.0, %v5850
        %v5852 = vrcp.pop %v5744
        %v5853 = vmul.f32 1.0, %v5852
        %v5854 = vrcp.pop %v5745
        %v5855 = vmul.f32 1.0, %v5854
        %v5856 = vrcp.pop %v5746
        %v5857 = vmul.f32 1.0, %v5856
        %v5858 = vrcp.pop %v5747
        %v5859 = vmul.f32 1.0, %v5858
        %v5860 = vrcp.pop %v5748
        %v5861 = vmul.f32 1.0, %v5860
        %v5862 = vrcp.pop %v5749
        %v5863 = vmul.f32 1.0, %v5862
        %v5864 = vrcp.pop %v5750
        %v5865 = vmul.f32 1.0, %v5864
        %v5866 = vrcp.pop %v5751
        %v5867 = vmul.f32 1.0, %v5866
        %v5868 = vrcp.pop %v5752
        %v5869 = vmul.f32 1.0, %v5868
        %v5870 = vrcp.pop %v5753
        %v5871 = vmul.f32 1.0, %v5870
        %v5872 = vrcp.pop %v5754
        %v5873 = vmul.f32 1.0, %v5872
        %v5874 = vrcp.pop %v5755
        %v5875 = vmul.f32 1.0, %v5874
        %v5876 = vrcp.pop %v5756
        %v5877 = vmul.f32 1.0, %v5876
        %v5878 = vrcp.pop %v5757
        %v5879 = vmul.f32 1.0, %v5878
        %v5880 = vrcp.pop %v5758
        %v5881 = vmul.f32 1.0, %v5880
        %v5882 = vrcp.pop %v5759
        %v5883 = vmul.f32 1.0, %v5882
        %v5884 = vrcp.pop %v5760
        %v5885 = vmul.f32 1.0, %v5884
        %v5886 = vrcp.pop %v5761
        %v5887 = vmul.f32 1.0, %v5886
        %v5888 = vrcp.pop %v5762
        %v5889 = vmul.f32 1.0, %v5888
        %v5890 = vrcp.pop %v5763
        %v5891 = vmul.f32 1.0, %v5890
        %v5892 = vmul.f32 %v5444, %v5765
        %v5893 = vmul.f32 %v5445, %v5767
        %v5894 = vmul.f32 %v5446, %v5769
        %v5895 = vmul.f32 %v5447, %v5771
        %v5896 = vmul.f32 %v5448, %v5773
        %v5897 = vmul.f32 %v5449, %v5775
        %v5898 = vmul.f32 %v5450, %v5777
        %v5899 = vmul.f32 %v5451, %v5779
        %v5900 = vmul.f32 %v5452, %v5781
        %v5901 = vmul.f32 %v5453, %v5783
        %v5902 = vmul.f32 %v5454, %v5785
        %v5903 = vmul.f32 %v5455, %v5787
        %v5904 = vmul.f32 %v5456, %v5789
        %v5905 = vmul.f32 %v5457, %v5791
        %v5906 = vmul.f32 %v5458, %v5793
        %v5907 = vmul.f32 %v5459, %v5795
        %v5908 = vmul.f32 %v5460, %v5797
        %v5909 = vmul.f32 %v5461, %v5799
        %v5910 = vmul.f32 %v5462, %v5801
        %v5911 = vmul.f32 %v5463, %v5803
        %v5912 = vmul.f32 %v5464, %v5805
        %v5913 = vmul.f32 %v5465, %v5807
        %v5914 = vmul.f32 %v5466, %v5809
        %v5915 = vmul.f32 %v5467, %v5811
        %v5916 = vmul.f32 %v5468, %v5813
        %v5917 = vmul.f32 %v5469, %v5815
        %v5918 = vmul.f32 %v5470, %v5817
        %v5919 = vmul.f32 %v5471, %v5819
        %v5920 = vmul.f32 %v5472, %v5821
        %v5921 = vmul.f32 %v5473, %v5823
        %v5922 = vmul.f32 %v5474, %v5825
        %v5923 = vmul.f32 %v5475, %v5827
        %v5924 = vmul.f32 %v5476, %v5829
        %v5925 = vmul.f32 %v5477, %v5831
        %v5926 = vmul.f32 %v5478, %v5833
        %v5927 = vmul.f32 %v5479, %v5835
        %v5928 = vmul.f32 %v5480, %v5837
        %v5929 = vmul.f32 %v5481, %v5839
        %v5930 = vmul.f32 %v5482, %v5841
        %v5931 = vmul.f32 %v5483, %v5843
        %v5932 = vmul.f32 %v5484, %v5845
        %v5933 = vmul.f32 %v5485, %v5847
        %v5934 = vmul.f32 %v5486, %v5849
        %v5935 = vmul.f32 %v5487, %v5851
        %v5936 = vmul.f32 %v5488, %v5853
        %v5937 = vmul.f32 %v5489, %v5855
        %v5938 = vmul.f32 %v5490, %v5857
        %v5939 = vmul.f32 %v5491, %v5859
        %v5940 = vmul.f32 %v5492, %v5861
        %v5941 = vmul.f32 %v5493, %v5863
        %v5942 = vmul.f32 %v5494, %v5865
        %v5943 = vmul.f32 %v5495, %v5867
        %v5944 = vmul.f32 %v5496, %v5869
        %v5945 = vmul.f32 %v5497, %v5871
        %v5946 = vmul.f32 %v5498, %v5873
        %v5947 = vmul.f32 %v5499, %v5875
        %v5948 = vmul.f32 %v5500, %v5877
        %v5949 = vmul.f32 %v5501, %v5879
        %v5950 = vmul.f32 %v5502, %v5881
        %v5951 = vmul.f32 %v5503, %v5883
        %v5952 = vmul.f32 %v5504, %v5885
        %v5953 = vmul.f32 %v5505, %v5887
        %v5954 = vmul.f32 %v5506, %v5889
        %v5955 = vmul.f32 %v5507, %v5891
        %vm5956 = vcmask 64512
        %v5957 = vsel %vm5956, %v5892, 0.0
        %v5958 = vsel %vm5956, %v5900, 0.0
        %v5959 = vadd.f32 %v5957, %v5958
        %v5960 = vsel %vm5956, %v5908, 0.0
        %v5961 = vadd.f32 %v5959, %v5960
        %v5962 = vsel %vm5956, %v5916, 0.0
        %v5963 = vadd.f32 %v5961, %v5962
        %v5964 = vsel %vm5956, %v5924, 0.0
        %v5965 = vadd.f32 %v5963, %v5964
        %v5966 = vsel %vm5956, %v5932, 0.0
        %v5967 = vadd.f32 %v5965, %v5966
        %v5968 = vsel %vm5956, %v5940, 0.0
        %v5969 = vadd.f32 %v5967, %v5968
        %v5970 = vsel %vm5956, %v5948, 0.0
        %v5971 = vadd.f32 %v5969, %v5970
        %v5972 = vsel %vm5956, %v5893, 0.0
        %v5973 = vsel %vm5956, %v5901, 0.0
        %v5974 = vadd.f32 %v5972, %v5973
        %v5975 = vsel %vm5956, %v5909, 0.0
        %v5976 = vadd.f32 %v5974, %v5975
        %v5977 = vsel %vm5956, %v5917, 0.0
        %v5978 = vadd.f32 %v5976, %v5977
        %v5979 = vsel %vm5956, %v5925, 0.0
        %v5980 = vadd.f32 %v5978, %v5979
        %v5981 = vsel %vm5956, %v5933, 0.0
        %v5982 = vadd.f32 %v5980, %v5981
        %v5983 = vsel %vm5956, %v5941, 0.0
        %v5984 = vadd.f32 %v5982, %v5983
        %v5985 = vsel %vm5956, %v5949, 0.0
        %v5986 = vadd.f32 %v5984, %v5985
        %v5987 = vsel %vm5956, %v5894, 0.0
        %v5988 = vsel %vm5956, %v5902, 0.0
        %v5989 = vadd.f32 %v5987, %v5988
        %v5990 = vsel %vm5956, %v5910, 0.0
        %v5991 = vadd.f32 %v5989, %v5990
        %v5992 = vsel %vm5956, %v5918, 0.0
        %v5993 = vadd.f32 %v5991, %v5992
        %v5994 = vsel %vm5956, %v5926, 0.0
        %v5995 = vadd.f32 %v5993, %v5994
        %v5996 = vsel %vm5956, %v5934, 0.0
        %v5997 = vadd.f32 %v5995, %v5996
        %v5998 = vsel %vm5956, %v5942, 0.0
        %v5999 = vadd.f32 %v5997, %v5998
        %v6000 = vsel %vm5956, %v5950, 0.0
        %v6001 = vadd.f32 %v5999, %v6000
        %v6002 = vsel %vm5956, %v5895, 0.0
        %v6003 = vsel %vm5956, %v5903, 0.0
        %v6004 = vadd.f32 %v6002, %v6003
        %v6005 = vsel %vm5956, %v5911, 0.0
        %v6006 = vadd.f32 %v6004, %v6005
        %v6007 = vsel %vm5956, %v5919, 0.0
        %v6008 = vadd.f32 %v6006, %v6007
        %v6009 = vsel %vm5956, %v5927, 0.0
        %v6010 = vadd.f32 %v6008, %v6009
        %v6011 = vsel %vm5956, %v5935, 0.0
        %v6012 = vadd.f32 %v6010, %v6011
        %v6013 = vsel %vm5956, %v5943, 0.0
        %v6014 = vadd.f32 %v6012, %v6013
        %v6015 = vsel %vm5956, %v5951, 0.0
        %v6016 = vadd.f32 %v6014, %v6015
        %v6017 = vsel %vm5956, %v5896, 0.0
        %v6018 = vsel %vm5956, %v5904, 0.0
        %v6019 = vadd.f32 %v6017, %v6018
        %v6020 = vsel %vm5956, %v5912, 0.0
        %v6021 = vadd.f32 %v6019, %v6020
        %v6022 = vsel %vm5956, %v5920, 0.0
        %v6023 = vadd.f32 %v6021, %v6022
        %v6024 = vsel %vm5956, %v5928, 0.0
        %v6025 = vadd.f32 %v6023, %v6024
        %v6026 = vsel %vm5956, %v5936, 0.0
        %v6027 = vadd.f32 %v6025, %v6026
        %v6028 = vsel %vm5956, %v5944, 0.0
        %v6029 = vadd.f32 %v6027, %v6028
        %v6030 = vsel %vm5956, %v5952, 0.0
        %v6031 = vadd.f32 %v6029, %v6030
        %v6032 = vsel %vm5956, %v5897, 0.0
        %v6033 = vsel %vm5956, %v5905, 0.0
        %v6034 = vadd.f32 %v6032, %v6033
        %v6035 = vsel %vm5956, %v5913, 0.0
        %v6036 = vadd.f32 %v6034, %v6035
        %v6037 = vsel %vm5956, %v5921, 0.0
        %v6038 = vadd.f32 %v6036, %v6037
        %v6039 = vsel %vm5956, %v5929, 0.0
        %v6040 = vadd.f32 %v6038, %v6039
        %v6041 = vsel %vm5956, %v5937, 0.0
        %v6042 = vadd.f32 %v6040, %v6041
        %v6043 = vsel %vm5956, %v5945, 0.0
        %v6044 = vadd.f32 %v6042, %v6043
        %v6045 = vsel %vm5956, %v5953, 0.0
        %v6046 = vadd.f32 %v6044, %v6045
        %v6047 = vsel %vm5956, %v5898, 0.0
        %v6048 = vsel %vm5956, %v5906, 0.0
        %v6049 = vadd.f32 %v6047, %v6048
        %v6050 = vsel %vm5956, %v5914, 0.0
        %v6051 = vadd.f32 %v6049, %v6050
        %v6052 = vsel %vm5956, %v5922, 0.0
        %v6053 = vadd.f32 %v6051, %v6052
        %v6054 = vsel %vm5956, %v5930, 0.0
        %v6055 = vadd.f32 %v6053, %v6054
        %v6056 = vsel %vm5956, %v5938, 0.0
        %v6057 = vadd.f32 %v6055, %v6056
        %v6058 = vsel %vm5956, %v5946, 0.0
        %v6059 = vadd.f32 %v6057, %v6058
        %v6060 = vsel %vm5956, %v5954, 0.0
        %v6061 = vadd.f32 %v6059, %v6060
        %v6062 = vsel %vm5956, %v5899, 0.0
        %v6063 = vsel %vm5956, %v5907, 0.0
        %v6064 = vadd.f32 %v6062, %v6063
        %v6065 = vsel %vm5956, %v5915, 0.0
        %v6066 = vadd.f32 %v6064, %v6065
        %v6067 = vsel %vm5956, %v5923, 0.0
        %v6068 = vadd.f32 %v6066, %v6067
        %v6069 = vsel %vm5956, %v5931, 0.0
        %v6070 = vadd.f32 %v6068, %v6069
        %v6071 = vsel %vm5956, %v5939, 0.0
        %v6072 = vadd.f32 %v6070, %v6071
        %v6073 = vsel %vm5956, %v5947, 0.0
        %v6074 = vadd.f32 %v6072, %v6073
        %v6075 = vsel %vm5956, %v5955, 0.0
        %v6076 = vadd.f32 %v6074, %v6075
        %v6077 = vadd.f32 %v5971, 0.0
        %v6078 = vadd.f32 %v5986, 0.0
        %v6079 = vadd.f32 %v6001, 0.0
        %v6080 = vadd.f32 %v6016, 0.0
        %v6081 = vadd.f32 %v6031, 0.0
        %v6082 = vadd.f32 %v6046, 0.0
        %v6083 = vadd.f32 %v6061, 0.0
        %v6084 = vadd.f32 %v6076, 0.0
        %s6085 = scalar_lea.vmem %s279, 1920
        %v6086 = vld [vmem:[%s6085] sm:$0xff]
        %v6087 = vld [vmem:[%s6085 + $0x8] sm:$0xff]
        %v6088 = vld [vmem:[%s6085 + $0x10] sm:$0xff]
        %v6089 = vld [vmem:[%s6085 + $0x18] sm:$0xff]
        %v6090 = vld [vmem:[%s6085 + $0x20] sm:$0xff]
        %v6091 = vld [vmem:[%s6085 + $0x28] sm:$0xff]
        %v6092 = vld [vmem:[%s6085 + $0x30] sm:$0xff]
        %v6093 = vld [vmem:[%s6085 + $0x38] sm:$0xff]
        %v6094 = vld [vmem:[%s6085 + $0x40] sm:$0xff]
        %v6095 = vld [vmem:[%s6085 + $0x48] sm:$0xff]
        %v6096 = vld [vmem:[%s6085 + $0x50] sm:$0xff]
        %v6097 = vld [vmem:[%s6085 + $0x58] sm:$0xff]
        %v6098 = vld [vmem:[%s6085 + $0x60] sm:$0xff]
        %v6099 = vld [vmem:[%s6085 + $0x68] sm:$0xff]
        %v6100 = vld [vmem:[%s6085 + $0x70] sm:$0xff]
        %v6101 = vld [vmem:[%s6085 + $0x78] sm:$0xff]
        %v6102 = vld [vmem:[%s6085 + $0x80] sm:$0xff]
        %v6103 = vld [vmem:[%s6085 + $0x88] sm:$0xff]
        %v6104 = vld [vmem:[%s6085 + $0x90] sm:$0xff]
        %v6105 = vld [vmem:[%s6085 + $0x98] sm:$0xff]
        %v6106 = vld [vmem:[%s6085 + $0xa0] sm:$0xff]
        %v6107 = vld [vmem:[%s6085 + $0xa8] sm:$0xff]
        %v6108 = vld [vmem:[%s6085 + $0xb0] sm:$0xff]
        %v6109 = vld [vmem:[%s6085 + $0xb8] sm:$0xff]
        %v6110 = vld [vmem:[%s6085 + $0xc0] sm:$0xff]
        %v6111 = vld [vmem:[%s6085 + $0xc8] sm:$0xff]
        %v6112 = vld [vmem:[%s6085 + $0xd0] sm:$0xff]
        %v6113 = vld [vmem:[%s6085 + $0xd8] sm:$0xff]
        %v6114 = vld [vmem:[%s6085 + $0xf0] sm:$0xff]
        %v6115 = vld [vmem:[%s6085 + $0xf8] sm:$0xff]
        %v6116 = vld [vmem:[%s6085 + $0x100] sm:$0xff]
        %v6117 = vld [vmem:[%s6085 + $0x108] sm:$0xff]
        %v6118 = vld [vmem:[%s6085 + $0x110] sm:$0xff]
        %v6119 = vld [vmem:[%s6085 + $0x118] sm:$0xff]
        %v6120 = vld [vmem:[%s6085 + $0x120] sm:$0xff]
        %v6121 = vld [vmem:[%s6085 + $0x128] sm:$0xff]
        %v6122 = vld [vmem:[%s6085 + $0x130] sm:$0xff]
        %v6123 = vld [vmem:[%s6085 + $0x138] sm:$0xff]
        %v6124 = vld [vmem:[%s6085 + $0x140] sm:$0xff]
        %v6125 = vld [vmem:[%s6085 + $0x148] sm:$0xff]
        %v6126 = vld [vmem:[%s6085 + $0x150] sm:$0xff]
        %v6127 = vld [vmem:[%s6085 + $0x158] sm:$0xff]
        %v6128 = vld [vmem:[%s6085 + $0x160] sm:$0xff]
        %v6129 = vld [vmem:[%s6085 + $0x168] sm:$0xff]
        %v6130 = vld [vmem:[%s6085 + $0x170] sm:$0xff]
        %v6131 = vld [vmem:[%s6085 + $0x178] sm:$0xff]
        %v6132 = vld [vmem:[%s6085 + $0x180] sm:$0xff]
        %v6133 = vld [vmem:[%s6085 + $0x188] sm:$0xff]
        %v6134 = vld [vmem:[%s6085 + $0x190] sm:$0xff]
        %v6135 = vld [vmem:[%s6085 + $0x198] sm:$0xff]
        %v6136 = vld [vmem:[%s6085 + $0x1a0] sm:$0xff]
        %v6137 = vld [vmem:[%s6085 + $0x1a8] sm:$0xff]
        %v6138 = vld [vmem:[%s6085 + $0x1b0] sm:$0xff]
        %v6139 = vld [vmem:[%s6085 + $0x1b8] sm:$0xff]
        %v6140 = vld [vmem:[%s6085 + $0x1c0] sm:$0xff]
        %v6141 = vld [vmem:[%s6085 + $0x1c8] sm:$0xff]
        %v6142 = vld [vmem:[%s6085 + $0x1e0] sm:$0xff]
        %v6143 = vld [vmem:[%s6085 + $0x1e8] sm:$0xff]
        %v6144 = vld [vmem:[%s6085 + $0x1f0] sm:$0xff]
        %v6145 = vld [vmem:[%s6085 + $0x1f8] sm:$0xff]
        %v6146 = vld [vmem:[%s6085 + $0x200] sm:$0xff]
        %v6147 = vld [vmem:[%s6085 + $0x208] sm:$0xff]
        %v6148 = vld [vmem:[%s6085 + $0x210] sm:$0xff]
        %v6149 = vld [vmem:[%s6085 + $0x218] sm:$0xff]
        %v6150 = vld [vmem:[%s6085 + $0x220] sm:$0xff]
        %v6151 = vld [vmem:[%s6085 + $0x228] sm:$0xff]
        %v6152 = vld [vmem:[%s6085 + $0x230] sm:$0xff]
        %v6153 = vld [vmem:[%s6085 + $0x238] sm:$0xff]
        %v6154 = vld [vmem:[%s6085 + $0x240] sm:$0xff]
        %v6155 = vld [vmem:[%s6085 + $0x248] sm:$0xff]
        %v6156 = vld [vmem:[%s6085 + $0x250] sm:$0xff]
        %v6157 = vld [vmem:[%s6085 + $0x258] sm:$0xff]
        %v6158 = vld [vmem:[%s6085 + $0x260] sm:$0xff]
        %v6159 = vld [vmem:[%s6085 + $0x268] sm:$0xff]
        %v6160 = vld [vmem:[%s6085 + $0x270] sm:$0xff]
        %v6161 = vld [vmem:[%s6085 + $0x278] sm:$0xff]
        %v6162 = vld [vmem:[%s6085 + $0x280] sm:$0xff]
        %v6163 = vld [vmem:[%s6085 + $0x288] sm:$0xff]
        %v6164 = vld [vmem:[%s6085 + $0x290] sm:$0xff]
        %v6165 = vld [vmem:[%s6085 + $0x298] sm:$0xff]
        %v6166 = vld [vmem:[%s6085 + $0x2a0] sm:$0xff]
        %v6167 = vld [vmem:[%s6085 + $0x2a8] sm:$0xff]
        %v6168 = vld [vmem:[%s6085 + $0x2b0] sm:$0xff]
        %v6169 = vld [vmem:[%s6085 + $0x2b8] sm:$0xff]
        %v6170 = vld [vmem:[%s6085 + $0x2d0] sm:$0xff]
        %v6171 = vld [vmem:[%s6085 + $0x2d8] sm:$0xff]
        %v6172 = vld [vmem:[%s6085 + $0x2e0] sm:$0xff]
        %v6173 = vld [vmem:[%s6085 + $0x2e8] sm:$0xff]
        %v6174 = vld [vmem:[%s6085 + $0x2f0] sm:$0xff]
        %v6175 = vld [vmem:[%s6085 + $0x2f8] sm:$0xff]
        %v6176 = vld [vmem:[%s6085 + $0x300] sm:$0xff]
        %v6177 = vld [vmem:[%s6085 + $0x308] sm:$0xff]
        %v6178 = vld [vmem:[%s6085 + $0x310] sm:$0xff]
        %v6179 = vld [vmem:[%s6085 + $0x318] sm:$0xff]
        %v6180 = vld [vmem:[%s6085 + $0x320] sm:$0xff]
        %v6181 = vld [vmem:[%s6085 + $0x328] sm:$0xff]
        %v6182 = vld [vmem:[%s6085 + $0x330] sm:$0xff]
        %v6183 = vld [vmem:[%s6085 + $0x338] sm:$0xff]
        %v6184 = vld [vmem:[%s6085 + $0x340] sm:$0xff]
        %v6185 = vld [vmem:[%s6085 + $0x348] sm:$0xff]
        %v6186 = vld [vmem:[%s6085 + $0x350] sm:$0xff]
        %v6187 = vld [vmem:[%s6085 + $0x358] sm:$0xff]
        %v6188 = vld [vmem:[%s6085 + $0x360] sm:$0xff]
        %v6189 = vld [vmem:[%s6085 + $0x368] sm:$0xff]
        %v6190 = vld [vmem:[%s6085 + $0x370] sm:$0xff]
        %v6191 = vld [vmem:[%s6085 + $0x378] sm:$0xff]
        %v6192 = vld [vmem:[%s6085 + $0x380] sm:$0xff]
        %v6193 = vld [vmem:[%s6085 + $0x388] sm:$0xff]
        %v6194 = vld [vmem:[%s6085 + $0x390] sm:$0xff]
        %v6195 = vld [vmem:[%s6085 + $0x398] sm:$0xff]
        %v6196 = vld [vmem:[%s6085 + $0x3a0] sm:$0xff]
        %v6197 = vld [vmem:[%s6085 + $0x3a8] sm:$0xff]
        %v6198 = vld [vmem:[%s6085 + $0x3c0] sm:$0xff]
        %v6199 = vld [vmem:[%s6085 + $0x3c8] sm:$0xff]
        %v6200 = vld [vmem:[%s6085 + $0x3d0] sm:$0xff]
        %v6201 = vld [vmem:[%s6085 + $0x3d8] sm:$0xff]
        %v6202 = vld [vmem:[%s6085 + $0x3e0] sm:$0xff]
        %v6203 = vld [vmem:[%s6085 + $0x3e8] sm:$0xff]
        %v6204 = vld [vmem:[%s6085 + $0x3f0] sm:$0xff]
        %v6205 = vld [vmem:[%s6085 + $0x3f8] sm:$0xff]
        %v6206 = vld [vmem:[%s6085 + $0x400] sm:$0xff]
        %v6207 = vld [vmem:[%s6085 + $0x408] sm:$0xff]
        %v6208 = vld [vmem:[%s6085 + $0x410] sm:$0xff]
        %v6209 = vld [vmem:[%s6085 + $0x418] sm:$0xff]
        %v6210 = vld [vmem:[%s6085 + $0x420] sm:$0xff]
        %v6211 = vld [vmem:[%s6085 + $0x428] sm:$0xff]
        %v6212 = vld [vmem:[%s6085 + $0x430] sm:$0xff]
        %v6213 = vld [vmem:[%s6085 + $0x438] sm:$0xff]
        %v6214 = vld [vmem:[%s6085 + $0x440] sm:$0xff]
        %v6215 = vld [vmem:[%s6085 + $0x448] sm:$0xff]
        %v6216 = vld [vmem:[%s6085 + $0x450] sm:$0xff]
        %v6217 = vld [vmem:[%s6085 + $0x458] sm:$0xff]
        %v6218 = vld [vmem:[%s6085 + $0x460] sm:$0xff]
        %v6219 = vld [vmem:[%s6085 + $0x468] sm:$0xff]
        %v6220 = vld [vmem:[%s6085 + $0x470] sm:$0xff]
        %v6221 = vld [vmem:[%s6085 + $0x478] sm:$0xff]
        %v6222 = vld [vmem:[%s6085 + $0x480] sm:$0xff]
        %v6223 = vld [vmem:[%s6085 + $0x488] sm:$0xff]
        %v6224 = vld [vmem:[%s6085 + $0x490] sm:$0xff]
        %v6225 = vld [vmem:[%s6085 + $0x498] sm:$0xff]
        %v6226 = vld [vmem:[%s6085 + $0x4b0] sm:$0xff]
        %v6227 = vld [vmem:[%s6085 + $0x4b8] sm:$0xff]
        %v6228 = vld [vmem:[%s6085 + $0x4c0] sm:$0xff]
        %v6229 = vld [vmem:[%s6085 + $0x4c8] sm:$0xff]
        %v6230 = vld [vmem:[%s6085 + $0x4d0] sm:$0xff]
        %v6231 = vld [vmem:[%s6085 + $0x4d8] sm:$0xff]
        %v6232 = vld [vmem:[%s6085 + $0x4e0] sm:$0xff]
        %v6233 = vld [vmem:[%s6085 + $0x4e8] sm:$0xff]
        %v6234 = vld [vmem:[%s6085 + $0x4f0] sm:$0xff]
        %v6235 = vld [vmem:[%s6085 + $0x4f8] sm:$0xff]
        %v6236 = vld [vmem:[%s6085 + $0x500] sm:$0xff]
        %v6237 = vld [vmem:[%s6085 + $0x508] sm:$0xff]
        %v6238 = vld [vmem:[%s6085 + $0x510] sm:$0xff]
        %v6239 = vld [vmem:[%s6085 + $0x518] sm:$0xff]
        %v6240 = vld [vmem:[%s6085 + $0x520] sm:$0xff]
        %v6241 = vld [vmem:[%s6085 + $0x528] sm:$0xff]
        %v6242 = vld [vmem:[%s6085 + $0x530] sm:$0xff]
        %v6243 = vld [vmem:[%s6085 + $0x538] sm:$0xff]
        %v6244 = vld [vmem:[%s6085 + $0x540] sm:$0xff]
        %v6245 = vld [vmem:[%s6085 + $0x548] sm:$0xff]
        %v6246 = vld [vmem:[%s6085 + $0x550] sm:$0xff]
        %v6247 = vld [vmem:[%s6085 + $0x558] sm:$0xff]
        %v6248 = vld [vmem:[%s6085 + $0x560] sm:$0xff]
        %v6249 = vld [vmem:[%s6085 + $0x568] sm:$0xff]
        %v6250 = vld [vmem:[%s6085 + $0x570] sm:$0xff]
        %v6251 = vld [vmem:[%s6085 + $0x578] sm:$0xff]
        %v6252 = vld [vmem:[%s6085 + $0x580] sm:$0xff]
        %v6253 = vld [vmem:[%s6085 + $0x588] sm:$0xff]
        %v6254 = vld [vmem:[%s6085 + $0x5a0] sm:$0xff]
        %v6255 = vld [vmem:[%s6085 + $0x5a8] sm:$0xff]
        %v6256 = vld [vmem:[%s6085 + $0x5b0] sm:$0xff]
        %v6257 = vld [vmem:[%s6085 + $0x5b8] sm:$0xff]
        %v6258 = vld [vmem:[%s6085 + $0x5c0] sm:$0xff]
        %v6259 = vld [vmem:[%s6085 + $0x5c8] sm:$0xff]
        %v6260 = vld [vmem:[%s6085 + $0x5d0] sm:$0xff]
        %v6261 = vld [vmem:[%s6085 + $0x5d8] sm:$0xff]
        %v6262 = vld [vmem:[%s6085 + $0x5e0] sm:$0xff]
        %v6263 = vld [vmem:[%s6085 + $0x5e8] sm:$0xff]
        %v6264 = vld [vmem:[%s6085 + $0x5f0] sm:$0xff]
        %v6265 = vld [vmem:[%s6085 + $0x5f8] sm:$0xff]
        %v6266 = vld [vmem:[%s6085 + $0x600] sm:$0xff]
        %v6267 = vld [vmem:[%s6085 + $0x608] sm:$0xff]
        %v6268 = vld [vmem:[%s6085 + $0x610] sm:$0xff]
        %v6269 = vld [vmem:[%s6085 + $0x618] sm:$0xff]
        %v6270 = vld [vmem:[%s6085 + $0x620] sm:$0xff]
        %v6271 = vld [vmem:[%s6085 + $0x628] sm:$0xff]
        %v6272 = vld [vmem:[%s6085 + $0x630] sm:$0xff]
        %v6273 = vld [vmem:[%s6085 + $0x638] sm:$0xff]
        %v6274 = vld [vmem:[%s6085 + $0x640] sm:$0xff]
        %v6275 = vld [vmem:[%s6085 + $0x648] sm:$0xff]
        %v6276 = vld [vmem:[%s6085 + $0x650] sm:$0xff]
        %v6277 = vld [vmem:[%s6085 + $0x658] sm:$0xff]
        %v6278 = vld [vmem:[%s6085 + $0x660] sm:$0xff]
        %v6279 = vld [vmem:[%s6085 + $0x668] sm:$0xff]
        %v6280 = vld [vmem:[%s6085 + $0x670] sm:$0xff]
        %v6281 = vld [vmem:[%s6085 + $0x678] sm:$0xff]
        %v6282 = vld [vmem:[%s6085 + $0x690] sm:$0xff]
        %v6283 = vld [vmem:[%s6085 + $0x698] sm:$0xff]
        %v6284 = vld [vmem:[%s6085 + $0x6a0] sm:$0xff]
        %v6285 = vld [vmem:[%s6085 + $0x6a8] sm:$0xff]
        %v6286 = vld [vmem:[%s6085 + $0x6b0] sm:$0xff]
        %v6287 = vld [vmem:[%s6085 + $0x6b8] sm:$0xff]
        %v6288 = vld [vmem:[%s6085 + $0x6c0] sm:$0xff]
        %v6289 = vld [vmem:[%s6085 + $0x6c8] sm:$0xff]
        %v6290 = vld [vmem:[%s6085 + $0x6d0] sm:$0xff]
        %v6291 = vld [vmem:[%s6085 + $0x6d8] sm:$0xff]
        %v6292 = vld [vmem:[%s6085 + $0x6e0] sm:$0xff]
        %v6293 = vld [vmem:[%s6085 + $0x6e8] sm:$0xff]
        %v6294 = vld [vmem:[%s6085 + $0x6f0] sm:$0xff]
        %v6295 = vld [vmem:[%s6085 + $0x6f8] sm:$0xff]
        %v6296 = vld [vmem:[%s6085 + $0x700] sm:$0xff]
        %v6297 = vld [vmem:[%s6085 + $0x708] sm:$0xff]
        %v6298 = vld [vmem:[%s6085 + $0x710] sm:$0xff]
        %v6299 = vld [vmem:[%s6085 + $0x718] sm:$0xff]
        %v6300 = vld [vmem:[%s6085 + $0x720] sm:$0xff]
        %v6301 = vld [vmem:[%s6085 + $0x728] sm:$0xff]
        %v6302 = vld [vmem:[%s6085 + $0x730] sm:$0xff]
        %v6303 = vld [vmem:[%s6085 + $0x738] sm:$0xff]
        %v6304 = vld [vmem:[%s6085 + $0x740] sm:$0xff]
        %v6305 = vld [vmem:[%s6085 + $0x748] sm:$0xff]
        %v6306 = vld [vmem:[%s6085 + $0x750] sm:$0xff]
        %v6307 = vld [vmem:[%s6085 + $0x758] sm:$0xff]
        %v6308 = vld [vmem:[%s6085 + $0x760] sm:$0xff]
        %v6309 = vld [vmem:[%s6085 + $0x768] sm:$0xff]
        %v6310 = vld [vmem:[%s6085] sm:$0xfe]
        %v6311 = vld [vmem:[%s6085 + $0x8] sm:$0xfe]
        %v6312 = vld [vmem:[%s6085 + $0xe0] sm:$0x1]
        %v6313 = vld [vmem:[%s6085 + $0xe8] sm:$0x1]
        %v6314 = vld [vmem:[%s6085 + $0xf0] sm:$0xfe]
        %v6315 = vld [vmem:[%s6085 + $0xf8] sm:$0xfe]
        %v6316 = vld [vmem:[%s6085 + $0x1d0] sm:$0x1]
        %v6317 = vld [vmem:[%s6085 + $0x1d8] sm:$0x1]
        %v6318 = vld [vmem:[%s6085 + $0x1e0] sm:$0xfe]
        %v6319 = vld [vmem:[%s6085 + $0x1e8] sm:$0xfe]
        %v6320 = vld [vmem:[%s6085 + $0x2c0] sm:$0x1]
        %v6321 = vld [vmem:[%s6085 + $0x2c8] sm:$0x1]
        %v6322 = vld [vmem:[%s6085 + $0x2d0] sm:$0xfe]
        %v6323 = vld [vmem:[%s6085 + $0x2d8] sm:$0xfe]
        %v6324 = vld [vmem:[%s6085 + $0x3b0] sm:$0x1]
        %v6325 = vld [vmem:[%s6085 + $0x3b8] sm:$0x1]
        %v6326 = vld [vmem:[%s6085 + $0x3c0] sm:$0xfe]
        %v6327 = vld [vmem:[%s6085 + $0x3c8] sm:$0xfe]
        %v6328 = vld [vmem:[%s6085 + $0x4a0] sm:$0x1]
        %v6329 = vld [vmem:[%s6085 + $0x4a8] sm:$0x1]
        %v6330 = vld [vmem:[%s6085 + $0x4b0] sm:$0xfe]
        %v6331 = vld [vmem:[%s6085 + $0x4b8] sm:$0xfe]
        %v6332 = vld [vmem:[%s6085 + $0x590] sm:$0x1]
        %v6333 = vld [vmem:[%s6085 + $0x598] sm:$0x1]
        %v6334 = vld [vmem:[%s6085 + $0x5a0] sm:$0xfe]
        %v6335 = vld [vmem:[%s6085 + $0x5a8] sm:$0xfe]
        %v6336 = vld [vmem:[%s6085 + $0x680] sm:$0x1]
        %v6337 = vld [vmem:[%s6085 + $0x688] sm:$0x1]
        %v6338 = vld [vmem:[%s6085 + $0x690] sm:$0xfe]
        %v6339 = vld [vmem:[%s6085 + $0x698] sm:$0xfe]
        %v6340 = vld [vmem:[%s6085 + $0x770] sm:$0x1]
        %v6341 = vld [vmem:[%s6085 + $0x778] sm:$0x1]
        %v6582 = vrot.slane %v6310, 1
        %v6583 = vrot.slane %v6088, 1
        %v6584 = vsel %vm820, %v6582, %v6583
        %v6585 = vrot.slane %v6311, 1
        %v6586 = vrot.slane %v6089, 1
        %v6587 = vsel %vm820, %v6585, %v6586
        %v6588 = vrot.slane %v6090, 1
        %v6589 = vsel %vm820, %v6583, %v6588
        %v6590 = vrot.slane %v6091, 1
        %v6591 = vsel %vm820, %v6586, %v6590
        %v6592 = vrot.slane %v6092, 1
        %v6593 = vsel %vm820, %v6588, %v6592
        %v6594 = vrot.slane %v6093, 1
        %v6595 = vsel %vm820, %v6590, %v6594
        %v6596 = vrot.slane %v6094, 1
        %v6597 = vsel %vm820, %v6592, %v6596
        %v6598 = vrot.slane %v6095, 1
        %v6599 = vsel %vm820, %v6594, %v6598
        %v6600 = vrot.slane %v6096, 1
        %v6601 = vsel %vm820, %v6596, %v6600
        %v6602 = vrot.slane %v6097, 1
        %v6603 = vsel %vm820, %v6598, %v6602
        %v6604 = vrot.slane %v6098, 1
        %v6605 = vsel %vm820, %v6600, %v6604
        %v6606 = vrot.slane %v6099, 1
        %v6607 = vsel %vm820, %v6602, %v6606
        %v6608 = vrot.slane %v6100, 1
        %v6609 = vsel %vm820, %v6604, %v6608
        %v6610 = vrot.slane %v6101, 1
        %v6611 = vsel %vm820, %v6606, %v6610
        %v6612 = vrot.slane %v6102, 1
        %v6613 = vsel %vm820, %v6608, %v6612
        %v6614 = vrot.slane %v6103, 1
        %v6615 = vsel %vm820, %v6610, %v6614
        %v6616 = vrot.slane %v6104, 1
        %v6617 = vsel %vm820, %v6612, %v6616
        %v6618 = vrot.slane %v6105, 1
        %v6619 = vsel %vm820, %v6614, %v6618
        %v6620 = vrot.slane %v6106, 1
        %v6621 = vsel %vm820, %v6616, %v6620
        %v6622 = vrot.slane %v6107, 1
        %v6623 = vsel %vm820, %v6618, %v6622
        %v6624 = vrot.slane %v6108, 1
        %v6625 = vsel %vm820, %v6620, %v6624
        %v6626 = vrot.slane %v6109, 1
        %v6627 = vsel %vm820, %v6622, %v6626
        %v6628 = vrot.slane %v6110, 1
        %v6629 = vsel %vm820, %v6624, %v6628
        %v6630 = vrot.slane %v6111, 1
        %v6631 = vsel %vm820, %v6626, %v6630
        %v6632 = vrot.slane %v6112, 1
        %v6633 = vsel %vm820, %v6628, %v6632
        %v6634 = vrot.slane %v6113, 1
        %v6635 = vsel %vm820, %v6630, %v6634
        %v6636 = vrot.slane %v6312, 1
        %v6637 = vsel %vm820, %v6632, %v6636
        %v6638 = vrot.slane %v6313, 1
        %v6639 = vsel %vm820, %v6634, %v6638
        %v6640 = vrot.slane %v6314, 1
        %v6641 = vrot.slane %v6116, 1
        %v6642 = vsel %vm820, %v6640, %v6641
        %v6643 = vrot.slane %v6315, 1
        %v6644 = vrot.slane %v6117, 1
        %v6645 = vsel %vm820, %v6643, %v6644
        %v6646 = vrot.slane %v6118, 1
        %v6647 = vsel %vm820, %v6641, %v6646
        %v6648 = vrot.slane %v6119, 1
        %v6649 = vsel %vm820, %v6644, %v6648
        %v6650 = vrot.slane %v6120, 1
        %v6651 = vsel %vm820, %v6646, %v6650
        %v6652 = vrot.slane %v6121, 1
        %v6653 = vsel %vm820, %v6648, %v6652
        %v6654 = vrot.slane %v6122, 1
        %v6655 = vsel %vm820, %v6650, %v6654
        %v6656 = vrot.slane %v6123, 1
        %v6657 = vsel %vm820, %v6652, %v6656
        %v6658 = vrot.slane %v6124, 1
        %v6659 = vsel %vm820, %v6654, %v6658
        %v6660 = vrot.slane %v6125, 1
        %v6661 = vsel %vm820, %v6656, %v6660
        %v6662 = vrot.slane %v6126, 1
        %v6663 = vsel %vm820, %v6658, %v6662
        %v6664 = vrot.slane %v6127, 1
        %v6665 = vsel %vm820, %v6660, %v6664
        %v6666 = vrot.slane %v6128, 1
        %v6667 = vsel %vm820, %v6662, %v6666
        %v6668 = vrot.slane %v6129, 1
        %v6669 = vsel %vm820, %v6664, %v6668
        %v6670 = vrot.slane %v6130, 1
        %v6671 = vsel %vm820, %v6666, %v6670
        %v6672 = vrot.slane %v6131, 1
        %v6673 = vsel %vm820, %v6668, %v6672
        %v6674 = vrot.slane %v6132, 1
        %v6675 = vsel %vm820, %v6670, %v6674
        %v6676 = vrot.slane %v6133, 1
        %v6677 = vsel %vm820, %v6672, %v6676
        %v6678 = vrot.slane %v6134, 1
        %v6679 = vsel %vm820, %v6674, %v6678
        %v6680 = vrot.slane %v6135, 1
        %v6681 = vsel %vm820, %v6676, %v6680
        %v6682 = vrot.slane %v6136, 1
        %v6683 = vsel %vm820, %v6678, %v6682
        %v6684 = vrot.slane %v6137, 1
        %v6685 = vsel %vm820, %v6680, %v6684
        %v6686 = vrot.slane %v6138, 1
        %v6687 = vsel %vm820, %v6682, %v6686
        %v6688 = vrot.slane %v6139, 1
        %v6689 = vsel %vm820, %v6684, %v6688
        %v6690 = vrot.slane %v6140, 1
        %v6691 = vsel %vm820, %v6686, %v6690
        %v6692 = vrot.slane %v6141, 1
        %v6693 = vsel %vm820, %v6688, %v6692
        %v6694 = vrot.slane %v6316, 1
        %v6695 = vsel %vm820, %v6690, %v6694
        %v6696 = vrot.slane %v6317, 1
        %v6697 = vsel %vm820, %v6692, %v6696
        %v6698 = vrot.slane %v6318, 1
        %v6699 = vrot.slane %v6144, 1
        %v6700 = vsel %vm820, %v6698, %v6699
        %v6701 = vrot.slane %v6319, 1
        %v6702 = vrot.slane %v6145, 1
        %v6703 = vsel %vm820, %v6701, %v6702
        %v6704 = vrot.slane %v6146, 1
        %v6705 = vsel %vm820, %v6699, %v6704
        %v6706 = vrot.slane %v6147, 1
        %v6707 = vsel %vm820, %v6702, %v6706
        %v6708 = vrot.slane %v6148, 1
        %v6709 = vsel %vm820, %v6704, %v6708
        %v6710 = vrot.slane %v6149, 1
        %v6711 = vsel %vm820, %v6706, %v6710
        %v6712 = vrot.slane %v6150, 1
        %v6713 = vsel %vm820, %v6708, %v6712
        %v6714 = vrot.slane %v6151, 1
        %v6715 = vsel %vm820, %v6710, %v6714
        %v6716 = vrot.slane %v6152, 1
        %v6717 = vsel %vm820, %v6712, %v6716
        %v6718 = vrot.slane %v6153, 1
        %v6719 = vsel %vm820, %v6714, %v6718
        %v6720 = vrot.slane %v6154, 1
        %v6721 = vsel %vm820, %v6716, %v6720
        %v6722 = vrot.slane %v6155, 1
        %v6723 = vsel %vm820, %v6718, %v6722
        %v6724 = vrot.slane %v6156, 1
        %v6725 = vsel %vm820, %v6720, %v6724
        %v6726 = vrot.slane %v6157, 1
        %v6727 = vsel %vm820, %v6722, %v6726
        %v6728 = vrot.slane %v6158, 1
        %v6729 = vsel %vm820, %v6724, %v6728
        %v6730 = vrot.slane %v6159, 1
        %v6731 = vsel %vm820, %v6726, %v6730
        %v6732 = vrot.slane %v6160, 1
        %v6733 = vsel %vm820, %v6728, %v6732
        %v6734 = vrot.slane %v6161, 1
        %v6735 = vsel %vm820, %v6730, %v6734
        %v6736 = vrot.slane %v6162, 1
        %v6737 = vsel %vm820, %v6732, %v6736
        %v6738 = vrot.slane %v6163, 1
        %v6739 = vsel %vm820, %v6734, %v6738
        %v6740 = vrot.slane %v6164, 1
        %v6741 = vsel %vm820, %v6736, %v6740
        %v6742 = vrot.slane %v6165, 1
        %v6743 = vsel %vm820, %v6738, %v6742
        %v6744 = vrot.slane %v6166, 1
        %v6745 = vsel %vm820, %v6740, %v6744
        %v6746 = vrot.slane %v6167, 1
        %v6747 = vsel %vm820, %v6742, %v6746
        %v6748 = vrot.slane %v6168, 1
        %v6749 = vsel %vm820, %v6744, %v6748
        %v6750 = vrot.slane %v6169, 1
        %v6751 = vsel %vm820, %v6746, %v6750
        %v6752 = vrot.slane %v6320, 1
        %v6753 = vsel %vm820, %v6748, %v6752
        %v6754 = vrot.slane %v6321, 1
        %v6755 = vsel %vm820, %v6750, %v6754
        %v6756 = vrot.slane %v6322, 1
        %v6757 = vrot.slane %v6172, 1
        %v6758 = vsel %vm820, %v6756, %v6757
        %v6759 = vrot.slane %v6323, 1
        %v6760 = vrot.slane %v6173, 1
        %v6761 = vsel %vm820, %v6759, %v6760
        %v6762 = vrot.slane %v6174, 1
        %v6763 = vsel %vm820, %v6757, %v6762
        %v6764 = vrot.slane %v6175, 1
        %v6765 = vsel %vm820, %v6760, %v6764
        %v6766 = vrot.slane %v6176, 1
        %v6767 = vsel %vm820, %v6762, %v6766
        %v6768 = vrot.slane %v6177, 1
        %v6769 = vsel %vm820, %v6764, %v6768
        %v6770 = vrot.slane %v6178, 1
        %v6771 = vsel %vm820, %v6766, %v6770
        %v6772 = vrot.slane %v6179, 1
        %v6773 = vsel %vm820, %v6768, %v6772
        %v6774 = vrot.slane %v6180, 1
        %v6775 = vsel %vm820, %v6770, %v6774
        %v6776 = vrot.slane %v6181, 1
        %v6777 = vsel %vm820, %v6772, %v6776
        %v6778 = vrot.slane %v6182, 1
        %v6779 = vsel %vm820, %v6774, %v6778
        %v6780 = vrot.slane %v6183, 1
        %v6781 = vsel %vm820, %v6776, %v6780
        %v6782 = vrot.slane %v6184, 1
        %v6783 = vsel %vm820, %v6778, %v6782
        %v6784 = vrot.slane %v6185, 1
        %v6785 = vsel %vm820, %v6780, %v6784
        %v6786 = vrot.slane %v6186, 1
        %v6787 = vsel %vm820, %v6782, %v6786
        %v6788 = vrot.slane %v6187, 1
        %v6789 = vsel %vm820, %v6784, %v6788
        %v6790 = vrot.slane %v6188, 1
        %v6791 = vsel %vm820, %v6786, %v6790
        %v6792 = vrot.slane %v6189, 1
        %v6793 = vsel %vm820, %v6788, %v6792
        %v6794 = vrot.slane %v6190, 1
        %v6795 = vsel %vm820, %v6790, %v6794
        %v6796 = vrot.slane %v6191, 1
        %v6797 = vsel %vm820, %v6792, %v6796
        %v6798 = vrot.slane %v6192, 1
        %v6799 = vsel %vm820, %v6794, %v6798
        %v6800 = vrot.slane %v6193, 1
        %v6801 = vsel %vm820, %v6796, %v6800
        %v6802 = vrot.slane %v6194, 1
        %v6803 = vsel %vm820, %v6798, %v6802
        %v6804 = vrot.slane %v6195, 1
        %v6805 = vsel %vm820, %v6800, %v6804
        %v6806 = vrot.slane %v6196, 1
        %v6807 = vsel %vm820, %v6802, %v6806
        %v6808 = vrot.slane %v6197, 1
        %v6809 = vsel %vm820, %v6804, %v6808
        %v6810 = vrot.slane %v6324, 1
        %v6811 = vsel %vm820, %v6806, %v6810
        %v6812 = vrot.slane %v6325, 1
        %v6813 = vsel %vm820, %v6808, %v6812
        %v6814 = vrot.slane %v6326, 1
        %v6815 = vrot.slane %v6200, 1
        %v6816 = vsel %vm820, %v6814, %v6815
        %v6817 = vrot.slane %v6327, 1
        %v6818 = vrot.slane %v6201, 1
        %v6819 = vsel %vm820, %v6817, %v6818
        %v6820 = vrot.slane %v6202, 1
        %v6821 = vsel %vm820, %v6815, %v6820
        %v6822 = vrot.slane %v6203, 1
        %v6823 = vsel %vm820, %v6818, %v6822
        %v6824 = vrot.slane %v6204, 1
        %v6825 = vsel %vm820, %v6820, %v6824
        %v6826 = vrot.slane %v6205, 1
        %v6827 = vsel %vm820, %v6822, %v6826
        %v6828 = vrot.slane %v6206, 1
        %v6829 = vsel %vm820, %v6824, %v6828
        %v6830 = vrot.slane %v6207, 1
        %v6831 = vsel %vm820, %v6826, %v6830
        %v6832 = vrot.slane %v6208, 1
        %v6833 = vsel %vm820, %v6828, %v6832
        %v6834 = vrot.slane %v6209, 1
        %v6835 = vsel %vm820, %v6830, %v6834
        %v6836 = vrot.slane %v6210, 1
        %v6837 = vsel %vm820, %v6832, %v6836
        %v6838 = vrot.slane %v6211, 1
        %v6839 = vsel %vm820, %v6834, %v6838
        %v6840 = vrot.slane %v6212, 1
        %v6841 = vsel %vm820, %v6836, %v6840
        %v6842 = vrot.slane %v6213, 1
        %v6843 = vsel %vm820, %v6838, %v6842
        %v6844 = vrot.slane %v6214, 1
        %v6845 = vsel %vm820, %v6840, %v6844
        %v6846 = vrot.slane %v6215, 1
        %v6847 = vsel %vm820, %v6842, %v6846
        %v6848 = vrot.slane %v6216, 1
        %v6849 = vsel %vm820, %v6844, %v6848
        %v6850 = vrot.slane %v6217, 1
        %v6851 = vsel %vm820, %v6846, %v6850
        %v6852 = vrot.slane %v6218, 1
        %v6853 = vsel %vm820, %v6848, %v6852
        %v6854 = vrot.slane %v6219, 1
        %v6855 = vsel %vm820, %v6850, %v6854
        %v6856 = vrot.slane %v6220, 1
        %v6857 = vsel %vm820, %v6852, %v6856
        %v6858 = vrot.slane %v6221, 1
        %v6859 = vsel %vm820, %v6854, %v6858
        %v6860 = vrot.slane %v6222, 1
        %v6861 = vsel %vm820, %v6856, %v6860
        %v6862 = vrot.slane %v6223, 1
        %v6863 = vsel %vm820, %v6858, %v6862
        %v6864 = vrot.slane %v6224, 1
        %v6865 = vsel %vm820, %v6860, %v6864
        %v6866 = vrot.slane %v6225, 1
        %v6867 = vsel %vm820, %v6862, %v6866
        %v6868 = vrot.slane %v6328, 1
        %v6869 = vsel %vm820, %v6864, %v6868
        %v6870 = vrot.slane %v6329, 1
        %v6871 = vsel %vm820, %v6866, %v6870
        %v6872 = vrot.slane %v6330, 1
        %v6873 = vrot.slane %v6228, 1
        %v6874 = vsel %vm820, %v6872, %v6873
        %v6875 = vrot.slane %v6331, 1
        %v6876 = vrot.slane %v6229, 1
        %v6877 = vsel %vm820, %v6875, %v6876
        %v6878 = vrot.slane %v6230, 1
        %v6879 = vsel %vm820, %v6873, %v6878
        %v6880 = vrot.slane %v6231, 1
        %v6881 = vsel %vm820, %v6876, %v6880
        %v6882 = vrot.slane %v6232, 1
        %v6883 = vsel %vm820, %v6878, %v6882
        %v6884 = vrot.slane %v6233, 1
        %v6885 = vsel %vm820, %v6880, %v6884
        %v6886 = vrot.slane %v6234, 1
        %v6887 = vsel %vm820, %v6882, %v6886
        %v6888 = vrot.slane %v6235, 1
        %v6889 = vsel %vm820, %v6884, %v6888
        %v6890 = vrot.slane %v6236, 1
        %v6891 = vsel %vm820, %v6886, %v6890
        %v6892 = vrot.slane %v6237, 1
        %v6893 = vsel %vm820, %v6888, %v6892
        %v6894 = vrot.slane %v6238, 1
        %v6895 = vsel %vm820, %v6890, %v6894
        %v6896 = vrot.slane %v6239, 1
        %v6897 = vsel %vm820, %v6892, %v6896
        %v6898 = vrot.slane %v6240, 1
        %v6899 = vsel %vm820, %v6894, %v6898
        %v6900 = vrot.slane %v6241, 1
        %v6901 = vsel %vm820, %v6896, %v6900
        %v6902 = vrot.slane %v6242, 1
        %v6903 = vsel %vm820, %v6898, %v6902
        %v6904 = vrot.slane %v6243, 1
        %v6905 = vsel %vm820, %v6900, %v6904
        %v6906 = vrot.slane %v6244, 1
        %v6907 = vsel %vm820, %v6902, %v6906
        %v6908 = vrot.slane %v6245, 1
        %v6909 = vsel %vm820, %v6904, %v6908
        %v6910 = vrot.slane %v6246, 1
        %v6911 = vsel %vm820, %v6906, %v6910
        %v6912 = vrot.slane %v6247, 1
        %v6913 = vsel %vm820, %v6908, %v6912
        %v6914 = vrot.slane %v6248, 1
        %v6915 = vsel %vm820, %v6910, %v6914
        %v6916 = vrot.slane %v6249, 1
        %v6917 = vsel %vm820, %v6912, %v6916
        %v6918 = vrot.slane %v6250, 1
        %v6919 = vsel %vm820, %v6914, %v6918
        %v6920 = vrot.slane %v6251, 1
        %v6921 = vsel %vm820, %v6916, %v6920
        %v6922 = vrot.slane %v6252, 1
        %v6923 = vsel %vm820, %v6918, %v6922
        %v6924 = vrot.slane %v6253, 1
        %v6925 = vsel %vm820, %v6920, %v6924
        %v6926 = vrot.slane %v6332, 1
        %v6927 = vsel %vm820, %v6922, %v6926
        %v6928 = vrot.slane %v6333, 1
        %v6929 = vsel %vm820, %v6924, %v6928
        %v6930 = vrot.slane %v6334, 1
        %v6931 = vrot.slane %v6256, 1
        %v6932 = vsel %vm820, %v6930, %v6931
        %v6933 = vrot.slane %v6335, 1
        %v6934 = vrot.slane %v6257, 1
        %v6935 = vsel %vm820, %v6933, %v6934
        %v6936 = vrot.slane %v6258, 1
        %v6937 = vsel %vm820, %v6931, %v6936
        %v6938 = vrot.slane %v6259, 1
        %v6939 = vsel %vm820, %v6934, %v6938
        %v6940 = vrot.slane %v6260, 1
        %v6941 = vsel %vm820, %v6936, %v6940
        %v6942 = vrot.slane %v6261, 1
        %v6943 = vsel %vm820, %v6938, %v6942
        %v6944 = vrot.slane %v6262, 1
        %v6945 = vsel %vm820, %v6940, %v6944
        %v6946 = vrot.slane %v6263, 1
        %v6947 = vsel %vm820, %v6942, %v6946
        %v6948 = vrot.slane %v6264, 1
        %v6949 = vsel %vm820, %v6944, %v6948
        %v6950 = vrot.slane %v6265, 1
        %v6951 = vsel %vm820, %v6946, %v6950
        %v6952 = vrot.slane %v6266, 1
        %v6953 = vsel %vm820, %v6948, %v6952
        %v6954 = vrot.slane %v6267, 1
        %v6955 = vsel %vm820, %v6950, %v6954
        %v6956 = vrot.slane %v6268, 1
        %v6957 = vsel %vm820, %v6952, %v6956
        %v6958 = vrot.slane %v6269, 1
        %v6959 = vsel %vm820, %v6954, %v6958
        %v6960 = vrot.slane %v6270, 1
        %v6961 = vsel %vm820, %v6956, %v6960
        %v6962 = vrot.slane %v6271, 1
        %v6963 = vsel %vm820, %v6958, %v6962
        %v6964 = vrot.slane %v6272, 1
        %v6965 = vsel %vm820, %v6960, %v6964
        %v6966 = vrot.slane %v6273, 1
        %v6967 = vsel %vm820, %v6962, %v6966
        %v6968 = vrot.slane %v6274, 1
        %v6969 = vsel %vm820, %v6964, %v6968
        %v6970 = vrot.slane %v6275, 1
        %v6971 = vsel %vm820, %v6966, %v6970
        %v6972 = vrot.slane %v6276, 1
        %v6973 = vsel %vm820, %v6968, %v6972
        %v6974 = vrot.slane %v6277, 1
        %v6975 = vsel %vm820, %v6970, %v6974
        %v6976 = vrot.slane %v6278, 1
        %v6977 = vsel %vm820, %v6972, %v6976
        %v6978 = vrot.slane %v6279, 1
        %v6979 = vsel %vm820, %v6974, %v6978
        %v6980 = vrot.slane %v6280, 1
        %v6981 = vsel %vm820, %v6976, %v6980
        %v6982 = vrot.slane %v6281, 1
        %v6983 = vsel %vm820, %v6978, %v6982
        %v6984 = vrot.slane %v6336, 1
        %v6985 = vsel %vm820, %v6980, %v6984
        %v6986 = vrot.slane %v6337, 1
        %v6987 = vsel %vm820, %v6982, %v6986
        %v6988 = vrot.slane %v6338, 1
        %v6989 = vrot.slane %v6284, 1
        %v6990 = vsel %vm820, %v6988, %v6989
        %v6991 = vrot.slane %v6339, 1
        %v6992 = vrot.slane %v6285, 1
        %v6993 = vsel %vm820, %v6991, %v6992
        %v6994 = vrot.slane %v6286, 1
        %v6995 = vsel %vm820, %v6989, %v6994
        %v6996 = vrot.slane %v6287, 1
        %v6997 = vsel %vm820, %v6992, %v6996
        %v6998 = vrot.slane %v6288, 1
        %v6999 = vsel %vm820, %v6994, %v6998
        %v7000 = vrot.slane %v6289, 1
        %v7001 = vsel %vm820, %v6996, %v7000
        %v7002 = vrot.slane %v6290, 1
        %v7003 = vsel %vm820, %v6998, %v7002
        %v7004 = vrot.slane %v6291, 1
        %v7005 = vsel %vm820, %v7000, %v7004
        %v7006 = vrot.slane %v6292, 1
        %v7007 = vsel %vm820, %v7002, %v7006
        %v7008 = vrot.slane %v6293, 1
        %v7009 = vsel %vm820, %v7004, %v7008
        %v7010 = vrot.slane %v6294, 1
        %v7011 = vsel %vm820, %v7006, %v7010
        %v7012 = vrot.slane %v6295, 1
        %v7013 = vsel %vm820, %v7008, %v7012
        %v7014 = vrot.slane %v6296, 1
        %v7015 = vsel %vm820, %v7010, %v7014
        %v7016 = vrot.slane %v6297, 1
        %v7017 = vsel %vm820, %v7012, %v7016
        %v7018 = vrot.slane %v6298, 1
        %v7019 = vsel %vm820, %v7014, %v7018
        %v7020 = vrot.slane %v6299, 1
        %v7021 = vsel %vm820, %v7016, %v7020
        %v7022 = vrot.slane %v6300, 1
        %v7023 = vsel %vm820, %v7018, %v7022
        %v7024 = vrot.slane %v6301, 1
        %v7025 = vsel %vm820, %v7020, %v7024
        %v7026 = vrot.slane %v6302, 1
        %v7027 = vsel %vm820, %v7022, %v7026
        %v7028 = vrot.slane %v6303, 1
        %v7029 = vsel %vm820, %v7024, %v7028
        %v7030 = vrot.slane %v6304, 1
        %v7031 = vsel %vm820, %v7026, %v7030
        %v7032 = vrot.slane %v6305, 1
        %v7033 = vsel %vm820, %v7028, %v7032
        %v7034 = vrot.slane %v6306, 1
        %v7035 = vsel %vm820, %v7030, %v7034
        %v7036 = vrot.slane %v6307, 1
        %v7037 = vsel %vm820, %v7032, %v7036
        %v7038 = vrot.slane %v6308, 1
        %v7039 = vsel %vm820, %v7034, %v7038
        %v7040 = vrot.slane %v6309, 1
        %v7041 = vsel %vm820, %v7036, %v7040
        %v7042 = vrot.slane %v6340, 1
        %v7043 = vsel %vm820, %v7038, %v7042
        %v7044 = vrot.slane %v6341, 1
        %v7045 = vsel %vm820, %v7040, %v7044
        %7270 = vmatprep.subr.mxu0 0.0
        %7271 = vmatpush1.msra.mxu0 %v1525
        %7272 = vmatprep.subr.mxu0 0.0
        %7273 = vmatpush1.msra.mxu0 %v1524
        %7274 = vmatprep.subr.mxu0 0.0
        %7275 = vmatpush1.msra.mxu0 %v1523
        %7276 = vmatprep.subr.mxu0 0.0
        %7277 = vmatpush1.msra.mxu0 %v1522
        %7278 = vmatprep.subr.mxu0 0.0
        %7279 = vmatpush1.msra.mxu0 %v1521
        %7280 = vmatprep.subr.mxu0 0.0
        %7281 = vmatpush1.msra.mxu0 %v1520
        %7282 = vmatprep.subr.mxu0 0.0
        %7283 = vmatpush1.msra.mxu0 %v1519
        %7284 = vmatprep.subr.mxu0 0.0
        %7285 = vmatpush1.msra.mxu0 %v1518
        %7286 = vmatprep.subr.mxu0 0.0
        %7287 = vmatpush1.msra.mxu0 %v1517
        %7288 = vmatprep.subr.mxu0 0.0
        %7289 = vmatpush1.msra.mxu0 %v1516
        %7290 = vmatprep.subr.mxu0 0.0
        %7291 = vmatpush1.msra.mxu0 %v1515
        %7292 = vmatprep.subr.mxu0 0.0
        %7293 = vmatpush1.msra.mxu0 %v1514
        %7294 = vmatprep.subr.mxu0 0.0
        %7295 = vmatpush1.msra.mxu0 %v1513
        %7296 = vmatprep.subr.mxu0 0.0
        %7297 = vmatpush1.msra.mxu0 %v1512
        %7298 = vmatprep.subr.mxu0 0.0
        %7299 = vmatpush1.msra.mxu0 %v1511
        %7300 = vmatprep.subr.mxu0 0.0
        %7301 = vmatpush1.msra.mxu0 %v1510
        %7302 = vmatprep.subr.mxu0 0.0
        %7303 = vmatpush2.msra.mxu0 %v1541
        %7304 = vmatprep.subr.mxu0 0.0
        %7305 = vmatpush2.msra.mxu0 %v1540
        %7306 = vmatprep.subr.mxu0 0.0
        %7307 = vmatpush2.msra.mxu0 %v1539
        %7308 = vmatprep.subr.mxu0 0.0
        %7309 = vmatpush2.msra.mxu0 %v1538
        %7310 = vmatprep.subr.mxu0 0.0
        %7311 = vmatpush2.msra.mxu0 %v1537
        %7312 = vmatprep.subr.mxu0 0.0
        %7313 = vmatpush2.msra.mxu0 %v1536
        %7314 = vmatprep.subr.mxu0 0.0
        %7315 = vmatpush2.msra.mxu0 %v1535
        %7316 = vmatprep.subr.mxu0 0.0
        %7317 = vmatpush2.msra.mxu0 %v1534
        %7318 = vmatprep.subr.mxu0 0.0
        %7319 = vmatpush2.msra.mxu0 %v1533
        %7320 = vmatprep.subr.mxu0 0.0
        %7321 = vmatpush2.msra.mxu0 %v1532
        %7322 = vmatprep.subr.mxu0 0.0
        %7323 = vmatpush2.msra.mxu0 %v1531
        %7324 = vmatprep.subr.mxu0 0.0
        %7325 = vmatpush2.msra.mxu0 %v1530
        %7326 = vmatprep.subr.mxu0 0.0
        %7327 = vmatpush2.msra.mxu0 %v1529
        %7328 = vmatprep.subr.mxu0 0.0
        %7329 = vmatpush2.msra.mxu0 %v1528
        %7330 = vmatprep.subr.mxu0 0.0
        %7331 = vmatpush2.msra.mxu0 %v1527
        %7332 = vmatprep.subr.mxu0 0.0
        %7333 = vmatpush2.msra.mxu0 %v1526
        %7334 = vmatprep.mubr.f32.mxu0 %v6587
        %7335 = vmatmul.mubr.f32.gmra.mxu0 %v6584
        %v7336 = vpop.f32.mrf.mxu0
        %v7337 = vadd.f32 0.0, %v7336
        %v7338 = vpop.f32.mrf.mxu0
        %7339 = vmatprep.mubr.f32.mxu0 %v6591
        %7340 = vmatmul.mubr.f32.gmra.mxu0 %v6589
        %v7341 = vpop.f32.mrf.mxu0
        %v7342 = vadd.f32 0.0, %v7341
        %v7343 = vpop.f32.mrf.mxu0
        %7344 = vmatprep.mubr.f32.mxu0 %v6595
        %7345 = vmatmul.mubr.f32.gmra.mxu0 %v6593
        %v7346 = vpop.f32.mrf.mxu0
        %v7347 = vpop.f32.mrf.mxu0
        %7348 = vmatprep.mubr.f32.mxu0 %v6599
        %7349 = vmatmul.mubr.f32.gmra.mxu0 %v6597
        %v7350 = vpop.f32.mrf.mxu0
        %v7351 = vpop.f32.mrf.mxu0
        %7352 = vmatprep.mubr.f32.mxu0 %v6603
        %7353 = vmatmul.mubr.f32.gmra.mxu0 %v6601
        %v7354 = vpop.f32.mrf.mxu0
        %v7355 = vadd.f32 0.0, %v7354
        %v7356 = vpop.f32.mrf.mxu0
        %7357 = vmatprep.mubr.f32.mxu0 %v6607
        %7358 = vmatmul.mubr.f32.gmra.mxu0 %v6605
        %v7359 = vpop.f32.mrf.mxu0
        %v7360 = vadd.f32 0.0, %v7359
        %v7361 = vpop.f32.mrf.mxu0
        %7362 = vmatprep.mubr.f32.mxu0 %v6611
        %7363 = vmatmul.mubr.f32.gmra.mxu0 %v6609
        %v7364 = vpop.f32.mrf.mxu0
        %v7365 = vpop.f32.mrf.mxu0
        %7366 = vmatprep.mubr.f32.mxu0 %v6615
        %7367 = vmatmul.mubr.f32.gmra.mxu0 %v6613
        %v7368 = vpop.f32.mrf.mxu0
        %v7369 = vpop.f32.mrf.mxu0
        %7370 = vmatprep.mubr.f32.mxu0 %v6619
        %7371 = vmatmul.mubr.f32.gmra.mxu0 %v6617
        %v7372 = vpop.f32.mrf.mxu0
        %v7373 = vadd.f32 0.0, %v7372
        %v7374 = vpop.f32.mrf.mxu0
        %7375 = vmatprep.mubr.f32.mxu0 %v6623
        %7376 = vmatmul.mubr.f32.gmra.mxu0 %v6621
        %v7377 = vpop.f32.mrf.mxu0
        %v7378 = vadd.f32 0.0, %v7377
        %v7379 = vpop.f32.mrf.mxu0
        %7380 = vmatprep.mubr.f32.mxu0 %v6627
        %7381 = vmatmul.mubr.f32.gmra.mxu0 %v6625
        %v7382 = vpop.f32.mrf.mxu0
        %v7383 = vpop.f32.mrf.mxu0
        %7384 = vmatprep.mubr.f32.mxu0 %v6631
        %7385 = vmatmul.mubr.f32.gmra.mxu0 %v6629
        %v7386 = vpop.f32.mrf.mxu0
        %v7387 = vpop.f32.mrf.mxu0
        %7388 = vmatprep.mubr.f32.mxu0 %v6635
        %7389 = vmatmul.mubr.f32.gmra.mxu0 %v6633
        %v7390 = vpop.f32.mrf.mxu0
        %v7391 = vadd.f32 0.0, %v7390
        %v7392 = vpop.f32.mrf.mxu0
        %7393 = vmatprep.mubr.f32.mxu0 %v6639
        %7394 = vmatmul.mubr.f32.gmra.mxu0 %v6637
        %v7395 = vpop.f32.mrf.mxu0
        %v7396 = vadd.f32 0.0, %v7395
        %v7397 = vpop.f32.mrf.mxu0
        %7398 = vmatprep.mubr.f32.mxu0 %v6645
        %7399 = vmatmul.mubr.f32.gmra.mxu0 %v6642
        %v7400 = vpop.f32.mrf.mxu0
        %v7401 = vadd.f32 0.0, %v7400
        %v7402 = vpop.f32.mrf.mxu0
        %7403 = vmatprep.mubr.f32.mxu0 %v6649
        %7404 = vmatmul.mubr.f32.gmra.mxu0 %v6647
        %v7405 = vpop.f32.mrf.mxu0
        %v7406 = vadd.f32 0.0, %v7405
        %v7407 = vpop.f32.mrf.mxu0
        %7408 = vmatprep.mubr.f32.mxu0 %v6653
        %7409 = vmatmul.mubr.f32.gmra.mxu0 %v6651
        %v7410 = vpop.f32.mrf.mxu0
        %v7411 = vpop.f32.mrf.mxu0
        %7412 = vmatprep.mubr.f32.mxu0 %v6657
        %7413 = vmatmul.mubr.f32.gmra.mxu0 %v6655
        %v7414 = vpop.f32.mrf.mxu0
        %v7415 = vpop.f32.mrf.mxu0
        %7416 = vmatprep.mubr.f32.mxu0 %v6661
        %7417 = vmatmul.mubr.f32.gmra.mxu0 %v6659
        %v7418 = vpop.f32.mrf.mxu0
        %v7419 = vadd.f32 0.0, %v7418
        %v7420 = vpop.f32.mrf.mxu0
        %7421 = vmatprep.mubr.f32.mxu0 %v6665
        %7422 = vmatmul.mubr.f32.gmra.mxu0 %v6663
        %v7423 = vpop.f32.mrf.mxu0
        %v7424 = vadd.f32 0.0, %v7423
        %v7425 = vpop.f32.mrf.mxu0
        %7426 = vmatprep.mubr.f32.mxu0 %v6669
        %7427 = vmatmul.mubr.f32.gmra.mxu0 %v6667
        %v7428 = vpop.f32.mrf.mxu0
        %v7429 = vpop.f32.mrf.mxu0
        %7430 = vmatprep.mubr.f32.mxu0 %v6673
        %7431 = vmatmul.mubr.f32.gmra.mxu0 %v6671
        %v7432 = vpop.f32.mrf.mxu0
        %v7433 = vpop.f32.mrf.mxu0
        %7434 = vmatprep.mubr.f32.mxu0 %v6677
        %7435 = vmatmul.mubr.f32.gmra.mxu0 %v6675
        %v7436 = vpop.f32.mrf.mxu0
        %v7437 = vadd.f32 0.0, %v7436
        %v7438 = vpop.f32.mrf.mxu0
        %7439 = vmatprep.mubr.f32.mxu0 %v6681
        %7440 = vmatmul.mubr.f32.gmra.mxu0 %v6679
        %v7441 = vpop.f32.mrf.mxu0
        %v7442 = vadd.f32 0.0, %v7441
        %v7443 = vpop.f32.mrf.mxu0
        %7444 = vmatprep.mubr.f32.mxu0 %v6685
        %7445 = vmatmul.mubr.f32.gmra.mxu0 %v6683
        %v7446 = vpop.f32.mrf.mxu0
        %v7447 = vpop.f32.mrf.mxu0
        %7448 = vmatprep.mubr.f32.mxu0 %v6689
        %7449 = vmatmul.mubr.f32.gmra.mxu0 %v6687
        %v7450 = vpop.f32.mrf.mxu0
        %v7451 = vpop.f32.mrf.mxu0
        %7452 = vmatprep.mubr.f32.mxu0 %v6693
        %7453 = vmatmul.mubr.f32.gmra.mxu0 %v6691
        %v7454 = vpop.f32.mrf.mxu0
        %v7455 = vadd.f32 0.0, %v7454
        %v7456 = vpop.f32.mrf.mxu0
        %7457 = vmatprep.mubr.f32.mxu0 %v6697
        %7458 = vmatmul.mubr.f32.gmra.mxu0 %v6695
        %v7459 = vpop.f32.mrf.mxu0
        %v7460 = vadd.f32 0.0, %v7459
        %v7461 = vpop.f32.mrf.mxu0
        %7462 = vmatprep.mubr.f32.mxu0 %v6703
        %7463 = vmatmul.mubr.f32.gmra.mxu0 %v6700
        %v7464 = vpop.f32.mrf.mxu0
        %v7465 = vadd.f32 0.0, %v7464
        %v7466 = vpop.f32.mrf.mxu0
        %7467 = vmatprep.mubr.f32.mxu0 %v6707
        %7468 = vmatmul.mubr.f32.gmra.mxu0 %v6705
        %v7469 = vpop.f32.mrf.mxu0
        %v7470 = vadd.f32 0.0, %v7469
        %v7471 = vpop.f32.mrf.mxu0
        %7472 = vmatprep.mubr.f32.mxu0 %v6711
        %7473 = vmatmul.mubr.f32.gmra.mxu0 %v6709
        %v7474 = vpop.f32.mrf.mxu0
        %v7475 = vpop.f32.mrf.mxu0
        %7476 = vmatprep.mubr.f32.mxu0 %v6715
        %7477 = vmatmul.mubr.f32.gmra.mxu0 %v6713
        %v7478 = vpop.f32.mrf.mxu0
        %v7479 = vpop.f32.mrf.mxu0
        %7480 = vmatprep.mubr.f32.mxu0 %v6719
        %7481 = vmatmul.mubr.f32.gmra.mxu0 %v6717
        %v7482 = vpop.f32.mrf.mxu0
        %v7483 = vadd.f32 0.0, %v7482
        %v7484 = vpop.f32.mrf.mxu0
        %7485 = vmatprep.mubr.f32.mxu0 %v6723
        %7486 = vmatmul.mubr.f32.gmra.mxu0 %v6721
        %v7487 = vpop.f32.mrf.mxu0
        %v7488 = vadd.f32 0.0, %v7487
        %v7489 = vpop.f32.mrf.mxu0
        %7490 = vmatprep.mubr.f32.mxu0 %v6727
        %7491 = vmatmul.mubr.f32.gmra.mxu0 %v6725
        %v7492 = vpop.f32.mrf.mxu0
        %v7493 = vpop.f32.mrf.mxu0
        %7494 = vmatprep.mubr.f32.mxu0 %v6731
        %7495 = vmatmul.mubr.f32.gmra.mxu0 %v6729
        %v7496 = vpop.f32.mrf.mxu0
        %v7497 = vpop.f32.mrf.mxu0
        %7498 = vmatprep.mubr.f32.mxu0 %v6735
        %7499 = vmatmul.mubr.f32.gmra.mxu0 %v6733
        %v7500 = vpop.f32.mrf.mxu0
        %v7501 = vadd.f32 0.0, %v7500
        %v7502 = vpop.f32.mrf.mxu0
        %7503 = vmatprep.mubr.f32.mxu0 %v6739
        %7504 = vmatmul.mubr.f32.gmra.mxu0 %v6737
        %v7505 = vpop.f32.mrf.mxu0
        %v7506 = vadd.f32 0.0, %v7505
        %v7507 = vpop.f32.mrf.mxu0
        %7508 = vmatprep.mubr.f32.mxu0 %v6743
        %7509 = vmatmul.mubr.f32.gmra.mxu0 %v6741
        %v7510 = vpop.f32.mrf.mxu0
        %v7511 = vpop.f32.mrf.mxu0
        %7512 = vmatprep.mubr.f32.mxu0 %v6747
        %7513 = vmatmul.mubr.f32.gmra.mxu0 %v6745
        %v7514 = vpop.f32.mrf.mxu0
        %v7515 = vpop.f32.mrf.mxu0
        %7516 = vmatprep.mubr.f32.mxu0 %v6751
        %7517 = vmatmul.mubr.f32.gmra.mxu0 %v6749
        %v7518 = vpop.f32.mrf.mxu0
        %v7519 = vadd.f32 0.0, %v7518
        %v7520 = vpop.f32.mrf.mxu0
        %7521 = vmatprep.mubr.f32.mxu0 %v6755
        %7522 = vmatmul.mubr.f32.gmra.mxu0 %v6753
        %v7523 = vpop.f32.mrf.mxu0
        %v7524 = vadd.f32 0.0, %v7523
        %v7525 = vpop.f32.mrf.mxu0
        %7526 = vmatprep.mubr.f32.mxu0 %v6761
        %7527 = vmatmul.mubr.f32.gmra.mxu0 %v6758
        %v7528 = vpop.f32.mrf.mxu0
        %v7529 = vadd.f32 0.0, %v7528
        %v7530 = vpop.f32.mrf.mxu0
        %7531 = vmatprep.mubr.f32.mxu0 %v6765
        %7532 = vmatmul.mubr.f32.gmra.mxu0 %v6763
        %v7533 = vpop.f32.mrf.mxu0
        %v7534 = vadd.f32 0.0, %v7533
        %v7535 = vpop.f32.mrf.mxu0
        %7536 = vmatprep.mubr.f32.mxu0 %v6769
        %7537 = vmatmul.mubr.f32.gmra.mxu0 %v6767
        %v7538 = vpop.f32.mrf.mxu0
        %v7539 = vpop.f32.mrf.mxu0
        %7540 = vmatprep.mubr.f32.mxu0 %v6773
        %7541 = vmatmul.mubr.f32.gmra.mxu0 %v6771
        %v7542 = vpop.f32.mrf.mxu0
        %v7543 = vpop.f32.mrf.mxu0
        %7544 = vmatprep.mubr.f32.mxu0 %v6777
        %7545 = vmatmul.mubr.f32.gmra.mxu0 %v6775
        %v7546 = vpop.f32.mrf.mxu0
        %v7547 = vadd.f32 0.0, %v7546
        %v7548 = vpop.f32.mrf.mxu0
        %7549 = vmatprep.mubr.f32.mxu0 %v6781
        %7550 = vmatmul.mubr.f32.gmra.mxu0 %v6779
        %v7551 = vpop.f32.mrf.mxu0
        %v7552 = vadd.f32 0.0, %v7551
        %v7553 = vpop.f32.mrf.mxu0
        %7554 = vmatprep.mubr.f32.mxu0 %v6785
        %7555 = vmatmul.mubr.f32.gmra.mxu0 %v6783
        %v7556 = vpop.f32.mrf.mxu0
        %v7557 = vpop.f32.mrf.mxu0
        %7558 = vmatprep.mubr.f32.mxu0 %v6789
        %7559 = vmatmul.mubr.f32.gmra.mxu0 %v6787
        %v7560 = vpop.f32.mrf.mxu0
        %v7561 = vpop.f32.mrf.mxu0
        %7562 = vmatprep.mubr.f32.mxu0 %v6793
        %7563 = vmatmul.mubr.f32.gmra.mxu0 %v6791
        %v7564 = vpop.f32.mrf.mxu0
        %v7565 = vadd.f32 0.0, %v7564
        %v7566 = vpop.f32.mrf.mxu0
        %7567 = vmatprep.mubr.f32.mxu0 %v6797
        %7568 = vmatmul.mubr.f32.gmra.mxu0 %v6795
        %v7569 = vpop.f32.mrf.mxu0
        %v7570 = vadd.f32 0.0, %v7569
        %v7571 = vpop.f32.mrf.mxu0
        %7572 = vmatprep.mubr.f32.mxu0 %v6801
        %7573 = vmatmul.mubr.f32.gmra.mxu0 %v6799
        %v7574 = vpop.f32.mrf.mxu0
        %v7575 = vpop.f32.mrf.mxu0
        %7576 = vmatprep.mubr.f32.mxu0 %v6805
        %7577 = vmatmul.mubr.f32.gmra.mxu0 %v6803
        %v7578 = vpop.f32.mrf.mxu0
        %v7579 = vpop.f32.mrf.mxu0
        %7580 = vmatprep.mubr.f32.mxu0 %v6809
        %7581 = vmatmul.mubr.f32.gmra.mxu0 %v6807
        %v7582 = vpop.f32.mrf.mxu0
        %v7583 = vadd.f32 0.0, %v7582
        %v7584 = vpop.f32.mrf.mxu0
        %7585 = vmatprep.mubr.f32.mxu0 %v6813
        %7586 = vmatmul.mubr.f32.gmra.mxu0 %v6811
        %v7587 = vpop.f32.mrf.mxu0
        %v7588 = vadd.f32 0.0, %v7587
        %v7589 = vpop.f32.mrf.mxu0
        %7590 = vmatprep.mubr.f32.mxu0 %v6819
        %7591 = vmatmul.mubr.f32.gmra.mxu0 %v6816
        %v7592 = vpop.f32.mrf.mxu0
        %v7593 = vadd.f32 0.0, %v7592
        %v7594 = vpop.f32.mrf.mxu0
        %7595 = vmatprep.mubr.f32.mxu0 %v6823
        %7596 = vmatmul.mubr.f32.gmra.mxu0 %v6821
        %v7597 = vpop.f32.mrf.mxu0
        %v7598 = vadd.f32 0.0, %v7597
        %v7599 = vpop.f32.mrf.mxu0
        %7600 = vmatprep.mubr.f32.mxu0 %v6827
        %7601 = vmatmul.mubr.f32.gmra.mxu0 %v6825
        %v7602 = vpop.f32.mrf.mxu0
        %v7603 = vpop.f32.mrf.mxu0
        %7604 = vmatprep.mubr.f32.mxu0 %v6831
        %7605 = vmatmul.mubr.f32.gmra.mxu0 %v6829
        %v7606 = vpop.f32.mrf.mxu0
        %v7607 = vpop.f32.mrf.mxu0
        %7608 = vmatprep.mubr.f32.mxu0 %v6835
        %7609 = vmatmul.mubr.f32.gmra.mxu0 %v6833
        %v7610 = vpop.f32.mrf.mxu0
        %v7611 = vadd.f32 0.0, %v7610
        %v7612 = vpop.f32.mrf.mxu0
        %7613 = vmatprep.mubr.f32.mxu0 %v6839
        %7614 = vmatmul.mubr.f32.gmra.mxu0 %v6837
        %v7615 = vpop.f32.mrf.mxu0
        %v7616 = vadd.f32 0.0, %v7615
        %v7617 = vpop.f32.mrf.mxu0
        %7618 = vmatprep.mubr.f32.mxu0 %v6843
        %7619 = vmatmul.mubr.f32.gmra.mxu0 %v6841
        %v7620 = vpop.f32.mrf.mxu0
        %v7621 = vpop.f32.mrf.mxu0
        %7622 = vmatprep.mubr.f32.mxu0 %v6847
        %7623 = vmatmul.mubr.f32.gmra.mxu0 %v6845
        %v7624 = vpop.f32.mrf.mxu0
        %v7625 = vpop.f32.mrf.mxu0
        %7626 = vmatprep.mubr.f32.mxu0 %v6851
        %7627 = vmatmul.mubr.f32.gmra.mxu0 %v6849
        %v7628 = vpop.f32.mrf.mxu0
        %v7629 = vadd.f32 0.0, %v7628
        %v7630 = vpop.f32.mrf.mxu0
        %7631 = vmatprep.mubr.f32.mxu0 %v6855
        %7632 = vmatmul.mubr.f32.gmra.mxu0 %v6853
        %v7633 = vpop.f32.mrf.mxu0
        %v7634 = vadd.f32 0.0, %v7633
        %v7635 = vpop.f32.mrf.mxu0
        %7636 = vmatprep.mubr.f32.mxu0 %v6859
        %7637 = vmatmul.mubr.f32.gmra.mxu0 %v6857
        %v7638 = vpop.f32.mrf.mxu0
        %v7639 = vpop.f32.mrf.mxu0
        %7640 = vmatprep.mubr.f32.mxu0 %v6863
        %7641 = vmatmul.mubr.f32.gmra.mxu0 %v6861
        %v7642 = vpop.f32.mrf.mxu0
        %v7643 = vpop.f32.mrf.mxu0
        %7644 = vmatprep.mubr.f32.mxu0 %v6867
        %7645 = vmatmul.mubr.f32.gmra.mxu0 %v6865
        %v7646 = vpop.f32.mrf.mxu0
        %v7647 = vadd.f32 0.0, %v7646
        %v7648 = vpop.f32.mrf.mxu0
        %7649 = vmatprep.mubr.f32.mxu0 %v6871
        %7650 = vmatmul.mubr.f32.gmra.mxu0 %v6869
        %v7651 = vpop.f32.mrf.mxu0
        %v7652 = vadd.f32 0.0, %v7651
        %v7653 = vpop.f32.mrf.mxu0
        %7654 = vmatprep.mubr.f32.mxu0 %v6877
        %7655 = vmatmul.mubr.f32.gmra.mxu0 %v6874
        %v7656 = vpop.f32.mrf.mxu0
        %v7657 = vadd.f32 0.0, %v7656
        %v7658 = vpop.f32.mrf.mxu0
        %7659 = vmatprep.mubr.f32.mxu0 %v6881
        %7660 = vmatmul.mubr.f32.gmra.mxu0 %v6879
        %v7661 = vpop.f32.mrf.mxu0
        %v7662 = vadd.f32 0.0, %v7661
        %v7663 = vpop.f32.mrf.mxu0
        %7664 = vmatprep.mubr.f32.mxu0 %v6885
        %7665 = vmatmul.mubr.f32.gmra.mxu0 %v6883
        %v7666 = vpop.f32.mrf.mxu0
        %v7667 = vpop.f32.mrf.mxu0
        %7668 = vmatprep.mubr.f32.mxu0 %v6889
        %7669 = vmatmul.mubr.f32.gmra.mxu0 %v6887
        %v7670 = vpop.f32.mrf.mxu0
        %v7671 = vpop.f32.mrf.mxu0
        %7672 = vmatprep.mubr.f32.mxu0 %v6893
        %7673 = vmatmul.mubr.f32.gmra.mxu0 %v6891
        %v7674 = vpop.f32.mrf.mxu0
        %v7675 = vadd.f32 0.0, %v7674
        %v7676 = vpop.f32.mrf.mxu0
        %7677 = vmatprep.mubr.f32.mxu0 %v6897
        %7678 = vmatmul.mubr.f32.gmra.mxu0 %v6895
        %v7679 = vpop.f32.mrf.mxu0
        %v7680 = vadd.f32 0.0, %v7679
        %v7681 = vpop.f32.mrf.mxu0
        %7682 = vmatprep.mubr.f32.mxu0 %v6901
        %7683 = vmatmul.mubr.f32.gmra.mxu0 %v6899
        %v7684 = vpop.f32.mrf.mxu0
        %v7685 = vpop.f32.mrf.mxu0
        %7686 = vmatprep.mubr.f32.mxu0 %v6905
        %7687 = vmatmul.mubr.f32.gmra.mxu0 %v6903
        %v7688 = vpop.f32.mrf.mxu0
        %v7689 = vpop.f32.mrf.mxu0
        %7690 = vmatprep.mubr.f32.mxu0 %v6909
        %7691 = vmatmul.mubr.f32.gmra.mxu0 %v6907
        %v7692 = vpop.f32.mrf.mxu0
        %v7693 = vadd.f32 0.0, %v7692
        %v7694 = vpop.f32.mrf.mxu0
        %7695 = vmatprep.mubr.f32.mxu0 %v6913
        %7696 = vmatmul.mubr.f32.gmra.mxu0 %v6911
        %v7697 = vpop.f32.mrf.mxu0
        %v7698 = vadd.f32 0.0, %v7697
        %v7699 = vpop.f32.mrf.mxu0
        %7700 = vmatprep.mubr.f32.mxu0 %v6917
        %7701 = vmatmul.mubr.f32.gmra.mxu0 %v6915
        %v7702 = vpop.f32.mrf.mxu0
        %v7703 = vpop.f32.mrf.mxu0
        %7704 = vmatprep.mubr.f32.mxu0 %v6921
        %7705 = vmatmul.mubr.f32.gmra.mxu0 %v6919
        %v7706 = vpop.f32.mrf.mxu0
        %v7707 = vpop.f32.mrf.mxu0
        %7708 = vmatprep.mubr.f32.mxu0 %v6925
        %7709 = vmatmul.mubr.f32.gmra.mxu0 %v6923
        %v7710 = vpop.f32.mrf.mxu0
        %v7711 = vadd.f32 0.0, %v7710
        %v7712 = vpop.f32.mrf.mxu0
        %7713 = vmatprep.mubr.f32.mxu0 %v6929
        %7714 = vmatmul.mubr.f32.gmra.mxu0 %v6927
        %v7715 = vpop.f32.mrf.mxu0
        %v7716 = vadd.f32 0.0, %v7715
        %v7717 = vpop.f32.mrf.mxu0
        %7718 = vmatprep.mubr.f32.mxu0 %v6935
        %7719 = vmatmul.mubr.f32.gmra.mxu0 %v6932
        %v7720 = vpop.f32.mrf.mxu0
        %v7721 = vadd.f32 0.0, %v7720
        %v7722 = vpop.f32.mrf.mxu0
        %7723 = vmatprep.mubr.f32.mxu0 %v6939
        %7724 = vmatmul.mubr.f32.gmra.mxu0 %v6937
        %v7725 = vpop.f32.mrf.mxu0
        %v7726 = vadd.f32 0.0, %v7725
        %v7727 = vpop.f32.mrf.mxu0
        %7728 = vmatprep.mubr.f32.mxu0 %v6943
        %7729 = vmatmul.mubr.f32.gmra.mxu0 %v6941
        %v7730 = vpop.f32.mrf.mxu0
        %v7731 = vpop.f32.mrf.mxu0
        %7732 = vmatprep.mubr.f32.mxu0 %v6947
        %7733 = vmatmul.mubr.f32.gmra.mxu0 %v6945
        %v7734 = vpop.f32.mrf.mxu0
        %v7735 = vpop.f32.mrf.mxu0
        %7736 = vmatprep.mubr.f32.mxu0 %v6951
        %7737 = vmatmul.mubr.f32.gmra.mxu0 %v6949
        %v7738 = vpop.f32.mrf.mxu0
        %v7739 = vadd.f32 0.0, %v7738
        %v7740 = vpop.f32.mrf.mxu0
        %7741 = vmatprep.mubr.f32.mxu0 %v6955
        %7742 = vmatmul.mubr.f32.gmra.mxu0 %v6953
        %v7743 = vpop.f32.mrf.mxu0
        %v7744 = vadd.f32 0.0, %v7743
        %v7745 = vpop.f32.mrf.mxu0
        %7746 = vmatprep.mubr.f32.mxu0 %v6959
        %7747 = vmatmul.mubr.f32.gmra.mxu0 %v6957
        %v7748 = vpop.f32.mrf.mxu0
        %v7749 = vpop.f32.mrf.mxu0
        %7750 = vmatprep.mubr.f32.mxu0 %v6963
        %7751 = vmatmul.mubr.f32.gmra.mxu0 %v6961
        %v7752 = vpop.f32.mrf.mxu0
        %v7753 = vpop.f32.mrf.mxu0
        %7754 = vmatprep.mubr.f32.mxu0 %v6967
        %7755 = vmatmul.mubr.f32.gmra.mxu0 %v6965
        %v7756 = vpop.f32.mrf.mxu0
        %v7757 = vadd.f32 0.0, %v7756
        %v7758 = vpop.f32.mrf.mxu0
        %7759 = vmatprep.mubr.f32.mxu0 %v6971
        %7760 = vmatmul.mubr.f32.gmra.mxu0 %v6969
        %v7761 = vpop.f32.mrf.mxu0
        %v7762 = vadd.f32 0.0, %v7761
        %v7763 = vpop.f32.mrf.mxu0
        %7764 = vmatprep.mubr.f32.mxu0 %v6975
        %7765 = vmatmul.mubr.f32.gmra.mxu0 %v6973
        %v7766 = vpop.f32.mrf.mxu0
        %v7767 = vpop.f32.mrf.mxu0
        %7768 = vmatprep.mubr.f32.mxu0 %v6979
        %7769 = vmatmul.mubr.f32.gmra.mxu0 %v6977
        %v7770 = vpop.f32.mrf.mxu0
        %v7771 = vpop.f32.mrf.mxu0
        %7772 = vmatprep.mubr.f32.mxu0 %v6983
        %7773 = vmatmul.mubr.f32.gmra.mxu0 %v6981
        %v7774 = vpop.f32.mrf.mxu0
        %v7775 = vadd.f32 0.0, %v7774
        %v7776 = vpop.f32.mrf.mxu0
        %7777 = vmatprep.mubr.f32.mxu0 %v6987
        %7778 = vmatmul.mubr.f32.gmra.mxu0 %v6985
        %v7779 = vpop.f32.mrf.mxu0
        %v7780 = vadd.f32 0.0, %v7779
        %v7781 = vpop.f32.mrf.mxu0
        %7782 = vmatprep.mubr.f32.mxu0 %v6993
        %7783 = vmatmul.mubr.f32.gmra.mxu0 %v6990
        %v7784 = vpop.f32.mrf.mxu0
        %v7785 = vadd.f32 0.0, %v7784
        %v7786 = vpop.f32.mrf.mxu0
        %7787 = vmatprep.mubr.f32.mxu0 %v6997
        %7788 = vmatmul.mubr.f32.gmra.mxu0 %v6995
        %v7789 = vpop.f32.mrf.mxu0
        %v7790 = vadd.f32 0.0, %v7789
        %v7791 = vpop.f32.mrf.mxu0
        %7792 = vmatprep.mubr.f32.mxu0 %v7001
        %7793 = vmatmul.mubr.f32.gmra.mxu0 %v6999
        %v7794 = vpop.f32.mrf.mxu0
        %v7795 = vpop.f32.mrf.mxu0
        %7796 = vmatprep.mubr.f32.mxu0 %v7005
        %7797 = vmatmul.mubr.f32.gmra.mxu0 %v7003
        %v7798 = vpop.f32.mrf.mxu0
        %v7799 = vpop.f32.mrf.mxu0
        %7800 = vmatprep.mubr.f32.mxu0 %v7009
        %7801 = vmatmul.mubr.f32.gmra.mxu0 %v7007
        %v7802 = vpop.f32.mrf.mxu0
        %v7803 = vadd.f32 0.0, %v7802
        %v7804 = vpop.f32.mrf.mxu0
        %7805 = vmatprep.mubr.f32.mxu0 %v7013
        %7806 = vmatmul.mubr.f32.gmra.mxu0 %v7011
        %v7807 = vpop.f32.mrf.mxu0
        %v7808 = vadd.f32 0.0, %v7807
        %v7809 = vpop.f32.mrf.mxu0
        %7810 = vmatprep.mubr.f32.mxu0 %v7017
        %7811 = vmatmul.mubr.f32.gmra.mxu0 %v7015
        %v7812 = vpop.f32.mrf.mxu0
        %v7813 = vpop.f32.mrf.mxu0
        %7814 = vmatprep.mubr.f32.mxu0 %v7021
        %7815 = vmatmul.mubr.f32.gmra.mxu0 %v7019
        %v7816 = vpop.f32.mrf.mxu0
        %v7817 = vpop.f32.mrf.mxu0
        %7818 = vmatprep.mubr.f32.mxu0 %v7025
        %7819 = vmatmul.mubr.f32.gmra.mxu0 %v7023
        %v7820 = vpop.f32.mrf.mxu0
        %v7821 = vadd.f32 0.0, %v7820
        %v7822 = vpop.f32.mrf.mxu0
        %7823 = vmatprep.mubr.f32.mxu0 %v7029
        %7824 = vmatmul.mubr.f32.gmra.mxu0 %v7027
        %v7825 = vpop.f32.mrf.mxu0
        %v7826 = vadd.f32 0.0, %v7825
        %v7827 = vpop.f32.mrf.mxu0
        %7828 = vmatprep.mubr.f32.mxu0 %v7033
        %7829 = vmatmul.mubr.f32.gmra.mxu0 %v7031
        %v7830 = vpop.f32.mrf.mxu0
        %v7831 = vpop.f32.mrf.mxu0
        %7832 = vmatprep.mubr.f32.mxu0 %v7037
        %7833 = vmatmul.mubr.f32.gmra.mxu0 %v7035
        %v7834 = vpop.f32.mrf.mxu0
        %v7835 = vpop.f32.mrf.mxu0
        %7836 = vmatprep.mubr.f32.mxu0 %v7041
        %7837 = vmatmul.mubr.f32.gmra.mxu0 %v7039
        %v7838 = vpop.f32.mrf.mxu0
        %v7839 = vadd.f32 0.0, %v7838
        %v7840 = vpop.f32.mrf.mxu0
        %7841 = vmatprep.mubr.f32.mxu0 %v7045
        %7842 = vmatmul.mubr.f32.gmra.mxu0 %v7043
        %v7843 = vpop.f32.mrf.mxu0
        %v7844 = vadd.f32 0.0, %v7843
        %v7845 = vpop.f32.mrf.mxu0
        %7846 = vdwg.mxu0
        %7847 = vmatprep.subr.mxu0 0.0
        %7848 = vmatpush1.msra.mxu0 %v531
        %7849 = vmatprep.subr.mxu0 0.0
        %7850 = vmatpush1.msra.mxu0 %v530
        %7851 = vmatprep.subr.mxu0 0.0
        %7852 = vmatpush1.msra.mxu0 %v529
        %7853 = vmatprep.subr.mxu0 0.0
        %7854 = vmatpush1.msra.mxu0 %v528
        %7855 = vmatprep.subr.mxu0 0.0
        %7856 = vmatpush1.msra.mxu0 %v527
        %7857 = vmatprep.subr.mxu0 0.0
        %7858 = vmatpush1.msra.mxu0 %v526
        %7859 = vmatprep.subr.mxu0 0.0
        %7860 = vmatpush1.msra.mxu0 %v525
        %7861 = vmatprep.subr.mxu0 0.0
        %7862 = vmatpush1.msra.mxu0 %v524
        %7863 = vmatprep.subr.mxu0 0.0
        %7864 = vmatpush1.msra.mxu0 %v523
        %7865 = vmatprep.subr.mxu0 0.0
        %7866 = vmatpush1.msra.mxu0 %v522
        %7867 = vmatprep.subr.mxu0 0.0
        %7868 = vmatpush1.msra.mxu0 %v521
        %7869 = vmatprep.subr.mxu0 0.0
        %7870 = vmatpush1.msra.mxu0 %v520
        %7871 = vmatprep.subr.mxu0 0.0
        %7872 = vmatpush1.msra.mxu0 %v519
        %7873 = vmatprep.subr.mxu0 0.0
        %7874 = vmatpush1.msra.mxu0 %v518
        %7875 = vmatprep.subr.mxu0 0.0
        %7876 = vmatpush1.msra.mxu0 %v517
        %7877 = vmatprep.subr.mxu0 0.0
        %7878 = vmatpush1.msra.mxu0 %v516
        %7879 = vmatprep.subr.mxu0 0.0
        %7880 = vmatpush2.msra.mxu0 %v547
        %7881 = vmatprep.subr.mxu0 0.0
        %7882 = vmatpush2.msra.mxu0 %v546
        %7883 = vmatprep.subr.mxu0 0.0
        %7884 = vmatpush2.msra.mxu0 %v545
        %7885 = vmatprep.subr.mxu0 0.0
        %7886 = vmatpush2.msra.mxu0 %v544
        %7887 = vmatprep.subr.mxu0 0.0
        %7888 = vmatpush2.msra.mxu0 %v543
        %7889 = vmatprep.subr.mxu0 0.0
        %7890 = vmatpush2.msra.mxu0 %v542
        %7891 = vmatprep.subr.mxu0 0.0
        %7892 = vmatpush2.msra.mxu0 %v541
        %7893 = vmatprep.subr.mxu0 0.0
        %7894 = vmatpush2.msra.mxu0 %v540
        %7895 = vmatprep.subr.mxu0 0.0
        %7896 = vmatpush2.msra.mxu0 %v539
        %7897 = vmatprep.subr.mxu0 0.0
        %7898 = vmatpush2.msra.mxu0 %v538
        %7899 = vmatprep.subr.mxu0 0.0
        %7900 = vmatpush2.msra.mxu0 %v537
        %7901 = vmatprep.subr.mxu0 0.0
        %7902 = vmatpush2.msra.mxu0 %v536
        %7903 = vmatprep.subr.mxu0 0.0
        %7904 = vmatpush2.msra.mxu0 %v535
        %7905 = vmatprep.subr.mxu0 0.0
        %7906 = vmatpush2.msra.mxu0 %v534
        %7907 = vmatprep.subr.mxu0 0.0
        %7908 = vmatpush2.msra.mxu0 %v533
        %7909 = vmatprep.subr.mxu0 0.0
        %7910 = vmatpush2.msra.mxu0 %v532
        %7911 = vmatprep.mubr.f32.mxu0 %v6087
        %7912 = vmatmul.mubr.f32.gmra.mxu0 %v6086
        %v7913 = vpop.f32.mrf.mxu0
        %v7914 = vadd.f32 %v7337, %v7913
        %v7915 = vpop.f32.mrf.mxu0
        %7916 = vmatprep.mubr.f32.mxu0 %v6089
        %7917 = vmatmul.mubr.f32.gmra.mxu0 %v6088
        %v7918 = vpop.f32.mrf.mxu0
        %v7919 = vadd.f32 %v7342, %v7918
        %v7920 = vpop.f32.mrf.mxu0
        %7921 = vmatprep.mubr.f32.mxu0 %v6091
        %7922 = vmatmul.mubr.f32.gmra.mxu0 %v6090
        %v7923 = vpop.f32.mrf.mxu0
        %v7924 = vpop.f32.mrf.mxu0
        %7925 = vmatprep.mubr.f32.mxu0 %v6093
        %7926 = vmatmul.mubr.f32.gmra.mxu0 %v6092
        %v7927 = vpop.f32.mrf.mxu0
        %v7928 = vpop.f32.mrf.mxu0
        %7929 = vmatprep.mubr.f32.mxu0 %v6095
        %7930 = vmatmul.mubr.f32.gmra.mxu0 %v6094
        %v7931 = vpop.f32.mrf.mxu0
        %v7932 = vadd.f32 %v7355, %v7931
        %v7933 = vpop.f32.mrf.mxu0
        %7934 = vmatprep.mubr.f32.mxu0 %v6097
        %7935 = vmatmul.mubr.f32.gmra.mxu0 %v6096
        %v7936 = vpop.f32.mrf.mxu0
        %v7937 = vadd.f32 %v7360, %v7936
        %v7938 = vpop.f32.mrf.mxu0
        %7939 = vmatprep.mubr.f32.mxu0 %v6099
        %7940 = vmatmul.mubr.f32.gmra.mxu0 %v6098
        %v7941 = vpop.f32.mrf.mxu0
        %v7942 = vpop.f32.mrf.mxu0
        %7943 = vmatprep.mubr.f32.mxu0 %v6101
        %7944 = vmatmul.mubr.f32.gmra.mxu0 %v6100
        %v7945 = vpop.f32.mrf.mxu0
        %v7946 = vpop.f32.mrf.mxu0
        %7947 = vmatprep.mubr.f32.mxu0 %v6103
        %7948 = vmatmul.mubr.f32.gmra.mxu0 %v6102
        %v7949 = vpop.f32.mrf.mxu0
        %v7950 = vadd.f32 %v7373, %v7949
        %v7951 = vpop.f32.mrf.mxu0
        %7952 = vmatprep.mubr.f32.mxu0 %v6105
        %7953 = vmatmul.mubr.f32.gmra.mxu0 %v6104
        %v7954 = vpop.f32.mrf.mxu0
        %v7955 = vadd.f32 %v7378, %v7954
        %v7956 = vpop.f32.mrf.mxu0
        %7957 = vmatprep.mubr.f32.mxu0 %v6107
        %7958 = vmatmul.mubr.f32.gmra.mxu0 %v6106
        %v7959 = vpop.f32.mrf.mxu0
        %v7960 = vpop.f32.mrf.mxu0
        %7961 = vmatprep.mubr.f32.mxu0 %v6109
        %7962 = vmatmul.mubr.f32.gmra.mxu0 %v6108
        %v7963 = vpop.f32.mrf.mxu0
        %v7964 = vpop.f32.mrf.mxu0
        %7965 = vmatprep.mubr.f32.mxu0 %v6111
        %7966 = vmatmul.mubr.f32.gmra.mxu0 %v6110
        %v7967 = vpop.f32.mrf.mxu0
        %v7968 = vadd.f32 %v7391, %v7967
        %v7969 = vpop.f32.mrf.mxu0
        %7970 = vmatprep.mubr.f32.mxu0 %v6113
        %7971 = vmatmul.mubr.f32.gmra.mxu0 %v6112
        %v7972 = vpop.f32.mrf.mxu0
        %v7973 = vadd.f32 %v7396, %v7972
        %v7974 = vpop.f32.mrf.mxu0
        %7975 = vmatprep.mubr.f32.mxu0 %v6115
        %7976 = vmatmul.mubr.f32.gmra.mxu0 %v6114
        %v7977 = vpop.f32.mrf.mxu0
        %v7978 = vadd.f32 %v7401, %v7977
        %v7979 = vpop.f32.mrf.mxu0
        %7980 = vmatprep.mubr.f32.mxu0 %v6117
        %7981 = vmatmul.mubr.f32.gmra.mxu0 %v6116
        %v7982 = vpop.f32.mrf.mxu0
        %v7983 = vadd.f32 %v7406, %v7982
        %v7984 = vpop.f32.mrf.mxu0
        %7985 = vmatprep.mubr.f32.mxu0 %v6119
        %7986 = vmatmul.mubr.f32.gmra.mxu0 %v6118
        %v7987 = vpop.f32.mrf.mxu0
        %v7988 = vpop.f32.mrf.mxu0
        %7989 = vmatprep.mubr.f32.mxu0 %v6121
        %7990 = vmatmul.mubr.f32.gmra.mxu0 %v6120
        %v7991 = vpop.f32.mrf.mxu0
        %v7992 = vpop.f32.mrf.mxu0
        %7993 = vmatprep.mubr.f32.mxu0 %v6123
        %7994 = vmatmul.mubr.f32.gmra.mxu0 %v6122
        %v7995 = vpop.f32.mrf.mxu0
        %v7996 = vadd.f32 %v7419, %v7995
        %v7997 = vpop.f32.mrf.mxu0
        %7998 = vmatprep.mubr.f32.mxu0 %v6125
        %7999 = vmatmul.mubr.f32.gmra.mxu0 %v6124
        %v8000 = vpop.f32.mrf.mxu0
        %v8001 = vadd.f32 %v7424, %v8000
        %v8002 = vpop.f32.mrf.mxu0
        %8003 = vmatprep.mubr.f32.mxu0 %v6127
        %8004 = vmatmul.mubr.f32.gmra.mxu0 %v6126
        %v8005 = vpop.f32.mrf.mxu0
        %v8006 = vpop.f32.mrf.mxu0
        %8007 = vmatprep.mubr.f32.mxu0 %v6129
        %8008 = vmatmul.mubr.f32.gmra.mxu0 %v6128
        %v8009 = vpop.f32.mrf.mxu0
        %v8010 = vpop.f32.mrf.mxu0
        %8011 = vmatprep.mubr.f32.mxu0 %v6131
        %8012 = vmatmul.mubr.f32.gmra.mxu0 %v6130
        %v8013 = vpop.f32.mrf.mxu0
        %v8014 = vadd.f32 %v7437, %v8013
        %v8015 = vpop.f32.mrf.mxu0
        %8016 = vmatprep.mubr.f32.mxu0 %v6133
        %8017 = vmatmul.mubr.f32.gmra.mxu0 %v6132
        %v8018 = vpop.f32.mrf.mxu0
        %v8019 = vadd.f32 %v7442, %v8018
        %v8020 = vpop.f32.mrf.mxu0
        %8021 = vmatprep.mubr.f32.mxu0 %v6135
        %8022 = vmatmul.mubr.f32.gmra.mxu0 %v6134
        %v8023 = vpop.f32.mrf.mxu0
        %v8024 = vpop.f32.mrf.mxu0
        %8025 = vmatprep.mubr.f32.mxu0 %v6137
        %8026 = vmatmul.mubr.f32.gmra.mxu0 %v6136
        %v8027 = vpop.f32.mrf.mxu0
        %v8028 = vpop.f32.mrf.mxu0
        %8029 = vmatprep.mubr.f32.mxu0 %v6139
        %8030 = vmatmul.mubr.f32.gmra.mxu0 %v6138
        %v8031 = vpop.f32.mrf.mxu0
        %v8032 = vadd.f32 %v7455, %v8031
        %v8033 = vpop.f32.mrf.mxu0
        %8034 = vmatprep.mubr.f32.mxu0 %v6141
        %8035 = vmatmul.mubr.f32.gmra.mxu0 %v6140
        %v8036 = vpop.f32.mrf.mxu0
        %v8037 = vadd.f32 %v7460, %v8036
        %v8038 = vpop.f32.mrf.mxu0
        %8039 = vmatprep.mubr.f32.mxu0 %v6143
        %8040 = vmatmul.mubr.f32.gmra.mxu0 %v6142
        %v8041 = vpop.f32.mrf.mxu0
        %v8042 = vadd.f32 %v7465, %v8041
        %v8043 = vpop.f32.mrf.mxu0
        %8044 = vmatprep.mubr.f32.mxu0 %v6145
        %8045 = vmatmul.mubr.f32.gmra.mxu0 %v6144
        %v8046 = vpop.f32.mrf.mxu0
        %v8047 = vadd.f32 %v7470, %v8046
        %v8048 = vpop.f32.mrf.mxu0
        %8049 = vmatprep.mubr.f32.mxu0 %v6147
        %8050 = vmatmul.mubr.f32.gmra.mxu0 %v6146
        %v8051 = vpop.f32.mrf.mxu0
        %v8052 = vpop.f32.mrf.mxu0
        %8053 = vmatprep.mubr.f32.mxu0 %v6149
        %8054 = vmatmul.mubr.f32.gmra.mxu0 %v6148
        %v8055 = vpop.f32.mrf.mxu0
        %v8056 = vpop.f32.mrf.mxu0
        %8057 = vmatprep.mubr.f32.mxu0 %v6151
        %8058 = vmatmul.mubr.f32.gmra.mxu0 %v6150
        %v8059 = vpop.f32.mrf.mxu0
        %v8060 = vadd.f32 %v7483, %v8059
        %v8061 = vpop.f32.mrf.mxu0
        %8062 = vmatprep.mubr.f32.mxu0 %v6153
        %8063 = vmatmul.mubr.f32.gmra.mxu0 %v6152
        %v8064 = vpop.f32.mrf.mxu0
        %v8065 = vadd.f32 %v7488, %v8064
        %v8066 = vpop.f32.mrf.mxu0
        %8067 = vmatprep.mubr.f32.mxu0 %v6155
        %8068 = vmatmul.mubr.f32.gmra.mxu0 %v6154
        %v8069 = vpop.f32.mrf.mxu0
        %v8070 = vpop.f32.mrf.mxu0
        %8071 = vmatprep.mubr.f32.mxu0 %v6157
        %8072 = vmatmul.mubr.f32.gmra.mxu0 %v6156
        %v8073 = vpop.f32.mrf.mxu0
        %v8074 = vpop.f32.mrf.mxu0
        %8075 = vmatprep.mubr.f32.mxu0 %v6159
        %8076 = vmatmul.mubr.f32.gmra.mxu0 %v6158
        %v8077 = vpop.f32.mrf.mxu0
        %v8078 = vadd.f32 %v7501, %v8077
        %v8079 = vpop.f32.mrf.mxu0
        %8080 = vmatprep.mubr.f32.mxu0 %v6161
        %8081 = vmatmul.mubr.f32.gmra.mxu0 %v6160
        %v8082 = vpop.f32.mrf.mxu0
        %v8083 = vadd.f32 %v7506, %v8082
        %v8084 = vpop.f32.mrf.mxu0
        %8085 = vmatprep.mubr.f32.mxu0 %v6163
        %8086 = vmatmul.mubr.f32.gmra.mxu0 %v6162
        %v8087 = vpop.f32.mrf.mxu0
        %v8088 = vpop.f32.mrf.mxu0
        %8089 = vmatprep.mubr.f32.mxu0 %v6165
        %8090 = vmatmul.mubr.f32.gmra.mxu0 %v6164
        %v8091 = vpop.f32.mrf.mxu0
        %v8092 = vpop.f32.mrf.mxu0
        %8093 = vmatprep.mubr.f32.mxu0 %v6167
        %8094 = vmatmul.mubr.f32.gmra.mxu0 %v6166
        %v8095 = vpop.f32.mrf.mxu0
        %v8096 = vadd.f32 %v7519, %v8095
        %v8097 = vpop.f32.mrf.mxu0
        %8098 = vmatprep.mubr.f32.mxu0 %v6169
        %8099 = vmatmul.mubr.f32.gmra.mxu0 %v6168
        %v8100 = vpop.f32.mrf.mxu0
        %v8101 = vadd.f32 %v7524, %v8100
        %v8102 = vpop.f32.mrf.mxu0
        %8103 = vmatprep.mubr.f32.mxu0 %v6171
        %8104 = vmatmul.mubr.f32.gmra.mxu0 %v6170
        %v8105 = vpop.f32.mrf.mxu0
        %v8106 = vadd.f32 %v7529, %v8105
        %v8107 = vpop.f32.mrf.mxu0
        %8108 = vmatprep.mubr.f32.mxu0 %v6173
        %8109 = vmatmul.mubr.f32.gmra.mxu0 %v6172
        %v8110 = vpop.f32.mrf.mxu0
        %v8111 = vadd.f32 %v7534, %v8110
        %v8112 = vpop.f32.mrf.mxu0
        %8113 = vmatprep.mubr.f32.mxu0 %v6175
        %8114 = vmatmul.mubr.f32.gmra.mxu0 %v6174
        %v8115 = vpop.f32.mrf.mxu0
        %v8116 = vpop.f32.mrf.mxu0
        %8117 = vmatprep.mubr.f32.mxu0 %v6177
        %8118 = vmatmul.mubr.f32.gmra.mxu0 %v6176
        %v8119 = vpop.f32.mrf.mxu0
        %v8120 = vpop.f32.mrf.mxu0
        %8121 = vmatprep.mubr.f32.mxu0 %v6179
        %8122 = vmatmul.mubr.f32.gmra.mxu0 %v6178
        %v8123 = vpop.f32.mrf.mxu0
        %v8124 = vadd.f32 %v7547, %v8123
        %v8125 = vpop.f32.mrf.mxu0
        %8126 = vmatprep.mubr.f32.mxu0 %v6181
        %8127 = vmatmul.mubr.f32.gmra.mxu0 %v6180
        %v8128 = vpop.f32.mrf.mxu0
        %v8129 = vadd.f32 %v7552, %v8128
        %v8130 = vpop.f32.mrf.mxu0
        %8131 = vmatprep.mubr.f32.mxu0 %v6183
        %8132 = vmatmul.mubr.f32.gmra.mxu0 %v6182
        %v8133 = vpop.f32.mrf.mxu0
        %v8134 = vpop.f32.mrf.mxu0
        %8135 = vmatprep.mubr.f32.mxu0 %v6185
        %8136 = vmatmul.mubr.f32.gmra.mxu0 %v6184
        %v8137 = vpop.f32.mrf.mxu0
        %v8138 = vpop.f32.mrf.mxu0
        %8139 = vmatprep.mubr.f32.mxu0 %v6187
        %8140 = vmatmul.mubr.f32.gmra.mxu0 %v6186
        %v8141 = vpop.f32.mrf.mxu0
        %v8142 = vadd.f32 %v7565, %v8141
        %v8143 = vpop.f32.mrf.mxu0
        %8144 = vmatprep.mubr.f32.mxu0 %v6189
        %8145 = vmatmul.mubr.f32.gmra.mxu0 %v6188
        %v8146 = vpop.f32.mrf.mxu0
        %v8147 = vadd.f32 %v7570, %v8146
        %v8148 = vpop.f32.mrf.mxu0
        %8149 = vmatprep.mubr.f32.mxu0 %v6191
        %8150 = vmatmul.mubr.f32.gmra.mxu0 %v6190
        %v8151 = vpop.f32.mrf.mxu0
        %v8152 = vpop.f32.mrf.mxu0
        %8153 = vmatprep.mubr.f32.mxu0 %v6193
        %8154 = vmatmul.mubr.f32.gmra.mxu0 %v6192
        %v8155 = vpop.f32.mrf.mxu0
        %v8156 = vpop.f32.mrf.mxu0
        %8157 = vmatprep.mubr.f32.mxu0 %v6195
        %8158 = vmatmul.mubr.f32.gmra.mxu0 %v6194
        %v8159 = vpop.f32.mrf.mxu0
        %v8160 = vadd.f32 %v7583, %v8159
        %v8161 = vpop.f32.mrf.mxu0
        %8162 = vmatprep.mubr.f32.mxu0 %v6197
        %8163 = vmatmul.mubr.f32.gmra.mxu0 %v6196
        %v8164 = vpop.f32.mrf.mxu0
        %v8165 = vadd.f32 %v7588, %v8164
        %v8166 = vpop.f32.mrf.mxu0
        %8167 = vmatprep.mubr.f32.mxu0 %v6199
        %8168 = vmatmul.mubr.f32.gmra.mxu0 %v6198
        %v8169 = vpop.f32.mrf.mxu0
        %v8170 = vadd.f32 %v7593, %v8169
        %v8171 = vpop.f32.mrf.mxu0
        %8172 = vmatprep.mubr.f32.mxu0 %v6201
        %8173 = vmatmul.mubr.f32.gmra.mxu0 %v6200
        %v8174 = vpop.f32.mrf.mxu0
        %v8175 = vadd.f32 %v7598, %v8174
        %v8176 = vpop.f32.mrf.mxu0
        %8177 = vmatprep.mubr.f32.mxu0 %v6203
        %8178 = vmatmul.mubr.f32.gmra.mxu0 %v6202
        %v8179 = vpop.f32.mrf.mxu0
        %v8180 = vpop.f32.mrf.mxu0
        %8181 = vmatprep.mubr.f32.mxu0 %v6205
        %8182 = vmatmul.mubr.f32.gmra.mxu0 %v6204
        %v8183 = vpop.f32.mrf.mxu0
        %v8184 = vpop.f32.mrf.mxu0
        %8185 = vmatprep.mubr.f32.mxu0 %v6207
        %8186 = vmatmul.mubr.f32.gmra.mxu0 %v6206
        %v8187 = vpop.f32.mrf.mxu0
        %v8188 = vadd.f32 %v7611, %v8187
        %v8189 = vpop.f32.mrf.mxu0
        %8190 = vmatprep.mubr.f32.mxu0 %v6209
        %8191 = vmatmul.mubr.f32.gmra.mxu0 %v6208
        %v8192 = vpop.f32.mrf.mxu0
        %v8193 = vadd.f32 %v7616, %v8192
        %v8194 = vpop.f32.mrf.mxu0
        %8195 = vmatprep.mubr.f32.mxu0 %v6211
        %8196 = vmatmul.mubr.f32.gmra.mxu0 %v6210
        %v8197 = vpop.f32.mrf.mxu0
        %v8198 = vpop.f32.mrf.mxu0
        %8199 = vmatprep.mubr.f32.mxu0 %v6213
        %8200 = vmatmul.mubr.f32.gmra.mxu0 %v6212
        %v8201 = vpop.f32.mrf.mxu0
        %v8202 = vpop.f32.mrf.mxu0
        %8203 = vmatprep.mubr.f32.mxu0 %v6215
        %8204 = vmatmul.mubr.f32.gmra.mxu0 %v6214
        %v8205 = vpop.f32.mrf.mxu0
        %v8206 = vadd.f32 %v7629, %v8205
        %v8207 = vpop.f32.mrf.mxu0
        %8208 = vmatprep.mubr.f32.mxu0 %v6217
        %8209 = vmatmul.mubr.f32.gmra.mxu0 %v6216
        %v8210 = vpop.f32.mrf.mxu0
        %v8211 = vadd.f32 %v7634, %v8210
        %v8212 = vpop.f32.mrf.mxu0
        %8213 = vmatprep.mubr.f32.mxu0 %v6219
        %8214 = vmatmul.mubr.f32.gmra.mxu0 %v6218
        %v8215 = vpop.f32.mrf.mxu0
        %v8216 = vpop.f32.mrf.mxu0
        %8217 = vmatprep.mubr.f32.mxu0 %v6221
        %8218 = vmatmul.mubr.f32.gmra.mxu0 %v6220
        %v8219 = vpop.f32.mrf.mxu0
        %v8220 = vpop.f32.mrf.mxu0
        %8221 = vmatprep.mubr.f32.mxu0 %v6223
        %8222 = vmatmul.mubr.f32.gmra.mxu0 %v6222
        %v8223 = vpop.f32.mrf.mxu0
        %v8224 = vadd.f32 %v7647, %v8223
        %v8225 = vpop.f32.mrf.mxu0
        %8226 = vmatprep.mubr.f32.mxu0 %v6225
        %8227 = vmatmul.mubr.f32.gmra.mxu0 %v6224
        %v8228 = vpop.f32.mrf.mxu0
        %v8229 = vadd.f32 %v7652, %v8228
        %v8230 = vpop.f32.mrf.mxu0
        %8231 = vmatprep.mubr.f32.mxu0 %v6227
        %8232 = vmatmul.mubr.f32.gmra.mxu0 %v6226
        %v8233 = vpop.f32.mrf.mxu0
        %v8234 = vadd.f32 %v7657, %v8233
        %v8235 = vpop.f32.mrf.mxu0
        %8236 = vmatprep.mubr.f32.mxu0 %v6229
        %8237 = vmatmul.mubr.f32.gmra.mxu0 %v6228
        %v8238 = vpop.f32.mrf.mxu0
        %v8239 = vadd.f32 %v7662, %v8238
        %v8240 = vpop.f32.mrf.mxu0
        %8241 = vmatprep.mubr.f32.mxu0 %v6231
        %8242 = vmatmul.mubr.f32.gmra.mxu0 %v6230
        %v8243 = vpop.f32.mrf.mxu0
        %v8244 = vpop.f32.mrf.mxu0
        %8245 = vmatprep.mubr.f32.mxu0 %v6233
        %8246 = vmatmul.mubr.f32.gmra.mxu0 %v6232
        %v8247 = vpop.f32.mrf.mxu0
        %v8248 = vpop.f32.mrf.mxu0
        %8249 = vmatprep.mubr.f32.mxu0 %v6235
        %8250 = vmatmul.mubr.f32.gmra.mxu0 %v6234
        %v8251 = vpop.f32.mrf.mxu0
        %v8252 = vadd.f32 %v7675, %v8251
        %v8253 = vpop.f32.mrf.mxu0
        %8254 = vmatprep.mubr.f32.mxu0 %v6237
        %8255 = vmatmul.mubr.f32.gmra.mxu0 %v6236
        %v8256 = vpop.f32.mrf.mxu0
        %v8257 = vadd.f32 %v7680, %v8256
        %v8258 = vpop.f32.mrf.mxu0
        %8259 = vmatprep.mubr.f32.mxu0 %v6239
        %8260 = vmatmul.mubr.f32.gmra.mxu0 %v6238
        %v8261 = vpop.f32.mrf.mxu0
        %v8262 = vpop.f32.mrf.mxu0
        %8263 = vmatprep.mubr.f32.mxu0 %v6241
        %8264 = vmatmul.mubr.f32.gmra.mxu0 %v6240
        %v8265 = vpop.f32.mrf.mxu0
        %v8266 = vpop.f32.mrf.mxu0
        %8267 = vmatprep.mubr.f32.mxu0 %v6243
        %8268 = vmatmul.mubr.f32.gmra.mxu0 %v6242
        %v8269 = vpop.f32.mrf.mxu0
        %v8270 = vadd.f32 %v7693, %v8269
        %v8271 = vpop.f32.mrf.mxu0
        %8272 = vmatprep.mubr.f32.mxu0 %v6245
        %8273 = vmatmul.mubr.f32.gmra.mxu0 %v6244
        %v8274 = vpop.f32.mrf.mxu0
        %v8275 = vadd.f32 %v7698, %v8274
        %v8276 = vpop.f32.mrf.mxu0
        %8277 = vmatprep.mubr.f32.mxu0 %v6247
        %8278 = vmatmul.mubr.f32.gmra.mxu0 %v6246
        %v8279 = vpop.f32.mrf.mxu0
        %v8280 = vpop.f32.mrf.mxu0
        %8281 = vmatprep.mubr.f32.mxu0 %v6249
        %8282 = vmatmul.mubr.f32.gmra.mxu0 %v6248
        %v8283 = vpop.f32.mrf.mxu0
        %v8284 = vpop.f32.mrf.mxu0
        %8285 = vmatprep.mubr.f32.mxu0 %v6251
        %8286 = vmatmul.mubr.f32.gmra.mxu0 %v6250
        %v8287 = vpop.f32.mrf.mxu0
        %v8288 = vadd.f32 %v7711, %v8287
        %v8289 = vpop.f32.mrf.mxu0
        %8290 = vmatprep.mubr.f32.mxu0 %v6253
        %8291 = vmatmul.mubr.f32.gmra.mxu0 %v6252
        %v8292 = vpop.f32.mrf.mxu0
        %v8293 = vadd.f32 %v7716, %v8292
        %v8294 = vpop.f32.mrf.mxu0
        %8295 = vmatprep.mubr.f32.mxu0 %v6255
        %8296 = vmatmul.mubr.f32.gmra.mxu0 %v6254
        %v8297 = vpop.f32.mrf.mxu0
        %v8298 = vadd.f32 %v7721, %v8297
        %v8299 = vpop.f32.mrf.mxu0
        %8300 = vmatprep.mubr.f32.mxu0 %v6257
        %8301 = vmatmul.mubr.f32.gmra.mxu0 %v6256
        %v8302 = vpop.f32.mrf.mxu0
        %v8303 = vadd.f32 %v7726, %v8302
        %v8304 = vpop.f32.mrf.mxu0
        %8305 = vmatprep.mubr.f32.mxu0 %v6259
        %8306 = vmatmul.mubr.f32.gmra.mxu0 %v6258
        %v8307 = vpop.f32.mrf.mxu0
        %v8308 = vpop.f32.mrf.mxu0
        %8309 = vmatprep.mubr.f32.mxu0 %v6261
        %8310 = vmatmul.mubr.f32.gmra.mxu0 %v6260
        %v8311 = vpop.f32.mrf.mxu0
        %v8312 = vpop.f32.mrf.mxu0
        %8313 = vmatprep.mubr.f32.mxu0 %v6263
        %8314 = vmatmul.mubr.f32.gmra.mxu0 %v6262
        %v8315 = vpop.f32.mrf.mxu0
        %v8316 = vadd.f32 %v7739, %v8315
        %v8317 = vpop.f32.mrf.mxu0
        %8318 = vmatprep.mubr.f32.mxu0 %v6265
        %8319 = vmatmul.mubr.f32.gmra.mxu0 %v6264
        %v8320 = vpop.f32.mrf.mxu0
        %v8321 = vadd.f32 %v7744, %v8320
        %v8322 = vpop.f32.mrf.mxu0
        %8323 = vmatprep.mubr.f32.mxu0 %v6267
        %8324 = vmatmul.mubr.f32.gmra.mxu0 %v6266
        %v8325 = vpop.f32.mrf.mxu0
        %v8326 = vpop.f32.mrf.mxu0
        %8327 = vmatprep.mubr.f32.mxu0 %v6269
        %8328 = vmatmul.mubr.f32.gmra.mxu0 %v6268
        %v8329 = vpop.f32.mrf.mxu0
        %v8330 = vpop.f32.mrf.mxu0
        %8331 = vmatprep.mubr.f32.mxu0 %v6271
        %8332 = vmatmul.mubr.f32.gmra.mxu0 %v6270
        %v8333 = vpop.f32.mrf.mxu0
        %v8334 = vadd.f32 %v7757, %v8333
        %v8335 = vpop.f32.mrf.mxu0
        %8336 = vmatprep.mubr.f32.mxu0 %v6273
        %8337 = vmatmul.mubr.f32.gmra.mxu0 %v6272
        %v8338 = vpop.f32.mrf.mxu0
        %v8339 = vadd.f32 %v7762, %v8338
        %v8340 = vpop.f32.mrf.mxu0
        %8341 = vmatprep.mubr.f32.mxu0 %v6275
        %8342 = vmatmul.mubr.f32.gmra.mxu0 %v6274
        %v8343 = vpop.f32.mrf.mxu0
        %v8344 = vpop.f32.mrf.mxu0
        %8345 = vmatprep.mubr.f32.mxu0 %v6277
        %8346 = vmatmul.mubr.f32.gmra.mxu0 %v6276
        %v8347 = vpop.f32.mrf.mxu0
        %v8348 = vpop.f32.mrf.mxu0
        %8349 = vmatprep.mubr.f32.mxu0 %v6279
        %8350 = vmatmul.mubr.f32.gmra.mxu0 %v6278
        %v8351 = vpop.f32.mrf.mxu0
        %v8352 = vadd.f32 %v7775, %v8351
        %v8353 = vpop.f32.mrf.mxu0
        %8354 = vmatprep.mubr.f32.mxu0 %v6281
        %8355 = vmatmul.mubr.f32.gmra.mxu0 %v6280
        %v8356 = vpop.f32.mrf.mxu0
        %v8357 = vadd.f32 %v7780, %v8356
        %v8358 = vpop.f32.mrf.mxu0
        %8359 = vmatprep.mubr.f32.mxu0 %v6283
        %8360 = vmatmul.mubr.f32.gmra.mxu0 %v6282
        %v8361 = vpop.f32.mrf.mxu0
        %v8362 = vadd.f32 %v7785, %v8361
        %v8363 = vpop.f32.mrf.mxu0
        %8364 = vmatprep.mubr.f32.mxu0 %v6285
        %8365 = vmatmul.mubr.f32.gmra.mxu0 %v6284
        %v8366 = vpop.f32.mrf.mxu0
        %v8367 = vadd.f32 %v7790, %v8366
        %v8368 = vpop.f32.mrf.mxu0
        %8369 = vmatprep.mubr.f32.mxu0 %v6287
        %8370 = vmatmul.mubr.f32.gmra.mxu0 %v6286
        %v8371 = vpop.f32.mrf.mxu0
        %v8372 = vpop.f32.mrf.mxu0
        %8373 = vmatprep.mubr.f32.mxu0 %v6289
        %8374 = vmatmul.mubr.f32.gmra.mxu0 %v6288
        %v8375 = vpop.f32.mrf.mxu0
        %v8376 = vpop.f32.mrf.mxu0
        %8377 = vmatprep.mubr.f32.mxu0 %v6291
        %8378 = vmatmul.mubr.f32.gmra.mxu0 %v6290
        %v8379 = vpop.f32.mrf.mxu0
        %v8380 = vadd.f32 %v7803, %v8379
        %v8381 = vpop.f32.mrf.mxu0
        %8382 = vmatprep.mubr.f32.mxu0 %v6293
        %8383 = vmatmul.mubr.f32.gmra.mxu0 %v6292
        %v8384 = vpop.f32.mrf.mxu0
        %v8385 = vadd.f32 %v7808, %v8384
        %v8386 = vpop.f32.mrf.mxu0
        %8387 = vmatprep.mubr.f32.mxu0 %v6295
        %8388 = vmatmul.mubr.f32.gmra.mxu0 %v6294
        %v8389 = vpop.f32.mrf.mxu0
        %v8390 = vpop.f32.mrf.mxu0
        %8391 = vmatprep.mubr.f32.mxu0 %v6297
        %8392 = vmatmul.mubr.f32.gmra.mxu0 %v6296
        %v8393 = vpop.f32.mrf.mxu0
        %v8394 = vpop.f32.mrf.mxu0
        %8395 = vmatprep.mubr.f32.mxu0 %v6299
        %8396 = vmatmul.mubr.f32.gmra.mxu0 %v6298
        %v8397 = vpop.f32.mrf.mxu0
        %v8398 = vadd.f32 %v7821, %v8397
        %v8399 = vpop.f32.mrf.mxu0
        %8400 = vmatprep.mubr.f32.mxu0 %v6301
        %8401 = vmatmul.mubr.f32.gmra.mxu0 %v6300
        %v8402 = vpop.f32.mrf.mxu0
        %v8403 = vadd.f32 %v7826, %v8402
        %v8404 = vpop.f32.mrf.mxu0
        %8405 = vmatprep.mubr.f32.mxu0 %v6303
        %8406 = vmatmul.mubr.f32.gmra.mxu0 %v6302
        %v8407 = vpop.f32.mrf.mxu0
        %v8408 = vpop.f32.mrf.mxu0
        %8409 = vmatprep.mubr.f32.mxu0 %v6305
        %8410 = vmatmul.mubr.f32.gmra.mxu0 %v6304
        %v8411 = vpop.f32.mrf.mxu0
        %v8412 = vpop.f32.mrf.mxu0
        %8413 = vmatprep.mubr.f32.mxu0 %v6307
        %8414 = vmatmul.mubr.f32.gmra.mxu0 %v6306
        %v8415 = vpop.f32.mrf.mxu0
        %v8416 = vadd.f32 %v7839, %v8415
        %v8417 = vpop.f32.mrf.mxu0
        %8418 = vmatprep.mubr.f32.mxu0 %v6309
        %8419 = vmatmul.mubr.f32.gmra.mxu0 %v6308
        %v8420 = vpop.f32.mrf.mxu0
        %v8421 = vadd.f32 %v7844, %v8420
        %v8422 = vpop.f32.mrf.mxu0
        %8423 = vdwg.mxu0
        %s8424 = scalar_lea.vmem %s279, 2160
        %v8425 = vld [vmem:[%s8424] sm:$0xff]
        %v8426 = vld [vmem:[%s8424 + $0x8] sm:$0xff]
        %v8427 = vld [vmem:[%s8424 + $0x10] sm:$0xff]
        %v8428 = vld [vmem:[%s8424 + $0x18] sm:$0xff]
        %v8429 = vld [vmem:[%s8424 + $0x20] sm:$0xff]
        %v8430 = vld [vmem:[%s8424 + $0x28] sm:$0xff]
        %v8431 = vld [vmem:[%s8424 + $0x30] sm:$0xff]
        %v8432 = vld [vmem:[%s8424 + $0x38] sm:$0xff]
        %v8433 = vld [vmem:[%s8424 + $0x40] sm:$0xff]
        %v8434 = vld [vmem:[%s8424 + $0x48] sm:$0xff]
        %v8435 = vld [vmem:[%s8424 + $0x50] sm:$0xff]
        %v8436 = vld [vmem:[%s8424 + $0x58] sm:$0xff]
        %v8437 = vld [vmem:[%s8424 + $0x60] sm:$0xff]
        %v8438 = vld [vmem:[%s8424 + $0x68] sm:$0xff]
        %v8439 = vld [vmem:[%s8424 + $0x70] sm:$0xff]
        %v8440 = vld [vmem:[%s8424 + $0x78] sm:$0xff]
        %v8441 = vld [vmem:[%s8424 + $0x80] sm:$0xff]
        %v8442 = vld [vmem:[%s8424 + $0x88] sm:$0xff]
        %v8443 = vld [vmem:[%s8424 + $0x90] sm:$0xff]
        %v8444 = vld [vmem:[%s8424 + $0x98] sm:$0xff]
        %v8445 = vld [vmem:[%s8424 + $0xa0] sm:$0xff]
        %v8446 = vld [vmem:[%s8424 + $0xa8] sm:$0xff]
        %v8447 = vld [vmem:[%s8424 + $0xb0] sm:$0xff]
        %v8448 = vld [vmem:[%s8424 + $0xb8] sm:$0xff]
        %v8449 = vld [vmem:[%s8424 + $0xc0] sm:$0xff]
        %v8450 = vld [vmem:[%s8424 + $0xc8] sm:$0xff]
        %v8451 = vld [vmem:[%s8424 + $0xd0] sm:$0xff]
        %v8452 = vld [vmem:[%s8424 + $0xd8] sm:$0xff]
        %v8453 = vld [vmem:[%s8424 + $0xf0] sm:$0xff]
        %v8454 = vld [vmem:[%s8424 + $0xf8] sm:$0xff]
        %v8455 = vld [vmem:[%s8424 + $0x100] sm:$0xff]
        %v8456 = vld [vmem:[%s8424 + $0x108] sm:$0xff]
        %v8457 = vld [vmem:[%s8424 + $0x110] sm:$0xff]
        %v8458 = vld [vmem:[%s8424 + $0x118] sm:$0xff]
        %v8459 = vld [vmem:[%s8424 + $0x120] sm:$0xff]
        %v8460 = vld [vmem:[%s8424 + $0x128] sm:$0xff]
        %v8461 = vld [vmem:[%s8424 + $0x130] sm:$0xff]
        %v8462 = vld [vmem:[%s8424 + $0x138] sm:$0xff]
        %v8463 = vld [vmem:[%s8424 + $0x140] sm:$0xff]
        %v8464 = vld [vmem:[%s8424 + $0x148] sm:$0xff]
        %v8465 = vld [vmem:[%s8424 + $0x150] sm:$0xff]
        %v8466 = vld [vmem:[%s8424 + $0x158] sm:$0xff]
        %v8467 = vld [vmem:[%s8424 + $0x160] sm:$0xff]
        %v8468 = vld [vmem:[%s8424 + $0x168] sm:$0xff]
        %v8469 = vld [vmem:[%s8424 + $0x170] sm:$0xff]
        %v8470 = vld [vmem:[%s8424 + $0x178] sm:$0xff]
        %v8471 = vld [vmem:[%s8424 + $0x180] sm:$0xff]
        %v8472 = vld [vmem:[%s8424 + $0x188] sm:$0xff]
        %v8473 = vld [vmem:[%s8424 + $0x190] sm:$0xff]
        %v8474 = vld [vmem:[%s8424 + $0x198] sm:$0xff]
        %v8475 = vld [vmem:[%s8424 + $0x1a0] sm:$0xff]
        %v8476 = vld [vmem:[%s8424 + $0x1a8] sm:$0xff]
        %v8477 = vld [vmem:[%s8424 + $0x1b0] sm:$0xff]
        %v8478 = vld [vmem:[%s8424 + $0x1b8] sm:$0xff]
        %v8479 = vld [vmem:[%s8424 + $0x1c0] sm:$0xff]
        %v8480 = vld [vmem:[%s8424 + $0x1c8] sm:$0xff]
        %v8481 = vld [vmem:[%s8424 + $0x1e0] sm:$0xff]
        %v8482 = vld [vmem:[%s8424 + $0x1e8] sm:$0xff]
        %v8483 = vld [vmem:[%s8424 + $0x1f0] sm:$0xff]
        %v8484 = vld [vmem:[%s8424 + $0x1f8] sm:$0xff]
        %v8485 = vld [vmem:[%s8424 + $0x200] sm:$0xff]
        %v8486 = vld [vmem:[%s8424 + $0x208] sm:$0xff]
        %v8487 = vld [vmem:[%s8424 + $0x210] sm:$0xff]
        %v8488 = vld [vmem:[%s8424 + $0x218] sm:$0xff]
        %v8489 = vld [vmem:[%s8424 + $0x220] sm:$0xff]
        %v8490 = vld [vmem:[%s8424 + $0x228] sm:$0xff]
        %v8491 = vld [vmem:[%s8424 + $0x230] sm:$0xff]
        %v8492 = vld [vmem:[%s8424 + $0x238] sm:$0xff]
        %v8493 = vld [vmem:[%s8424 + $0x240] sm:$0xff]
        %v8494 = vld [vmem:[%s8424 + $0x248] sm:$0xff]
        %v8495 = vld [vmem:[%s8424 + $0x250] sm:$0xff]
        %v8496 = vld [vmem:[%s8424 + $0x258] sm:$0xff]
        %v8497 = vld [vmem:[%s8424 + $0x260] sm:$0xff]
        %v8498 = vld [vmem:[%s8424 + $0x268] sm:$0xff]
        %v8499 = vld [vmem:[%s8424 + $0x270] sm:$0xff]
        %v8500 = vld [vmem:[%s8424 + $0x278] sm:$0xff]
        %v8501 = vld [vmem:[%s8424 + $0x280] sm:$0xff]
        %v8502 = vld [vmem:[%s8424 + $0x288] sm:$0xff]
        %v8503 = vld [vmem:[%s8424 + $0x290] sm:$0xff]
        %v8504 = vld [vmem:[%s8424 + $0x298] sm:$0xff]
        %v8505 = vld [vmem:[%s8424 + $0x2a0] sm:$0xff]
        %v8506 = vld [vmem:[%s8424 + $0x2a8] sm:$0xff]
        %v8507 = vld [vmem:[%s8424 + $0x2b0] sm:$0xff]
        %v8508 = vld [vmem:[%s8424 + $0x2b8] sm:$0xff]
        %v8509 = vld [vmem:[%s8424 + $0x2d0] sm:$0xff]
        %v8510 = vld [vmem:[%s8424 + $0x2d8] sm:$0xff]
        %v8511 = vld [vmem:[%s8424 + $0x2e0] sm:$0xff]
        %v8512 = vld [vmem:[%s8424 + $0x2e8] sm:$0xff]
        %v8513 = vld [vmem:[%s8424 + $0x2f0] sm:$0xff]
        %v8514 = vld [vmem:[%s8424 + $0x2f8] sm:$0xff]
        %v8515 = vld [vmem:[%s8424 + $0x300] sm:$0xff]
        %v8516 = vld [vmem:[%s8424 + $0x308] sm:$0xff]
        %v8517 = vld [vmem:[%s8424 + $0x310] sm:$0xff]
        %v8518 = vld [vmem:[%s8424 + $0x318] sm:$0xff]
        %v8519 = vld [vmem:[%s8424 + $0x320] sm:$0xff]
        %v8520 = vld [vmem:[%s8424 + $0x328] sm:$0xff]
        %v8521 = vld [vmem:[%s8424 + $0x330] sm:$0xff]
        %v8522 = vld [vmem:[%s8424 + $0x338] sm:$0xff]
        %v8523 = vld [vmem:[%s8424 + $0x340] sm:$0xff]
        %v8524 = vld [vmem:[%s8424 + $0x348] sm:$0xff]
        %v8525 = vld [vmem:[%s8424 + $0x350] sm:$0xff]
        %v8526 = vld [vmem:[%s8424 + $0x358] sm:$0xff]
        %v8527 = vld [vmem:[%s8424 + $0x360] sm:$0xff]
        %v8528 = vld [vmem:[%s8424 + $0x368] sm:$0xff]
        %v8529 = vld [vmem:[%s8424 + $0x370] sm:$0xff]
        %v8530 = vld [vmem:[%s8424 + $0x378] sm:$0xff]
        %v8531 = vld [vmem:[%s8424 + $0x380] sm:$0xff]
        %v8532 = vld [vmem:[%s8424 + $0x388] sm:$0xff]
        %v8533 = vld [vmem:[%s8424 + $0x390] sm:$0xff]
        %v8534 = vld [vmem:[%s8424 + $0x398] sm:$0xff]
        %v8535 = vld [vmem:[%s8424 + $0x3a0] sm:$0xff]
        %v8536 = vld [vmem:[%s8424 + $0x3a8] sm:$0xff]
        %v8537 = vld [vmem:[%s8424 + $0x3c0] sm:$0xff]
        %v8538 = vld [vmem:[%s8424 + $0x3c8] sm:$0xff]
        %v8539 = vld [vmem:[%s8424 + $0x3d0] sm:$0xff]
        %v8540 = vld [vmem:[%s8424 + $0x3d8] sm:$0xff]
        %v8541 = vld [vmem:[%s8424 + $0x3e0] sm:$0xff]
        %v8542 = vld [vmem:[%s8424 + $0x3e8] sm:$0xff]
        %v8543 = vld [vmem:[%s8424 + $0x3f0] sm:$0xff]
        %v8544 = vld [vmem:[%s8424 + $0x3f8] sm:$0xff]
        %v8545 = vld [vmem:[%s8424 + $0x400] sm:$0xff]
        %v8546 = vld [vmem:[%s8424 + $0x408] sm:$0xff]
        %v8547 = vld [vmem:[%s8424 + $0x410] sm:$0xff]
        %v8548 = vld [vmem:[%s8424 + $0x418] sm:$0xff]
        %v8549 = vld [vmem:[%s8424 + $0x420] sm:$0xff]
        %v8550 = vld [vmem:[%s8424 + $0x428] sm:$0xff]
        %v8551 = vld [vmem:[%s8424 + $0x430] sm:$0xff]
        %v8552 = vld [vmem:[%s8424 + $0x438] sm:$0xff]
        %v8553 = vld [vmem:[%s8424 + $0x440] sm:$0xff]
        %v8554 = vld [vmem:[%s8424 + $0x448] sm:$0xff]
        %v8555 = vld [vmem:[%s8424 + $0x450] sm:$0xff]
        %v8556 = vld [vmem:[%s8424 + $0x458] sm:$0xff]
        %v8557 = vld [vmem:[%s8424 + $0x460] sm:$0xff]
        %v8558 = vld [vmem:[%s8424 + $0x468] sm:$0xff]
        %v8559 = vld [vmem:[%s8424 + $0x470] sm:$0xff]
        %v8560 = vld [vmem:[%s8424 + $0x478] sm:$0xff]
        %v8561 = vld [vmem:[%s8424 + $0x480] sm:$0xff]
        %v8562 = vld [vmem:[%s8424 + $0x488] sm:$0xff]
        %v8563 = vld [vmem:[%s8424 + $0x490] sm:$0xff]
        %v8564 = vld [vmem:[%s8424 + $0x498] sm:$0xff]
        %v8565 = vld [vmem:[%s8424 + $0x4b0] sm:$0xff]
        %v8566 = vld [vmem:[%s8424 + $0x4b8] sm:$0xff]
        %v8567 = vld [vmem:[%s8424 + $0x4c0] sm:$0xff]
        %v8568 = vld [vmem:[%s8424 + $0x4c8] sm:$0xff]
        %v8569 = vld [vmem:[%s8424 + $0x4d0] sm:$0xff]
        %v8570 = vld [vmem:[%s8424 + $0x4d8] sm:$0xff]
        %v8571 = vld [vmem:[%s8424 + $0x4e0] sm:$0xff]
        %v8572 = vld [vmem:[%s8424 + $0x4e8] sm:$0xff]
        %v8573 = vld [vmem:[%s8424 + $0x4f0] sm:$0xff]
        %v8574 = vld [vmem:[%s8424 + $0x4f8] sm:$0xff]
        %v8575 = vld [vmem:[%s8424 + $0x500] sm:$0xff]
        %v8576 = vld [vmem:[%s8424 + $0x508] sm:$0xff]
        %v8577 = vld [vmem:[%s8424 + $0x510] sm:$0xff]
        %v8578 = vld [vmem:[%s8424 + $0x518] sm:$0xff]
        %v8579 = vld [vmem:[%s8424 + $0x520] sm:$0xff]
        %v8580 = vld [vmem:[%s8424 + $0x528] sm:$0xff]
        %v8581 = vld [vmem:[%s8424 + $0x530] sm:$0xff]
        %v8582 = vld [vmem:[%s8424 + $0x538] sm:$0xff]
        %v8583 = vld [vmem:[%s8424 + $0x540] sm:$0xff]
        %v8584 = vld [vmem:[%s8424 + $0x548] sm:$0xff]
        %v8585 = vld [vmem:[%s8424 + $0x550] sm:$0xff]
        %v8586 = vld [vmem:[%s8424 + $0x558] sm:$0xff]
        %v8587 = vld [vmem:[%s8424 + $0x560] sm:$0xff]
        %v8588 = vld [vmem:[%s8424 + $0x568] sm:$0xff]
        %v8589 = vld [vmem:[%s8424 + $0x570] sm:$0xff]
        %v8590 = vld [vmem:[%s8424 + $0x578] sm:$0xff]
        %v8591 = vld [vmem:[%s8424 + $0x580] sm:$0xff]
        %v8592 = vld [vmem:[%s8424 + $0x588] sm:$0xff]
        %v8593 = vld [vmem:[%s8424 + $0x5a0] sm:$0xff]
        %v8594 = vld [vmem:[%s8424 + $0x5a8] sm:$0xff]
        %v8595 = vld [vmem:[%s8424 + $0x5b0] sm:$0xff]
        %v8596 = vld [vmem:[%s8424 + $0x5b8] sm:$0xff]
        %v8597 = vld [vmem:[%s8424 + $0x5c0] sm:$0xff]
        %v8598 = vld [vmem:[%s8424 + $0x5c8] sm:$0xff]
        %v8599 = vld [vmem:[%s8424 + $0x5d0] sm:$0xff]
        %v8600 = vld [vmem:[%s8424 + $0x5d8] sm:$0xff]
        %v8601 = vld [vmem:[%s8424 + $0x5e0] sm:$0xff]
        %v8602 = vld [vmem:[%s8424 + $0x5e8] sm:$0xff]
        %v8603 = vld [vmem:[%s8424 + $0x5f0] sm:$0xff]
        %v8604 = vld [vmem:[%s8424 + $0x5f8] sm:$0xff]
        %v8605 = vld [vmem:[%s8424 + $0x600] sm:$0xff]
        %v8606 = vld [vmem:[%s8424 + $0x608] sm:$0xff]
        %v8607 = vld [vmem:[%s8424 + $0x610] sm:$0xff]
        %v8608 = vld [vmem:[%s8424 + $0x618] sm:$0xff]
        %v8609 = vld [vmem:[%s8424 + $0x620] sm:$0xff]
        %v8610 = vld [vmem:[%s8424 + $0x628] sm:$0xff]
        %v8611 = vld [vmem:[%s8424 + $0x630] sm:$0xff]
        %v8612 = vld [vmem:[%s8424 + $0x638] sm:$0xff]
        %v8613 = vld [vmem:[%s8424 + $0x640] sm:$0xff]
        %v8614 = vld [vmem:[%s8424 + $0x648] sm:$0xff]
        %v8615 = vld [vmem:[%s8424 + $0x650] sm:$0xff]
        %v8616 = vld [vmem:[%s8424 + $0x658] sm:$0xff]
        %v8617 = vld [vmem:[%s8424 + $0x660] sm:$0xff]
        %v8618 = vld [vmem:[%s8424 + $0x668] sm:$0xff]
        %v8619 = vld [vmem:[%s8424 + $0x670] sm:$0xff]
        %v8620 = vld [vmem:[%s8424 + $0x678] sm:$0xff]
        %v8621 = vld [vmem:[%s8424 + $0x690] sm:$0xff]
        %v8622 = vld [vmem:[%s8424 + $0x698] sm:$0xff]
        %v8623 = vld [vmem:[%s8424 + $0x6a0] sm:$0xff]
        %v8624 = vld [vmem:[%s8424 + $0x6a8] sm:$0xff]
        %v8625 = vld [vmem:[%s8424 + $0x6b0] sm:$0xff]
        %v8626 = vld [vmem:[%s8424 + $0x6b8] sm:$0xff]
        %v8627 = vld [vmem:[%s8424 + $0x6c0] sm:$0xff]
        %v8628 = vld [vmem:[%s8424 + $0x6c8] sm:$0xff]
        %v8629 = vld [vmem:[%s8424 + $0x6d0] sm:$0xff]
        %v8630 = vld [vmem:[%s8424 + $0x6d8] sm:$0xff]
        %v8631 = vld [vmem:[%s8424 + $0x6e0] sm:$0xff]
        %v8632 = vld [vmem:[%s8424 + $0x6e8] sm:$0xff]
        %v8633 = vld [vmem:[%s8424 + $0x6f0] sm:$0xff]
        %v8634 = vld [vmem:[%s8424 + $0x6f8] sm:$0xff]
        %v8635 = vld [vmem:[%s8424 + $0x700] sm:$0xff]
        %v8636 = vld [vmem:[%s8424 + $0x708] sm:$0xff]
        %v8637 = vld [vmem:[%s8424 + $0x710] sm:$0xff]
        %v8638 = vld [vmem:[%s8424 + $0x718] sm:$0xff]
        %v8639 = vld [vmem:[%s8424 + $0x720] sm:$0xff]
        %v8640 = vld [vmem:[%s8424 + $0x728] sm:$0xff]
        %v8641 = vld [vmem:[%s8424 + $0x730] sm:$0xff]
        %v8642 = vld [vmem:[%s8424 + $0x738] sm:$0xff]
        %v8643 = vld [vmem:[%s8424 + $0x740] sm:$0xff]
        %v8644 = vld [vmem:[%s8424 + $0x748] sm:$0xff]
        %v8645 = vld [vmem:[%s8424 + $0x750] sm:$0xff]
        %v8646 = vld [vmem:[%s8424 + $0x758] sm:$0xff]
        %v8647 = vld [vmem:[%s8424 + $0x760] sm:$0xff]
        %v8648 = vld [vmem:[%s8424 + $0x768] sm:$0xff]
        %8649 = vmatprep.subr.mxu0 0.0
        %8650 = vmatpush1.msra.mxu0 %v2937
        %8651 = vmatprep.subr.mxu0 0.0
        %8652 = vmatpush1.msra.mxu0 %v2936
        %8653 = vmatprep.subr.mxu0 0.0
        %8654 = vmatpush1.msra.mxu0 %v2935
        %8655 = vmatprep.subr.mxu0 0.0
        %8656 = vmatpush1.msra.mxu0 %v2934
        %8657 = vmatprep.subr.mxu0 0.0
        %8658 = vmatpush1.msra.mxu0 %v2933
        %8659 = vmatprep.subr.mxu0 0.0
        %8660 = vmatpush1.msra.mxu0 %v2932
        %8661 = vmatprep.subr.mxu0 0.0
        %8662 = vmatpush1.msra.mxu0 %v2931
        %8663 = vmatprep.subr.mxu0 0.0
        %8664 = vmatpush1.msra.mxu0 %v2930
        %8665 = vmatprep.subr.mxu0 0.0
        %8666 = vmatpush1.msra.mxu0 %v2929
        %8667 = vmatprep.subr.mxu0 0.0
        %8668 = vmatpush1.msra.mxu0 %v2928
        %8669 = vmatprep.subr.mxu0 0.0
        %8670 = vmatpush1.msra.mxu0 %v2927
        %8671 = vmatprep.subr.mxu0 0.0
        %8672 = vmatpush1.msra.mxu0 %v2926
        %8673 = vmatprep.subr.mxu0 0.0
        %8674 = vmatpush1.msra.mxu0 %v2925
        %8675 = vmatprep.subr.mxu0 0.0
        %8676 = vmatpush1.msra.mxu0 %v2924
        %8677 = vmatprep.subr.mxu0 0.0
        %8678 = vmatpush1.msra.mxu0 %v2923
        %8679 = vmatprep.subr.mxu0 0.0
        %8680 = vmatpush1.msra.mxu0 %v2922
        %8681 = vmatprep.subr.mxu0 0.0
        %8682 = vmatpush2.msra.mxu0 %v2953
        %8683 = vmatprep.subr.mxu0 0.0
        %8684 = vmatpush2.msra.mxu0 %v2952
        %8685 = vmatprep.subr.mxu0 0.0
        %8686 = vmatpush2.msra.mxu0 %v2951
        %8687 = vmatprep.subr.mxu0 0.0
        %8688 = vmatpush2.msra.mxu0 %v2950
        %8689 = vmatprep.subr.mxu0 0.0
        %8690 = vmatpush2.msra.mxu0 %v2949
        %8691 = vmatprep.subr.mxu0 0.0
        %8692 = vmatpush2.msra.mxu0 %v2948
        %8693 = vmatprep.subr.mxu0 0.0
        %8694 = vmatpush2.msra.mxu0 %v2947
        %8695 = vmatprep.subr.mxu0 0.0
        %8696 = vmatpush2.msra.mxu0 %v2946
        %8697 = vmatprep.subr.mxu0 0.0
        %8698 = vmatpush2.msra.mxu0 %v2945
        %8699 = vmatprep.subr.mxu0 0.0
        %8700 = vmatpush2.msra.mxu0 %v2944
        %8701 = vmatprep.subr.mxu0 0.0
        %8702 = vmatpush2.msra.mxu0 %v2943
        %8703 = vmatprep.subr.mxu0 0.0
        %8704 = vmatpush2.msra.mxu0 %v2942
        %8705 = vmatprep.subr.mxu0 0.0
        %8706 = vmatpush2.msra.mxu0 %v2941
        %8707 = vmatprep.subr.mxu0 0.0
        %8708 = vmatpush2.msra.mxu0 %v2940
        %8709 = vmatprep.subr.mxu0 0.0
        %8710 = vmatpush2.msra.mxu0 %v2939
        %8711 = vmatprep.subr.mxu0 0.0
        %8712 = vmatpush2.msra.mxu0 %v2938
        %8713 = vmatprep.mubr.f32.mxu0 %v8426
        %8714 = vmatmul.mubr.f32.gmra.mxu0 %v8425
        %v8715 = vpop.f32.mrf.mxu0
        %v8716 = vadd.f32 0.0, %v8715
        %v8717 = vpop.f32.mrf.mxu0
        %8718 = vmatprep.mubr.f32.mxu0 %v8428
        %8719 = vmatmul.mubr.f32.gmra.mxu0 %v8427
        %v8720 = vpop.f32.mrf.mxu0
        %v8721 = vadd.f32 0.0, %v8720
        %v8722 = vpop.f32.mrf.mxu0
        %8723 = vmatprep.mubr.f32.mxu0 %v8430
        %8724 = vmatmul.mubr.f32.gmra.mxu0 %v8429
        %v8725 = vpop.f32.mrf.mxu0
        %v8726 = vpop.f32.mrf.mxu0
        %8727 = vmatprep.mubr.f32.mxu0 %v8432
        %8728 = vmatmul.mubr.f32.gmra.mxu0 %v8431
        %v8729 = vpop.f32.mrf.mxu0
        %v8730 = vpop.f32.mrf.mxu0
        %8731 = vmatprep.mubr.f32.mxu0 %v8434
        %8732 = vmatmul.mubr.f32.gmra.mxu0 %v8433
        %v8733 = vpop.f32.mrf.mxu0
        %v8734 = vadd.f32 0.0, %v8733
        %v8735 = vpop.f32.mrf.mxu0
        %8736 = vmatprep.mubr.f32.mxu0 %v8436
        %8737 = vmatmul.mubr.f32.gmra.mxu0 %v8435
        %v8738 = vpop.f32.mrf.mxu0
        %v8739 = vadd.f32 0.0, %v8738
        %v8740 = vpop.f32.mrf.mxu0
        %8741 = vmatprep.mubr.f32.mxu0 %v8438
        %8742 = vmatmul.mubr.f32.gmra.mxu0 %v8437
        %v8743 = vpop.f32.mrf.mxu0
        %v8744 = vpop.f32.mrf.mxu0
        %8745 = vmatprep.mubr.f32.mxu0 %v8440
        %8746 = vmatmul.mubr.f32.gmra.mxu0 %v8439
        %v8747 = vpop.f32.mrf.mxu0
        %v8748 = vpop.f32.mrf.mxu0
        %8749 = vmatprep.mubr.f32.mxu0 %v8442
        %8750 = vmatmul.mubr.f32.gmra.mxu0 %v8441
        %v8751 = vpop.f32.mrf.mxu0
        %v8752 = vadd.f32 0.0, %v8751
        %v8753 = vpop.f32.mrf.mxu0
        %8754 = vmatprep.mubr.f32.mxu0 %v8444
        %8755 = vmatmul.mubr.f32.gmra.mxu0 %v8443
        %v8756 = vpop.f32.mrf.mxu0
        %v8757 = vadd.f32 0.0, %v8756
        %v8758 = vpop.f32.mrf.mxu0
        %8759 = vmatprep.mubr.f32.mxu0 %v8446
        %8760 = vmatmul.mubr.f32.gmra.mxu0 %v8445
        %v8761 = vpop.f32.mrf.mxu0
        %v8762 = vpop.f32.mrf.mxu0
        %8763 = vmatprep.mubr.f32.mxu0 %v8448
        %8764 = vmatmul.mubr.f32.gmra.mxu0 %v8447
        %v8765 = vpop.f32.mrf.mxu0
        %v8766 = vpop.f32.mrf.mxu0
        %8767 = vmatprep.mubr.f32.mxu0 %v8450
        %8768 = vmatmul.mubr.f32.gmra.mxu0 %v8449
        %v8769 = vpop.f32.mrf.mxu0
        %v8770 = vadd.f32 0.0, %v8769
        %v8771 = vpop.f32.mrf.mxu0
        %8772 = vmatprep.mubr.f32.mxu0 %v8452
        %8773 = vmatmul.mubr.f32.gmra.mxu0 %v8451
        %v8774 = vpop.f32.mrf.mxu0
        %v8775 = vadd.f32 0.0, %v8774
        %v8776 = vpop.f32.mrf.mxu0
        %8777 = vmatprep.mubr.f32.mxu0 %v8454
        %8778 = vmatmul.mubr.f32.gmra.mxu0 %v8453
        %v8779 = vpop.f32.mrf.mxu0
        %v8780 = vadd.f32 0.0, %v8779
        %v8781 = vpop.f32.mrf.mxu0
        %8782 = vmatprep.mubr.f32.mxu0 %v8456
        %8783 = vmatmul.mubr.f32.gmra.mxu0 %v8455
        %v8784 = vpop.f32.mrf.mxu0
        %v8785 = vadd.f32 0.0, %v8784
        %v8786 = vpop.f32.mrf.mxu0
        %8787 = vmatprep.mubr.f32.mxu0 %v8458
        %8788 = vmatmul.mubr.f32.gmra.mxu0 %v8457
        %v8789 = vpop.f32.mrf.mxu0
        %v8790 = vpop.f32.mrf.mxu0
        %8791 = vmatprep.mubr.f32.mxu0 %v8460
        %8792 = vmatmul.mubr.f32.gmra.mxu0 %v8459
        %v8793 = vpop.f32.mrf.mxu0
        %v8794 = vpop.f32.mrf.mxu0
        %8795 = vmatprep.mubr.f32.mxu0 %v8462
        %8796 = vmatmul.mubr.f32.gmra.mxu0 %v8461
        %v8797 = vpop.f32.mrf.mxu0
        %v8798 = vadd.f32 0.0, %v8797
        %v8799 = vpop.f32.mrf.mxu0
        %8800 = vmatprep.mubr.f32.mxu0 %v8464
        %8801 = vmatmul.mubr.f32.gmra.mxu0 %v8463
        %v8802 = vpop.f32.mrf.mxu0
        %v8803 = vadd.f32 0.0, %v8802
        %v8804 = vpop.f32.mrf.mxu0
        %8805 = vmatprep.mubr.f32.mxu0 %v8466
        %8806 = vmatmul.mubr.f32.gmra.mxu0 %v8465
        %v8807 = vpop.f32.mrf.mxu0
        %v8808 = vpop.f32.mrf.mxu0
        %8809 = vmatprep.mubr.f32.mxu0 %v8468
        %8810 = vmatmul.mubr.f32.gmra.mxu0 %v8467
        %v8811 = vpop.f32.mrf.mxu0
        %v8812 = vpop.f32.mrf.mxu0
        %8813 = vmatprep.mubr.f32.mxu0 %v8470
        %8814 = vmatmul.mubr.f32.gmra.mxu0 %v8469
        %v8815 = vpop.f32.mrf.mxu0
        %v8816 = vadd.f32 0.0, %v8815
        %v8817 = vpop.f32.mrf.mxu0
        %8818 = vmatprep.mubr.f32.mxu0 %v8472
        %8819 = vmatmul.mubr.f32.gmra.mxu0 %v8471
        %v8820 = vpop.f32.mrf.mxu0
        %v8821 = vadd.f32 0.0, %v8820
        %v8822 = vpop.f32.mrf.mxu0
        %8823 = vmatprep.mubr.f32.mxu0 %v8474
        %8824 = vmatmul.mubr.f32.gmra.mxu0 %v8473
        %v8825 = vpop.f32.mrf.mxu0
        %v8826 = vpop.f32.mrf.mxu0
        %8827 = vmatprep.mubr.f32.mxu0 %v8476
        %8828 = vmatmul.mubr.f32.gmra.mxu0 %v8475
        %v8829 = vpop.f32.mrf.mxu0
        %v8830 = vpop.f32.mrf.mxu0
        %8831 = vmatprep.mubr.f32.mxu0 %v8478
        %8832 = vmatmul.mubr.f32.gmra.mxu0 %v8477
        %v8833 = vpop.f32.mrf.mxu0
        %v8834 = vadd.f32 0.0, %v8833
        %v8835 = vpop.f32.mrf.mxu0
        %8836 = vmatprep.mubr.f32.mxu0 %v8480
        %8837 = vmatmul.mubr.f32.gmra.mxu0 %v8479
        %v8838 = vpop.f32.mrf.mxu0
        %v8839 = vadd.f32 0.0, %v8838
        %v8840 = vpop.f32.mrf.mxu0
        %8841 = vmatprep.mubr.f32.mxu0 %v8482
        %8842 = vmatmul.mubr.f32.gmra.mxu0 %v8481
        %v8843 = vpop.f32.mrf.mxu0
        %v8844 = vadd.f32 0.0, %v8843
        %v8845 = vpop.f32.mrf.mxu0
        %8846 = vmatprep.mubr.f32.mxu0 %v8484
        %8847 = vmatmul.mubr.f32.gmra.mxu0 %v8483
        %v8848 = vpop.f32.mrf.mxu0
        %v8849 = vadd.f32 0.0, %v8848
        %v8850 = vpop.f32.mrf.mxu0
        %8851 = vmatprep.mubr.f32.mxu0 %v8486
        %8852 = vmatmul.mubr.f32.gmra.mxu0 %v8485
        %v8853 = vpop.f32.mrf.mxu0
        %v8854 = vpop.f32.mrf.mxu0
        %8855 = vmatprep.mubr.f32.mxu0 %v8488
        %8856 = vmatmul.mubr.f32.gmra.mxu0 %v8487
        %v8857 = vpop.f32.mrf.mxu0
        %v8858 = vpop.f32.mrf.mxu0
        %8859 = vmatprep.mubr.f32.mxu0 %v8490
        %8860 = vmatmul.mubr.f32.gmra.mxu0 %v8489
        %v8861 = vpop.f32.mrf.mxu0
        %v8862 = vadd.f32 0.0, %v8861
        %v8863 = vpop.f32.mrf.mxu0
        %8864 = vmatprep.mubr.f32.mxu0 %v8492
        %8865 = vmatmul.mubr.f32.gmra.mxu0 %v8491
        %v8866 = vpop.f32.mrf.mxu0
        %v8867 = vadd.f32 0.0, %v8866
        %v8868 = vpop.f32.mrf.mxu0
        %8869 = vmatprep.mubr.f32.mxu0 %v8494
        %8870 = vmatmul.mubr.f32.gmra.mxu0 %v8493
        %v8871 = vpop.f32.mrf.mxu0
        %v8872 = vpop.f32.mrf.mxu0
        %8873 = vmatprep.mubr.f32.mxu0 %v8496
        %8874 = vmatmul.mubr.f32.gmra.mxu0 %v8495
        %v8875 = vpop.f32.mrf.mxu0
        %v8876 = vpop.f32.mrf.mxu0
        %8877 = vmatprep.mubr.f32.mxu0 %v8498
        %8878 = vmatmul.mubr.f32.gmra.mxu0 %v8497
        %v8879 = vpop.f32.mrf.mxu0
        %v8880 = vadd.f32 0.0, %v8879
        %v8881 = vpop.f32.mrf.mxu0
        %8882 = vmatprep.mubr.f32.mxu0 %v8500
        %8883 = vmatmul.mubr.f32.gmra.mxu0 %v8499
        %v8884 = vpop.f32.mrf.mxu0
        %v8885 = vadd.f32 0.0, %v8884
        %v8886 = vpop.f32.mrf.mxu0
        %8887 = vmatprep.mubr.f32.mxu0 %v8502
        %8888 = vmatmul.mubr.f32.gmra.mxu0 %v8501
        %v8889 = vpop.f32.mrf.mxu0
        %v8890 = vpop.f32.mrf.mxu0
        %8891 = vmatprep.mubr.f32.mxu0 %v8504
        %8892 = vmatmul.mubr.f32.gmra.mxu0 %v8503
        %v8893 = vpop.f32.mrf.mxu0
        %v8894 = vpop.f32.mrf.mxu0
        %8895 = vmatprep.mubr.f32.mxu0 %v8506
        %8896 = vmatmul.mubr.f32.gmra.mxu0 %v8505
        %v8897 = vpop.f32.mrf.mxu0
        %v8898 = vadd.f32 0.0, %v8897
        %v8899 = vpop.f32.mrf.mxu0
        %8900 = vmatprep.mubr.f32.mxu0 %v8508
        %8901 = vmatmul.mubr.f32.gmra.mxu0 %v8507
        %v8902 = vpop.f32.mrf.mxu0
        %v8903 = vadd.f32 0.0, %v8902
        %v8904 = vpop.f32.mrf.mxu0
        %8905 = vmatprep.mubr.f32.mxu0 %v8510
        %8906 = vmatmul.mubr.f32.gmra.mxu0 %v8509
        %v8907 = vpop.f32.mrf.mxu0
        %v8908 = vadd.f32 0.0, %v8907
        %v8909 = vpop.f32.mrf.mxu0
        %8910 = vmatprep.mubr.f32.mxu0 %v8512
        %8911 = vmatmul.mubr.f32.gmra.mxu0 %v8511
        %v8912 = vpop.f32.mrf.mxu0
        %v8913 = vadd.f32 0.0, %v8912
        %v8914 = vpop.f32.mrf.mxu0
        %8915 = vmatprep.mubr.f32.mxu0 %v8514
        %8916 = vmatmul.mubr.f32.gmra.mxu0 %v8513
        %v8917 = vpop.f32.mrf.mxu0
        %v8918 = vpop.f32.mrf.mxu0
        %8919 = vmatprep.mubr.f32.mxu0 %v8516
        %8920 = vmatmul.mubr.f32.gmra.mxu0 %v8515
        %v8921 = vpop.f32.mrf.mxu0
        %v8922 = vpop.f32.mrf.mxu0
        %8923 = vmatprep.mubr.f32.mxu0 %v8518
        %8924 = vmatmul.mubr.f32.gmra.mxu0 %v8517
        %v8925 = vpop.f32.mrf.mxu0
        %v8926 = vadd.f32 0.0, %v8925
        %v8927 = vpop.f32.mrf.mxu0
        %8928 = vmatprep.mubr.f32.mxu0 %v8520
        %8929 = vmatmul.mubr.f32.gmra.mxu0 %v8519
        %v8930 = vpop.f32.mrf.mxu0
        %v8931 = vadd.f32 0.0, %v8930
        %v8932 = vpop.f32.mrf.mxu0
        %8933 = vmatprep.mubr.f32.mxu0 %v8522
        %8934 = vmatmul.mubr.f32.gmra.mxu0 %v8521
        %v8935 = vpop.f32.mrf.mxu0
        %v8936 = vpop.f32.mrf.mxu0
        %8937 = vmatprep.mubr.f32.mxu0 %v8524
        %8938 = vmatmul.mubr.f32.gmra.mxu0 %v8523
        %v8939 = vpop.f32.mrf.mxu0
        %v8940 = vpop.f32.mrf.mxu0
        %8941 = vmatprep.mubr.f32.mxu0 %v8526
        %8942 = vmatmul.mubr.f32.gmra.mxu0 %v8525
        %v8943 = vpop.f32.mrf.mxu0
        %v8944 = vadd.f32 0.0, %v8943
        %v8945 = vpop.f32.mrf.mxu0
        %8946 = vmatprep.mubr.f32.mxu0 %v8528
        %8947 = vmatmul.mubr.f32.gmra.mxu0 %v8527
        %v8948 = vpop.f32.mrf.mxu0
        %v8949 = vadd.f32 0.0, %v8948
        %v8950 = vpop.f32.mrf.mxu0
        %8951 = vmatprep.mubr.f32.mxu0 %v8530
        %8952 = vmatmul.mubr.f32.gmra.mxu0 %v8529
        %v8953 = vpop.f32.mrf.mxu0
        %v8954 = vpop.f32.mrf.mxu0
        %8955 = vmatprep.mubr.f32.mxu0 %v8532
        %8956 = vmatmul.mubr.f32.gmra.mxu0 %v8531
        %v8957 = vpop.f32.mrf.mxu0
        %v8958 = vpop.f32.mrf.mxu0
        %8959 = vmatprep.mubr.f32.mxu0 %v8534
        %8960 = vmatmul.mubr.f32.gmra.mxu0 %v8533
        %v8961 = vpop.f32.mrf.mxu0
        %v8962 = vadd.f32 0.0, %v8961
        %v8963 = vpop.f32.mrf.mxu0
        %8964 = vmatprep.mubr.f32.mxu0 %v8536
        %8965 = vmatmul.mubr.f32.gmra.mxu0 %v8535
        %v8966 = vpop.f32.mrf.mxu0
        %v8967 = vadd.f32 0.0, %v8966
        %v8968 = vpop.f32.mrf.mxu0
        %8969 = vmatprep.mubr.f32.mxu0 %v8538
        %8970 = vmatmul.mubr.f32.gmra.mxu0 %v8537
        %v8971 = vpop.f32.mrf.mxu0
        %v8972 = vadd.f32 0.0, %v8971
        %v8973 = vpop.f32.mrf.mxu0
        %8974 = vmatprep.mubr.f32.mxu0 %v8540
        %8975 = vmatmul.mubr.f32.gmra.mxu0 %v8539
        %v8976 = vpop.f32.mrf.mxu0
        %v8977 = vadd.f32 0.0, %v8976
        %v8978 = vpop.f32.mrf.mxu0
        %8979 = vmatprep.mubr.f32.mxu0 %v8542
        %8980 = vmatmul.mubr.f32.gmra.mxu0 %v8541
        %v8981 = vpop.f32.mrf.mxu0
        %v8982 = vpop.f32.mrf.mxu0
        %8983 = vmatprep.mubr.f32.mxu0 %v8544
        %8984 = vmatmul.mubr.f32.gmra.mxu0 %v8543
        %v8985 = vpop.f32.mrf.mxu0
        %v8986 = vpop.f32.mrf.mxu0
        %8987 = vmatprep.mubr.f32.mxu0 %v8546
        %8988 = vmatmul.mubr.f32.gmra.mxu0 %v8545
        %v8989 = vpop.f32.mrf.mxu0
        %v8990 = vadd.f32 0.0, %v8989
        %v8991 = vpop.f32.mrf.mxu0
        %8992 = vmatprep.mubr.f32.mxu0 %v8548
        %8993 = vmatmul.mubr.f32.gmra.mxu0 %v8547
        %v8994 = vpop.f32.mrf.mxu0
        %v8995 = vadd.f32 0.0, %v8994
        %v8996 = vpop.f32.mrf.mxu0
        %8997 = vmatprep.mubr.f32.mxu0 %v8550
        %8998 = vmatmul.mubr.f32.gmra.mxu0 %v8549
        %v8999 = vpop.f32.mrf.mxu0
        %v9000 = vpop.f32.mrf.mxu0
        %9001 = vmatprep.mubr.f32.mxu0 %v8552
        %9002 = vmatmul.mubr.f32.gmra.mxu0 %v8551
        %v9003 = vpop.f32.mrf.mxu0
        %v9004 = vpop.f32.mrf.mxu0
        %9005 = vmatprep.mubr.f32.mxu0 %v8554
        %9006 = vmatmul.mubr.f32.gmra.mxu0 %v8553
        %v9007 = vpop.f32.mrf.mxu0
        %v9008 = vadd.f32 0.0, %v9007
        %v9009 = vpop.f32.mrf.mxu0
        %9010 = vmatprep.mubr.f32.mxu0 %v8556
        %9011 = vmatmul.mubr.f32.gmra.mxu0 %v8555
        %v9012 = vpop.f32.mrf.mxu0
        %v9013 = vadd.f32 0.0, %v9012
        %v9014 = vpop.f32.mrf.mxu0
        %9015 = vmatprep.mubr.f32.mxu0 %v8558
        %9016 = vmatmul.mubr.f32.gmra.mxu0 %v8557
        %v9017 = vpop.f32.mrf.mxu0
        %v9018 = vpop.f32.mrf.mxu0
        %9019 = vmatprep.mubr.f32.mxu0 %v8560
        %9020 = vmatmul.mubr.f32.gmra.mxu0 %v8559
        %v9021 = vpop.f32.mrf.mxu0
        %v9022 = vpop.f32.mrf.mxu0
        %9023 = vmatprep.mubr.f32.mxu0 %v8562
        %9024 = vmatmul.mubr.f32.gmra.mxu0 %v8561
        %v9025 = vpop.f32.mrf.mxu0
        %v9026 = vadd.f32 0.0, %v9025
        %v9027 = vpop.f32.mrf.mxu0
        %9028 = vmatprep.mubr.f32.mxu0 %v8564
        %9029 = vmatmul.mubr.f32.gmra.mxu0 %v8563
        %v9030 = vpop.f32.mrf.mxu0
        %v9031 = vadd.f32 0.0, %v9030
        %v9032 = vpop.f32.mrf.mxu0
        %9033 = vmatprep.mubr.f32.mxu0 %v8566
        %9034 = vmatmul.mubr.f32.gmra.mxu0 %v8565
        %v9035 = vpop.f32.mrf.mxu0
        %v9036 = vadd.f32 0.0, %v9035
        %v9037 = vpop.f32.mrf.mxu0
        %9038 = vmatprep.mubr.f32.mxu0 %v8568
        %9039 = vmatmul.mubr.f32.gmra.mxu0 %v8567
        %v9040 = vpop.f32.mrf.mxu0
        %v9041 = vadd.f32 0.0, %v9040
        %v9042 = vpop.f32.mrf.mxu0
        %9043 = vmatprep.mubr.f32.mxu0 %v8570
        %9044 = vmatmul.mubr.f32.gmra.mxu0 %v8569
        %v9045 = vpop.f32.mrf.mxu0
        %v9046 = vpop.f32.mrf.mxu0
        %9047 = vmatprep.mubr.f32.mxu0 %v8572
        %9048 = vmatmul.mubr.f32.gmra.mxu0 %v8571
        %v9049 = vpop.f32.mrf.mxu0
        %v9050 = vpop.f32.mrf.mxu0
        %9051 = vmatprep.mubr.f32.mxu0 %v8574
        %9052 = vmatmul.mubr.f32.gmra.mxu0 %v8573
        %v9053 = vpop.f32.mrf.mxu0
        %v9054 = vadd.f32 0.0, %v9053
        %v9055 = vpop.f32.mrf.mxu0
        %9056 = vmatprep.mubr.f32.mxu0 %v8576
        %9057 = vmatmul.mubr.f32.gmra.mxu0 %v8575
        %v9058 = vpop.f32.mrf.mxu0
        %v9059 = vadd.f32 0.0, %v9058
        %v9060 = vpop.f32.mrf.mxu0
        %9061 = vmatprep.mubr.f32.mxu0 %v8578
        %9062 = vmatmul.mubr.f32.gmra.mxu0 %v8577
        %v9063 = vpop.f32.mrf.mxu0
        %v9064 = vpop.f32.mrf.mxu0
        %9065 = vmatprep.mubr.f32.mxu0 %v8580
        %9066 = vmatmul.mubr.f32.gmra.mxu0 %v8579
        %v9067 = vpop.f32.mrf.mxu0
        %v9068 = vpop.f32.mrf.mxu0
        %9069 = vmatprep.mubr.f32.mxu0 %v8582
        %9070 = vmatmul.mubr.f32.gmra.mxu0 %v8581
        %v9071 = vpop.f32.mrf.mxu0
        %v9072 = vadd.f32 0.0, %v9071
        %v9073 = vpop.f32.mrf.mxu0
        %9074 = vmatprep.mubr.f32.mxu0 %v8584
        %9075 = vmatmul.mubr.f32.gmra.mxu0 %v8583
        %v9076 = vpop.f32.mrf.mxu0
        %v9077 = vadd.f32 0.0, %v9076
        %v9078 = vpop.f32.mrf.mxu0
        %9079 = vmatprep.mubr.f32.mxu0 %v8586
        %9080 = vmatmul.mubr.f32.gmra.mxu0 %v8585
        %v9081 = vpop.f32.mrf.mxu0
        %v9082 = vpop.f32.mrf.mxu0
        %9083 = vmatprep.mubr.f32.mxu0 %v8588
        %9084 = vmatmul.mubr.f32.gmra.mxu0 %v8587
        %v9085 = vpop.f32.mrf.mxu0
        %v9086 = vpop.f32.mrf.mxu0
        %9087 = vmatprep.mubr.f32.mxu0 %v8590
        %9088 = vmatmul.mubr.f32.gmra.mxu0 %v8589
        %v9089 = vpop.f32.mrf.mxu0
        %v9090 = vadd.f32 0.0, %v9089
        %v9091 = vpop.f32.mrf.mxu0
        %9092 = vmatprep.mubr.f32.mxu0 %v8592
        %9093 = vmatmul.mubr.f32.gmra.mxu0 %v8591
        %v9094 = vpop.f32.mrf.mxu0
        %v9095 = vadd.f32 0.0, %v9094
        %v9096 = vpop.f32.mrf.mxu0
        %9097 = vmatprep.mubr.f32.mxu0 %v8594
        %9098 = vmatmul.mubr.f32.gmra.mxu0 %v8593
        %v9099 = vpop.f32.mrf.mxu0
        %v9100 = vadd.f32 0.0, %v9099
        %v9101 = vpop.f32.mrf.mxu0
        %9102 = vmatprep.mubr.f32.mxu0 %v8596
        %9103 = vmatmul.mubr.f32.gmra.mxu0 %v8595
        %v9104 = vpop.f32.mrf.mxu0
        %v9105 = vadd.f32 0.0, %v9104
        %v9106 = vpop.f32.mrf.mxu0
        %9107 = vmatprep.mubr.f32.mxu0 %v8598
        %9108 = vmatmul.mubr.f32.gmra.mxu0 %v8597
        %v9109 = vpop.f32.mrf.mxu0
        %v9110 = vpop.f32.mrf.mxu0
        %9111 = vmatprep.mubr.f32.mxu0 %v8600
        %9112 = vmatmul.mubr.f32.gmra.mxu0 %v8599
        %v9113 = vpop.f32.mrf.mxu0
        %v9114 = vpop.f32.mrf.mxu0
        %9115 = vmatprep.mubr.f32.mxu0 %v8602
        %9116 = vmatmul.mubr.f32.gmra.mxu0 %v8601
        %v9117 = vpop.f32.mrf.mxu0
        %v9118 = vadd.f32 0.0, %v9117
        %v9119 = vpop.f32.mrf.mxu0
        %9120 = vmatprep.mubr.f32.mxu0 %v8604
        %9121 = vmatmul.mubr.f32.gmra.mxu0 %v8603
        %v9122 = vpop.f32.mrf.mxu0
        %v9123 = vadd.f32 0.0, %v9122
        %v9124 = vpop.f32.mrf.mxu0
        %9125 = vmatprep.mubr.f32.mxu0 %v8606
        %9126 = vmatmul.mubr.f32.gmra.mxu0 %v8605
        %v9127 = vpop.f32.mrf.mxu0
        %v9128 = vpop.f32.mrf.mxu0
        %9129 = vmatprep.mubr.f32.mxu0 %v8608
        %9130 = vmatmul.mubr.f32.gmra.mxu0 %v8607
        %v9131 = vpop.f32.mrf.mxu0
        %v9132 = vpop.f32.mrf.mxu0
        %9133 = vmatprep.mubr.f32.mxu0 %v8610
        %9134 = vmatmul.mubr.f32.gmra.mxu0 %v8609
        %v9135 = vpop.f32.mrf.mxu0
        %v9136 = vadd.f32 0.0, %v9135
        %v9137 = vpop.f32.mrf.mxu0
        %9138 = vmatprep.mubr.f32.mxu0 %v8612
        %9139 = vmatmul.mubr.f32.gmra.mxu0 %v8611
        %v9140 = vpop.f32.mrf.mxu0
        %v9141 = vadd.f32 0.0, %v9140
        %v9142 = vpop.f32.mrf.mxu0
        %9143 = vmatprep.mubr.f32.mxu0 %v8614
        %9144 = vmatmul.mubr.f32.gmra.mxu0 %v8613
        %v9145 = vpop.f32.mrf.mxu0
        %v9146 = vpop.f32.mrf.mxu0
        %9147 = vmatprep.mubr.f32.mxu0 %v8616
        %9148 = vmatmul.mubr.f32.gmra.mxu0 %v8615
        %v9149 = vpop.f32.mrf.mxu0
        %v9150 = vpop.f32.mrf.mxu0
        %9151 = vmatprep.mubr.f32.mxu0 %v8618
        %9152 = vmatmul.mubr.f32.gmra.mxu0 %v8617
        %v9153 = vpop.f32.mrf.mxu0
        %v9154 = vadd.f32 0.0, %v9153
        %v9155 = vpop.f32.mrf.mxu0
        %9156 = vmatprep.mubr.f32.mxu0 %v8620
        %9157 = vmatmul.mubr.f32.gmra.mxu0 %v8619
        %v9158 = vpop.f32.mrf.mxu0
        %v9159 = vadd.f32 0.0, %v9158
        %v9160 = vpop.f32.mrf.mxu0
        %9161 = vmatprep.mubr.f32.mxu0 %v8622
        %9162 = vmatmul.mubr.f32.gmra.mxu0 %v8621
        %v9163 = vpop.f32.mrf.mxu0
        %v9164 = vadd.f32 0.0, %v9163
        %v9165 = vpop.f32.mrf.mxu0
        %9166 = vmatprep.mubr.f32.mxu0 %v8624
        %9167 = vmatmul.mubr.f32.gmra.mxu0 %v8623
        %v9168 = vpop.f32.mrf.mxu0
        %v9169 = vadd.f32 0.0, %v9168
        %v9170 = vpop.f32.mrf.mxu0
        %9171 = vmatprep.mubr.f32.mxu0 %v8626
        %9172 = vmatmul.mubr.f32.gmra.mxu0 %v8625
        %v9173 = vpop.f32.mrf.mxu0
        %v9174 = vpop.f32.mrf.mxu0
        %9175 = vmatprep.mubr.f32.mxu0 %v8628
        %9176 = vmatmul.mubr.f32.gmra.mxu0 %v8627
        %v9177 = vpop.f32.mrf.mxu0
        %v9178 = vpop.f32.mrf.mxu0
        %9179 = vmatprep.mubr.f32.mxu0 %v8630
        %9180 = vmatmul.mubr.f32.gmra.mxu0 %v8629
        %v9181 = vpop.f32.mrf.mxu0
        %v9182 = vadd.f32 0.0, %v9181
        %v9183 = vpop.f32.mrf.mxu0
        %9184 = vmatprep.mubr.f32.mxu0 %v8632
        %9185 = vmatmul.mubr.f32.gmra.mxu0 %v8631
        %v9186 = vpop.f32.mrf.mxu0
        %v9187 = vadd.f32 0.0, %v9186
        %v9188 = vpop.f32.mrf.mxu0
        %9189 = vmatprep.mubr.f32.mxu0 %v8634
        %9190 = vmatmul.mubr.f32.gmra.mxu0 %v8633
        %v9191 = vpop.f32.mrf.mxu0
        %v9192 = vpop.f32.mrf.mxu0
        %9193 = vmatprep.mubr.f32.mxu0 %v8636
        %9194 = vmatmul.mubr.f32.gmra.mxu0 %v8635
        %v9195 = vpop.f32.mrf.mxu0
        %v9196 = vpop.f32.mrf.mxu0
        %9197 = vmatprep.mubr.f32.mxu0 %v8638
        %9198 = vmatmul.mubr.f32.gmra.mxu0 %v8637
        %v9199 = vpop.f32.mrf.mxu0
        %v9200 = vadd.f32 0.0, %v9199
        %v9201 = vpop.f32.mrf.mxu0
        %9202 = vmatprep.mubr.f32.mxu0 %v8640
        %9203 = vmatmul.mubr.f32.gmra.mxu0 %v8639
        %v9204 = vpop.f32.mrf.mxu0
        %v9205 = vadd.f32 0.0, %v9204
        %v9206 = vpop.f32.mrf.mxu0
        %9207 = vmatprep.mubr.f32.mxu0 %v8642
        %9208 = vmatmul.mubr.f32.gmra.mxu0 %v8641
        %v9209 = vpop.f32.mrf.mxu0
        %v9210 = vpop.f32.mrf.mxu0
        %9211 = vmatprep.mubr.f32.mxu0 %v8644
        %9212 = vmatmul.mubr.f32.gmra.mxu0 %v8643
        %v9213 = vpop.f32.mrf.mxu0
        %v9214 = vpop.f32.mrf.mxu0
        %9215 = vmatprep.mubr.f32.mxu0 %v8646
        %9216 = vmatmul.mubr.f32.gmra.mxu0 %v8645
        %v9217 = vpop.f32.mrf.mxu0
        %v9218 = vadd.f32 0.0, %v9217
        %v9219 = vpop.f32.mrf.mxu0
        %9220 = vmatprep.mubr.f32.mxu0 %v8648
        %9221 = vmatmul.mubr.f32.gmra.mxu0 %v8647
        %v9222 = vpop.f32.mrf.mxu0
        %v9223 = vadd.f32 0.0, %v9222
        %v9224 = vpop.f32.mrf.mxu0
        %9225 = vdwg.mxu0
        %v9226 = vadd.f32 %v7914, %v8716
        %v9227 = vadd.f32 %v7919, %v8721
        %v9228 = vadd.f32 %v7932, %v8734
        %v9229 = vadd.f32 %v7937, %v8739
        %v9230 = vadd.f32 %v7950, %v8752
        %v9231 = vadd.f32 %v7955, %v8757
        %v9232 = vadd.f32 %v7968, %v8770
        %v9233 = vadd.f32 %v7973, %v8775
        %v9234 = vadd.f32 %v7978, %v8780
        %v9235 = vadd.f32 %v7983, %v8785
        %v9236 = vadd.f32 %v7996, %v8798
        %v9237 = vadd.f32 %v8001, %v8803
        %v9238 = vadd.f32 %v8014, %v8816
        %v9239 = vadd.f32 %v8019, %v8821
        %v9240 = vadd.f32 %v8032, %v8834
        %v9241 = vadd.f32 %v8037, %v8839
        %v9242 = vadd.f32 %v8042, %v8844
        %v9243 = vadd.f32 %v8047, %v8849
        %v9244 = vadd.f32 %v8060, %v8862
        %v9245 = vadd.f32 %v8065, %v8867
        %v9246 = vadd.f32 %v8078, %v8880
        %v9247 = vadd.f32 %v8083, %v8885
        %v9248 = vadd.f32 %v8096, %v8898
        %v9249 = vadd.f32 %v8101, %v8903
        %v9250 = vadd.f32 %v8106, %v8908
        %v9251 = vadd.f32 %v8111, %v8913
        %v9252 = vadd.f32 %v8124, %v8926
        %v9253 = vadd.f32 %v8129, %v8931
        %v9254 = vadd.f32 %v8142, %v8944
        %v9255 = vadd.f32 %v8147, %v8949
        %v9256 = vadd.f32 %v8160, %v8962
        %v9257 = vadd.f32 %v8165, %v8967
        %v9258 = vadd.f32 %v8170, %v8972
        %v9259 = vadd.f32 %v8175, %v8977
        %v9260 = vadd.f32 %v8188, %v8990
        %v9261 = vadd.f32 %v8193, %v8995
        %v9262 = vadd.f32 %v8206, %v9008
        %v9263 = vadd.f32 %v8211, %v9013
        %v9264 = vadd.f32 %v8224, %v9026
        %v9265 = vadd.f32 %v8229, %v9031
        %v9266 = vadd.f32 %v8234, %v9036
        %v9267 = vadd.f32 %v8239, %v9041
        %v9268 = vadd.f32 %v8252, %v9054
        %v9269 = vadd.f32 %v8257, %v9059
        %v9270 = vadd.f32 %v8270, %v9072
        %v9271 = vadd.f32 %v8275, %v9077
        %v9272 = vadd.f32 %v8288, %v9090
        %v9273 = vadd.f32 %v8293, %v9095
        %v9274 = vadd.f32 %v8298, %v9100
        %v9275 = vadd.f32 %v8303, %v9105
        %v9276 = vadd.f32 %v8316, %v9118
        %v9277 = vadd.f32 %v8321, %v9123
        %v9278 = vadd.f32 %v8334, %v9136
        %v9279 = vadd.f32 %v8339, %v9141
        %v9280 = vadd.f32 %v8352, %v9154
        %v9281 = vadd.f32 %v8357, %v9159
        %v9282 = vadd.f32 %v8362, %v9164
        %v9283 = vadd.f32 %v8367, %v9169
        %v9284 = vadd.f32 %v8380, %v9182
        %v9285 = vadd.f32 %v8385, %v9187
        %v9286 = vadd.f32 %v8398, %v9200
        %v9287 = vadd.f32 %v8403, %v9205
        %v9288 = vadd.f32 %v8416, %v9218
        %v9289 = vadd.f32 %v8421, %v9223
        %v9290 = vld [vmem:[%s8424] sm:$0xfe]
        %v9291 = vld [vmem:[%s8424 + $0x8] sm:$0xfe]
        %v9292 = vld [vmem:[%s8424 + $0x10] sm:$0xff]
        %v9293 = vld [vmem:[%s8424 + $0x18] sm:$0xff]
        %v9294 = vld [vmem:[%s8424 + $0x20] sm:$0xff]
        %v9295 = vld [vmem:[%s8424 + $0x28] sm:$0xff]
        %v9296 = vld [vmem:[%s8424 + $0x30] sm:$0xff]
        %v9297 = vld [vmem:[%s8424 + $0x38] sm:$0xff]
        %v9298 = vld [vmem:[%s8424 + $0x40] sm:$0xff]
        %v9299 = vld [vmem:[%s8424 + $0x48] sm:$0xff]
        %v9300 = vld [vmem:[%s8424 + $0x50] sm:$0xff]
        %v9301 = vld [vmem:[%s8424 + $0x58] sm:$0xff]
        %v9302 = vld [vmem:[%s8424 + $0x60] sm:$0xff]
        %v9303 = vld [vmem:[%s8424 + $0x68] sm:$0xff]
        %v9304 = vld [vmem:[%s8424 + $0x70] sm:$0xff]
        %v9305 = vld [vmem:[%s8424 + $0x78] sm:$0xff]
        %v9306 = vld [vmem:[%s8424 + $0x80] sm:$0xff]
        %v9307 = vld [vmem:[%s8424 + $0x88] sm:$0xff]
        %v9308 = vld [vmem:[%s8424 + $0x90] sm:$0xff]
        %v9309 = vld [vmem:[%s8424 + $0x98] sm:$0xff]
        %v9310 = vld [vmem:[%s8424 + $0xa0] sm:$0xff]
        %v9311 = vld [vmem:[%s8424 + $0xa8] sm:$0xff]
        %v9312 = vld [vmem:[%s8424 + $0xb0] sm:$0xff]
        %v9313 = vld [vmem:[%s8424 + $0xb8] sm:$0xff]
        %v9314 = vld [vmem:[%s8424 + $0xc0] sm:$0xff]
        %v9315 = vld [vmem:[%s8424 + $0xc8] sm:$0xff]
        %v9316 = vld [vmem:[%s8424 + $0xd0] sm:$0xff]
        %v9317 = vld [vmem:[%s8424 + $0xd8] sm:$0xff]
        %v9318 = vld [vmem:[%s8424 + $0xe0] sm:$0x1]
        %v9319 = vld [vmem:[%s8424 + $0xe8] sm:$0x1]
        %v9320 = vld [vmem:[%s8424 + $0xf0] sm:$0xfe]
        %v9321 = vld [vmem:[%s8424 + $0xf8] sm:$0xfe]
        %v9322 = vld [vmem:[%s8424 + $0x100] sm:$0xff]
        %v9323 = vld [vmem:[%s8424 + $0x108] sm:$0xff]
        %v9324 = vld [vmem:[%s8424 + $0x110] sm:$0xff]
        %v9325 = vld [vmem:[%s8424 + $0x118] sm:$0xff]
        %v9326 = vld [vmem:[%s8424 + $0x120] sm:$0xff]
        %v9327 = vld [vmem:[%s8424 + $0x128] sm:$0xff]
        %v9328 = vld [vmem:[%s8424 + $0x130] sm:$0xff]
        %v9329 = vld [vmem:[%s8424 + $0x138] sm:$0xff]
        %v9330 = vld [vmem:[%s8424 + $0x140] sm:$0xff]
        %v9331 = vld [vmem:[%s8424 + $0x148] sm:$0xff]
        %v9332 = vld [vmem:[%s8424 + $0x150] sm:$0xff]
        %v9333 = vld [vmem:[%s8424 + $0x158] sm:$0xff]
        %v9334 = vld [vmem:[%s8424 + $0x160] sm:$0xff]
        %v9335 = vld [vmem:[%s8424 + $0x168] sm:$0xff]
        %v9336 = vld [vmem:[%s8424 + $0x170] sm:$0xff]
        %v9337 = vld [vmem:[%s8424 + $0x178] sm:$0xff]
        %v9338 = vld [vmem:[%s8424 + $0x180] sm:$0xff]
        %v9339 = vld [vmem:[%s8424 + $0x188] sm:$0xff]
        %v9340 = vld [vmem:[%s8424 + $0x190] sm:$0xff]
        %v9341 = vld [vmem:[%s8424 + $0x198] sm:$0xff]
        %v9342 = vld [vmem:[%s8424 + $0x1a0] sm:$0xff]
        %v9343 = vld [vmem:[%s8424 + $0x1a8] sm:$0xff]
        %v9344 = vld [vmem:[%s8424 + $0x1b0] sm:$0xff]
        %v9345 = vld [vmem:[%s8424 + $0x1b8] sm:$0xff]
        %v9346 = vld [vmem:[%s8424 + $0x1c0] sm:$0xff]
        %v9347 = vld [vmem:[%s8424 + $0x1c8] sm:$0xff]
        %v9348 = vld [vmem:[%s8424 + $0x1d0] sm:$0x1]
        %v9349 = vld [vmem:[%s8424 + $0x1d8] sm:$0x1]
        %v9350 = vld [vmem:[%s8424 + $0x1e0] sm:$0xfe]
        %v9351 = vld [vmem:[%s8424 + $0x1e8] sm:$0xfe]
        %v9352 = vld [vmem:[%s8424 + $0x1f0] sm:$0xff]
        %v9353 = vld [vmem:[%s8424 + $0x1f8] sm:$0xff]
        %v9354 = vld [vmem:[%s8424 + $0x200] sm:$0xff]
        %v9355 = vld [vmem:[%s8424 + $0x208] sm:$0xff]
        %v9356 = vld [vmem:[%s8424 + $0x210] sm:$0xff]
        %v9357 = vld [vmem:[%s8424 + $0x218] sm:$0xff]
        %v9358 = vld [vmem:[%s8424 + $0x220] sm:$0xff]
        %v9359 = vld [vmem:[%s8424 + $0x228] sm:$0xff]
        %v9360 = vld [vmem:[%s8424 + $0x230] sm:$0xff]
        %v9361 = vld [vmem:[%s8424 + $0x238] sm:$0xff]
        %v9362 = vld [vmem:[%s8424 + $0x240] sm:$0xff]
        %v9363 = vld [vmem:[%s8424 + $0x248] sm:$0xff]
        %v9364 = vld [vmem:[%s8424 + $0x250] sm:$0xff]
        %v9365 = vld [vmem:[%s8424 + $0x258] sm:$0xff]
        %v9366 = vld [vmem:[%s8424 + $0x260] sm:$0xff]
        %v9367 = vld [vmem:[%s8424 + $0x268] sm:$0xff]
        %v9368 = vld [vmem:[%s8424 + $0x270] sm:$0xff]
        %v9369 = vld [vmem:[%s8424 + $0x278] sm:$0xff]
        %v9370 = vld [vmem:[%s8424 + $0x280] sm:$0xff]
        %v9371 = vld [vmem:[%s8424 + $0x288] sm:$0xff]
        %v9372 = vld [vmem:[%s8424 + $0x290] sm:$0xff]
        %v9373 = vld [vmem:[%s8424 + $0x298] sm:$0xff]
        %v9374 = vld [vmem:[%s8424 + $0x2a0] sm:$0xff]
        %v9375 = vld [vmem:[%s8424 + $0x2a8] sm:$0xff]
        %v9376 = vld [vmem:[%s8424 + $0x2b0] sm:$0xff]
        %v9377 = vld [vmem:[%s8424 + $0x2b8] sm:$0xff]
        %v9378 = vld [vmem:[%s8424 + $0x2c0] sm:$0x1]
        %v9379 = vld [vmem:[%s8424 + $0x2c8] sm:$0x1]
        %v9380 = vld [vmem:[%s8424 + $0x2d0] sm:$0xfe]
        %v9381 = vld [vmem:[%s8424 + $0x2d8] sm:$0xfe]
        %v9382 = vld [vmem:[%s8424 + $0x2e0] sm:$0xff]
        %v9383 = vld [vmem:[%s8424 + $0x2e8] sm:$0xff]
        %v9384 = vld [vmem:[%s8424 + $0x2f0] sm:$0xff]
        %v9385 = vld [vmem:[%s8424 + $0x2f8] sm:$0xff]
        %v9386 = vld [vmem:[%s8424 + $0x300] sm:$0xff]
        %v9387 = vld [vmem:[%s8424 + $0x308] sm:$0xff]
        %v9388 = vld [vmem:[%s8424 + $0x310] sm:$0xff]
        %v9389 = vld [vmem:[%s8424 + $0x318] sm:$0xff]
        %v9390 = vld [vmem:[%s8424 + $0x320] sm:$0xff]
        %v9391 = vld [vmem:[%s8424 + $0x328] sm:$0xff]
        %v9392 = vld [vmem:[%s8424 + $0x330] sm:$0xff]
        %v9393 = vld [vmem:[%s8424 + $0x338] sm:$0xff]
        %v9394 = vld [vmem:[%s8424 + $0x340] sm:$0xff]
        %v9395 = vld [vmem:[%s8424 + $0x348] sm:$0xff]
        %v9396 = vld [vmem:[%s8424 + $0x350] sm:$0xff]
        %v9397 = vld [vmem:[%s8424 + $0x358] sm:$0xff]
        %v9398 = vld [vmem:[%s8424 + $0x360] sm:$0xff]
        %v9399 = vld [vmem:[%s8424 + $0x368] sm:$0xff]
        %v9400 = vld [vmem:[%s8424 + $0x370] sm:$0xff]
        %v9401 = vld [vmem:[%s8424 + $0x378] sm:$0xff]
        %v9402 = vld [vmem:[%s8424 + $0x380] sm:$0xff]
        %v9403 = vld [vmem:[%s8424 + $0x388] sm:$0xff]
        %v9404 = vld [vmem:[%s8424 + $0x390] sm:$0xff]
        %v9405 = vld [vmem:[%s8424 + $0x398] sm:$0xff]
        %v9406 = vld [vmem:[%s8424 + $0x3a0] sm:$0xff]
        %v9407 = vld [vmem:[%s8424 + $0x3a8] sm:$0xff]
        %v9408 = vld [vmem:[%s8424 + $0x3b0] sm:$0x1]
        %v9409 = vld [vmem:[%s8424 + $0x3b8] sm:$0x1]
        %v9410 = vld [vmem:[%s8424 + $0x3c0] sm:$0xfe]
        %v9411 = vld [vmem:[%s8424 + $0x3c8] sm:$0xfe]
        %v9412 = vld [vmem:[%s8424 + $0x3d0] sm:$0xff]
        %v9413 = vld [vmem:[%s8424 + $0x3d8] sm:$0xff]
        %v9414 = vld [vmem:[%s8424 + $0x3e0] sm:$0xff]
        %v9415 = vld [vmem:[%s8424 + $0x3e8] sm:$0xff]
        %v9416 = vld [vmem:[%s8424 + $0x3f0] sm:$0xff]
        %v9417 = vld [vmem:[%s8424 + $0x3f8] sm:$0xff]
        %v9418 = vld [vmem:[%s8424 + $0x400] sm:$0xff]
        %v9419 = vld [vmem:[%s8424 + $0x408] sm:$0xff]
        %v9420 = vld [vmem:[%s8424 + $0x410] sm:$0xff]
        %v9421 = vld [vmem:[%s8424 + $0x418] sm:$0xff]
        %v9422 = vld [vmem:[%s8424 + $0x420] sm:$0xff]
        %v9423 = vld [vmem:[%s8424 + $0x428] sm:$0xff]
        %v9424 = vld [vmem:[%s8424 + $0x430] sm:$0xff]
        %v9425 = vld [vmem:[%s8424 + $0x438] sm:$0xff]
        %v9426 = vld [vmem:[%s8424 + $0x440] sm:$0xff]
        %v9427 = vld [vmem:[%s8424 + $0x448] sm:$0xff]
        %v9428 = vld [vmem:[%s8424 + $0x450] sm:$0xff]
        %v9429 = vld [vmem:[%s8424 + $0x458] sm:$0xff]
        %v9430 = vld [vmem:[%s8424 + $0x460] sm:$0xff]
        %v9431 = vld [vmem:[%s8424 + $0x468] sm:$0xff]
        %v9432 = vld [vmem:[%s8424 + $0x470] sm:$0xff]
        %v9433 = vld [vmem:[%s8424 + $0x478] sm:$0xff]
        %v9434 = vld [vmem:[%s8424 + $0x480] sm:$0xff]
        %v9435 = vld [vmem:[%s8424 + $0x488] sm:$0xff]
        %v9436 = vld [vmem:[%s8424 + $0x490] sm:$0xff]
        %v9437 = vld [vmem:[%s8424 + $0x498] sm:$0xff]
        %v9438 = vld [vmem:[%s8424 + $0x4a0] sm:$0x1]
        %v9439 = vld [vmem:[%s8424 + $0x4a8] sm:$0x1]
        %v9440 = vld [vmem:[%s8424 + $0x4b0] sm:$0xfe]
        %v9441 = vld [vmem:[%s8424 + $0x4b8] sm:$0xfe]
        %v9442 = vld [vmem:[%s8424 + $0x4c0] sm:$0xff]
        %v9443 = vld [vmem:[%s8424 + $0x4c8] sm:$0xff]
        %v9444 = vld [vmem:[%s8424 + $0x4d0] sm:$0xff]
        %v9445 = vld [vmem:[%s8424 + $0x4d8] sm:$0xff]
        %v9446 = vld [vmem:[%s8424 + $0x4e0] sm:$0xff]
        %v9447 = vld [vmem:[%s8424 + $0x4e8] sm:$0xff]
        %v9448 = vld [vmem:[%s8424 + $0x4f0] sm:$0xff]
        %v9449 = vld [vmem:[%s8424 + $0x4f8] sm:$0xff]
        %v9450 = vld [vmem:[%s8424 + $0x500] sm:$0xff]
        %v9451 = vld [vmem:[%s8424 + $0x508] sm:$0xff]
        %v9452 = vld [vmem:[%s8424 + $0x510] sm:$0xff]
        %v9453 = vld [vmem:[%s8424 + $0x518] sm:$0xff]
        %v9454 = vld [vmem:[%s8424 + $0x520] sm:$0xff]
        %v9455 = vld [vmem:[%s8424 + $0x528] sm:$0xff]
        %v9456 = vld [vmem:[%s8424 + $0x530] sm:$0xff]
        %v9457 = vld [vmem:[%s8424 + $0x538] sm:$0xff]
        %v9458 = vld [vmem:[%s8424 + $0x540] sm:$0xff]
        %v9459 = vld [vmem:[%s8424 + $0x548] sm:$0xff]
        %v9460 = vld [vmem:[%s8424 + $0x550] sm:$0xff]
        %v9461 = vld [vmem:[%s8424 + $0x558] sm:$0xff]
        %v9462 = vld [vmem:[%s8424 + $0x560] sm:$0xff]
        %v9463 = vld [vmem:[%s8424 + $0x568] sm:$0xff]
        %v9464 = vld [vmem:[%s8424 + $0x570] sm:$0xff]
        %v9465 = vld [vmem:[%s8424 + $0x578] sm:$0xff]
        %v9466 = vld [vmem:[%s8424 + $0x580] sm:$0xff]
        %v9467 = vld [vmem:[%s8424 + $0x588] sm:$0xff]
        %v9468 = vld [vmem:[%s8424 + $0x590] sm:$0x1]
        %v9469 = vld [vmem:[%s8424 + $0x598] sm:$0x1]
        %v9470 = vld [vmem:[%s8424 + $0x5a0] sm:$0xfe]
        %v9471 = vld [vmem:[%s8424 + $0x5a8] sm:$0xfe]
        %v9472 = vld [vmem:[%s8424 + $0x5b0] sm:$0xff]
        %v9473 = vld [vmem:[%s8424 + $0x5b8] sm:$0xff]
        %v9474 = vld [vmem:[%s8424 + $0x5c0] sm:$0xff]
        %v9475 = vld [vmem:[%s8424 + $0x5c8] sm:$0xff]
        %v9476 = vld [vmem:[%s8424 + $0x5d0] sm:$0xff]
        %v9477 = vld [vmem:[%s8424 + $0x5d8] sm:$0xff]
        %v9478 = vld [vmem:[%s8424 + $0x5e0] sm:$0xff]
        %v9479 = vld [vmem:[%s8424 + $0x5e8] sm:$0xff]
        %v9480 = vld [vmem:[%s8424 + $0x5f0] sm:$0xff]
        %v9481 = vld [vmem:[%s8424 + $0x5f8] sm:$0xff]
        %v9482 = vld [vmem:[%s8424 + $0x600] sm:$0xff]
        %v9483 = vld [vmem:[%s8424 + $0x608] sm:$0xff]
        %v9484 = vld [vmem:[%s8424 + $0x610] sm:$0xff]
        %v9485 = vld [vmem:[%s8424 + $0x618] sm:$0xff]
        %v9486 = vld [vmem:[%s8424 + $0x620] sm:$0xff]
        %v9487 = vld [vmem:[%s8424 + $0x628] sm:$0xff]
        %v9488 = vld [vmem:[%s8424 + $0x630] sm:$0xff]
        %v9489 = vld [vmem:[%s8424 + $0x638] sm:$0xff]
        %v9490 = vld [vmem:[%s8424 + $0x640] sm:$0xff]
        %v9491 = vld [vmem:[%s8424 + $0x648] sm:$0xff]
        %v9492 = vld [vmem:[%s8424 + $0x650] sm:$0xff]
        %v9493 = vld [vmem:[%s8424 + $0x658] sm:$0xff]
        %v9494 = vld [vmem:[%s8424 + $0x660] sm:$0xff]
        %v9495 = vld [vmem:[%s8424 + $0x668] sm:$0xff]
        %v9496 = vld [vmem:[%s8424 + $0x670] sm:$0xff]
        %v9497 = vld [vmem:[%s8424 + $0x678] sm:$0xff]
        %v9498 = vld [vmem:[%s8424 + $0x680] sm:$0x1]
        %v9499 = vld [vmem:[%s8424 + $0x688] sm:$0x1]
        %v9500 = vld [vmem:[%s8424 + $0x690] sm:$0xfe]
        %v9501 = vld [vmem:[%s8424 + $0x698] sm:$0xfe]
        %v9502 = vld [vmem:[%s8424 + $0x6a0] sm:$0xff]
        %v9503 = vld [vmem:[%s8424 + $0x6a8] sm:$0xff]
        %v9504 = vld [vmem:[%s8424 + $0x6b0] sm:$0xff]
        %v9505 = vld [vmem:[%s8424 + $0x6b8] sm:$0xff]
        %v9506 = vld [vmem:[%s8424 + $0x6c0] sm:$0xff]
        %v9507 = vld [vmem:[%s8424 + $0x6c8] sm:$0xff]
        %v9508 = vld [vmem:[%s8424 + $0x6d0] sm:$0xff]
        %v9509 = vld [vmem:[%s8424 + $0x6d8] sm:$0xff]
        %v9510 = vld [vmem:[%s8424 + $0x6e0] sm:$0xff]
        %v9511 = vld [vmem:[%s8424 + $0x6e8] sm:$0xff]
        %v9512 = vld [vmem:[%s8424 + $0x6f0] sm:$0xff]
        %v9513 = vld [vmem:[%s8424 + $0x6f8] sm:$0xff]
        %v9514 = vld [vmem:[%s8424 + $0x700] sm:$0xff]
        %v9515 = vld [vmem:[%s8424 + $0x708] sm:$0xff]
        %v9516 = vld [vmem:[%s8424 + $0x710] sm:$0xff]
        %v9517 = vld [vmem:[%s8424 + $0x718] sm:$0xff]
        %v9518 = vld [vmem:[%s8424 + $0x720] sm:$0xff]
        %v9519 = vld [vmem:[%s8424 + $0x728] sm:$0xff]
        %v9520 = vld [vmem:[%s8424 + $0x730] sm:$0xff]
        %v9521 = vld [vmem:[%s8424 + $0x738] sm:$0xff]
        %v9522 = vld [vmem:[%s8424 + $0x740] sm:$0xff]
        %v9523 = vld [vmem:[%s8424 + $0x748] sm:$0xff]
        %v9524 = vld [vmem:[%s8424 + $0x750] sm:$0xff]
        %v9525 = vld [vmem:[%s8424 + $0x758] sm:$0xff]
        %v9526 = vld [vmem:[%s8424 + $0x760] sm:$0xff]
        %v9527 = vld [vmem:[%s8424 + $0x768] sm:$0xff]
        %v9528 = vld [vmem:[%s8424 + $0x770] sm:$0x1]
        %v9529 = vld [vmem:[%s8424 + $0x778] sm:$0x1]
        %v9770 = vrot.slane %v9290, 1
        %v9771 = vrot.slane %v9292, 1
        %v9772 = vsel %vm820, %v9770, %v9771
        %v9773 = vrot.slane %v9291, 1
        %v9774 = vrot.slane %v9293, 1
        %v9775 = vsel %vm820, %v9773, %v9774
        %v9776 = vrot.slane %v9294, 1
        %v9777 = vsel %vm820, %v9771, %v9776
        %v9778 = vrot.slane %v9295, 1
        %v9779 = vsel %vm820, %v9774, %v9778
        %v9780 = vrot.slane %v9296, 1
        %v9781 = vsel %vm820, %v9776, %v9780
        %v9782 = vrot.slane %v9297, 1
        %v9783 = vsel %vm820, %v9778, %v9782
        %v9784 = vrot.slane %v9298, 1
        %v9785 = vsel %vm820, %v9780, %v9784
        %v9786 = vrot.slane %v9299, 1
        %v9787 = vsel %vm820, %v9782, %v9786
        %v9788 = vrot.slane %v9300, 1
        %v9789 = vsel %vm820, %v9784, %v9788
        %v9790 = vrot.slane %v9301, 1
        %v9791 = vsel %vm820, %v9786, %v9790
        %v9792 = vrot.slane %v9302, 1
        %v9793 = vsel %vm820, %v9788, %v9792
        %v9794 = vrot.slane %v9303, 1
        %v9795 = vsel %vm820, %v9790, %v9794
        %v9796 = vrot.slane %v9304, 1
        %v9797 = vsel %vm820, %v9792, %v9796
        %v9798 = vrot.slane %v9305, 1
        %v9799 = vsel %vm820, %v9794, %v9798
        %v9800 = vrot.slane %v9306, 1
        %v9801 = vsel %vm820, %v9796, %v9800
        %v9802 = vrot.slane %v9307, 1
        %v9803 = vsel %vm820, %v9798, %v9802
        %v9804 = vrot.slane %v9308, 1
        %v9805 = vsel %vm820, %v9800, %v9804
        %v9806 = vrot.slane %v9309, 1
        %v9807 = vsel %vm820, %v9802, %v9806
        %v9808 = vrot.slane %v9310, 1
        %v9809 = vsel %vm820, %v9804, %v9808
        %v9810 = vrot.slane %v9311, 1
        %v9811 = vsel %vm820, %v9806, %v9810
        %v9812 = vrot.slane %v9312, 1
        %v9813 = vsel %vm820, %v9808, %v9812
        %v9814 = vrot.slane %v9313, 1
        %v9815 = vsel %vm820, %v9810, %v9814
        %v9816 = vrot.slane %v9314, 1
        %v9817 = vsel %vm820, %v9812, %v9816
        %v9818 = vrot.slane %v9315, 1
        %v9819 = vsel %vm820, %v9814, %v9818
        %v9820 = vrot.slane %v9316, 1
        %v9821 = vsel %vm820, %v9816, %v9820
        %v9822 = vrot.slane %v9317, 1
        %v9823 = vsel %vm820, %v9818, %v9822
        %v9824 = vrot.slane %v9318, 1
        %v9825 = vsel %vm820, %v9820, %v9824
        %v9826 = vrot.slane %v9319, 1
        %v9827 = vsel %vm820, %v9822, %v9826
        %v9828 = vrot.slane %v9320, 1
        %v9829 = vrot.slane %v9322, 1
        %v9830 = vsel %vm820, %v9828, %v9829
        %v9831 = vrot.slane %v9321, 1
        %v9832 = vrot.slane %v9323, 1
        %v9833 = vsel %vm820, %v9831, %v9832
        %v9834 = vrot.slane %v9324, 1
        %v9835 = vsel %vm820, %v9829, %v9834
        %v9836 = vrot.slane %v9325, 1
        %v9837 = vsel %vm820, %v9832, %v9836
        %v9838 = vrot.slane %v9326, 1
        %v9839 = vsel %vm820, %v9834, %v9838
        %v9840 = vrot.slane %v9327, 1
        %v9841 = vsel %vm820, %v9836, %v9840
        %v9842 = vrot.slane %v9328, 1
        %v9843 = vsel %vm820, %v9838, %v9842
        %v9844 = vrot.slane %v9329, 1
        %v9845 = vsel %vm820, %v9840, %v9844
        %v9846 = vrot.slane %v9330, 1
        %v9847 = vsel %vm820, %v9842, %v9846
        %v9848 = vrot.slane %v9331, 1
        %v9849 = vsel %vm820, %v9844, %v9848
        %v9850 = vrot.slane %v9332, 1
        %v9851 = vsel %vm820, %v9846, %v9850
        %v9852 = vrot.slane %v9333, 1
        %v9853 = vsel %vm820, %v9848, %v9852
        %v9854 = vrot.slane %v9334, 1
        %v9855 = vsel %vm820, %v9850, %v9854
        %v9856 = vrot.slane %v9335, 1
        %v9857 = vsel %vm820, %v9852, %v9856
        %v9858 = vrot.slane %v9336, 1
        %v9859 = vsel %vm820, %v9854, %v9858
        %v9860 = vrot.slane %v9337, 1
        %v9861 = vsel %vm820, %v9856, %v9860
        %v9862 = vrot.slane %v9338, 1
        %v9863 = vsel %vm820, %v9858, %v9862
        %v9864 = vrot.slane %v9339, 1
        %v9865 = vsel %vm820, %v9860, %v9864
        %v9866 = vrot.slane %v9340, 1
        %v9867 = vsel %vm820, %v9862, %v9866
        %v9868 = vrot.slane %v9341, 1
        %v9869 = vsel %vm820, %v9864, %v9868
        %v9870 = vrot.slane %v9342, 1
        %v9871 = vsel %vm820, %v9866, %v9870
        %v9872 = vrot.slane %v9343, 1
        %v9873 = vsel %vm820, %v9868, %v9872
        %v9874 = vrot.slane %v9344, 1
        %v9875 = vsel %vm820, %v9870, %v9874
        %v9876 = vrot.slane %v9345, 1
        %v9877 = vsel %vm820, %v9872, %v9876
        %v9878 = vrot.slane %v9346, 1
        %v9879 = vsel %vm820, %v9874, %v9878
        %v9880 = vrot.slane %v9347, 1
        %v9881 = vsel %vm820, %v9876, %v9880
        %v9882 = vrot.slane %v9348, 1
        %v9883 = vsel %vm820, %v9878, %v9882
        %v9884 = vrot.slane %v9349, 1
        %v9885 = vsel %vm820, %v9880, %v9884
        %v9886 = vrot.slane %v9350, 1
        %v9887 = vrot.slane %v9352, 1
        %v9888 = vsel %vm820, %v9886, %v9887
        %v9889 = vrot.slane %v9351, 1
        %v9890 = vrot.slane %v9353, 1
        %v9891 = vsel %vm820, %v9889, %v9890
        %v9892 = vrot.slane %v9354, 1
        %v9893 = vsel %vm820, %v9887, %v9892
        %v9894 = vrot.slane %v9355, 1
        %v9895 = vsel %vm820, %v9890, %v9894
        %v9896 = vrot.slane %v9356, 1
        %v9897 = vsel %vm820, %v9892, %v9896
        %v9898 = vrot.slane %v9357, 1
        %v9899 = vsel %vm820, %v9894, %v9898
        %v9900 = vrot.slane %v9358, 1
        %v9901 = vsel %vm820, %v9896, %v9900
        %v9902 = vrot.slane %v9359, 1
        %v9903 = vsel %vm820, %v9898, %v9902
        %v9904 = vrot.slane %v9360, 1
        %v9905 = vsel %vm820, %v9900, %v9904
        %v9906 = vrot.slane %v9361, 1
        %v9907 = vsel %vm820, %v9902, %v9906
        %v9908 = vrot.slane %v9362, 1
        %v9909 = vsel %vm820, %v9904, %v9908
        %v9910 = vrot.slane %v9363, 1
        %v9911 = vsel %vm820, %v9906, %v9910
        %v9912 = vrot.slane %v9364, 1
        %v9913 = vsel %vm820, %v9908, %v9912
        %v9914 = vrot.slane %v9365, 1
        %v9915 = vsel %vm820, %v9910, %v9914
        %v9916 = vrot.slane %v9366, 1
        %v9917 = vsel %vm820, %v9912, %v9916
        %v9918 = vrot.slane %v9367, 1
        %v9919 = vsel %vm820, %v9914, %v9918
        %v9920 = vrot.slane %v9368, 1
        %v9921 = vsel %vm820, %v9916, %v9920
        %v9922 = vrot.slane %v9369, 1
        %v9923 = vsel %vm820, %v9918, %v9922
        %v9924 = vrot.slane %v9370, 1
        %v9925 = vsel %vm820, %v9920, %v9924
        %v9926 = vrot.slane %v9371, 1
        %v9927 = vsel %vm820, %v9922, %v9926
        %v9928 = vrot.slane %v9372, 1
        %v9929 = vsel %vm820, %v9924, %v9928
        %v9930 = vrot.slane %v9373, 1
        %v9931 = vsel %vm820, %v9926, %v9930
        %v9932 = vrot.slane %v9374, 1
        %v9933 = vsel %vm820, %v9928, %v9932
        %v9934 = vrot.slane %v9375, 1
        %v9935 = vsel %vm820, %v9930, %v9934
        %v9936 = vrot.slane %v9376, 1
        %v9937 = vsel %vm820, %v9932, %v9936
        %v9938 = vrot.slane %v9377, 1
        %v9939 = vsel %vm820, %v9934, %v9938
        %v9940 = vrot.slane %v9378, 1
        %v9941 = vsel %vm820, %v9936, %v9940
        %v9942 = vrot.slane %v9379, 1
        %v9943 = vsel %vm820, %v9938, %v9942
        %v9944 = vrot.slane %v9380, 1
        %v9945 = vrot.slane %v9382, 1
        %v9946 = vsel %vm820, %v9944, %v9945
        %v9947 = vrot.slane %v9381, 1
        %v9948 = vrot.slane %v9383, 1
        %v9949 = vsel %vm820, %v9947, %v9948
        %v9950 = vrot.slane %v9384, 1
        %v9951 = vsel %vm820, %v9945, %v9950
        %v9952 = vrot.slane %v9385, 1
        %v9953 = vsel %vm820, %v9948, %v9952
        %v9954 = vrot.slane %v9386, 1
        %v9955 = vsel %vm820, %v9950, %v9954
        %v9956 = vrot.slane %v9387, 1
        %v9957 = vsel %vm820, %v9952, %v9956
        %v9958 = vrot.slane %v9388, 1
        %v9959 = vsel %vm820, %v9954, %v9958
        %v9960 = vrot.slane %v9389, 1
        %v9961 = vsel %vm820, %v9956, %v9960
        %v9962 = vrot.slane %v9390, 1
        %v9963 = vsel %vm820, %v9958, %v9962
        %v9964 = vrot.slane %v9391, 1
        %v9965 = vsel %vm820, %v9960, %v9964
        %v9966 = vrot.slane %v9392, 1
        %v9967 = vsel %vm820, %v9962, %v9966
        %v9968 = vrot.slane %v9393, 1
        %v9969 = vsel %vm820, %v9964, %v9968
        %v9970 = vrot.slane %v9394, 1
        %v9971 = vsel %vm820, %v9966, %v9970
        %v9972 = vrot.slane %v9395, 1
        %v9973 = vsel %vm820, %v9968, %v9972
        %v9974 = vrot.slane %v9396, 1
        %v9975 = vsel %vm820, %v9970, %v9974
        %v9976 = vrot.slane %v9397, 1
        %v9977 = vsel %vm820, %v9972, %v9976
        %v9978 = vrot.slane %v9398, 1
        %v9979 = vsel %vm820, %v9974, %v9978
        %v9980 = vrot.slane %v9399, 1
        %v9981 = vsel %vm820, %v9976, %v9980
        %v9982 = vrot.slane %v9400, 1
        %v9983 = vsel %vm820, %v9978, %v9982
        %v9984 = vrot.slane %v9401, 1
        %v9985 = vsel %vm820, %v9980, %v9984
        %v9986 = vrot.slane %v9402, 1
        %v9987 = vsel %vm820, %v9982, %v9986
        %v9988 = vrot.slane %v9403, 1
        %v9989 = vsel %vm820, %v9984, %v9988
        %v9990 = vrot.slane %v9404, 1
        %v9991 = vsel %vm820, %v9986, %v9990
        %v9992 = vrot.slane %v9405, 1
        %v9993 = vsel %vm820, %v9988, %v9992
        %v9994 = vrot.slane %v9406, 1
        %v9995 = vsel %vm820, %v9990, %v9994
        %v9996 = vrot.slane %v9407, 1
        %v9997 = vsel %vm820, %v9992, %v9996
        %v9998 = vrot.slane %v9408, 1
        %v9999 = vsel %vm820, %v9994, %v9998
        %v10000 = vrot.slane %v9409, 1
        %v10001 = vsel %vm820, %v9996, %v10000
        %v10002 = vrot.slane %v9410, 1
        %v10003 = vrot.slane %v9412, 1
        %v10004 = vsel %vm820, %v10002, %v10003
        %v10005 = vrot.slane %v9411, 1
        %v10006 = vrot.slane %v9413, 1
        %v10007 = vsel %vm820, %v10005, %v10006
        %v10008 = vrot.slane %v9414, 1
        %v10009 = vsel %vm820, %v10003, %v10008
        %v10010 = vrot.slane %v9415, 1
        %v10011 = vsel %vm820, %v10006, %v10010
        %v10012 = vrot.slane %v9416, 1
        %v10013 = vsel %vm820, %v10008, %v10012
        %v10014 = vrot.slane %v9417, 1
        %v10015 = vsel %vm820, %v10010, %v10014
        %v10016 = vrot.slane %v9418, 1
        %v10017 = vsel %vm820, %v10012, %v10016
        %v10018 = vrot.slane %v9419, 1
        %v10019 = vsel %vm820, %v10014, %v10018
        %v10020 = vrot.slane %v9420, 1
        %v10021 = vsel %vm820, %v10016, %v10020
        %v10022 = vrot.slane %v9421, 1
        %v10023 = vsel %vm820, %v10018, %v10022
        %v10024 = vrot.slane %v9422, 1
        %v10025 = vsel %vm820, %v10020, %v10024
        %v10026 = vrot.slane %v9423, 1
        %v10027 = vsel %vm820, %v10022, %v10026
        %v10028 = vrot.slane %v9424, 1
        %v10029 = vsel %vm820, %v10024, %v10028
        %v10030 = vrot.slane %v9425, 1
        %v10031 = vsel %vm820, %v10026, %v10030
        %v10032 = vrot.slane %v9426, 1
        %v10033 = vsel %vm820, %v10028, %v10032
        %v10034 = vrot.slane %v9427, 1
        %v10035 = vsel %vm820, %v10030, %v10034
        %v10036 = vrot.slane %v9428, 1
        %v10037 = vsel %vm820, %v10032, %v10036
        %v10038 = vrot.slane %v9429, 1
        %v10039 = vsel %vm820, %v10034, %v10038
        %v10040 = vrot.slane %v9430, 1
        %v10041 = vsel %vm820, %v10036, %v10040
        %v10042 = vrot.slane %v9431, 1
        %v10043 = vsel %vm820, %v10038, %v10042
        %v10044 = vrot.slane %v9432, 1
        %v10045 = vsel %vm820, %v10040, %v10044
        %v10046 = vrot.slane %v9433, 1
        %v10047 = vsel %vm820, %v10042, %v10046
        %v10048 = vrot.slane %v9434, 1
        %v10049 = vsel %vm820, %v10044, %v10048
        %v10050 = vrot.slane %v9435, 1
        %v10051 = vsel %vm820, %v10046, %v10050
        %v10052 = vrot.slane %v9436, 1
        %v10053 = vsel %vm820, %v10048, %v10052
        %v10054 = vrot.slane %v9437, 1
        %v10055 = vsel %vm820, %v10050, %v10054
        %v10056 = vrot.slane %v9438, 1
        %v10057 = vsel %vm820, %v10052, %v10056
        %v10058 = vrot.slane %v9439, 1
        %v10059 = vsel %vm820, %v10054, %v10058
        %v10060 = vrot.slane %v9440, 1
        %v10061 = vrot.slane %v9442, 1
        %v10062 = vsel %vm820, %v10060, %v10061
        %v10063 = vrot.slane %v9441, 1
        %v10064 = vrot.slane %v9443, 1
        %v10065 = vsel %vm820, %v10063, %v10064
        %v10066 = vrot.slane %v9444, 1
        %v10067 = vsel %vm820, %v10061, %v10066
        %v10068 = vrot.slane %v9445, 1
        %v10069 = vsel %vm820, %v10064, %v10068
        %v10070 = vrot.slane %v9446, 1
        %v10071 = vsel %vm820, %v10066, %v10070
        %v10072 = vrot.slane %v9447, 1
        %v10073 = vsel %vm820, %v10068, %v10072
        %v10074 = vrot.slane %v9448, 1
        %v10075 = vsel %vm820, %v10070, %v10074
        %v10076 = vrot.slane %v9449, 1
        %v10077 = vsel %vm820, %v10072, %v10076
        %v10078 = vrot.slane %v9450, 1
        %v10079 = vsel %vm820, %v10074, %v10078
        %v10080 = vrot.slane %v9451, 1
        %v10081 = vsel %vm820, %v10076, %v10080
        %v10082 = vrot.slane %v9452, 1
        %v10083 = vsel %vm820, %v10078, %v10082
        %v10084 = vrot.slane %v9453, 1
        %v10085 = vsel %vm820, %v10080, %v10084
        %v10086 = vrot.slane %v9454, 1
        %v10087 = vsel %vm820, %v10082, %v10086
        %v10088 = vrot.slane %v9455, 1
        %v10089 = vsel %vm820, %v10084, %v10088
        %v10090 = vrot.slane %v9456, 1
        %v10091 = vsel %vm820, %v10086, %v10090
        %v10092 = vrot.slane %v9457, 1
        %v10093 = vsel %vm820, %v10088, %v10092
        %v10094 = vrot.slane %v9458, 1
        %v10095 = vsel %vm820, %v10090, %v10094
        %v10096 = vrot.slane %v9459, 1
        %v10097 = vsel %vm820, %v10092, %v10096
        %v10098 = vrot.slane %v9460, 1
        %v10099 = vsel %vm820, %v10094, %v10098
        %v10100 = vrot.slane %v9461, 1
        %v10101 = vsel %vm820, %v10096, %v10100
        %v10102 = vrot.slane %v9462, 1
        %v10103 = vsel %vm820, %v10098, %v10102
        %v10104 = vrot.slane %v9463, 1
        %v10105 = vsel %vm820, %v10100, %v10104
        %v10106 = vrot.slane %v9464, 1
        %v10107 = vsel %vm820, %v10102, %v10106
        %v10108 = vrot.slane %v9465, 1
        %v10109 = vsel %vm820, %v10104, %v10108
        %v10110 = vrot.slane %v9466, 1
        %v10111 = vsel %vm820, %v10106, %v10110
        %v10112 = vrot.slane %v9467, 1
        %v10113 = vsel %vm820, %v10108, %v10112
        %v10114 = vrot.slane %v9468, 1
        %v10115 = vsel %vm820, %v10110, %v10114
        %v10116 = vrot.slane %v9469, 1
        %v10117 = vsel %vm820, %v10112, %v10116
        %v10118 = vrot.slane %v9470, 1
        %v10119 = vrot.slane %v9472, 1
        %v10120 = vsel %vm820, %v10118, %v10119
        %v10121 = vrot.slane %v9471, 1
        %v10122 = vrot.slane %v9473, 1
        %v10123 = vsel %vm820, %v10121, %v10122
        %v10124 = vrot.slane %v9474, 1
        %v10125 = vsel %vm820, %v10119, %v10124
        %v10126 = vrot.slane %v9475, 1
        %v10127 = vsel %vm820, %v10122, %v10126
        %v10128 = vrot.slane %v9476, 1
        %v10129 = vsel %vm820, %v10124, %v10128
        %v10130 = vrot.slane %v9477, 1
        %v10131 = vsel %vm820, %v10126, %v10130
        %v10132 = vrot.slane %v9478, 1
        %v10133 = vsel %vm820, %v10128, %v10132
        %v10134 = vrot.slane %v9479, 1
        %v10135 = vsel %vm820, %v10130, %v10134
        %v10136 = vrot.slane %v9480, 1
        %v10137 = vsel %vm820, %v10132, %v10136
        %v10138 = vrot.slane %v9481, 1
        %v10139 = vsel %vm820, %v10134, %v10138
        %v10140 = vrot.slane %v9482, 1
        %v10141 = vsel %vm820, %v10136, %v10140
        %v10142 = vrot.slane %v9483, 1
        %v10143 = vsel %vm820, %v10138, %v10142
        %v10144 = vrot.slane %v9484, 1
        %v10145 = vsel %vm820, %v10140, %v10144
        %v10146 = vrot.slane %v9485, 1
        %v10147 = vsel %vm820, %v10142, %v10146
        %v10148 = vrot.slane %v9486, 1
        %v10149 = vsel %vm820, %v10144, %v10148
        %v10150 = vrot.slane %v9487, 1
        %v10151 = vsel %vm820, %v10146, %v10150
        %v10152 = vrot.slane %v9488, 1
        %v10153 = vsel %vm820, %v10148, %v10152
        %v10154 = vrot.slane %v9489, 1
        %v10155 = vsel %vm820, %v10150, %v10154
        %v10156 = vrot.slane %v9490, 1
        %v10157 = vsel %vm820, %v10152, %v10156
        %v10158 = vrot.slane %v9491, 1
        %v10159 = vsel %vm820, %v10154, %v10158
        %v10160 = vrot.slane %v9492, 1
        %v10161 = vsel %vm820, %v10156, %v10160
        %v10162 = vrot.slane %v9493, 1
        %v10163 = vsel %vm820, %v10158, %v10162
        %v10164 = vrot.slane %v9494, 1
        %v10165 = vsel %vm820, %v10160, %v10164
        %v10166 = vrot.slane %v9495, 1
        %v10167 = vsel %vm820, %v10162, %v10166
        %v10168 = vrot.slane %v9496, 1
        %v10169 = vsel %vm820, %v10164, %v10168
        %v10170 = vrot.slane %v9497, 1
        %v10171 = vsel %vm820, %v10166, %v10170
        %v10172 = vrot.slane %v9498, 1
        %v10173 = vsel %vm820, %v10168, %v10172
        %v10174 = vrot.slane %v9499, 1
        %v10175 = vsel %vm820, %v10170, %v10174
        %v10176 = vrot.slane %v9500, 1
        %v10177 = vrot.slane %v9502, 1
        %v10178 = vsel %vm820, %v10176, %v10177
        %v10179 = vrot.slane %v9501, 1
        %v10180 = vrot.slane %v9503, 1
        %v10181 = vsel %vm820, %v10179, %v10180
        %v10182 = vrot.slane %v9504, 1
        %v10183 = vsel %vm820, %v10177, %v10182
        %v10184 = vrot.slane %v9505, 1
        %v10185 = vsel %vm820, %v10180, %v10184
        %v10186 = vrot.slane %v9506, 1
        %v10187 = vsel %vm820, %v10182, %v10186
        %v10188 = vrot.slane %v9507, 1
        %v10189 = vsel %vm820, %v10184, %v10188
        %v10190 = vrot.slane %v9508, 1
        %v10191 = vsel %vm820, %v10186, %v10190
        %v10192 = vrot.slane %v9509, 1
        %v10193 = vsel %vm820, %v10188, %v10192
        %v10194 = vrot.slane %v9510, 1
        %v10195 = vsel %vm820, %v10190, %v10194
        %v10196 = vrot.slane %v9511, 1
        %v10197 = vsel %vm820, %v10192, %v10196
        %v10198 = vrot.slane %v9512, 1
        %v10199 = vsel %vm820, %v10194, %v10198
        %v10200 = vrot.slane %v9513, 1
        %v10201 = vsel %vm820, %v10196, %v10200
        %v10202 = vrot.slane %v9514, 1
        %v10203 = vsel %vm820, %v10198, %v10202
        %v10204 = vrot.slane %v9515, 1
        %v10205 = vsel %vm820, %v10200, %v10204
        %v10206 = vrot.slane %v9516, 1
        %v10207 = vsel %vm820, %v10202, %v10206
        %v10208 = vrot.slane %v9517, 1
        %v10209 = vsel %vm820, %v10204, %v10208
        %v10210 = vrot.slane %v9518, 1
        %v10211 = vsel %vm820, %v10206, %v10210
        %v10212 = vrot.slane %v9519, 1
        %v10213 = vsel %vm820, %v10208, %v10212
        %v10214 = vrot.slane %v9520, 1
        %v10215 = vsel %vm820, %v10210, %v10214
        %v10216 = vrot.slane %v9521, 1
        %v10217 = vsel %vm820, %v10212, %v10216
        %v10218 = vrot.slane %v9522, 1
        %v10219 = vsel %vm820, %v10214, %v10218
        %v10220 = vrot.slane %v9523, 1
        %v10221 = vsel %vm820, %v10216, %v10220
        %v10222 = vrot.slane %v9524, 1
        %v10223 = vsel %vm820, %v10218, %v10222
        %v10224 = vrot.slane %v9525, 1
        %v10225 = vsel %vm820, %v10220, %v10224
        %v10226 = vrot.slane %v9526, 1
        %v10227 = vsel %vm820, %v10222, %v10226
        %v10228 = vrot.slane %v9527, 1
        %v10229 = vsel %vm820, %v10224, %v10228
        %v10230 = vrot.slane %v9528, 1
        %v10231 = vsel %vm820, %v10226, %v10230
        %v10232 = vrot.slane %v9529, 1
        %v10233 = vsel %vm820, %v10228, %v10232
        %10458 = vmatprep.subr.mxu0 0.0
        %10459 = vmatpush1.msra.mxu0 %v4779
        %10460 = vmatprep.subr.mxu0 0.0
        %10461 = vmatpush1.msra.mxu0 %v4778
        %10462 = vmatprep.subr.mxu0 0.0
        %10463 = vmatpush1.msra.mxu0 %v4777
        %10464 = vmatprep.subr.mxu0 0.0
        %10465 = vmatpush1.msra.mxu0 %v4776
        %10466 = vmatprep.subr.mxu0 0.0
        %10467 = vmatpush1.msra.mxu0 %v4775
        %10468 = vmatprep.subr.mxu0 0.0
        %10469 = vmatpush1.msra.mxu0 %v4774
        %10470 = vmatprep.subr.mxu0 0.0
        %10471 = vmatpush1.msra.mxu0 %v4773
        %10472 = vmatprep.subr.mxu0 0.0
        %10473 = vmatpush1.msra.mxu0 %v4772
        %10474 = vmatprep.subr.mxu0 0.0
        %10475 = vmatpush1.msra.mxu0 %v4771
        %10476 = vmatprep.subr.mxu0 0.0
        %10477 = vmatpush1.msra.mxu0 %v4770
        %10478 = vmatprep.subr.mxu0 0.0
        %10479 = vmatpush1.msra.mxu0 %v4769
        %10480 = vmatprep.subr.mxu0 0.0
        %10481 = vmatpush1.msra.mxu0 %v4768
        %10482 = vmatprep.subr.mxu0 0.0
        %10483 = vmatpush1.msra.mxu0 %v4767
        %10484 = vmatprep.subr.mxu0 0.0
        %10485 = vmatpush1.msra.mxu0 %v4766
        %10486 = vmatprep.subr.mxu0 0.0
        %10487 = vmatpush1.msra.mxu0 %v4765
        %10488 = vmatprep.subr.mxu0 0.0
        %10489 = vmatpush1.msra.mxu0 %v4764
        %10490 = vmatprep.subr.mxu0 0.0
        %10491 = vmatpush2.msra.mxu0 %v4795
        %10492 = vmatprep.subr.mxu0 0.0
        %10493 = vmatpush2.msra.mxu0 %v4794
        %10494 = vmatprep.subr.mxu0 0.0
        %10495 = vmatpush2.msra.mxu0 %v4793
        %10496 = vmatprep.subr.mxu0 0.0
        %10497 = vmatpush2.msra.mxu0 %v4792
        %10498 = vmatprep.subr.mxu0 0.0
        %10499 = vmatpush2.msra.mxu0 %v4791
        %10500 = vmatprep.subr.mxu0 0.0
        %10501 = vmatpush2.msra.mxu0 %v4790
        %10502 = vmatprep.subr.mxu0 0.0
        %10503 = vmatpush2.msra.mxu0 %v4789
        %10504 = vmatprep.subr.mxu0 0.0
        %10505 = vmatpush2.msra.mxu0 %v4788
        %10506 = vmatprep.subr.mxu0 0.0
        %10507 = vmatpush2.msra.mxu0 %v4787
        %10508 = vmatprep.subr.mxu0 0.0
        %10509 = vmatpush2.msra.mxu0 %v4786
        %10510 = vmatprep.subr.mxu0 0.0
        %10511 = vmatpush2.msra.mxu0 %v4785
        %10512 = vmatprep.subr.mxu0 0.0
        %10513 = vmatpush2.msra.mxu0 %v4784
        %10514 = vmatprep.subr.mxu0 0.0
        %10515 = vmatpush2.msra.mxu0 %v4783
        %10516 = vmatprep.subr.mxu0 0.0
        %10517 = vmatpush2.msra.mxu0 %v4782
        %10518 = vmatprep.subr.mxu0 0.0
        %10519 = vmatpush2.msra.mxu0 %v4781
        %10520 = vmatprep.subr.mxu0 0.0
        %10521 = vmatpush2.msra.mxu0 %v4780
        %10522 = vmatprep.mubr.f32.mxu0 %v9775
        %10523 = vmatmul.mubr.f32.gmra.mxu0 %v9772
        %v10524 = vpop.f32.mrf.mxu0
        %v10525 = vadd.f32 0.0, %v10524
        %v10526 = vpop.f32.mrf.mxu0
        %10527 = vmatprep.mubr.f32.mxu0 %v9779
        %10528 = vmatmul.mubr.f32.gmra.mxu0 %v9777
        %v10529 = vpop.f32.mrf.mxu0
        %v10530 = vadd.f32 0.0, %v10529
        %v10531 = vpop.f32.mrf.mxu0
        %10532 = vmatprep.mubr.f32.mxu0 %v9783
        %10533 = vmatmul.mubr.f32.gmra.mxu0 %v9781
        %v10534 = vpop.f32.mrf.mxu0
        %v10535 = vpop.f32.mrf.mxu0
        %10536 = vmatprep.mubr.f32.mxu0 %v9787
        %10537 = vmatmul.mubr.f32.gmra.mxu0 %v9785
        %v10538 = vpop.f32.mrf.mxu0
        %v10539 = vpop.f32.mrf.mxu0
        %10540 = vmatprep.mubr.f32.mxu0 %v9791
        %10541 = vmatmul.mubr.f32.gmra.mxu0 %v9789
        %v10542 = vpop.f32.mrf.mxu0
        %v10543 = vadd.f32 0.0, %v10542
        %v10544 = vpop.f32.mrf.mxu0
        %10545 = vmatprep.mubr.f32.mxu0 %v9795
        %10546 = vmatmul.mubr.f32.gmra.mxu0 %v9793
        %v10547 = vpop.f32.mrf.mxu0
        %v10548 = vadd.f32 0.0, %v10547
        %v10549 = vpop.f32.mrf.mxu0
        %10550 = vmatprep.mubr.f32.mxu0 %v9799
        %10551 = vmatmul.mubr.f32.gmra.mxu0 %v9797
        %v10552 = vpop.f32.mrf.mxu0
        %v10553 = vpop.f32.mrf.mxu0
        %10554 = vmatprep.mubr.f32.mxu0 %v9803
        %10555 = vmatmul.mubr.f32.gmra.mxu0 %v9801
        %v10556 = vpop.f32.mrf.mxu0
        %v10557 = vpop.f32.mrf.mxu0
        %10558 = vmatprep.mubr.f32.mxu0 %v9807
        %10559 = vmatmul.mubr.f32.gmra.mxu0 %v9805
        %v10560 = vpop.f32.mrf.mxu0
        %v10561 = vadd.f32 0.0, %v10560
        %v10562 = vpop.f32.mrf.mxu0
        %10563 = vmatprep.mubr.f32.mxu0 %v9811
        %10564 = vmatmul.mubr.f32.gmra.mxu0 %v9809
        %v10565 = vpop.f32.mrf.mxu0
        %v10566 = vadd.f32 0.0, %v10565
        %v10567 = vpop.f32.mrf.mxu0
        %10568 = vmatprep.mubr.f32.mxu0 %v9815
        %10569 = vmatmul.mubr.f32.gmra.mxu0 %v9813
        %v10570 = vpop.f32.mrf.mxu0
        %v10571 = vpop.f32.mrf.mxu0
        %10572 = vmatprep.mubr.f32.mxu0 %v9819
        %10573 = vmatmul.mubr.f32.gmra.mxu0 %v9817
        %v10574 = vpop.f32.mrf.mxu0
        %v10575 = vpop.f32.mrf.mxu0
        %10576 = vmatprep.mubr.f32.mxu0 %v9823
        %10577 = vmatmul.mubr.f32.gmra.mxu0 %v9821
        %v10578 = vpop.f32.mrf.mxu0
        %v10579 = vadd.f32 0.0, %v10578
        %v10580 = vpop.f32.mrf.mxu0
        %10581 = vmatprep.mubr.f32.mxu0 %v9827
        %10582 = vmatmul.mubr.f32.gmra.mxu0 %v9825
        %v10583 = vpop.f32.mrf.mxu0
        %v10584 = vadd.f32 0.0, %v10583
        %v10585 = vpop.f32.mrf.mxu0
        %10586 = vmatprep.mubr.f32.mxu0 %v9833
        %10587 = vmatmul.mubr.f32.gmra.mxu0 %v9830
        %v10588 = vpop.f32.mrf.mxu0
        %v10589 = vadd.f32 0.0, %v10588
        %v10590 = vpop.f32.mrf.mxu0
        %10591 = vmatprep.mubr.f32.mxu0 %v9837
        %10592 = vmatmul.mubr.f32.gmra.mxu0 %v9835
        %v10593 = vpop.f32.mrf.mxu0
        %v10594 = vadd.f32 0.0, %v10593
        %v10595 = vpop.f32.mrf.mxu0
        %10596 = vmatprep.mubr.f32.mxu0 %v9841
        %10597 = vmatmul.mubr.f32.gmra.mxu0 %v9839
        %v10598 = vpop.f32.mrf.mxu0
        %v10599 = vpop.f32.mrf.mxu0
        %10600 = vmatprep.mubr.f32.mxu0 %v9845
        %10601 = vmatmul.mubr.f32.gmra.mxu0 %v9843
        %v10602 = vpop.f32.mrf.mxu0
        %v10603 = vpop.f32.mrf.mxu0
        %10604 = vmatprep.mubr.f32.mxu0 %v9849
        %10605 = vmatmul.mubr.f32.gmra.mxu0 %v9847
        %v10606 = vpop.f32.mrf.mxu0
        %v10607 = vadd.f32 0.0, %v10606
        %v10608 = vpop.f32.mrf.mxu0
        %10609 = vmatprep.mubr.f32.mxu0 %v9853
        %10610 = vmatmul.mubr.f32.gmra.mxu0 %v9851
        %v10611 = vpop.f32.mrf.mxu0
        %v10612 = vadd.f32 0.0, %v10611
        %v10613 = vpop.f32.mrf.mxu0
        %10614 = vmatprep.mubr.f32.mxu0 %v9857
        %10615 = vmatmul.mubr.f32.gmra.mxu0 %v9855
        %v10616 = vpop.f32.mrf.mxu0
        %v10617 = vpop.f32.mrf.mxu0
        %10618 = vmatprep.mubr.f32.mxu0 %v9861
        %10619 = vmatmul.mubr.f32.gmra.mxu0 %v9859
        %v10620 = vpop.f32.mrf.mxu0
        %v10621 = vpop.f32.mrf.mxu0
        %10622 = vmatprep.mubr.f32.mxu0 %v9865
        %10623 = vmatmul.mubr.f32.gmra.mxu0 %v9863
        %v10624 = vpop.f32.mrf.mxu0
        %v10625 = vadd.f32 0.0, %v10624
        %v10626 = vpop.f32.mrf.mxu0
        %10627 = vmatprep.mubr.f32.mxu0 %v9869
        %10628 = vmatmul.mubr.f32.gmra.mxu0 %v9867
        %v10629 = vpop.f32.mrf.mxu0
        %v10630 = vadd.f32 0.0, %v10629
        %v10631 = vpop.f32.mrf.mxu0
        %10632 = vmatprep.mubr.f32.mxu0 %v9873
        %10633 = vmatmul.mubr.f32.gmra.mxu0 %v9871
        %v10634 = vpop.f32.mrf.mxu0
        %v10635 = vpop.f32.mrf.mxu0
        %10636 = vmatprep.mubr.f32.mxu0 %v9877
        %10637 = vmatmul.mubr.f32.gmra.mxu0 %v9875
        %v10638 = vpop.f32.mrf.mxu0
        %v10639 = vpop.f32.mrf.mxu0
        %10640 = vmatprep.mubr.f32.mxu0 %v9881
        %10641 = vmatmul.mubr.f32.gmra.mxu0 %v9879
        %v10642 = vpop.f32.mrf.mxu0
        %v10643 = vadd.f32 0.0, %v10642
        %v10644 = vpop.f32.mrf.mxu0
        %10645 = vmatprep.mubr.f32.mxu0 %v9885
        %10646 = vmatmul.mubr.f32.gmra.mxu0 %v9883
        %v10647 = vpop.f32.mrf.mxu0
        %v10648 = vadd.f32 0.0, %v10647
        %v10649 = vpop.f32.mrf.mxu0
        %10650 = vmatprep.mubr.f32.mxu0 %v9891
        %10651 = vmatmul.mubr.f32.gmra.mxu0 %v9888
        %v10652 = vpop.f32.mrf.mxu0
        %v10653 = vadd.f32 0.0, %v10652
        %v10654 = vpop.f32.mrf.mxu0
        %10655 = vmatprep.mubr.f32.mxu0 %v9895
        %10656 = vmatmul.mubr.f32.gmra.mxu0 %v9893
        %v10657 = vpop.f32.mrf.mxu0
        %v10658 = vadd.f32 0.0, %v10657
        %v10659 = vpop.f32.mrf.mxu0
        %10660 = vmatprep.mubr.f32.mxu0 %v9899
        %10661 = vmatmul.mubr.f32.gmra.mxu0 %v9897
        %v10662 = vpop.f32.mrf.mxu0
        %v10663 = vpop.f32.mrf.mxu0
        %10664 = vmatprep.mubr.f32.mxu0 %v9903
        %10665 = vmatmul.mubr.f32.gmra.mxu0 %v9901
        %v10666 = vpop.f32.mrf.mxu0
        %v10667 = vpop.f32.mrf.mxu0
        %10668 = vmatprep.mubr.f32.mxu0 %v9907
        %10669 = vmatmul.mubr.f32.gmra.mxu0 %v9905
        %v10670 = vpop.f32.mrf.mxu0
        %v10671 = vadd.f32 0.0, %v10670
        %v10672 = vpop.f32.mrf.mxu0
        %10673 = vmatprep.mubr.f32.mxu0 %v9911
        %10674 = vmatmul.mubr.f32.gmra.mxu0 %v9909
        %v10675 = vpop.f32.mrf.mxu0
        %v10676 = vadd.f32 0.0, %v10675
        %v10677 = vpop.f32.mrf.mxu0
        %10678 = vmatprep.mubr.f32.mxu0 %v9915
        %10679 = vmatmul.mubr.f32.gmra.mxu0 %v9913
        %v10680 = vpop.f32.mrf.mxu0
        %v10681 = vpop.f32.mrf.mxu0
        %10682 = vmatprep.mubr.f32.mxu0 %v9919
        %10683 = vmatmul.mubr.f32.gmra.mxu0 %v9917
        %v10684 = vpop.f32.mrf.mxu0
        %v10685 = vpop.f32.mrf.mxu0
        %10686 = vmatprep.mubr.f32.mxu0 %v9923
        %10687 = vmatmul.mubr.f32.gmra.mxu0 %v9921
        %v10688 = vpop.f32.mrf.mxu0
        %v10689 = vadd.f32 0.0, %v10688
        %v10690 = vpop.f32.mrf.mxu0
        %10691 = vmatprep.mubr.f32.mxu0 %v9927
        %10692 = vmatmul.mubr.f32.gmra.mxu0 %v9925
        %v10693 = vpop.f32.mrf.mxu0
        %v10694 = vadd.f32 0.0, %v10693
        %v10695 = vpop.f32.mrf.mxu0
        %10696 = vmatprep.mubr.f32.mxu0 %v9931
        %10697 = vmatmul.mubr.f32.gmra.mxu0 %v9929
        %v10698 = vpop.f32.mrf.mxu0
        %v10699 = vpop.f32.mrf.mxu0
        %10700 = vmatprep.mubr.f32.mxu0 %v9935
        %10701 = vmatmul.mubr.f32.gmra.mxu0 %v9933
        %v10702 = vpop.f32.mrf.mxu0
        %v10703 = vpop.f32.mrf.mxu0
        %10704 = vmatprep.mubr.f32.mxu0 %v9939
        %10705 = vmatmul.mubr.f32.gmra.mxu0 %v9937
        %v10706 = vpop.f32.mrf.mxu0
        %v10707 = vadd.f32 0.0, %v10706
        %v10708 = vpop.f32.mrf.mxu0
        %10709 = vmatprep.mubr.f32.mxu0 %v9943
        %10710 = vmatmul.mubr.f32.gmra.mxu0 %v9941
        %v10711 = vpop.f32.mrf.mxu0
        %v10712 = vadd.f32 0.0, %v10711
        %v10713 = vpop.f32.mrf.mxu0
        %10714 = vmatprep.mubr.f32.mxu0 %v9949
        %10715 = vmatmul.mubr.f32.gmra.mxu0 %v9946
        %v10716 = vpop.f32.mrf.mxu0
        %v10717 = vadd.f32 0.0, %v10716
        %v10718 = vpop.f32.mrf.mxu0
        %10719 = vmatprep.mubr.f32.mxu0 %v9953
        %10720 = vmatmul.mubr.f32.gmra.mxu0 %v9951
        %v10721 = vpop.f32.mrf.mxu0
        %v10722 = vadd.f32 0.0, %v10721
        %v10723 = vpop.f32.mrf.mxu0
        %10724 = vmatprep.mubr.f32.mxu0 %v9957
        %10725 = vmatmul.mubr.f32.gmra.mxu0 %v9955
        %v10726 = vpop.f32.mrf.mxu0
        %v10727 = vpop.f32.mrf.mxu0
        %10728 = vmatprep.mubr.f32.mxu0 %v9961
        %10729 = vmatmul.mubr.f32.gmra.mxu0 %v9959
        %v10730 = vpop.f32.mrf.mxu0
        %v10731 = vpop.f32.mrf.mxu0
        %10732 = vmatprep.mubr.f32.mxu0 %v9965
        %10733 = vmatmul.mubr.f32.gmra.mxu0 %v9963
        %v10734 = vpop.f32.mrf.mxu0
        %v10735 = vadd.f32 0.0, %v10734
        %v10736 = vpop.f32.mrf.mxu0
        %10737 = vmatprep.mubr.f32.mxu0 %v9969
        %10738 = vmatmul.mubr.f32.gmra.mxu0 %v9967
        %v10739 = vpop.f32.mrf.mxu0
        %v10740 = vadd.f32 0.0, %v10739
        %v10741 = vpop.f32.mrf.mxu0
        %10742 = vmatprep.mubr.f32.mxu0 %v9973
        %10743 = vmatmul.mubr.f32.gmra.mxu0 %v9971
        %v10744 = vpop.f32.mrf.mxu0
        %v10745 = vpop.f32.mrf.mxu0
        %10746 = vmatprep.mubr.f32.mxu0 %v9977
        %10747 = vmatmul.mubr.f32.gmra.mxu0 %v9975
        %v10748 = vpop.f32.mrf.mxu0
        %v10749 = vpop.f32.mrf.mxu0
        %10750 = vmatprep.mubr.f32.mxu0 %v9981
        %10751 = vmatmul.mubr.f32.gmra.mxu0 %v9979
        %v10752 = vpop.f32.mrf.mxu0
        %v10753 = vadd.f32 0.0, %v10752
        %v10754 = vpop.f32.mrf.mxu0
        %10755 = vmatprep.mubr.f32.mxu0 %v9985
        %10756 = vmatmul.mubr.f32.gmra.mxu0 %v9983
        %v10757 = vpop.f32.mrf.mxu0
        %v10758 = vadd.f32 0.0, %v10757
        %v10759 = vpop.f32.mrf.mxu0
        %10760 = vmatprep.mubr.f32.mxu0 %v9989
        %10761 = vmatmul.mubr.f32.gmra.mxu0 %v9987
        %v10762 = vpop.f32.mrf.mxu0
        %v10763 = vpop.f32.mrf.mxu0
        %10764 = vmatprep.mubr.f32.mxu0 %v9993
        %10765 = vmatmul.mubr.f32.gmra.mxu0 %v9991
        %v10766 = vpop.f32.mrf.mxu0
        %v10767 = vpop.f32.mrf.mxu0
        %10768 = vmatprep.mubr.f32.mxu0 %v9997
        %10769 = vmatmul.mubr.f32.gmra.mxu0 %v9995
        %v10770 = vpop.f32.mrf.mxu0
        %v10771 = vadd.f32 0.0, %v10770
        %v10772 = vpop.f32.mrf.mxu0
        %10773 = vmatprep.mubr.f32.mxu0 %v10001
        %10774 = vmatmul.mubr.f32.gmra.mxu0 %v9999
        %v10775 = vpop.f32.mrf.mxu0
        %v10776 = vadd.f32 0.0, %v10775
        %v10777 = vpop.f32.mrf.mxu0
        %10778 = vmatprep.mubr.f32.mxu0 %v10007
        %10779 = vmatmul.mubr.f32.gmra.mxu0 %v10004
        %v10780 = vpop.f32.mrf.mxu0
        %v10781 = vadd.f32 0.0, %v10780
        %v10782 = vpop.f32.mrf.mxu0
        %10783 = vmatprep.mubr.f32.mxu0 %v10011
        %10784 = vmatmul.mubr.f32.gmra.mxu0 %v10009
        %v10785 = vpop.f32.mrf.mxu0
        %v10786 = vadd.f32 0.0, %v10785
        %v10787 = vpop.f32.mrf.mxu0
        %10788 = vmatprep.mubr.f32.mxu0 %v10015
        %10789 = vmatmul.mubr.f32.gmra.mxu0 %v10013
        %v10790 = vpop.f32.mrf.mxu0
        %v10791 = vpop.f32.mrf.mxu0
        %10792 = vmatprep.mubr.f32.mxu0 %v10019
        %10793 = vmatmul.mubr.f32.gmra.mxu0 %v10017
        %v10794 = vpop.f32.mrf.mxu0
        %v10795 = vpop.f32.mrf.mxu0
        %10796 = vmatprep.mubr.f32.mxu0 %v10023
        %10797 = vmatmul.mubr.f32.gmra.mxu0 %v10021
        %v10798 = vpop.f32.mrf.mxu0
        %v10799 = vadd.f32 0.0, %v10798
        %v10800 = vpop.f32.mrf.mxu0
        %10801 = vmatprep.mubr.f32.mxu0 %v10027
        %10802 = vmatmul.mubr.f32.gmra.mxu0 %v10025
        %v10803 = vpop.f32.mrf.mxu0
        %v10804 = vadd.f32 0.0, %v10803
        %v10805 = vpop.f32.mrf.mxu0
        %10806 = vmatprep.mubr.f32.mxu0 %v10031
        %10807 = vmatmul.mubr.f32.gmra.mxu0 %v10029
        %v10808 = vpop.f32.mrf.mxu0
        %v10809 = vpop.f32.mrf.mxu0
        %10810 = vmatprep.mubr.f32.mxu0 %v10035
        %10811 = vmatmul.mubr.f32.gmra.mxu0 %v10033
        %v10812 = vpop.f32.mrf.mxu0
        %v10813 = vpop.f32.mrf.mxu0
        %10814 = vmatprep.mubr.f32.mxu0 %v10039
        %10815 = vmatmul.mubr.f32.gmra.mxu0 %v10037
        %v10816 = vpop.f32.mrf.mxu0
        %v10817 = vadd.f32 0.0, %v10816
        %v10818 = vpop.f32.mrf.mxu0
        %10819 = vmatprep.mubr.f32.mxu0 %v10043
        %10820 = vmatmul.mubr.f32.gmra.mxu0 %v10041
        %v10821 = vpop.f32.mrf.mxu0
        %v10822 = vadd.f32 0.0, %v10821
        %v10823 = vpop.f32.mrf.mxu0
        %10824 = vmatprep.mubr.f32.mxu0 %v10047
        %10825 = vmatmul.mubr.f32.gmra.mxu0 %v10045
        %v10826 = vpop.f32.mrf.mxu0
        %v10827 = vpop.f32.mrf.mxu0
        %10828 = vmatprep.mubr.f32.mxu0 %v10051
        %10829 = vmatmul.mubr.f32.gmra.mxu0 %v10049
        %v10830 = vpop.f32.mrf.mxu0
        %v10831 = vpop.f32.mrf.mxu0
        %10832 = vmatprep.mubr.f32.mxu0 %v10055
        %10833 = vmatmul.mubr.f32.gmra.mxu0 %v10053
        %v10834 = vpop.f32.mrf.mxu0
        %v10835 = vadd.f32 0.0, %v10834
        %v10836 = vpop.f32.mrf.mxu0
        %10837 = vmatprep.mubr.f32.mxu0 %v10059
        %10838 = vmatmul.mubr.f32.gmra.mxu0 %v10057
        %v10839 = vpop.f32.mrf.mxu0
        %v10840 = vadd.f32 0.0, %v10839
        %v10841 = vpop.f32.mrf.mxu0
        %10842 = vmatprep.mubr.f32.mxu0 %v10065
        %10843 = vmatmul.mubr.f32.gmra.mxu0 %v10062
        %v10844 = vpop.f32.mrf.mxu0
        %v10845 = vadd.f32 0.0, %v10844
        %v10846 = vpop.f32.mrf.mxu0
        %10847 = vmatprep.mubr.f32.mxu0 %v10069
        %10848 = vmatmul.mubr.f32.gmra.mxu0 %v10067
        %v10849 = vpop.f32.mrf.mxu0
        %v10850 = vadd.f32 0.0, %v10849
        %v10851 = vpop.f32.mrf.mxu0
        %10852 = vmatprep.mubr.f32.mxu0 %v10073
        %10853 = vmatmul.mubr.f32.gmra.mxu0 %v10071
        %v10854 = vpop.f32.mrf.mxu0
        %v10855 = vpop.f32.mrf.mxu0
        %10856 = vmatprep.mubr.f32.mxu0 %v10077
        %10857 = vmatmul.mubr.f32.gmra.mxu0 %v10075
        %v10858 = vpop.f32.mrf.mxu0
        %v10859 = vpop.f32.mrf.mxu0
        %10860 = vmatprep.mubr.f32.mxu0 %v10081
        %10861 = vmatmul.mubr.f32.gmra.mxu0 %v10079
        %v10862 = vpop.f32.mrf.mxu0
        %v10863 = vadd.f32 0.0, %v10862
        %v10864 = vpop.f32.mrf.mxu0
        %10865 = vmatprep.mubr.f32.mxu0 %v10085
        %10866 = vmatmul.mubr.f32.gmra.mxu0 %v10083
        %v10867 = vpop.f32.mrf.mxu0
        %v10868 = vadd.f32 0.0, %v10867
        %v10869 = vpop.f32.mrf.mxu0
        %10870 = vmatprep.mubr.f32.mxu0 %v10089
        %10871 = vmatmul.mubr.f32.gmra.mxu0 %v10087
        %v10872 = vpop.f32.mrf.mxu0
        %v10873 = vpop.f32.mrf.mxu0
        %10874 = vmatprep.mubr.f32.mxu0 %v10093
        %10875 = vmatmul.mubr.f32.gmra.mxu0 %v10091
        %v10876 = vpop.f32.mrf.mxu0
        %v10877 = vpop.f32.mrf.mxu0
        %10878 = vmatprep.mubr.f32.mxu0 %v10097
        %10879 = vmatmul.mubr.f32.gmra.mxu0 %v10095
        %v10880 = vpop.f32.mrf.mxu0
        %v10881 = vadd.f32 0.0, %v10880
        %v10882 = vpop.f32.mrf.mxu0
        %10883 = vmatprep.mubr.f32.mxu0 %v10101
        %10884 = vmatmul.mubr.f32.gmra.mxu0 %v10099
        %v10885 = vpop.f32.mrf.mxu0
        %v10886 = vadd.f32 0.0, %v10885
        %v10887 = vpop.f32.mrf.mxu0
        %10888 = vmatprep.mubr.f32.mxu0 %v10105
        %10889 = vmatmul.mubr.f32.gmra.mxu0 %v10103
        %v10890 = vpop.f32.mrf.mxu0
        %v10891 = vpop.f32.mrf.mxu0
        %10892 = vmatprep.mubr.f32.mxu0 %v10109
        %10893 = vmatmul.mubr.f32.gmra.mxu0 %v10107
        %v10894 = vpop.f32.mrf.mxu0
        %v10895 = vpop.f32.mrf.mxu0
        %10896 = vmatprep.mubr.f32.mxu0 %v10113
        %10897 = vmatmul.mubr.f32.gmra.mxu0 %v10111
        %v10898 = vpop.f32.mrf.mxu0
        %v10899 = vadd.f32 0.0, %v10898
        %v10900 = vpop.f32.mrf.mxu0
        %10901 = vmatprep.mubr.f32.mxu0 %v10117
        %10902 = vmatmul.mubr.f32.gmra.mxu0 %v10115
        %v10903 = vpop.f32.mrf.mxu0
        %v10904 = vadd.f32 0.0, %v10903
        %v10905 = vpop.f32.mrf.mxu0
        %10906 = vmatprep.mubr.f32.mxu0 %v10123
        %10907 = vmatmul.mubr.f32.gmra.mxu0 %v10120
        %v10908 = vpop.f32.mrf.mxu0
        %v10909 = vadd.f32 0.0, %v10908
        %v10910 = vpop.f32.mrf.mxu0
        %10911 = vmatprep.mubr.f32.mxu0 %v10127
        %10912 = vmatmul.mubr.f32.gmra.mxu0 %v10125
        %v10913 = vpop.f32.mrf.mxu0
        %v10914 = vadd.f32 0.0, %v10913
        %v10915 = vpop.f32.mrf.mxu0
        %10916 = vmatprep.mubr.f32.mxu0 %v10131
        %10917 = vmatmul.mubr.f32.gmra.mxu0 %v10129
        %v10918 = vpop.f32.mrf.mxu0
        %v10919 = vpop.f32.mrf.mxu0
        %10920 = vmatprep.mubr.f32.mxu0 %v10135
        %10921 = vmatmul.mubr.f32.gmra.mxu0 %v10133
        %v10922 = vpop.f32.mrf.mxu0
        %v10923 = vpop.f32.mrf.mxu0
        %10924 = vmatprep.mubr.f32.mxu0 %v10139
        %10925 = vmatmul.mubr.f32.gmra.mxu0 %v10137
        %v10926 = vpop.f32.mrf.mxu0
        %v10927 = vadd.f32 0.0, %v10926
        %v10928 = vpop.f32.mrf.mxu0
        %10929 = vmatprep.mubr.f32.mxu0 %v10143
        %10930 = vmatmul.mubr.f32.gmra.mxu0 %v10141
        %v10931 = vpop.f32.mrf.mxu0
        %v10932 = vadd.f32 0.0, %v10931
        %v10933 = vpop.f32.mrf.mxu0
        %10934 = vmatprep.mubr.f32.mxu0 %v10147
        %10935 = vmatmul.mubr.f32.gmra.mxu0 %v10145
        %v10936 = vpop.f32.mrf.mxu0
        %v10937 = vpop.f32.mrf.mxu0
        %10938 = vmatprep.mubr.f32.mxu0 %v10151
        %10939 = vmatmul.mubr.f32.gmra.mxu0 %v10149
        %v10940 = vpop.f32.mrf.mxu0
        %v10941 = vpop.f32.mrf.mxu0
        %10942 = vmatprep.mubr.f32.mxu0 %v10155
        %10943 = vmatmul.mubr.f32.gmra.mxu0 %v10153
        %v10944 = vpop.f32.mrf.mxu0
        %v10945 = vadd.f32 0.0, %v10944
        %v10946 = vpop.f32.mrf.mxu0
        %10947 = vmatprep.mubr.f32.mxu0 %v10159
        %10948 = vmatmul.mubr.f32.gmra.mxu0 %v10157
        %v10949 = vpop.f32.mrf.mxu0
        %v10950 = vadd.f32 0.0, %v10949
        %v10951 = vpop.f32.mrf.mxu0
        %10952 = vmatprep.mubr.f32.mxu0 %v10163
        %10953 = vmatmul.mubr.f32.gmra.mxu0 %v10161
        %v10954 = vpop.f32.mrf.mxu0
        %v10955 = vpop.f32.mrf.mxu0
        %10956 = vmatprep.mubr.f32.mxu0 %v10167
        %10957 = vmatmul.mubr.f32.gmra.mxu0 %v10165
        %v10958 = vpop.f32.mrf.mxu0
        %v10959 = vpop.f32.mrf.mxu0
        %10960 = vmatprep.mubr.f32.mxu0 %v10171
        %10961 = vmatmul.mubr.f32.gmra.mxu0 %v10169
        %v10962 = vpop.f32.mrf.mxu0
        %v10963 = vadd.f32 0.0, %v10962
        %v10964 = vpop.f32.mrf.mxu0
        %10965 = vmatprep.mubr.f32.mxu0 %v10175
        %10966 = vmatmul.mubr.f32.gmra.mxu0 %v10173
        %v10967 = vpop.f32.mrf.mxu0
        %v10968 = vadd.f32 0.0, %v10967
        %v10969 = vpop.f32.mrf.mxu0
        %10970 = vmatprep.mubr.f32.mxu0 %v10181
        %10971 = vmatmul.mubr.f32.gmra.mxu0 %v10178
        %v10972 = vpop.f32.mrf.mxu0
        %v10973 = vadd.f32 0.0, %v10972
        %v10974 = vpop.f32.mrf.mxu0
        %10975 = vmatprep.mubr.f32.mxu0 %v10185
        %10976 = vmatmul.mubr.f32.gmra.mxu0 %v10183
        %v10977 = vpop.f32.mrf.mxu0
        %v10978 = vadd.f32 0.0, %v10977
        %v10979 = vpop.f32.mrf.mxu0
        %10980 = vmatprep.mubr.f32.mxu0 %v10189
        %10981 = vmatmul.mubr.f32.gmra.mxu0 %v10187
        %v10982 = vpop.f32.mrf.mxu0
        %v10983 = vpop.f32.mrf.mxu0
        %10984 = vmatprep.mubr.f32.mxu0 %v10193
        %10985 = vmatmul.mubr.f32.gmra.mxu0 %v10191
        %v10986 = vpop.f32.mrf.mxu0
        %v10987 = vpop.f32.mrf.mxu0
        %10988 = vmatprep.mubr.f32.mxu0 %v10197
        %10989 = vmatmul.mubr.f32.gmra.mxu0 %v10195
        %v10990 = vpop.f32.mrf.mxu0
        %v10991 = vadd.f32 0.0, %v10990
        %v10992 = vpop.f32.mrf.mxu0
        %10993 = vmatprep.mubr.f32.mxu0 %v10201
        %10994 = vmatmul.mubr.f32.gmra.mxu0 %v10199
        %v10995 = vpop.f32.mrf.mxu0
        %v10996 = vadd.f32 0.0, %v10995
        %v10997 = vpop.f32.mrf.mxu0
        %10998 = vmatprep.mubr.f32.mxu0 %v10205
        %10999 = vmatmul.mubr.f32.gmra.mxu0 %v10203
        %v11000 = vpop.f32.mrf.mxu0
        %v11001 = vpop.f32.mrf.mxu0
        %11002 = vmatprep.mubr.f32.mxu0 %v10209
        %11003 = vmatmul.mubr.f32.gmra.mxu0 %v10207
        %v11004 = vpop.f32.mrf.mxu0
        %v11005 = vpop.f32.mrf.mxu0
        %11006 = vmatprep.mubr.f32.mxu0 %v10213
        %11007 = vmatmul.mubr.f32.gmra.mxu0 %v10211
        %v11008 = vpop.f32.mrf.mxu0
        %v11009 = vadd.f32 0.0, %v11008
        %v11010 = vpop.f32.mrf.mxu0
        %11011 = vmatprep.mubr.f32.mxu0 %v10217
        %11012 = vmatmul.mubr.f32.gmra.mxu0 %v10215
        %v11013 = vpop.f32.mrf.mxu0
        %v11014 = vadd.f32 0.0, %v11013
        %v11015 = vpop.f32.mrf.mxu0
        %11016 = vmatprep.mubr.f32.mxu0 %v10221
        %11017 = vmatmul.mubr.f32.gmra.mxu0 %v10219
        %v11018 = vpop.f32.mrf.mxu0
        %v11019 = vpop.f32.mrf.mxu0
        %11020 = vmatprep.mubr.f32.mxu0 %v10225
        %11021 = vmatmul.mubr.f32.gmra.mxu0 %v10223
        %v11022 = vpop.f32.mrf.mxu0
        %v11023 = vpop.f32.mrf.mxu0
        %11024 = vmatprep.mubr.f32.mxu0 %v10229
        %11025 = vmatmul.mubr.f32.gmra.mxu0 %v10227
        %v11026 = vpop.f32.mrf.mxu0
        %v11027 = vadd.f32 0.0, %v11026
        %v11028 = vpop.f32.mrf.mxu0
        %11029 = vmatprep.mubr.f32.mxu0 %v10233
        %11030 = vmatmul.mubr.f32.gmra.mxu0 %v10231
        %v11031 = vpop.f32.mrf.mxu0
        %v11032 = vadd.f32 0.0, %v11031
        %v11033 = vpop.f32.mrf.mxu0
        %11034 = vdwg.mxu0
        %v11035 = vadd.f32 %v9226, %v10525
        %v11036 = vadd.f32 %v9227, %v10530
        %v11037 = vadd.f32 %v9228, %v10543
        %v11038 = vadd.f32 %v9229, %v10548
        %v11039 = vadd.f32 %v9230, %v10561
        %v11040 = vadd.f32 %v9231, %v10566
        %v11041 = vadd.f32 %v9232, %v10579
        %v11042 = vadd.f32 %v9233, %v10584
        %v11043 = vadd.f32 %v9234, %v10589
        %v11044 = vadd.f32 %v9235, %v10594
        %v11045 = vadd.f32 %v9236, %v10607
        %v11046 = vadd.f32 %v9237, %v10612
        %v11047 = vadd.f32 %v9238, %v10625
        %v11048 = vadd.f32 %v9239, %v10630
        %v11049 = vadd.f32 %v9240, %v10643
        %v11050 = vadd.f32 %v9241, %v10648
        %v11051 = vadd.f32 %v9242, %v10653
        %v11052 = vadd.f32 %v9243, %v10658
        %v11053 = vadd.f32 %v9244, %v10671
        %v11054 = vadd.f32 %v9245, %v10676
        %v11055 = vadd.f32 %v9246, %v10689
        %v11056 = vadd.f32 %v9247, %v10694
        %v11057 = vadd.f32 %v9248, %v10707
        %v11058 = vadd.f32 %v9249, %v10712
        %v11059 = vadd.f32 %v9250, %v10717
        %v11060 = vadd.f32 %v9251, %v10722
        %v11061 = vadd.f32 %v9252, %v10735
        %v11062 = vadd.f32 %v9253, %v10740
        %v11063 = vadd.f32 %v9254, %v10753
        %v11064 = vadd.f32 %v9255, %v10758
        %v11065 = vadd.f32 %v9256, %v10771
        %v11066 = vadd.f32 %v9257, %v10776
        %v11067 = vadd.f32 %v9258, %v10781
        %v11068 = vadd.f32 %v9259, %v10786
        %v11069 = vadd.f32 %v9260, %v10799
        %v11070 = vadd.f32 %v9261, %v10804
        %v11071 = vadd.f32 %v9262, %v10817
        %v11072 = vadd.f32 %v9263, %v10822
        %v11073 = vadd.f32 %v9264, %v10835
        %v11074 = vadd.f32 %v9265, %v10840
        %v11075 = vadd.f32 %v9266, %v10845
        %v11076 = vadd.f32 %v9267, %v10850
        %v11077 = vadd.f32 %v9268, %v10863
        %v11078 = vadd.f32 %v9269, %v10868
        %v11079 = vadd.f32 %v9270, %v10881
        %v11080 = vadd.f32 %v9271, %v10886
        %v11081 = vadd.f32 %v9272, %v10899
        %v11082 = vadd.f32 %v9273, %v10904
        %v11083 = vadd.f32 %v9274, %v10909
        %v11084 = vadd.f32 %v9275, %v10914
        %v11085 = vadd.f32 %v9276, %v10927
        %v11086 = vadd.f32 %v9277, %v10932
        %v11087 = vadd.f32 %v9278, %v10945
        %v11088 = vadd.f32 %v9279, %v10950
        %v11089 = vadd.f32 %v9280, %v10963
        %v11090 = vadd.f32 %v9281, %v10968
        %v11091 = vadd.f32 %v9282, %v10973
        %v11092 = vadd.f32 %v9283, %v10978
        %v11093 = vadd.f32 %v9284, %v10991
        %v11094 = vadd.f32 %v9285, %v10996
        %v11095 = vadd.f32 %v9286, %v11009
        %v11096 = vadd.f32 %v9287, %v11014
        %v11097 = vadd.f32 %v9288, %v11027
        %v11098 = vadd.f32 %v9289, %v11032
        %v11099 = vadd.f32 %v11035, %v5442
        %v11100 = vadd.f32 %v11036, %v5442
        %v11101 = vadd.f32 %v11037, %v5442
        %v11102 = vadd.f32 %v11038, %v5442
        %v11103 = vadd.f32 %v11039, %v5442
        %v11104 = vadd.f32 %v11040, %v5442
        %v11105 = vadd.f32 %v11041, %v5442
        %v11106 = vadd.f32 %v11042, %v5442
        %v11107 = vadd.f32 %v11043, %v5442
        %v11108 = vadd.f32 %v11044, %v5442
        %v11109 = vadd.f32 %v11045, %v5442
        %v11110 = vadd.f32 %v11046, %v5442
        %v11111 = vadd.f32 %v11047, %v5442
        %v11112 = vadd.f32 %v11048, %v5442
        %v11113 = vadd.f32 %v11049, %v5442
        %v11114 = vadd.f32 %v11050, %v5442
        %v11115 = vadd.f32 %v11051, %v5442
        %v11116 = vadd.f32 %v11052, %v5442
        %v11117 = vadd.f32 %v11053, %v5442
        %v11118 = vadd.f32 %v11054, %v5442
        %v11119 = vadd.f32 %v11055, %v5442
        %v11120 = vadd.f32 %v11056, %v5442
        %v11121 = vadd.f32 %v11057, %v5442
        %v11122 = vadd.f32 %v11058, %v5442
        %v11123 = vadd.f32 %v11059, %v5442
        %v11124 = vadd.f32 %v11060, %v5442
        %v11125 = vadd.f32 %v11061, %v5442
        %v11126 = vadd.f32 %v11062, %v5442
        %v11127 = vadd.f32 %v11063, %v5442
        %v11128 = vadd.f32 %v11064, %v5442
        %v11129 = vadd.f32 %v11065, %v5442
        %v11130 = vadd.f32 %v11066, %v5442
        %v11131 = vadd.f32 %v11067, %v5442
        %v11132 = vadd.f32 %v11068, %v5442
        %v11133 = vadd.f32 %v11069, %v5442
        %v11134 = vadd.f32 %v11070, %v5442
        %v11135 = vadd.f32 %v11071, %v5442
        %v11136 = vadd.f32 %v11072, %v5442
        %v11137 = vadd.f32 %v11073, %v5442
        %v11138 = vadd.f32 %v11074, %v5442
        %v11139 = vadd.f32 %v11075, %v5442
        %v11140 = vadd.f32 %v11076, %v5442
        %v11141 = vadd.f32 %v11077, %v5442
        %v11142 = vadd.f32 %v11078, %v5442
        %v11143 = vadd.f32 %v11079, %v5442
        %v11144 = vadd.f32 %v11080, %v5442
        %v11145 = vadd.f32 %v11081, %v5442
        %v11146 = vadd.f32 %v11082, %v5442
        %v11147 = vadd.f32 %v11083, %v5442
        %v11148 = vadd.f32 %v11084, %v5442
        %v11149 = vadd.f32 %v11085, %v5442
        %v11150 = vadd.f32 %v11086, %v5442
        %v11151 = vadd.f32 %v11087, %v5442
        %v11152 = vadd.f32 %v11088, %v5442
        %v11153 = vadd.f32 %v11089, %v5442
        %v11154 = vadd.f32 %v11090, %v5442
        %v11155 = vadd.f32 %v11091, %v5442
        %v11156 = vadd.f32 %v11092, %v5442
        %v11157 = vadd.f32 %v11093, %v5442
        %v11158 = vadd.f32 %v11094, %v5442
        %v11159 = vadd.f32 %v11095, %v5442
        %v11160 = vadd.f32 %v11096, %v5442
        %v11161 = vadd.f32 %v11097, %v5442
        %v11162 = vadd.f32 %v11098, %v5442
        %v11163 = vxor.u32 %v11099, 2147483648
        %v11164 = vxor.u32 %v11100, 2147483648
        %v11165 = vxor.u32 %v11101, 2147483648
        %v11166 = vxor.u32 %v11102, 2147483648
        %v11167 = vxor.u32 %v11103, 2147483648
        %v11168 = vxor.u32 %v11104, 2147483648
        %v11169 = vxor.u32 %v11105, 2147483648
        %v11170 = vxor.u32 %v11106, 2147483648
        %v11171 = vxor.u32 %v11107, 2147483648
        %v11172 = vxor.u32 %v11108, 2147483648
        %v11173 = vxor.u32 %v11109, 2147483648
        %v11174 = vxor.u32 %v11110, 2147483648
        %v11175 = vxor.u32 %v11111, 2147483648
        %v11176 = vxor.u32 %v11112, 2147483648
        %v11177 = vxor.u32 %v11113, 2147483648
        %v11178 = vxor.u32 %v11114, 2147483648
        %v11179 = vxor.u32 %v11115, 2147483648
        %v11180 = vxor.u32 %v11116, 2147483648
        %v11181 = vxor.u32 %v11117, 2147483648
        %v11182 = vxor.u32 %v11118, 2147483648
        %v11183 = vxor.u32 %v11119, 2147483648
        %v11184 = vxor.u32 %v11120, 2147483648
        %v11185 = vxor.u32 %v11121, 2147483648
        %v11186 = vxor.u32 %v11122, 2147483648
        %v11187 = vxor.u32 %v11123, 2147483648
        %v11188 = vxor.u32 %v11124, 2147483648
        %v11189 = vxor.u32 %v11125, 2147483648
        %v11190 = vxor.u32 %v11126, 2147483648
        %v11191 = vxor.u32 %v11127, 2147483648
        %v11192 = vxor.u32 %v11128, 2147483648
        %v11193 = vxor.u32 %v11129, 2147483648
        %v11194 = vxor.u32 %v11130, 2147483648
        %v11195 = vxor.u32 %v11131, 2147483648
        %v11196 = vxor.u32 %v11132, 2147483648
        %v11197 = vxor.u32 %v11133, 2147483648
        %v11198 = vxor.u32 %v11134, 2147483648
        %v11199 = vxor.u32 %v11135, 2147483648
        %v11200 = vxor.u32 %v11136, 2147483648
        %v11201 = vxor.u32 %v11137, 2147483648
        %v11202 = vxor.u32 %v11138, 2147483648
        %v11203 = vxor.u32 %v11139, 2147483648
        %v11204 = vxor.u32 %v11140, 2147483648
        %v11205 = vxor.u32 %v11141, 2147483648
        %v11206 = vxor.u32 %v11142, 2147483648
        %v11207 = vxor.u32 %v11143, 2147483648
        %v11208 = vxor.u32 %v11144, 2147483648
        %v11209 = vxor.u32 %v11145, 2147483648
        %v11210 = vxor.u32 %v11146, 2147483648
        %v11211 = vxor.u32 %v11147, 2147483648
        %v11212 = vxor.u32 %v11148, 2147483648
        %v11213 = vxor.u32 %v11149, 2147483648
        %v11214 = vxor.u32 %v11150, 2147483648
        %v11215 = vxor.u32 %v11151, 2147483648
        %v11216 = vxor.u32 %v11152, 2147483648
        %v11217 = vxor.u32 %v11153, 2147483648
        %v11218 = vxor.u32 %v11154, 2147483648
        %v11219 = vxor.u32 %v11155, 2147483648
        %v11220 = vxor.u32 %v11156, 2147483648
        %v11221 = vxor.u32 %v11157, 2147483648
        %v11222 = vxor.u32 %v11158, 2147483648
        %v11223 = vxor.u32 %v11159, 2147483648
        %v11224 = vxor.u32 %v11160, 2147483648
        %v11225 = vxor.u32 %v11161, 2147483648
        %v11226 = vxor.u32 %v11162, 2147483648
        %v11227 = vmul.f32 %v11163, 1.442695
        %v11228 = vpow.pop %v11227
        %v11229 = vmul.f32 %v11164, 1.442695
        %v11230 = vpow.pop %v11229
        %v11231 = vmul.f32 %v11165, 1.442695
        %v11232 = vpow.pop %v11231
        %v11233 = vmul.f32 %v11166, 1.442695
        %v11234 = vpow.pop %v11233
        %v11235 = vmul.f32 %v11167, 1.442695
        %v11236 = vpow.pop %v11235
        %v11237 = vmul.f32 %v11168, 1.442695
        %v11238 = vpow.pop %v11237
        %v11239 = vmul.f32 %v11169, 1.442695
        %v11240 = vpow.pop %v11239
        %v11241 = vmul.f32 %v11170, 1.442695
        %v11242 = vpow.pop %v11241
        %v11243 = vmul.f32 %v11171, 1.442695
        %v11244 = vpow.pop %v11243
        %v11245 = vmul.f32 %v11172, 1.442695
        %v11246 = vpow.pop %v11245
        %v11247 = vmul.f32 %v11173, 1.442695
        %v11248 = vpow.pop %v11247
        %v11249 = vmul.f32 %v11174, 1.442695
        %v11250 = vpow.pop %v11249
        %v11251 = vmul.f32 %v11175, 1.442695
        %v11252 = vpow.pop %v11251
        %v11253 = vmul.f32 %v11176, 1.442695
        %v11254 = vpow.pop %v11253
        %v11255 = vmul.f32 %v11177, 1.442695
        %v11256 = vpow.pop %v11255
        %v11257 = vmul.f32 %v11178, 1.442695
        %v11258 = vpow.pop %v11257
        %v11259 = vmul.f32 %v11179, 1.442695
        %v11260 = vpow.pop %v11259
        %v11261 = vmul.f32 %v11180, 1.442695
        %v11262 = vpow.pop %v11261
        %v11263 = vmul.f32 %v11181, 1.442695
        %v11264 = vpow.pop %v11263
        %v11265 = vmul.f32 %v11182, 1.442695
        %v11266 = vpow.pop %v11265
        %v11267 = vmul.f32 %v11183, 1.442695
        %v11268 = vpow.pop %v11267
        %v11269 = vmul.f32 %v11184, 1.442695
        %v11270 = vpow.pop %v11269
        %v11271 = vmul.f32 %v11185, 1.442695
        %v11272 = vpow.pop %v11271
        %v11273 = vmul.f32 %v11186, 1.442695
        %v11274 = vpow.pop %v11273
        %v11275 = vmul.f32 %v11187, 1.442695
        %v11276 = vpow.pop %v11275
        %v11277 = vmul.f32 %v11188, 1.442695
        %v11278 = vpow.pop %v11277
        %v11279 = vmul.f32 %v11189, 1.442695
        %v11280 = vpow.pop %v11279
        %v11281 = vmul.f32 %v11190, 1.442695
        %v11282 = vpow.pop %v11281
        %v11283 = vmul.f32 %v11191, 1.442695
        %v11284 = vpow.pop %v11283
        %v11285 = vmul.f32 %v11192, 1.442695
        %v11286 = vpow.pop %v11285
        %v11287 = vmul.f32 %v11193, 1.442695
        %v11288 = vpow.pop %v11287
        %v11289 = vmul.f32 %v11194, 1.442695
        %v11290 = vpow.pop %v11289
        %v11291 = vmul.f32 %v11195, 1.442695
        %v11292 = vpow.pop %v11291
        %v11293 = vmul.f32 %v11196, 1.442695
        %v11294 = vpow.pop %v11293
        %v11295 = vmul.f32 %v11197, 1.442695
        %v11296 = vpow.pop %v11295
        %v11297 = vmul.f32 %v11198, 1.442695
        %v11298 = vpow.pop %v11297
        %v11299 = vmul.f32 %v11199, 1.442695
        %v11300 = vpow.pop %v11299
        %v11301 = vmul.f32 %v11200, 1.442695
        %v11302 = vpow.pop %v11301
        %v11303 = vmul.f32 %v11201, 1.442695
        %v11304 = vpow.pop %v11303
        %v11305 = vmul.f32 %v11202, 1.442695
        %v11306 = vpow.pop %v11305
        %v11307 = vmul.f32 %v11203, 1.442695
        %v11308 = vpow.pop %v11307
        %v11309 = vmul.f32 %v11204, 1.442695
        %v11310 = vpow.pop %v11309
        %v11311 = vmul.f32 %v11205, 1.442695
        %v11312 = vpow.pop %v11311
        %v11313 = vmul.f32 %v11206, 1.442695
        %v11314 = vpow.pop %v11313
        %v11315 = vmul.f32 %v11207, 1.442695
        %v11316 = vpow.pop %v11315
        %v11317 = vmul.f32 %v11208, 1.442695
        %v11318 = vpow.pop %v11317
        %v11319 = vmul.f32 %v11209, 1.442695
        %v11320 = vpow.pop %v11319
        %v11321 = vmul.f32 %v11210, 1.442695
        %v11322 = vpow.pop %v11321
        %v11323 = vmul.f32 %v11211, 1.442695
        %v11324 = vpow.pop %v11323
        %v11325 = vmul.f32 %v11212, 1.442695
        %v11326 = vpow.pop %v11325
        %v11327 = vmul.f32 %v11213, 1.442695
        %v11328 = vpow.pop %v11327
        %v11329 = vmul.f32 %v11214, 1.442695
        %v11330 = vpow.pop %v11329
        %v11331 = vmul.f32 %v11215, 1.442695
        %v11332 = vpow.pop %v11331
        %v11333 = vmul.f32 %v11216, 1.442695
        %v11334 = vpow.pop %v11333
        %v11335 = vmul.f32 %v11217, 1.442695
        %v11336 = vpow.pop %v11335
        %v11337 = vmul.f32 %v11218, 1.442695
        %v11338 = vpow.pop %v11337
        %v11339 = vmul.f32 %v11219, 1.442695
        %v11340 = vpow.pop %v11339
        %v11341 = vmul.f32 %v11220, 1.442695
        %v11342 = vpow.pop %v11341
        %v11343 = vmul.f32 %v11221, 1.442695
        %v11344 = vpow.pop %v11343
        %v11345 = vmul.f32 %v11222, 1.442695
        %v11346 = vpow.pop %v11345
        %v11347 = vmul.f32 %v11223, 1.442695
        %v11348 = vpow.pop %v11347
        %v11349 = vmul.f32 %v11224, 1.442695
        %v11350 = vpow.pop %v11349
        %v11351 = vmul.f32 %v11225, 1.442695
        %v11352 = vpow.pop %v11351
        %v11353 = vmul.f32 %v11226, 1.442695
        %v11354 = vpow.pop %v11353
        %v11355 = vadd.f32 %v11228, 1.0
        %v11356 = vadd.f32 %v11230, 1.0
        %v11357 = vadd.f32 %v11232, 1.0
        %v11358 = vadd.f32 %v11234, 1.0
        %v11359 = vadd.f32 %v11236, 1.0
        %v11360 = vadd.f32 %v11238, 1.0
        %v11361 = vadd.f32 %v11240, 1.0
        %v11362 = vadd.f32 %v11242, 1.0
        %v11363 = vadd.f32 %v11244, 1.0
        %v11364 = vadd.f32 %v11246, 1.0
        %v11365 = vadd.f32 %v11248, 1.0
        %v11366 = vadd.f32 %v11250, 1.0
        %v11367 = vadd.f32 %v11252, 1.0
        %v11368 = vadd.f32 %v11254, 1.0
        %v11369 = vadd.f32 %v11256, 1.0
        %v11370 = vadd.f32 %v11258, 1.0
        %v11371 = vadd.f32 %v11260, 1.0
        %v11372 = vadd.f32 %v11262, 1.0
        %v11373 = vadd.f32 %v11264, 1.0
        %v11374 = vadd.f32 %v11266, 1.0
        %v11375 = vadd.f32 %v11268, 1.0
        %v11376 = vadd.f32 %v11270, 1.0
        %v11377 = vadd.f32 %v11272, 1.0
        %v11378 = vadd.f32 %v11274, 1.0
        %v11379 = vadd.f32 %v11276, 1.0
        %v11380 = vadd.f32 %v11278, 1.0
        %v11381 = vadd.f32 %v11280, 1.0
        %v11382 = vadd.f32 %v11282, 1.0
        %v11383 = vadd.f32 %v11284, 1.0
        %v11384 = vadd.f32 %v11286, 1.0
        %v11385 = vadd.f32 %v11288, 1.0
        %v11386 = vadd.f32 %v11290, 1.0
        %v11387 = vadd.f32 %v11292, 1.0
        %v11388 = vadd.f32 %v11294, 1.0
        %v11389 = vadd.f32 %v11296, 1.0
        %v11390 = vadd.f32 %v11298, 1.0
        %v11391 = vadd.f32 %v11300, 1.0
        %v11392 = vadd.f32 %v11302, 1.0
        %v11393 = vadd.f32 %v11304, 1.0
        %v11394 = vadd.f32 %v11306, 1.0
        %v11395 = vadd.f32 %v11308, 1.0
        %v11396 = vadd.f32 %v11310, 1.0
        %v11397 = vadd.f32 %v11312, 1.0
        %v11398 = vadd.f32 %v11314, 1.0
        %v11399 = vadd.f32 %v11316, 1.0
        %v11400 = vadd.f32 %v11318, 1.0
        %v11401 = vadd.f32 %v11320, 1.0
        %v11402 = vadd.f32 %v11322, 1.0
        %v11403 = vadd.f32 %v11324, 1.0
        %v11404 = vadd.f32 %v11326, 1.0
        %v11405 = vadd.f32 %v11328, 1.0
        %v11406 = vadd.f32 %v11330, 1.0
        %v11407 = vadd.f32 %v11332, 1.0
        %v11408 = vadd.f32 %v11334, 1.0
        %v11409 = vadd.f32 %v11336, 1.0
        %v11410 = vadd.f32 %v11338, 1.0
        %v11411 = vadd.f32 %v11340, 1.0
        %v11412 = vadd.f32 %v11342, 1.0
        %v11413 = vadd.f32 %v11344, 1.0
        %v11414 = vadd.f32 %v11346, 1.0
        %v11415 = vadd.f32 %v11348, 1.0
        %v11416 = vadd.f32 %v11350, 1.0
        %v11417 = vadd.f32 %v11352, 1.0
        %v11418 = vadd.f32 %v11354, 1.0
        %v11419 = vrcp.pop %v11355
        %v11420 = vmul.f32 1.0, %v11419
        %v11421 = vrcp.pop %v11356
        %v11422 = vmul.f32 1.0, %v11421
        %v11423 = vrcp.pop %v11357
        %v11424 = vmul.f32 1.0, %v11423
        %v11425 = vrcp.pop %v11358
        %v11426 = vmul.f32 1.0, %v11425
        %v11427 = vrcp.pop %v11359
        %v11428 = vmul.f32 1.0, %v11427
        %v11429 = vrcp.pop %v11360
        %v11430 = vmul.f32 1.0, %v11429
        %v11431 = vrcp.pop %v11361
        %v11432 = vmul.f32 1.0, %v11431
        %v11433 = vrcp.pop %v11362
        %v11434 = vmul.f32 1.0, %v11433
        %v11435 = vrcp.pop %v11363
        %v11436 = vmul.f32 1.0, %v11435
        %v11437 = vrcp.pop %v11364
        %v11438 = vmul.f32 1.0, %v11437
        %v11439 = vrcp.pop %v11365
        %v11440 = vmul.f32 1.0, %v11439
        %v11441 = vrcp.pop %v11366
        %v11442 = vmul.f32 1.0, %v11441
        %v11443 = vrcp.pop %v11367
        %v11444 = vmul.f32 1.0, %v11443
        %v11445 = vrcp.pop %v11368
        %v11446 = vmul.f32 1.0, %v11445
        %v11447 = vrcp.pop %v11369
        %v11448 = vmul.f32 1.0, %v11447
        %v11449 = vrcp.pop %v11370
        %v11450 = vmul.f32 1.0, %v11449
        %v11451 = vrcp.pop %v11371
        %v11452 = vmul.f32 1.0, %v11451
        %v11453 = vrcp.pop %v11372
        %v11454 = vmul.f32 1.0, %v11453
        %v11455 = vrcp.pop %v11373
        %v11456 = vmul.f32 1.0, %v11455
        %v11457 = vrcp.pop %v11374
        %v11458 = vmul.f32 1.0, %v11457
        %v11459 = vrcp.pop %v11375
        %v11460 = vmul.f32 1.0, %v11459
        %v11461 = vrcp.pop %v11376
        %v11462 = vmul.f32 1.0, %v11461
        %v11463 = vrcp.pop %v11377
        %v11464 = vmul.f32 1.0, %v11463
        %v11465 = vrcp.pop %v11378
        %v11466 = vmul.f32 1.0, %v11465
        %v11467 = vrcp.pop %v11379
        %v11468 = vmul.f32 1.0, %v11467
        %v11469 = vrcp.pop %v11380
        %v11470 = vmul.f32 1.0, %v11469
        %v11471 = vrcp.pop %v11381
        %v11472 = vmul.f32 1.0, %v11471
        %v11473 = vrcp.pop %v11382
        %v11474 = vmul.f32 1.0, %v11473
        %v11475 = vrcp.pop %v11383
        %v11476 = vmul.f32 1.0, %v11475
        %v11477 = vrcp.pop %v11384
        %v11478 = vmul.f32 1.0, %v11477
        %v11479 = vrcp.pop %v11385
        %v11480 = vmul.f32 1.0, %v11479
        %v11481 = vrcp.pop %v11386
        %v11482 = vmul.f32 1.0, %v11481
        %v11483 = vrcp.pop %v11387
        %v11484 = vmul.f32 1.0, %v11483
        %v11485 = vrcp.pop %v11388
        %v11486 = vmul.f32 1.0, %v11485
        %v11487 = vrcp.pop %v11389
        %v11488 = vmul.f32 1.0, %v11487
        %v11489 = vrcp.pop %v11390
        %v11490 = vmul.f32 1.0, %v11489
        %v11491 = vrcp.pop %v11391
        %v11492 = vmul.f32 1.0, %v11491
        %v11493 = vrcp.pop %v11392
        %v11494 = vmul.f32 1.0, %v11493
        %v11495 = vrcp.pop %v11393
        %v11496 = vmul.f32 1.0, %v11495
        %v11497 = vrcp.pop %v11394
        %v11498 = vmul.f32 1.0, %v11497
        %v11499 = vrcp.pop %v11395
        %v11500 = vmul.f32 1.0, %v11499
        %v11501 = vrcp.pop %v11396
        %v11502 = vmul.f32 1.0, %v11501
        %v11503 = vrcp.pop %v11397
        %v11504 = vmul.f32 1.0, %v11503
        %v11505 = vrcp.pop %v11398
        %v11506 = vmul.f32 1.0, %v11505
        %v11507 = vrcp.pop %v11399
        %v11508 = vmul.f32 1.0, %v11507
        %v11509 = vrcp.pop %v11400
        %v11510 = vmul.f32 1.0, %v11509
        %v11511 = vrcp.pop %v11401
        %v11512 = vmul.f32 1.0, %v11511
        %v11513 = vrcp.pop %v11402
        %v11514 = vmul.f32 1.0, %v11513
        %v11515 = vrcp.pop %v11403
        %v11516 = vmul.f32 1.0, %v11515
        %v11517 = vrcp.pop %v11404
        %v11518 = vmul.f32 1.0, %v11517
        %v11519 = vrcp.pop %v11405
        %v11520 = vmul.f32 1.0, %v11519
        %v11521 = vrcp.pop %v11406
        %v11522 = vmul.f32 1.0, %v11521
        %v11523 = vrcp.pop %v11407
        %v11524 = vmul.f32 1.0, %v11523
        %v11525 = vrcp.pop %v11408
        %v11526 = vmul.f32 1.0, %v11525
        %v11527 = vrcp.pop %v11409
        %v11528 = vmul.f32 1.0, %v11527
        %v11529 = vrcp.pop %v11410
        %v11530 = vmul.f32 1.0, %v11529
        %v11531 = vrcp.pop %v11411
        %v11532 = vmul.f32 1.0, %v11531
        %v11533 = vrcp.pop %v11412
        %v11534 = vmul.f32 1.0, %v11533
        %v11535 = vrcp.pop %v11413
        %v11536 = vmul.f32 1.0, %v11535
        %v11537 = vrcp.pop %v11414
        %v11538 = vmul.f32 1.0, %v11537
        %v11539 = vrcp.pop %v11415
        %v11540 = vmul.f32 1.0, %v11539
        %v11541 = vrcp.pop %v11416
        %v11542 = vmul.f32 1.0, %v11541
        %v11543 = vrcp.pop %v11417
        %v11544 = vmul.f32 1.0, %v11543
        %v11545 = vrcp.pop %v11418
        %v11546 = vmul.f32 1.0, %v11545
        %v11547 = vmul.f32 %v11099, %v11420
        %v11548 = vmul.f32 %v11100, %v11422
        %v11549 = vmul.f32 %v11101, %v11424
        %v11550 = vmul.f32 %v11102, %v11426
        %v11551 = vmul.f32 %v11103, %v11428
        %v11552 = vmul.f32 %v11104, %v11430
        %v11553 = vmul.f32 %v11105, %v11432
        %v11554 = vmul.f32 %v11106, %v11434
        %v11555 = vmul.f32 %v11107, %v11436
        %v11556 = vmul.f32 %v11108, %v11438
        %v11557 = vmul.f32 %v11109, %v11440
        %v11558 = vmul.f32 %v11110, %v11442
        %v11559 = vmul.f32 %v11111, %v11444
        %v11560 = vmul.f32 %v11112, %v11446
        %v11561 = vmul.f32 %v11113, %v11448
        %v11562 = vmul.f32 %v11114, %v11450
        %v11563 = vmul.f32 %v11115, %v11452
        %v11564 = vmul.f32 %v11116, %v11454
        %v11565 = vmul.f32 %v11117, %v11456
        %v11566 = vmul.f32 %v11118, %v11458
        %v11567 = vmul.f32 %v11119, %v11460
        %v11568 = vmul.f32 %v11120, %v11462
        %v11569 = vmul.f32 %v11121, %v11464
        %v11570 = vmul.f32 %v11122, %v11466
        %v11571 = vmul.f32 %v11123, %v11468
        %v11572 = vmul.f32 %v11124, %v11470
        %v11573 = vmul.f32 %v11125, %v11472
        %v11574 = vmul.f32 %v11126, %v11474
        %v11575 = vmul.f32 %v11127, %v11476
        %v11576 = vmul.f32 %v11128, %v11478
        %v11577 = vmul.f32 %v11129, %v11480
        %v11578 = vmul.f32 %v11130, %v11482
        %v11579 = vmul.f32 %v11131, %v11484
        %v11580 = vmul.f32 %v11132, %v11486
        %v11581 = vmul.f32 %v11133, %v11488
        %v11582 = vmul.f32 %v11134, %v11490
        %v11583 = vmul.f32 %v11135, %v11492
        %v11584 = vmul.f32 %v11136, %v11494
        %v11585 = vmul.f32 %v11137, %v11496
        %v11586 = vmul.f32 %v11138, %v11498
        %v11587 = vmul.f32 %v11139, %v11500
        %v11588 = vmul.f32 %v11140, %v11502
        %v11589 = vmul.f32 %v11141, %v11504
        %v11590 = vmul.f32 %v11142, %v11506
        %v11591 = vmul.f32 %v11143, %v11508
        %v11592 = vmul.f32 %v11144, %v11510
        %v11593 = vmul.f32 %v11145, %v11512
        %v11594 = vmul.f32 %v11146, %v11514
        %v11595 = vmul.f32 %v11147, %v11516
        %v11596 = vmul.f32 %v11148, %v11518
        %v11597 = vmul.f32 %v11149, %v11520
        %v11598 = vmul.f32 %v11150, %v11522
        %v11599 = vmul.f32 %v11151, %v11524
        %v11600 = vmul.f32 %v11152, %v11526
        %v11601 = vmul.f32 %v11153, %v11528
        %v11602 = vmul.f32 %v11154, %v11530
        %v11603 = vmul.f32 %v11155, %v11532
        %v11604 = vmul.f32 %v11156, %v11534
        %v11605 = vmul.f32 %v11157, %v11536
        %v11606 = vmul.f32 %v11158, %v11538
        %v11607 = vmul.f32 %v11159, %v11540
        %v11608 = vmul.f32 %v11160, %v11542
        %v11609 = vmul.f32 %v11161, %v11544
        %v11610 = vmul.f32 %v11162, %v11546
        %v11611 = vsel %vm5956, %v11547, 0.0
        %v11612 = vsel %vm5956, %v11555, 0.0
        %v11613 = vadd.f32 %v11611, %v11612
        %v11614 = vsel %vm5956, %v11563, 0.0
        %v11615 = vadd.f32 %v11613, %v11614
        %v11616 = vsel %vm5956, %v11571, 0.0
        %v11617 = vadd.f32 %v11615, %v11616
        %v11618 = vsel %vm5956, %v11579, 0.0
        %v11619 = vadd.f32 %v11617, %v11618
        %v11620 = vsel %vm5956, %v11587, 0.0
        %v11621 = vadd.f32 %v11619, %v11620
        %v11622 = vsel %vm5956, %v11595, 0.0
        %v11623 = vadd.f32 %v11621, %v11622
        %v11624 = vsel %vm5956, %v11603, 0.0
        %v11625 = vadd.f32 %v11623, %v11624
        %v11626 = vsel %vm5956, %v11548, 0.0
        %v11627 = vsel %vm5956, %v11556, 0.0
        %v11628 = vadd.f32 %v11626, %v11627
        %v11629 = vsel %vm5956, %v11564, 0.0
        %v11630 = vadd.f32 %v11628, %v11629
        %v11631 = vsel %vm5956, %v11572, 0.0
        %v11632 = vadd.f32 %v11630, %v11631
        %v11633 = vsel %vm5956, %v11580, 0.0
        %v11634 = vadd.f32 %v11632, %v11633
        %v11635 = vsel %vm5956, %v11588, 0.0
        %v11636 = vadd.f32 %v11634, %v11635
        %v11637 = vsel %vm5956, %v11596, 0.0
        %v11638 = vadd.f32 %v11636, %v11637
        %v11639 = vsel %vm5956, %v11604, 0.0
        %v11640 = vadd.f32 %v11638, %v11639
        %v11641 = vsel %vm5956, %v11549, 0.0
        %v11642 = vsel %vm5956, %v11557, 0.0
        %v11643 = vadd.f32 %v11641, %v11642
        %v11644 = vsel %vm5956, %v11565, 0.0
        %v11645 = vadd.f32 %v11643, %v11644
        %v11646 = vsel %vm5956, %v11573, 0.0
        %v11647 = vadd.f32 %v11645, %v11646
        %v11648 = vsel %vm5956, %v11581, 0.0
        %v11649 = vadd.f32 %v11647, %v11648
        %v11650 = vsel %vm5956, %v11589, 0.0
        %v11651 = vadd.f32 %v11649, %v11650
        %v11652 = vsel %vm5956, %v11597, 0.0
        %v11653 = vadd.f32 %v11651, %v11652
        %v11654 = vsel %vm5956, %v11605, 0.0
        %v11655 = vadd.f32 %v11653, %v11654
        %v11656 = vsel %vm5956, %v11550, 0.0
        %v11657 = vsel %vm5956, %v11558, 0.0
        %v11658 = vadd.f32 %v11656, %v11657
        %v11659 = vsel %vm5956, %v11566, 0.0
        %v11660 = vadd.f32 %v11658, %v11659
        %v11661 = vsel %vm5956, %v11574, 0.0
        %v11662 = vadd.f32 %v11660, %v11661
        %v11663 = vsel %vm5956, %v11582, 0.0
        %v11664 = vadd.f32 %v11662, %v11663
        %v11665 = vsel %vm5956, %v11590, 0.0
        %v11666 = vadd.f32 %v11664, %v11665
        %v11667 = vsel %vm5956, %v11598, 0.0
        %v11668 = vadd.f32 %v11666, %v11667
        %v11669 = vsel %vm5956, %v11606, 0.0
        %v11670 = vadd.f32 %v11668, %v11669
        %v11671 = vsel %vm5956, %v11551, 0.0
        %v11672 = vsel %vm5956, %v11559, 0.0
        %v11673 = vadd.f32 %v11671, %v11672
        %v11674 = vsel %vm5956, %v11567, 0.0
        %v11675 = vadd.f32 %v11673, %v11674
        %v11676 = vsel %vm5956, %v11575, 0.0
        %v11677 = vadd.f32 %v11675, %v11676
        %v11678 = vsel %vm5956, %v11583, 0.0
        %v11679 = vadd.f32 %v11677, %v11678
        %v11680 = vsel %vm5956, %v11591, 0.0
        %v11681 = vadd.f32 %v11679, %v11680
        %v11682 = vsel %vm5956, %v11599, 0.0
        %v11683 = vadd.f32 %v11681, %v11682
        %v11684 = vsel %vm5956, %v11607, 0.0
        %v11685 = vadd.f32 %v11683, %v11684
        %v11686 = vsel %vm5956, %v11552, 0.0
        %v11687 = vsel %vm5956, %v11560, 0.0
        %v11688 = vadd.f32 %v11686, %v11687
        %v11689 = vsel %vm5956, %v11568, 0.0
        %v11690 = vadd.f32 %v11688, %v11689
        %v11691 = vsel %vm5956, %v11576, 0.0
        %v11692 = vadd.f32 %v11690, %v11691
        %v11693 = vsel %vm5956, %v11584, 0.0
        %v11694 = vadd.f32 %v11692, %v11693
        %v11695 = vsel %vm5956, %v11592, 0.0
        %v11696 = vadd.f32 %v11694, %v11695
        %v11697 = vsel %vm5956, %v11600, 0.0
        %v11698 = vadd.f32 %v11696, %v11697
        %v11699 = vsel %vm5956, %v11608, 0.0
        %v11700 = vadd.f32 %v11698, %v11699
        %v11701 = vsel %vm5956, %v11553, 0.0
        %v11702 = vsel %vm5956, %v11561, 0.0
        %v11703 = vadd.f32 %v11701, %v11702
        %v11704 = vsel %vm5956, %v11569, 0.0
        %v11705 = vadd.f32 %v11703, %v11704
        %v11706 = vsel %vm5956, %v11577, 0.0
        %v11707 = vadd.f32 %v11705, %v11706
        %v11708 = vsel %vm5956, %v11585, 0.0
        %v11709 = vadd.f32 %v11707, %v11708
        %v11710 = vsel %vm5956, %v11593, 0.0
        %v11711 = vadd.f32 %v11709, %v11710
        %v11712 = vsel %vm5956, %v11601, 0.0
        %v11713 = vadd.f32 %v11711, %v11712
        %v11714 = vsel %vm5956, %v11609, 0.0
        %v11715 = vadd.f32 %v11713, %v11714
        %v11716 = vsel %vm5956, %v11554, 0.0
        %v11717 = vsel %vm5956, %v11562, 0.0
        %v11718 = vadd.f32 %v11716, %v11717
        %v11719 = vsel %vm5956, %v11570, 0.0
        %v11720 = vadd.f32 %v11718, %v11719
        %v11721 = vsel %vm5956, %v11578, 0.0
        %v11722 = vadd.f32 %v11720, %v11721
        %v11723 = vsel %vm5956, %v11586, 0.0
        %v11724 = vadd.f32 %v11722, %v11723
        %v11725 = vsel %vm5956, %v11594, 0.0
        %v11726 = vadd.f32 %v11724, %v11725
        %v11727 = vsel %vm5956, %v11602, 0.0
        %v11728 = vadd.f32 %v11726, %v11727
        %v11729 = vsel %vm5956, %v11610, 0.0
        %v11730 = vadd.f32 %v11728, %v11729
        %v11731 = vadd.f32 %v6077, %v11625
        %v11732 = vadd.f32 %v6078, %v11640
        %v11733 = vadd.f32 %v6079, %v11655
        %v11734 = vadd.f32 %v6080, %v11670
        %v11735 = vadd.f32 %v6081, %v11685
        %v11736 = vadd.f32 %v6082, %v11700
        %v11737 = vadd.f32 %v6083, %v11715
        %v11738 = vadd.f32 %v6084, %v11730
        %v11739 = vld [vmem:[%s291] sm:$0xff]
        %s11740 = scalar_lea.vmem %s291, 8
        %v11741 = vld [vmem:[%s11740] sm:$0xff]
        %v11743 = vsel %vm5956, %v11733, 0
        %v11746 = vsel %vm5956, %v11734, 0
        %11748 = vmatprep.subr.mxu0 0.0
        %11749 = vmatpush1.msra.mxu0 0.0
        %11750 = vmatprep.subr.mxu0 0.0
        %11751 = vmatpush1.msra.mxu0 0.0
        %11752 = vmatprep.subr.mxu0 0.0
        %11753 = vmatpush1.msra.mxu0 0.0
        %11754 = vmatprep.subr.mxu0 0.0
        %11755 = vmatpush1.msra.mxu0 0.0
        %11756 = vmatprep.subr.mxu0 0.0
        %11757 = vmatpush1.msra.mxu0 0.0
        %11758 = vmatprep.subr.mxu0 0.0
        %11759 = vmatpush1.msra.mxu0 0.0
        %11760 = vmatprep.subr.mxu0 0.0
        %11761 = vmatpush1.msra.mxu0 0.0
        %11762 = vmatprep.subr.mxu0 0.0
        %11763 = vmatpush1.msra.mxu0 0.0
        %11764 = vmatprep.subr.mxu0 0.0
        %11765 = vmatpush1.msra.mxu0 0.0
        %11766 = vmatprep.subr.mxu0 0.0
        %11767 = vmatpush1.msra.mxu0 0.0
        %11768 = vmatprep.subr.mxu0 0.0
        %11769 = vmatpush1.msra.mxu0 0.0
        %11770 = vmatprep.subr.mxu0 0.0
        %11771 = vmatpush1.msra.mxu0 0.0
        %11772 = vmatprep.subr.mxu0 0.0
        %11773 = vmatpush1.msra.mxu0 0.0
        %11774 = vmatprep.subr.mxu0 0.0
        %11775 = vmatpush1.msra.mxu0 0.0
        %11776 = vmatprep.subr.mxu0 0.0
        %11777 = vmatpush1.msra.mxu0 0.0
        %11778 = vmatprep.subr.mxu0 0.0
        %11779 = vmatpush1.msra.mxu0 %v11741
        %11780 = vmatprep.subr.mxu0 0.0
        %11781 = vmatpush2.msra.mxu0 0.0
        %11782 = vmatprep.subr.mxu0 0.0
        %11783 = vmatpush2.msra.mxu0 0.0
        %11784 = vmatprep.subr.mxu0 0.0
        %11785 = vmatpush2.msra.mxu0 0.0
        %11786 = vmatprep.subr.mxu0 0.0
        %11787 = vmatpush2.msra.mxu0 0.0
        %11788 = vmatprep.subr.mxu0 0.0
        %11789 = vmatpush2.msra.mxu0 0.0
        %11790 = vmatprep.subr.mxu0 0.0
        %11791 = vmatpush2.msra.mxu0 0.0
        %11792 = vmatprep.subr.mxu0 0.0
        %11793 = vmatpush2.msra.mxu0 0.0
        %11794 = vmatprep.subr.mxu0 0.0
        %11795 = vmatpush2.msra.mxu0 0.0
        %11796 = vmatprep.subr.mxu0 0.0
        %11797 = vmatpush2.msra.mxu0 0.0
        %11798 = vmatprep.subr.mxu0 0.0
        %11799 = vmatpush2.msra.mxu0 0.0
        %11800 = vmatprep.subr.mxu0 0.0
        %11801 = vmatpush2.msra.mxu0 0.0
        %11802 = vmatprep.subr.mxu0 0.0
        %11803 = vmatpush2.msra.mxu0 0.0
        %11804 = vmatprep.subr.mxu0 0.0
        %11805 = vmatpush2.msra.mxu0 0.0
        %11806 = vmatprep.subr.mxu0 0.0
        %11807 = vmatpush2.msra.mxu0 0.0
        %11808 = vmatprep.subr.mxu0 0.0
        %11809 = vmatpush2.msra.mxu0 0.0
        %11810 = vmatprep.subr.mxu0 0.0
        %11811 = vmatpush2.msra.mxu0 0.0
        %11812 = vmatprep.mubr.f32.mxu0 0.0
        %11813 = vmatmul.mubr.f32.gmra.mxu0 %v11743
        %v11814 = vpop.f32.mrf.mxu0
        %v11815 = vadd.f32 0.0, %v11814
        %v11816 = vpop.f32.mrf.mxu0
        %11817 = vmatprep.mubr.f32.mxu0 0.0
        %11818 = vmatmul.mubr.f32.gmra.mxu0 %v11746
        %v11819 = vpop.f32.mrf.mxu0
        %v11820 = vadd.f32 0.0, %v11819
        %v11821 = vpop.f32.mrf.mxu0
        %11822 = vdwg.mxu0
        %v11824 = vsel %vm5956, %v11731, 0
        %v11827 = vsel %vm5956, %v11732, 0
        %11829 = vmatprep.subr.mxu0 0.0
        %11830 = vmatpush1.msra.mxu0 0.0
        %11831 = vmatprep.subr.mxu0 0.0
        %11832 = vmatpush1.msra.mxu0 0.0
        %11833 = vmatprep.subr.mxu0 0.0
        %11834 = vmatpush1.msra.mxu0 0.0
        %11835 = vmatprep.subr.mxu0 0.0
        %11836 = vmatpush1.msra.mxu0 0.0
        %11837 = vmatprep.subr.mxu0 0.0
        %11838 = vmatpush1.msra.mxu0 0.0
        %11839 = vmatprep.subr.mxu0 0.0
        %11840 = vmatpush1.msra.mxu0 0.0
        %11841 = vmatprep.subr.mxu0 0.0
        %11842 = vmatpush1.msra.mxu0 0.0
        %11843 = vmatprep.subr.mxu0 0.0
        %11844 = vmatpush1.msra.mxu0 0.0
        %11845 = vmatprep.subr.mxu0 0.0
        %11846 = vmatpush1.msra.mxu0 0.0
        %11847 = vmatprep.subr.mxu0 0.0
        %11848 = vmatpush1.msra.mxu0 0.0
        %11849 = vmatprep.subr.mxu0 0.0
        %11850 = vmatpush1.msra.mxu0 0.0
        %11851 = vmatprep.subr.mxu0 0.0
        %11852 = vmatpush1.msra.mxu0 0.0
        %11853 = vmatprep.subr.mxu0 0.0
        %11854 = vmatpush1.msra.mxu0 0.0
        %11855 = vmatprep.subr.mxu0 0.0
        %11856 = vmatpush1.msra.mxu0 0.0
        %11857 = vmatprep.subr.mxu0 0.0
        %11858 = vmatpush1.msra.mxu0 0.0
        %11859 = vmatprep.subr.mxu0 0.0
        %11860 = vmatpush1.msra.mxu0 %v11739
        %11861 = vmatprep.subr.mxu0 0.0
        %11862 = vmatpush2.msra.mxu0 0.0
        %11863 = vmatprep.subr.mxu0 0.0
        %11864 = vmatpush2.msra.mxu0 0.0
        %11865 = vmatprep.subr.mxu0 0.0
        %11866 = vmatpush2.msra.mxu0 0.0
        %11867 = vmatprep.subr.mxu0 0.0
        %11868 = vmatpush2.msra.mxu0 0.0
        %11869 = vmatprep.subr.mxu0 0.0
        %11870 = vmatpush2.msra.mxu0 0.0
        %11871 = vmatprep.subr.mxu0 0.0
        %11872 = vmatpush2.msra.mxu0 0.0
        %11873 = vmatprep.subr.mxu0 0.0
        %11874 = vmatpush2.msra.mxu0 0.0
        %11875 = vmatprep.subr.mxu0 0.0
        %11876 = vmatpush2.msra.mxu0 0.0
        %11877 = vmatprep.subr.mxu0 0.0
        %11878 = vmatpush2.msra.mxu0 0.0
        %11879 = vmatprep.subr.mxu0 0.0
        %11880 = vmatpush2.msra.mxu0 0.0
        %11881 = vmatprep.subr.mxu0 0.0
        %11882 = vmatpush2.msra.mxu0 0.0
        %11883 = vmatprep.subr.mxu0 0.0
        %11884 = vmatpush2.msra.mxu0 0.0
        %11885 = vmatprep.subr.mxu0 0.0
        %11886 = vmatpush2.msra.mxu0 0.0
        %11887 = vmatprep.subr.mxu0 0.0
        %11888 = vmatpush2.msra.mxu0 0.0
        %11889 = vmatprep.subr.mxu0 0.0
        %11890 = vmatpush2.msra.mxu0 0.0
        %11891 = vmatprep.subr.mxu0 0.0
        %11892 = vmatpush2.msra.mxu0 0.0
        %11893 = vmatprep.mubr.f32.mxu0 0.0
        %11894 = vmatmul.mubr.f32.gmra.mxu0 %v11824
        %v11895 = vpop.f32.mrf.mxu0
        %v11896 = vadd.f32 %v11815, %v11895
        %v11897 = vpop.f32.mrf.mxu0
        %11898 = vmatprep.mubr.f32.mxu0 0.0
        %11899 = vmatmul.mubr.f32.gmra.mxu0 %v11827
        %v11900 = vpop.f32.mrf.mxu0
        %v11901 = vadd.f32 %v11820, %v11900
        %v11902 = vpop.f32.mrf.mxu0
        %11903 = vdwg.mxu0
        %s11904 = scalar_lea.vmem %s291, 16
        %v11905 = vld [vmem:[%s11904] sm:$0xff]
        %v11907 = vsel %vm5956, %v11735, 0
        %v11910 = vsel %vm5956, %v11736, 0
        %11912 = vmatprep.subr.mxu0 0.0
        %11913 = vmatpush1.msra.mxu0 0.0
        %11914 = vmatprep.subr.mxu0 0.0
        %11915 = vmatpush1.msra.mxu0 0.0
        %11916 = vmatprep.subr.mxu0 0.0
        %11917 = vmatpush1.msra.mxu0 0.0
        %11918 = vmatprep.subr.mxu0 0.0
        %11919 = vmatpush1.msra.mxu0 0.0
        %11920 = vmatprep.subr.mxu0 0.0
        %11921 = vmatpush1.msra.mxu0 0.0
        %11922 = vmatprep.subr.mxu0 0.0
        %11923 = vmatpush1.msra.mxu0 0.0
        %11924 = vmatprep.subr.mxu0 0.0
        %11925 = vmatpush1.msra.mxu0 0.0
        %11926 = vmatprep.subr.mxu0 0.0
        %11927 = vmatpush1.msra.mxu0 0.0
        %11928 = vmatprep.subr.mxu0 0.0
        %11929 = vmatpush1.msra.mxu0 0.0
        %11930 = vmatprep.subr.mxu0 0.0
        %11931 = vmatpush1.msra.mxu0 0.0
        %11932 = vmatprep.subr.mxu0 0.0
        %11933 = vmatpush1.msra.mxu0 0.0
        %11934 = vmatprep.subr.mxu0 0.0
        %11935 = vmatpush1.msra.mxu0 0.0
        %11936 = vmatprep.subr.mxu0 0.0
        %11937 = vmatpush1.msra.mxu0 0.0
        %11938 = vmatprep.subr.mxu0 0.0
        %11939 = vmatpush1.msra.mxu0 0.0
        %11940 = vmatprep.subr.mxu0 0.0
        %11941 = vmatpush1.msra.mxu0 0.0
        %11942 = vmatprep.subr.mxu0 0.0
        %11943 = vmatpush1.msra.mxu0 %v11905
        %11944 = vmatprep.subr.mxu0 0.0
        %11945 = vmatpush2.msra.mxu0 0.0
        %11946 = vmatprep.subr.mxu0 0.0
        %11947 = vmatpush2.msra.mxu0 0.0
        %11948 = vmatprep.subr.mxu0 0.0
        %11949 = vmatpush2.msra.mxu0 0.0
        %11950 = vmatprep.subr.mxu0 0.0
        %11951 = vmatpush2.msra.mxu0 0.0
        %11952 = vmatprep.subr.mxu0 0.0
        %11953 = vmatpush2.msra.mxu0 0.0
        %11954 = vmatprep.subr.mxu0 0.0
        %11955 = vmatpush2.msra.mxu0 0.0
        %11956 = vmatprep.subr.mxu0 0.0
        %11957 = vmatpush2.msra.mxu0 0.0
        %11958 = vmatprep.subr.mxu0 0.0
        %11959 = vmatpush2.msra.mxu0 0.0
        %11960 = vmatprep.subr.mxu0 0.0
        %11961 = vmatpush2.msra.mxu0 0.0
        %11962 = vmatprep.subr.mxu0 0.0
        %11963 = vmatpush2.msra.mxu0 0.0
        %11964 = vmatprep.subr.mxu0 0.0
        %11965 = vmatpush2.msra.mxu0 0.0
        %11966 = vmatprep.subr.mxu0 0.0
        %11967 = vmatpush2.msra.mxu0 0.0
        %11968 = vmatprep.subr.mxu0 0.0
        %11969 = vmatpush2.msra.mxu0 0.0
        %11970 = vmatprep.subr.mxu0 0.0
        %11971 = vmatpush2.msra.mxu0 0.0
        %11972 = vmatprep.subr.mxu0 0.0
        %11973 = vmatpush2.msra.mxu0 0.0
        %11974 = vmatprep.subr.mxu0 0.0
        %11975 = vmatpush2.msra.mxu0 0.0
        %11976 = vmatprep.mubr.f32.mxu0 0.0
        %11977 = vmatmul.mubr.f32.gmra.mxu0 %v11907
        %v11978 = vpop.f32.mrf.mxu0
        %v11979 = vadd.f32 0.0, %v11978
        %v11980 = vpop.f32.mrf.mxu0
        %11981 = vmatprep.mubr.f32.mxu0 0.0
        %11982 = vmatmul.mubr.f32.gmra.mxu0 %v11910
        %v11983 = vpop.f32.mrf.mxu0
        %v11984 = vadd.f32 0.0, %v11983
        %v11985 = vpop.f32.mrf.mxu0
        %11986 = vdwg.mxu0
        %v11987 = vadd.f32 %v11896, %v11979
        %v11988 = vadd.f32 %v11901, %v11984
        %s11989 = scalar_lea.vmem %s291, 24
        %v11990 = vld [vmem:[%s11989] sm:$0xff]
        %v11992 = vsel %vm5956, %v11737, 0
        %v11995 = vsel %vm5956, %v11738, 0
        %11997 = vmatprep.subr.mxu0 0.0
        %11998 = vmatpush1.msra.mxu0 0.0
        %11999 = vmatprep.subr.mxu0 0.0
        %12000 = vmatpush1.msra.mxu0 0.0
        %12001 = vmatprep.subr.mxu0 0.0
        %12002 = vmatpush1.msra.mxu0 0.0
        %12003 = vmatprep.subr.mxu0 0.0
        %12004 = vmatpush1.msra.mxu0 0.0
        %12005 = vmatprep.subr.mxu0 0.0
        %12006 = vmatpush1.msra.mxu0 0.0
        %12007 = vmatprep.subr.mxu0 0.0
        %12008 = vmatpush1.msra.mxu0 0.0
        %12009 = vmatprep.subr.mxu0 0.0
        %12010 = vmatpush1.msra.mxu0 0.0
        %12011 = vmatprep.subr.mxu0 0.0
        %12012 = vmatpush1.msra.mxu0 0.0
        %12013 = vmatprep.subr.mxu0 0.0
        %12014 = vmatpush1.msra.mxu0 0.0
        %12015 = vmatprep.subr.mxu0 0.0
        %12016 = vmatpush1.msra.mxu0 0.0
        %12017 = vmatprep.subr.mxu0 0.0
        %12018 = vmatpush1.msra.mxu0 0.0
        %12019 = vmatprep.subr.mxu0 0.0
        %12020 = vmatpush1.msra.mxu0 0.0
        %12021 = vmatprep.subr.mxu0 0.0
        %12022 = vmatpush1.msra.mxu0 0.0
        %12023 = vmatprep.subr.mxu0 0.0
        %12024 = vmatpush1.msra.mxu0 0.0
        %12025 = vmatprep.subr.mxu0 0.0
        %12026 = vmatpush1.msra.mxu0 0.0
        %12027 = vmatprep.subr.mxu0 0.0
        %12028 = vmatpush1.msra.mxu0 %v11990
        %12029 = vmatprep.subr.mxu0 0.0
        %12030 = vmatpush2.msra.mxu0 0.0
        %12031 = vmatprep.subr.mxu0 0.0
        %12032 = vmatpush2.msra.mxu0 0.0
        %12033 = vmatprep.subr.mxu0 0.0
        %12034 = vmatpush2.msra.mxu0 0.0
        %12035 = vmatprep.subr.mxu0 0.0
        %12036 = vmatpush2.msra.mxu0 0.0
        %12037 = vmatprep.subr.mxu0 0.0
        %12038 = vmatpush2.msra.mxu0 0.0
        %12039 = vmatprep.subr.mxu0 0.0
        %12040 = vmatpush2.msra.mxu0 0.0
        %12041 = vmatprep.subr.mxu0 0.0
        %12042 = vmatpush2.msra.mxu0 0.0
        %12043 = vmatprep.subr.mxu0 0.0
        %12044 = vmatpush2.msra.mxu0 0.0
        %12045 = vmatprep.subr.mxu0 0.0
        %12046 = vmatpush2.msra.mxu0 0.0
        %12047 = vmatprep.subr.mxu0 0.0
        %12048 = vmatpush2.msra.mxu0 0.0
        %12049 = vmatprep.subr.mxu0 0.0
        %12050 = vmatpush2.msra.mxu0 0.0
        %12051 = vmatprep.subr.mxu0 0.0
        %12052 = vmatpush2.msra.mxu0 0.0
        %12053 = vmatprep.subr.mxu0 0.0
        %12054 = vmatpush2.msra.mxu0 0.0
        %12055 = vmatprep.subr.mxu0 0.0
        %12056 = vmatpush2.msra.mxu0 0.0
        %12057 = vmatprep.subr.mxu0 0.0
        %12058 = vmatpush2.msra.mxu0 0.0
        %12059 = vmatprep.subr.mxu0 0.0
        %12060 = vmatpush2.msra.mxu0 0.0
        %12061 = vmatprep.mubr.f32.mxu0 0.0
        %12062 = vmatmul.mubr.f32.gmra.mxu0 %v11992
        %v12063 = vpop.f32.mrf.mxu0
        %v12064 = vadd.f32 0.0, %v12063
        %v12065 = vpop.f32.mrf.mxu0
        %12066 = vmatprep.mubr.f32.mxu0 0.0
        %12067 = vmatmul.mubr.f32.gmra.mxu0 %v11995
        %v12068 = vpop.f32.mrf.mxu0
        %v12069 = vadd.f32 0.0, %v12068
        %v12070 = vpop.f32.mrf.mxu0
        %12071 = vdwg.mxu0
        %v12072 = vadd.f32 %v11987, %v12064
        %v12073 = vadd.f32 %v11988, %v12069
        %v12074 = vadd.f32 %v12072, %v12073
        %v12075 = vrot.slane %v12074, 4
        %v12076 = vadd.f32 %v12074, %v12075
        %v12077 = vrot.slane %v12076, 2
        %v12078 = vadd.f32 %v12076, %v12077
        %v12079 = vrot.slane %v12078, 1
        %v12080 = vadd.f32 %v12078, %v12079
        %v12081 = vmul.f32 %v12080, 0.00390625
        %p12082 = scmp.eq.s32.totalorder %s22, 0
        // Predicated region
        $region41: #{tpu_custom_call.1} parent=39 // pred_check
          %p12083 = pneg %p12082
        $region42: #{tpu_custom_call.1} parent=39 // pred_check_branch
          %12085 = sbr.rel (%p12083) target = $region44
        $region43: #{tpu_custom_call.1} parent=39 // pred_region
          %v12086 = vld [vmem:[%s4] sm:$0x1]
          %s12087 = scalar_lea.vmem [#allocation2], %s21
          %12088 = vst [vmem:[%s12087] sm:$0x1] %v12086
        $region44: #{tpu_custom_call.1} parent=39 // pred_fallthru
          _
        %s12089 = scalar_lea.vmem [#allocation2], %s21
        %v12090 = vld [vmem:[%s12089] sm:$0x1]
        %v12091 = vadd.f32 %v12090, %v12081
        %12092 = vst [vmem:[%s12089] sm:$0x1] %v12091
        // Predicated region
        $region45: #{tpu_custom_call.1} parent=39 // pred_check
          %p12093 = pneg %p159
        $region46: #{tpu_custom_call.1} parent=39 // pred_check_branch
          %12095 = sbr.rel (%p12093) target = $region48
        $region47: #{tpu_custom_call.1} parent=39 // pred_region
          %s12097 = ssub.s32 32, 32
          %12098 = vsyncadd [#allocation3], %s12097
          %s12100 = sshll.u32 [#allocation2], 4
          %s12101 = int_to_ptr.vmem [resolvable:$true] %s12100
          %12103 = dma.vmem_to_hbm [thread:$0]  %s12101, 32, %s5, [#allocation3]
        $region48: #{tpu_custom_call.1} parent=39 // pred_fallthru
          _
        // Predicated region
        $region49: #{tpu_custom_call.1} parent=39 // pred_check
          %p12104 = pneg %p159
        $region50: #{tpu_custom_call.1} parent=39 // pred_check_branch
          %12106 = sbr.rel (%p12104) target = $region52
        $region51: #{tpu_custom_call.1} parent=39 // pred_region
          %12107 = dma.done [#allocation3], 32
        $region52: #{tpu_custom_call.1} parent=39 // pred_fallthru
          _
      $region40: #{tpu_custom_call.1} parent=5 // pred_fallthru
        _
      %p12108 = scmp.le.s32.totalorder 2, %s12
      // Predicated region
      $region53: #{tpu_custom_call.1} parent=5 // pred_check
        %p12109 = pneg %p12108
      $region54: #{tpu_custom_call.1} parent=5 // pred_check_branch
        %12111 = sbr.rel (%p12109) target = $region56
      $region55: #{tpu_custom_call.1} parent=5 // pred_region
        %s12112 = ssub.s32 %s12, 2
      $region56: #{tpu_custom_call.1} parent=5 // pred_fallthru
        _
    $region6: #{tpu_custom_call.1} parent=1 // loop_footer
      %s16 = sadd.s32 1, %s12
    $region7: #{tpu_custom_call.1} parent=1 // loop_footer_branch
      %11 = sbr.rel target = $region3
    $region8: #{tpu_custom_call.1} parent=1 // loop_exit
      _
    %12113 = vsyncpa [#allocation3], 1
    %s12114 = scalar_lea.sflag [#allocation3], 1
    %12115 = vsyncpa %s12114, 1

</llo_original>
